<compile_context>
chip_gen: v7x
topology: tpu7x:2x2x1
jax: 0.10.0
libtpu: 0.0.40
codegen_flags: <defaults>
</compile_context>

<pallas_src>
import functools
import math

import jax
import jax.numpy as jnp
from jax.experimental import pallas as pl
from jax.experimental.pallas import tpu as pltpu


_BN_EPS = 1e-5
_BN_SCALE = 1.0 / math.sqrt(1.0 + _BN_EPS)   # eval-mode BN with default running stats


# ---------------------------------------------------------------------------
# Fully fused MBConv block kernel (one image per grid step)
# ---------------------------------------------------------------------------

def _mbconv_block_kernel(x_ref, we_ref, b1_ref, wd_ref, b2_ref,
                         sw1_ref, sb1_ref, sw2_ref, sb2_ref,
                         wp_ref, b3_ref, o_ref, pad_ref,
                         *, k, s, H, W, has_residual):
    """expand(1x1)+BN+ReLU -> zero-pad -> depthwise kxk+BN+ReLU -> SE pool/gate
    -> gate*y -> proj(1x1)+BN (+skip).  Everything stays in VMEM per image."""
    pad = (k - 1) // 2
    Hs, Ws = H // s, W // s                              # per-phase spatial size
    Ho = (H + 2 * pad - k) // s + 1
    Wo = (W + 2 * pad - k) // s + 1
    mid = we_ref.shape[1]
    P = s * s

    # 1) expand 1x1 conv (+ folded BN) + ReLU; result never leaves VMEM.
    x = x_ref[0]                                                     # (H*W, cin) bf16
    h = jnp.dot(x, we_ref[...], preferred_element_type=jnp.float32) + b1_ref[...]
    h = jnp.maximum(h, 0.0)                                          # (H*W, mid) f32
    h4 = h.reshape(P, Hs, Ws, mid)                                   # phase-major rows

    # 2) zero-pad in VMEM: place each stride-phase of h into the padded scratch.
    pad_ref[...] = jnp.zeros_like(pad_ref)
    for p in range(s):
        for q in range(s):
            sp, sq = (p - pad) % s, (q - pad) % s        # source (unpadded) phase
            ro, co = (sp + pad - p) // s, (sq + pad - q) // s
            pad_ref[p * s + q, ro:ro + Hs, co:co + Ws, :] = h4[sp * s + sq]

    # 3) depthwise k*k conv (+ folded BN) + ReLU; every tap is a unit-stride slice.
    w_dw = wd_ref[...]                                               # (k*k, mid) f32
    acc = jnp.zeros((Ho, Wo, mid), jnp.float32)
    for i in range(k):
        for j in range(k):
            ph = (i % s) * s + (j % s)
            di, dj = i // s, j // s
            acc = acc + pad_ref[ph, di:di + Ho, dj:dj + Wo, :] * w_dw[i * k + j]
    y = jnp.maximum(acc + b2_ref[...], 0.0).reshape(Ho * Wo, mid)    # f32

    # 4) SE: global average pool + FC -> ReLU -> FC -> sigmoid, fused in-kernel.
    pooled = jnp.sum(y, axis=0, keepdims=True) * (1.0 / (Ho * Wo))   # (1, mid)
    g = jnp.dot(pooled, sw1_ref[...], preferred_element_type=jnp.float32) + sb1_ref[...]
    g = jnp.maximum(g, 0.0)
    g = jnp.dot(g, sw2_ref[...], preferred_element_type=jnp.float32) + sb2_ref[...]
    gate = pl.reciprocal(1.0 + jnp.exp(-g), approx=True)             # sigmoid (EUP)

    # 5) channel gate + projection 1x1 conv (+ folded BN) + optional fused skip.
    yg = (y * gate).astype(jnp.bfloat16)                             # (Ho*Wo, mid)
    out = jnp.dot(yg, wp_ref[...], preferred_element_type=jnp.float32) + b3_ref[...]
    if has_residual:
        out = out + x.astype(jnp.float32)        # eval-mode dropout == identity
    o_ref[0] = out.astype(o_ref.dtype)


def mbconv_block(x, p):
    """x: (N, H, W, cin) bf16 NHWC -> (N, Ho, Wo, out_c) bf16."""
    N, H, W, cin = x.shape
    k, s = p["k"], p["stride"]
    pad = (k - 1) // 2
    assert H % s == 0 and W % s == 0, "downsample blocks need even H/W"
    mid = p["w_exp"].shape[1]
    inter = p["se_w1"].shape[1]
    out_c = p["w_proj"].shape[1]
    Ho = (H + 2 * pad - k) // s + 1
    Wo = (W + 2 * pad - k) // s + 1

    # Present rows in stride-phase-major order so in-kernel slices stay
    # unit-stride. This is layout plumbing on the NARROW cin tensor only
    # (identity for stride-1 blocks); the wide mid tensor never leaves VMEM.
    if s == 1:
        rows = x.reshape(N, H * W, cin)
    else:
        rows = (x.reshape(N, H // s, s, W // s, s, cin)
                 .transpose(0, 2, 4, 1, 3, 5)
                 .reshape(N, H * W, cin))

    kern = functools.partial(_mbconv_block_kernel, k=k, s=s, H=H, W=W,
                             has_residual=p["residual"])
    full2 = lambda n: (0, 0)
    out = pl.pallas_call(
        kern,
        out_shape=jax.ShapeDtypeStruct((N, Ho * Wo, out_c), jnp.bfloat16),
        grid=(N,),
        in_specs=[
            pl.BlockSpec((1, H * W, cin), lambda n: (n, 0, 0)),
            pl.BlockSpec((cin, mid), full2),
            pl.BlockSpec((1, mid), full2),
            pl.BlockSpec((k * k, mid), full2),
            pl.BlockSpec((1, mid), full2),
            pl.BlockSpec((mid, inter), full2),
            pl.BlockSpec((1, inter), full2),
            pl.BlockSpec((inter, mid), full2),
            pl.BlockSpec((1, mid), full2),
            pl.BlockSpec((mid, out_c), full2),
            pl.BlockSpec((1, out_c), full2),
        ],
        out_specs=pl.BlockSpec((1, Ho * Wo, out_c), lambda n: (n, 0, 0)),
        scratch_shapes=[pltpu.VMEM(
            (s * s, (H + 2 * pad) // s, (W + 2 * pad) // s, mid), jnp.float32)],
        compiler_params=pltpu.CompilerParams(dimension_semantics=("parallel",)),
    )(rows.astype(jnp.bfloat16),
      p["w_exp"], p["b1"].reshape(1, mid),
      p["w_dw"], p["b2"].reshape(1, mid),
      p["se_w1"], p["se_b1"].reshape(1, inter),
      p["se_w2"], p["se_b2"].reshape(1, mid),
      p["w_proj"], p["b3"].reshape(1, out_c))
    return out.reshape(N, Ho, Wo, out_c)


# ---------------------------------------------------------------------------
# Parameters (deterministic, synthetic) and forward pass
# ---------------------------------------------------------------------------

def make_mbconv_stage_params(in_channel, out_channel, kernel_size,
                             channel_expand_factor, num_layers,
                             stage_downsample=True, seed=0):
    root = jax.random.PRNGKey(seed)
    counter = [0]

    def winit(shape, fan_in):
        counter[0] += 1
        key = jax.random.fold_in(root, counter[0])
        return jax.random.normal(key, shape, jnp.float32) * (1.0 / math.sqrt(fan_in))

    blocks = []
    for i in range(num_layers):
        cin = in_channel if i == 0 else out_channel
        keepdim = not (i == num_layers - 1 and stage_downsample)
        mid = cin * channel_expand_factor
        inter = int(mid / channel_expand_factor // 4)      # SE_block ratio = 4
        blocks.append(dict(
            k=kernel_size,
            stride=1 if keepdim else 2,
            residual=bool(keepdim and cin == out_channel),
            # eval-mode BN scale folded into conv weights; BN beta (=0) kept as bias
            w_exp=(winit((cin, mid), cin) * _BN_SCALE).astype(jnp.bfloat16),
            b1=jnp.zeros((mid,), jnp.float32),
            w_dw=(winit((kernel_size * kernel_size, mid),
                        kernel_size * kernel_size) * _BN_SCALE).astype(jnp.float32),
            b2=jnp.zeros((mid,), jnp.float32),
            se_w1=winit((mid, inter), mid),
            se_b1=jnp.zeros((inter,), jnp.float32),
            se_w2=winit((inter, mid), inter),
            se_b2=jnp.zeros((mid,), jnp.float32),
            w_proj=(winit((mid, out_channel), mid) * _BN_SCALE).astype(jnp.bfloat16),
            b3=jnp.zeros((out_channel,), jnp.float32),
        ))
    return blocks


def mbconv_stage_forward(params, x_nchw):
    x = jnp.transpose(x_nchw, (0, 2, 3, 1)).astype(jnp.bfloat16)    # NCHW -> NHWC
    for blk in params:
        x = mbconv_block(x, blk)
    return jnp.transpose(x, (0, 3, 1, 2)).astype(jnp.float32)       # back to NCHW


if __name__ == "__main__":
    # MBConv_stage(in=24, out=24, kernel=3, expand=6, num_layers=2, downsample=True):
    # block 0 keeps 16x16 and exercises the fused skip, block 1 downsamples to 8x8.
    IN_C, OUT_C, KSIZE, EXPAND, LAYERS = 24, 24, 3, 6, 2
    params = make_mbconv_stage_params(IN_C, OUT_C, KSIZE, EXPAND, LAYERS,
                                      stage_downsample=True, seed=0)
    x = jax.random.normal(jax.random.PRNGKey(0), (2, IN_C, 16, 16), jnp.float32)
    fwd = jax.jit(functools.partial(mbconv_stage_forward, params))
    out = jax.block_until_ready(fwd(x))
    assert out.shape == (2, OUT_C, 8, 8), out.shape
    assert bool(jnp.all(jnp.isfinite(out)))
    print("KERNEL_OK")
</pallas_src>

<mosaic_0001>
module attributes {stable_mosaic.version = 11 : i64} {
  func.func @_mbconv_block_kernel(%arg0: i32, %arg1: memref<1x256x24xbf16, #tpu.memory_space<vmem>>, %arg2: memref<24x144xbf16, #tpu.memory_space<vmem>>, %arg3: memref<1x144xf32, #tpu.memory_space<vmem>>, %arg4: memref<9x144xf32, #tpu.memory_space<vmem>>, %arg5: memref<1x144xf32, #tpu.memory_space<vmem>>, %arg6: memref<144x6xf32, #tpu.memory_space<vmem>>, %arg7: memref<1x6xf32, #tpu.memory_space<vmem>>, %arg8: memref<6x144xf32, #tpu.memory_space<vmem>>, %arg9: memref<1x144xf32, #tpu.memory_space<vmem>>, %arg10: memref<144x24xbf16, #tpu.memory_space<vmem>>, %arg11: memref<1x24xf32, #tpu.memory_space<vmem>>, %arg12: memref<1x64x24xbf16, #tpu.memory_space<vmem>>, %arg13: memref<4x9x9x144xf32, #tpu.memory_space<vmem>>) attributes {dimension_semantics = [#tpu.dimension_semantics<parallel>], iteration_bounds = array<i64: 2>, scalar_prefetch = 0 : i64, scratch_operands = 1 : i64, tpu.core_type = #tpu.core_type<tc>, window_params = [{transform_indices = @transform_0, window_bounds = array<i64: 1, 256, 24>}, {pipeline_mode = #tpu.pipeline_mode<synchronous>, transform_indices = @transform_1, window_bounds = array<i64: 24, 144>}, {pipeline_mode = #tpu.pipeline_mode<synchronous>, transform_indices = @transform_2, window_bounds = array<i64: 1, 144>}, {pipeline_mode = #tpu.pipeline_mode<synchronous>, transform_indices = @transform_3, window_bounds = array<i64: 9, 144>}, {pipeline_mode = #tpu.pipeline_mode<synchronous>, transform_indices = @transform_4, window_bounds = array<i64: 1, 144>}, {pipeline_mode = #tpu.pipeline_mode<synchronous>, transform_indices = @transform_5, window_bounds = array<i64: 144, 6>}, {pipeline_mode = #tpu.pipeline_mode<synchronous>, transform_indices = @transform_6, window_bounds = array<i64: 1, 6>}, {pipeline_mode = #tpu.pipeline_mode<synchronous>, transform_indices = @transform_7, window_bounds = array<i64: 6, 144>}, {pipeline_mode = #tpu.pipeline_mode<synchronous>, transform_indices = @transform_8, window_bounds = array<i64: 1, 144>}, {pipeline_mode = #tpu.pipeline_mode<synchronous>, transform_indices = @transform_9, window_bounds = array<i64: 144, 24>}, {pipeline_mode = #tpu.pipeline_mode<synchronous>, transform_indices = @transform_10, window_bounds = array<i64: 1, 24>}, {transform_indices = @transform_11, window_bounds = array<i64: 1, 64, 24>}]} {
    %c0 = arith.constant 0 : index
    %c0_0 = arith.constant 0 : index
    %c0_1 = arith.constant 0 : index
    %0 = vector.load %arg1[%c0, %c0_0, %c0_1] : memref<1x256x24xbf16, #tpu.memory_space<vmem>>, vector<1x256x24xbf16>
    %1 = vector.shape_cast %0 : vector<1x256x24xbf16> to vector<256x24xbf16>
    %c0_2 = arith.constant 0 : index
    %c0_3 = arith.constant 0 : index
    %2 = vector.load %arg2[%c0_2, %c0_3] : memref<24x144xbf16, #tpu.memory_space<vmem>>, vector<24x144xbf16>
    %cst = arith.constant dense<0.000000e+00> : vector<256x144xf32>
    %3 = tpu.matmul %1, %2, %cst {dimension_numbers = #tpu.dot_dimension_numbers<[1], [0], [0], [1], [0, 0, 1, 1], [], []>} : vector<256x24xbf16>, vector<24x144xbf16>, vector<256x144xf32> -> vector<256x144xf32>
    %c0_4 = arith.constant 0 : index
    %c0_5 = arith.constant 0 : index
    %4 = vector.load %arg3[%c0_4, %c0_5] : memref<1x144xf32, #tpu.memory_space<vmem>>, vector<1x144xf32>
    %5 = vector.broadcast %4 : vector<1x144xf32> to vector<256x144xf32>
    %6 = arith.addf %3, %5 : vector<256x144xf32>
    %cst_6 = arith.constant 0.000000e+00 : f32
    %7 = vector.broadcast %cst_6 : f32 to vector<256x144xf32>
    %8 = arith.maximumf %6, %7 : vector<256x144xf32>
    %9 = vector.shape_cast %8 : vector<256x144xf32> to vector<4x8x8x144xf32>
    %cst_7 = arith.constant 0.000000e+00 : f32
    %10 = vector.broadcast %cst_7 : f32 to vector<4x9x9x144xf32>
    %c0_8 = arith.constant 0 : index
    %c0_9 = arith.constant 0 : index
    %c0_10 = arith.constant 0 : index
    %c0_11 = arith.constant 0 : index
    %11 = vector.load %arg13[%c0_8, %c0_9, %c0_10, %c0_11] : memref<4x9x9x144xf32, #tpu.memory_space<vmem>>, vector<4x9x9x144xf32>
    tpu.vector_store %arg13[%c0_8, %c0_9, %c0_10, %c0_11], %10 {strides = array<i32>} : memref<4x9x9x144xf32, #tpu.memory_space<vmem>>, vector<4x9x9x144xf32>,
    %12 = vector.extract_strided_slice %9 {offsets = [3, 0, 0, 0], sizes = [1, 8, 8, 144], strides = [1, 1, 1, 1]} : vector<4x8x8x144xf32> to vector<1x8x8x144xf32>
    %13 = vector.shape_cast %12 : vector<1x8x8x144xf32> to vector<8x8x144xf32>
    %c0_12 = arith.constant 0 : index
    %c1 = arith.constant 1 : index
    %c1_13 = arith.constant 1 : index
    %c0_14 = arith.constant 0 : index
    %14 = vector.load %arg13[%c0_12, %c1, %c1_13, %c0_14] : memref<4x9x9x144xf32, #tpu.memory_space<vmem>>, vector<1x8x8x144xf32>
    %15 = vector.shape_cast %14 : vector<1x8x8x144xf32> to vector<8x8x144xf32>
    %16 = vector.shape_cast %13 : vector<8x8x144xf32> to vector<1x8x8x144xf32>
    tpu.vector_store %arg13[%c0_12, %c1, %c1_13, %c0_14], %16 {strides = array<i32>} : memref<4x9x9x144xf32, #tpu.memory_space<vmem>>, vector<1x8x8x144xf32>,
    %17 = vector.extract_strided_slice %9 {offsets = [2, 0, 0, 0], sizes = [1, 8, 8, 144], strides = [1, 1, 1, 1]} : vector<4x8x8x144xf32> to vector<1x8x8x144xf32>
    %18 = vector.shape_cast %17 : vector<1x8x8x144xf32> to vector<8x8x144xf32>
    %c1_15 = arith.constant 1 : index
    %c1_16 = arith.constant 1 : index
    %c0_17 = arith.constant 0 : index
    %c0_18 = arith.constant 0 : index
    %19 = vector.load %arg13[%c1_15, %c1_16, %c0_17, %c0_18] : memref<4x9x9x144xf32, #tpu.memory_space<vmem>>, vector<1x8x8x144xf32>
    %20 = vector.shape_cast %19 : vector<1x8x8x144xf32> to vector<8x8x144xf32>
    %21 = vector.shape_cast %18 : vector<8x8x144xf32> to vector<1x8x8x144xf32>
    tpu.vector_store %arg13[%c1_15, %c1_16, %c0_17, %c0_18], %21 {strides = array<i32>} : memref<4x9x9x144xf32, #tpu.memory_space<vmem>>, vector<1x8x8x144xf32>,
    %22 = vector.extract_strided_slice %9 {offsets = [1, 0, 0, 0], sizes = [1, 8, 8, 144], strides = [1, 1, 1, 1]} : vector<4x8x8x144xf32> to vector<1x8x8x144xf32>
    %23 = vector.shape_cast %22 : vector<1x8x8x144xf32> to vector<8x8x144xf32>
    %c2 = arith.constant 2 : index
    %c0_19 = arith.constant 0 : index
    %c1_20 = arith.constant 1 : index
    %c0_21 = arith.constant 0 : index
    %24 = vector.load %arg13[%c2, %c0_19, %c1_20, %c0_21] : memref<4x9x9x144xf32, #tpu.memory_space<vmem>>, vector<1x8x8x144xf32>
    %25 = vector.shape_cast %24 : vector<1x8x8x144xf32> to vector<8x8x144xf32>
    %26 = vector.shape_cast %23 : vector<8x8x144xf32> to vector<1x8x8x144xf32>
    tpu.vector_store %arg13[%c2, %c0_19, %c1_20, %c0_21], %26 {strides = array<i32>} : memref<4x9x9x144xf32, #tpu.memory_space<vmem>>, vector<1x8x8x144xf32>,
    %27 = vector.extract_strided_slice %9 {offsets = [0, 0, 0, 0], sizes = [1, 8, 8, 144], strides = [1, 1, 1, 1]} : vector<4x8x8x144xf32> to vector<1x8x8x144xf32>
    %28 = vector.shape_cast %27 : vector<1x8x8x144xf32> to vector<8x8x144xf32>
    %c3 = arith.constant 3 : index
    %c0_22 = arith.constant 0 : index
    %c0_23 = arith.constant 0 : index
    %c0_24 = arith.constant 0 : index
    %29 = vector.load %arg13[%c3, %c0_22, %c0_23, %c0_24] : memref<4x9x9x144xf32, #tpu.memory_space<vmem>>, vector<1x8x8x144xf32>
    %30 = vector.shape_cast %29 : vector<1x8x8x144xf32> to vector<8x8x144xf32>
    %31 = vector.shape_cast %28 : vector<8x8x144xf32> to vector<1x8x8x144xf32>
    tpu.vector_store %arg13[%c3, %c0_22, %c0_23, %c0_24], %31 {strides = array<i32>} : memref<4x9x9x144xf32, #tpu.memory_space<vmem>>, vector<1x8x8x144xf32>,
    %c0_25 = arith.constant 0 : index
    %c0_26 = arith.constant 0 : index
    %32 = vector.load %arg4[%c0_25, %c0_26] : memref<9x144xf32, #tpu.memory_space<vmem>>, vector<9x144xf32>
    %cst_27 = arith.constant 0.000000e+00 : f32
    %33 = vector.broadcast %cst_27 : f32 to vector<8x8x144xf32>
    %c0_28 = arith.constant 0 : index
    %c0_29 = arith.constant 0 : index
    %c0_30 = arith.constant 0 : index
    %c0_31 = arith.constant 0 : index
    %34 = vector.load %arg13[%c0_28, %c0_29, %c0_30, %c0_31] : memref<4x9x9x144xf32, #tpu.memory_space<vmem>>, vector<1x8x8x144xf32>
    %35 = vector.shape_cast %34 : vector<1x8x8x144xf32> to vector<8x8x144xf32>
    %36 = vector.extract_strided_slice %32 {offsets = [0, 0], sizes = [1, 144], strides = [1, 1]} : vector<9x144xf32> to vector<1x144xf32>
    %37 = vector.shape_cast %36 : vector<1x144xf32> to vector<144xf32>
    %38 = vector.shape_cast %37 : vector<144xf32> to vector<1x1x144xf32>
    %39 = vector.broadcast %38 : vector<1x1x144xf32> to vector<8x8x144xf32>
    %40 = arith.mulf %35, %39 : vector<8x8x144xf32>
    %41 = arith.addf %33, %40 : vector<8x8x144xf32>
    %c1_32 = arith.constant 1 : index
    %c0_33 = arith.constant 0 : index
    %c0_34 = arith.constant 0 : index
    %c0_35 = arith.constant 0 : index
    %42 = vector.load %arg13[%c1_32, %c0_33, %c0_34, %c0_35] : memref<4x9x9x144xf32, #tpu.memory_space<vmem>>, vector<1x8x8x144xf32>
    %43 = vector.shape_cast %42 : vector<1x8x8x144xf32> to vector<8x8x144xf32>
    %44 = vector.extract_strided_slice %32 {offsets = [1, 0], sizes = [1, 144], strides = [1, 1]} : vector<9x144xf32> to vector<1x144xf32>
    %45 = vector.shape_cast %44 : vector<1x144xf32> to vector<144xf32>
    %46 = vector.shape_cast %45 : vector<144xf32> to vector<1x1x144xf32>
    %47 = vector.broadcast %46 : vector<1x1x144xf32> to vector<8x8x144xf32>
    %48 = arith.mulf %43, %47 : vector<8x8x144xf32>
    %49 = arith.addf %41, %48 : vector<8x8x144xf32>
    %c0_36 = arith.constant 0 : index
    %c0_37 = arith.constant 0 : index
    %c1_38 = arith.constant 1 : index
    %c0_39 = arith.constant 0 : index
    %50 = vector.load %arg13[%c0_36, %c0_37, %c1_38, %c0_39] : memref<4x9x9x144xf32, #tpu.memory_space<vmem>>, vector<1x8x8x144xf32>
    %51 = vector.shape_cast %50 : vector<1x8x8x144xf32> to vector<8x8x144xf32>
    %52 = vector.extract_strided_slice %32 {offsets = [2, 0], sizes = [1, 144], strides = [1, 1]} : vector<9x144xf32> to vector<1x144xf32>
    %53 = vector.shape_cast %52 : vector<1x144xf32> to vector<144xf32>
    %54 = vector.shape_cast %53 : vector<144xf32> to vector<1x1x144xf32>
    %55 = vector.broadcast %54 : vector<1x1x144xf32> to vector<8x8x144xf32>
    %56 = arith.mulf %51, %55 : vector<8x8x144xf32>
    %57 = arith.addf %49, %56 : vector<8x8x144xf32>
    %c2_40 = arith.constant 2 : index
    %c0_41 = arith.constant 0 : index
    %c0_42 = arith.constant 0 : index
    %c0_43 = arith.constant 0 : index
    %58 = vector.load %arg13[%c2_40, %c0_41, %c0_42, %c0_43] : memref<4x9x9x144xf32, #tpu.memory_space<vmem>>, vector<1x8x8x144xf32>
    %59 = vector.shape_cast %58 : vector<1x8x8x144xf32> to vector<8x8x144xf32>
    %60 = vector.extract_strided_slice %32 {offsets = [3, 0], sizes = [1, 144], strides = [1, 1]} : vector<9x144xf32> to vector<1x144xf32>
    %61 = vector.shape_cast %60 : vector<1x144xf32> to vector<144xf32>
    %62 = vector.shape_cast %61 : vector<144xf32> to vector<1x1x144xf32>
    %63 = vector.broadcast %62 : vector<1x1x144xf32> to vector<8x8x144xf32>
    %64 = arith.mulf %59, %63 : vector<8x8x144xf32>
    %65 = arith.addf %57, %64 : vector<8x8x144xf32>
    %c3_44 = arith.constant 3 : index
    %c0_45 = arith.constant 0 : index
    %c0_46 = arith.constant 0 : index
    %c0_47 = arith.constant 0 : index
    %66 = vector.load %arg13[%c3_44, %c0_45, %c0_46, %c0_47] : memref<4x9x9x144xf32, #tpu.memory_space<vmem>>, vector<1x8x8x144xf32>
    %67 = vector.shape_cast %66 : vector<1x8x8x144xf32> to vector<8x8x144xf32>
    %68 = vector.extract_strided_slice %32 {offsets = [4, 0], sizes = [1, 144], strides = [1, 1]} : vector<9x144xf32> to vector<1x144xf32>
    %69 = vector.shape_cast %68 : vector<1x144xf32> to vector<144xf32>
    %70 = vector.shape_cast %69 : vector<144xf32> to vector<1x1x144xf32>
    %71 = vector.broadcast %70 : vector<1x1x144xf32> to vector<8x8x144xf32>
    %72 = arith.mulf %67, %71 : vector<8x8x144xf32>
    %73 = arith.addf %65, %72 : vector<8x8x144xf32>
    %c2_48 = arith.constant 2 : index
    %c0_49 = arith.constant 0 : index
    %c1_50 = arith.constant 1 : index
    %c0_51 = arith.constant 0 : index
    %74 = vector.load %arg13[%c2_48, %c0_49, %c1_50, %c0_51] : memref<4x9x9x144xf32, #tpu.memory_space<vmem>>, vector<1x8x8x144xf32>
    %75 = vector.shape_cast %74 : vector<1x8x8x144xf32> to vector<8x8x144xf32>
    %76 = vector.extract_strided_slice %32 {offsets = [5, 0], sizes = [1, 144], strides = [1, 1]} : vector<9x144xf32> to vector<1x144xf32>
    %77 = vector.shape_cast %76 : vector<1x144xf32> to vector<144xf32>
    %78 = vector.shape_cast %77 : vector<144xf32> to vector<1x1x144xf32>
    %79 = vector.broadcast %78 : vector<1x1x144xf32> to vector<8x8x144xf32>
    %80 = arith.mulf %75, %79 : vector<8x8x144xf32>
    %81 = arith.addf %73, %80 : vector<8x8x144xf32>
    %c0_52 = arith.constant 0 : index
    %c1_53 = arith.constant 1 : index
    %c0_54 = arith.constant 0 : index
    %c0_55 = arith.constant 0 : index
    %82 = vector.load %arg13[%c0_52, %c1_53, %c0_54, %c0_55] : memref<4x9x9x144xf32, #tpu.memory_space<vmem>>, vector<1x8x8x144xf32>
    %83 = vector.shape_cast %82 : vector<1x8x8x144xf32> to vector<8x8x144xf32>
    %84 = vector.extract_strided_slice %32 {offsets = [6, 0], sizes = [1, 144], strides = [1, 1]} : vector<9x144xf32> to vector<1x144xf32>
    %85 = vector.shape_cast %84 : vector<1x144xf32> to vector<144xf32>
    %86 = vector.shape_cast %85 : vector<144xf32> to vector<1x1x144xf32>
    %87 = vector.broadcast %86 : vector<1x1x144xf32> to vector<8x8x144xf32>
    %88 = arith.mulf %83, %87 : vector<8x8x144xf32>
    %89 = arith.addf %81, %88 : vector<8x8x144xf32>
    %c1_56 = arith.constant 1 : index
    %c1_57 = arith.constant 1 : index
    %c0_58 = arith.constant 0 : index
    %c0_59 = arith.constant 0 : index
    %90 = vector.load %arg13[%c1_56, %c1_57, %c0_58, %c0_59] : memref<4x9x9x144xf32, #tpu.memory_space<vmem>>, vector<1x8x8x144xf32>
    %91 = vector.shape_cast %90 : vector<1x8x8x144xf32> to vector<8x8x144xf32>
    %92 = vector.extract_strided_slice %32 {offsets = [7, 0], sizes = [1, 144], strides = [1, 1]} : vector<9x144xf32> to vector<1x144xf32>
    %93 = vector.shape_cast %92 : vector<1x144xf32> to vector<144xf32>
    %94 = vector.shape_cast %93 : vector<144xf32> to vector<1x1x144xf32>
    %95 = vector.broadcast %94 : vector<1x1x144xf32> to vector<8x8x144xf32>
    %96 = arith.mulf %91, %95 : vector<8x8x144xf32>
    %97 = arith.addf %89, %96 : vector<8x8x144xf32>
    %c0_60 = arith.constant 0 : index
    %c1_61 = arith.constant 1 : index
    %c1_62 = arith.constant 1 : index
    %c0_63 = arith.constant 0 : index
    %98 = vector.load %arg13[%c0_60, %c1_61, %c1_62, %c0_63] : memref<4x9x9x144xf32, #tpu.memory_space<vmem>>, vector<1x8x8x144xf32>
    %99 = vector.shape_cast %98 : vector<1x8x8x144xf32> to vector<8x8x144xf32>
    %100 = vector.extract_strided_slice %32 {offsets = [8, 0], sizes = [1, 144], strides = [1, 1]} : vector<9x144xf32> to vector<1x144xf32>
    %101 = vector.shape_cast %100 : vector<1x144xf32> to vector<144xf32>
    %102 = vector.shape_cast %101 : vector<144xf32> to vector<1x1x144xf32>
    %103 = vector.broadcast %102 : vector<1x1x144xf32> to vector<8x8x144xf32>
    %104 = arith.mulf %99, %103 : vector<8x8x144xf32>
    %105 = arith.addf %97, %104 : vector<8x8x144xf32>
    %c0_64 = arith.constant 0 : index
    %c0_65 = arith.constant 0 : index
    %106 = vector.load %arg5[%c0_64, %c0_65] : memref<1x144xf32, #tpu.memory_space<vmem>>, vector<1x144xf32>
    %107 = vector.shape_cast %106 : vector<1x144xf32> to vector<1x1x144xf32>
    %108 = vector.broadcast %107 : vector<1x1x144xf32> to vector<8x8x144xf32>
    %109 = arith.addf %105, %108 : vector<8x8x144xf32>
    %cst_66 = arith.constant 0.000000e+00 : f32
    %110 = vector.broadcast %cst_66 : f32 to vector<8x8x144xf32>
    %111 = arith.maximumf %109, %110 : vector<8x8x144xf32>
    %112 = vector.shape_cast %111 : vector<8x8x144xf32> to vector<64x144xf32>
    %cst_67 = arith.constant dense<0.000000e+00> : vector<144xf32>
    %113 = vector.multi_reduction <add>, %112, %cst_67 [0] : vector<64x144xf32> to vector<144xf32>
    %114 = vector.shape_cast %113 : vector<144xf32> to vector<1x144xf32>
    %cst_68 = arith.constant 1.562500e-02 : f32
    %115 = vector.broadcast %cst_68 : f32 to vector<1x144xf32>
    %116 = arith.mulf %114, %115 : vector<1x144xf32>
    %c0_69 = arith.constant 0 : index
    %c0_70 = arith.constant 0 : index
    %117 = vector.load %arg6[%c0_69, %c0_70] : memref<144x6xf32, #tpu.memory_space<vmem>>, vector<144x6xf32>
    %cst_71 = arith.constant dense<0.000000e+00> : vector<1x6xf32>
    %118 = tpu.matmul %116, %117, %cst_71 {dimension_numbers = #tpu.dot_dimension_numbers<[1], [0], [0], [1], [0, 0, 1, 1], [], []>} : vector<1x144xf32>, vector<144x6xf32>, vector<1x6xf32> -> vector<1x6xf32>
    %c0_72 = arith.constant 0 : index
    %c0_73 = arith.constant 0 : index
    %119 = vector.load %arg7[%c0_72, %c0_73] : memref<1x6xf32, #tpu.memory_space<vmem>>, vector<1x6xf32>
    %120 = arith.addf %118, %119 : vector<1x6xf32>
    %cst_74 = arith.constant 0.000000e+00 : f32
    %121 = vector.broadcast %cst_74 : f32 to vector<1x6xf32>
    %122 = arith.maximumf %120, %121 : vector<1x6xf32>
    %c0_75 = arith.constant 0 : index
    %c0_76 = arith.constant 0 : index
    %123 = vector.load %arg8[%c0_75, %c0_76] : memref<6x144xf32, #tpu.memory_space<vmem>>, vector<6x144xf32>
    %cst_77 = arith.constant dense<0.000000e+00> : vector<1x144xf32>
    %124 = tpu.matmul %122, %123, %cst_77 {dimension_numbers = #tpu.dot_dimension_numbers<[1], [0], [0], [1], [0, 0, 1, 1], [], []>} : vector<1x6xf32>, vector<6x144xf32>, vector<1x144xf32> -> vector<1x144xf32>
    %c0_78 = arith.constant 0 : index
    %c0_79 = arith.constant 0 : index
    %125 = vector.load %arg9[%c0_78, %c0_79] : memref<1x144xf32, #tpu.memory_space<vmem>>, vector<1x144xf32>
    %126 = arith.addf %124, %125 : vector<1x144xf32>
    %cst_80 = arith.constant 0.000000e+00 : f32
    %127 = vector.broadcast %cst_80 : f32 to vector<1x144xf32>
    %128 = arith.subf %127, %126 : vector<1x144xf32>
    %129 = math.exp %128 : vector<1x144xf32>
    %cst_81 = arith.constant 1.000000e+00 : f32
    %130 = vector.broadcast %cst_81 : f32 to vector<1x144xf32>
    %131 = arith.addf %130, %129 : vector<1x144xf32>
    %132 = tpu.reciprocal %131 {approx = true} : vector<1x144xf32> -> vector<1x144xf32>
    %133 = vector.broadcast %132 : vector<1x144xf32> to vector<64x144xf32>
    %134 = arith.mulf %112, %133 : vector<64x144xf32>
    %135 = arith.truncf %134 : vector<64x144xf32> to vector<64x144xbf16>
    %c0_82 = arith.constant 0 : index
    %c0_83 = arith.constant 0 : index
    %136 = vector.load %arg10[%c0_82, %c0_83] : memref<144x24xbf16, #tpu.memory_space<vmem>>, vector<144x24xbf16>
    %cst_84 = arith.constant dense<0.000000e+00> : vector<64x24xf32>
    %137 = tpu.matmul %135, %136, %cst_84 {dimension_numbers = #tpu.dot_dimension_numbers<[1], [0], [0], [1], [0, 0, 1, 1], [], []>} : vector<64x144xbf16>, vector<144x24xbf16>, vector<64x24xf32> -> vector<64x24xf32>
    %c0_85 = arith.constant 0 : index
    %c0_86 = arith.constant 0 : index
    %138 = vector.load %arg11[%c0_85, %c0_86] : memref<1x24xf32, #tpu.memory_space<vmem>>, vector<1x24xf32>
    %139 = vector.broadcast %138 : vector<1x24xf32> to vector<64x24xf32>
    %140 = arith.addf %137, %139 : vector<64x24xf32>
    %141 = arith.truncf %140 : vector<64x24xf32> to vector<64x24xbf16>
    %c0_87 = arith.constant 0 : index
    %c0_88 = arith.constant 0 : index
    %c0_89 = arith.constant 0 : index
    %142 = vector.load %arg12[%c0_87, %c0_88, %c0_89] : memref<1x64x24xbf16, #tpu.memory_space<vmem>>, vector<1x64x24xbf16>
    %143 = vector.shape_cast %142 : vector<1x64x24xbf16> to vector<64x24xbf16>
    %144 = vector.shape_cast %141 : vector<64x24xbf16> to vector<1x64x24xbf16>
    tpu.vector_store %arg12[%c0_87, %c0_88, %c0_89], %144 {strides = array<i32>} : memref<1x64x24xbf16, #tpu.memory_space<vmem>>, vector<1x64x24xbf16>,
    return
  }
  func.func @transform_0(%arg0: i32) -> (i32, i32, i32) {
    %c0_i32 = arith.constant 0 : i32
    %c0_i32_0 = arith.constant 0 : i32
    %c0_i32_1 = arith.constant 0 : i32
    return %arg0, %c0_i32, %c0_i32_0 : i32, i32, i32
  }
  func.func @transform_1(%arg0: i32) -> (i32, i32) {
    %c0_i32 = arith.constant 0 : i32
    %c0_i32_0 = arith.constant 0 : i32
    %c0_i32_1 = arith.constant 0 : i32
    return %c0_i32, %c0_i32_0 : i32, i32
  }
  func.func @transform_2(%arg0: i32) -> (i32, i32) {
    %c0_i32 = arith.constant 0 : i32
    %c0_i32_0 = arith.constant 0 : i32
    %c0_i32_1 = arith.constant 0 : i32
    return %c0_i32, %c0_i32_0 : i32, i32
  }
  func.func @transform_3(%arg0: i32) -> (i32, i32) {
    %c0_i32 = arith.constant 0 : i32
    %c0_i32_0 = arith.constant 0 : i32
    %c0_i32_1 = arith.constant 0 : i32
    return %c0_i32, %c0_i32_0 : i32, i32
  }
  func.func @transform_4(%arg0: i32) -> (i32, i32) {
    %c0_i32 = arith.constant 0 : i32
    %c0_i32_0 = arith.constant 0 : i32
    %c0_i32_1 = arith.constant 0 : i32
    return %c0_i32, %c0_i32_0 : i32, i32
  }
  func.func @transform_5(%arg0: i32) -> (i32, i32) {
    %c0_i32 = arith.constant 0 : i32
    %c0_i32_0 = arith.constant 0 : i32
    %c0_i32_1 = arith.constant 0 : i32
    return %c0_i32, %c0_i32_0 : i32, i32
  }
  func.func @transform_6(%arg0: i32) -> (i32, i32) {
    %c0_i32 = arith.constant 0 : i32
    %c0_i32_0 = arith.constant 0 : i32
    %c0_i32_1 = arith.constant 0 : i32
    return %c0_i32, %c0_i32_0 : i32, i32
  }
  func.func @transform_7(%arg0: i32) -> (i32, i32) {
    %c0_i32 = arith.constant 0 : i32
    %c0_i32_0 = arith.constant 0 : i32
    %c0_i32_1 = arith.constant 0 : i32
    return %c0_i32, %c0_i32_0 : i32, i32
  }
  func.func @transform_8(%arg0: i32) -> (i32, i32) {
    %c0_i32 = arith.constant 0 : i32
    %c0_i32_0 = arith.constant 0 : i32
    %c0_i32_1 = arith.constant 0 : i32
    return %c0_i32, %c0_i32_0 : i32, i32
  }
  func.func @transform_9(%arg0: i32) -> (i32, i32) {
    %c0_i32 = arith.constant 0 : i32
    %c0_i32_0 = arith.constant 0 : i32
    %c0_i32_1 = arith.constant 0 : i32
    return %c0_i32, %c0_i32_0 : i32, i32
  }
  func.func @transform_10(%arg0: i32) -> (i32, i32) {
    %c0_i32 = arith.constant 0 : i32
    %c0_i32_0 = arith.constant 0 : i32
    %c0_i32_1 = arith.constant 0 : i32
    return %c0_i32, %c0_i32_0 : i32, i32
  }
  func.func @transform_11(%arg0: i32) -> (i32, i32, i32) {
    %c0_i32 = arith.constant 0 : i32
    %c0_i32_0 = arith.constant 0 : i32
    %c0_i32_1 = arith.constant 0 : i32
    return %arg0, %c0_i32, %c0_i32_0 : i32, i32, i32
  }
}

module attributes {stable_mosaic.version = 11 : i64} {
  func.func @_mbconv_block_kernel(%arg0: i32, %arg1: memref<1x256x24xbf16, #tpu.memory_space<vmem>>, %arg2: memref<24x144xbf16, #tpu.memory_space<vmem>>, %arg3: memref<1x144xf32, #tpu.memory_space<vmem>>, %arg4: memref<9x144xf32, #tpu.memory_space<vmem>>, %arg5: memref<1x144xf32, #tpu.memory_space<vmem>>, %arg6: memref<144x6xf32, #tpu.memory_space<vmem>>, %arg7: memref<1x6xf32, #tpu.memory_space<vmem>>, %arg8: memref<6x144xf32, #tpu.memory_space<vmem>>, %arg9: memref<1x144xf32, #tpu.memory_space<vmem>>, %arg10: memref<144x24xbf16, #tpu.memory_space<vmem>>, %arg11: memref<1x24xf32, #tpu.memory_space<vmem>>, %arg12: memref<1x256x24xbf16, #tpu.memory_space<vmem>>, %arg13: memref<1x18x18x144xf32, #tpu.memory_space<vmem>>) attributes {dimension_semantics = [#tpu.dimension_semantics<parallel>], iteration_bounds = array<i64: 2>, scalar_prefetch = 0 : i64, scratch_operands = 1 : i64, tpu.core_type = #tpu.core_type<tc>, window_params = [{transform_indices = @transform_0, window_bounds = array<i64: 1, 256, 24>}, {pipeline_mode = #tpu.pipeline_mode<synchronous>, transform_indices = @transform_1, window_bounds = array<i64: 24, 144>}, {pipeline_mode = #tpu.pipeline_mode<synchronous>, transform_indices = @transform_2, window_bounds = array<i64: 1, 144>}, {pipeline_mode = #tpu.pipeline_mode<synchronous>, transform_indices = @transform_3, window_bounds = array<i64: 9, 144>}, {pipeline_mode = #tpu.pipeline_mode<synchronous>, transform_indices = @transform_4, window_bounds = array<i64: 1, 144>}, {pipeline_mode = #tpu.pipeline_mode<synchronous>, transform_indices = @transform_5, window_bounds = array<i64: 144, 6>}, {pipeline_mode = #tpu.pipeline_mode<synchronous>, transform_indices = @transform_6, window_bounds = array<i64: 1, 6>}, {pipeline_mode = #tpu.pipeline_mode<synchronous>, transform_indices = @transform_7, window_bounds = array<i64: 6, 144>}, {pipeline_mode = #tpu.pipeline_mode<synchronous>, transform_indices = @transform_8, window_bounds = array<i64: 1, 144>}, {pipeline_mode = #tpu.pipeline_mode<synchronous>, transform_indices = @transform_9, window_bounds = array<i64: 144, 24>}, {pipeline_mode = #tpu.pipeline_mode<synchronous>, transform_indices = @transform_10, window_bounds = array<i64: 1, 24>}, {transform_indices = @transform_11, window_bounds = array<i64: 1, 256, 24>}]} {
    %c0 = arith.constant 0 : index
    %c0_0 = arith.constant 0 : index
    %c0_1 = arith.constant 0 : index
    %0 = vector.load %arg1[%c0, %c0_0, %c0_1] : memref<1x256x24xbf16, #tpu.memory_space<vmem>>, vector<1x256x24xbf16>
    %1 = vector.shape_cast %0 : vector<1x256x24xbf16> to vector<256x24xbf16>
    %c0_2 = arith.constant 0 : index
    %c0_3 = arith.constant 0 : index
    %2 = vector.load %arg2[%c0_2, %c0_3] : memref<24x144xbf16, #tpu.memory_space<vmem>>, vector<24x144xbf16>
    %cst = arith.constant dense<0.000000e+00> : vector<256x144xf32>
    %3 = tpu.matmul %1, %2, %cst {dimension_numbers = #tpu.dot_dimension_numbers<[1], [0], [0], [1], [0, 0, 1, 1], [], []>} : vector<256x24xbf16>, vector<24x144xbf16>, vector<256x144xf32> -> vector<256x144xf32>
    %c0_4 = arith.constant 0 : index
    %c0_5 = arith.constant 0 : index
    %4 = vector.load %arg3[%c0_4, %c0_5] : memref<1x144xf32, #tpu.memory_space<vmem>>, vector<1x144xf32>
    %5 = vector.broadcast %4 : vector<1x144xf32> to vector<256x144xf32>
    %6 = arith.addf %3, %5 : vector<256x144xf32>
    %cst_6 = arith.constant 0.000000e+00 : f32
    %7 = vector.broadcast %cst_6 : f32 to vector<256x144xf32>
    %8 = arith.maximumf %6, %7 : vector<256x144xf32>
    %9 = vector.shape_cast %8 : vector<256x144xf32> to vector<1x16x16x144xf32>
    %cst_7 = arith.constant 0.000000e+00 : f32
    %10 = vector.broadcast %cst_7 : f32 to vector<1x18x18x144xf32>
    %c0_8 = arith.constant 0 : index
    %c0_9 = arith.constant 0 : index
    %c0_10 = arith.constant 0 : index
    %c0_11 = arith.constant 0 : index
    %11 = vector.load %arg13[%c0_8, %c0_9, %c0_10, %c0_11] : memref<1x18x18x144xf32, #tpu.memory_space<vmem>>, vector<1x18x18x144xf32>
    tpu.vector_store %arg13[%c0_8, %c0_9, %c0_10, %c0_11], %10 {strides = array<i32>} : memref<1x18x18x144xf32, #tpu.memory_space<vmem>>, vector<1x18x18x144xf32>,
    %12 = vector.shape_cast %9 : vector<1x16x16x144xf32> to vector<16x16x144xf32>
    %c0_12 = arith.constant 0 : index
    %c1 = arith.constant 1 : index
    %c1_13 = arith.constant 1 : index
    %c0_14 = arith.constant 0 : index
    %13 = vector.load %arg13[%c0_12, %c1, %c1_13, %c0_14] : memref<1x18x18x144xf32, #tpu.memory_space<vmem>>, vector<1x16x16x144xf32>
    %14 = vector.shape_cast %13 : vector<1x16x16x144xf32> to vector<16x16x144xf32>
    %15 = vector.shape_cast %12 : vector<16x16x144xf32> to vector<1x16x16x144xf32>
    tpu.vector_store %arg13[%c0_12, %c1, %c1_13, %c0_14], %15 {strides = array<i32>} : memref<1x18x18x144xf32, #tpu.memory_space<vmem>>, vector<1x16x16x144xf32>,
    %c0_15 = arith.constant 0 : index
    %c0_16 = arith.constant 0 : index
    %16 = vector.load %arg4[%c0_15, %c0_16] : memref<9x144xf32, #tpu.memory_space<vmem>>, vector<9x144xf32>
    %cst_17 = arith.constant 0.000000e+00 : f32
    %17 = vector.broadcast %cst_17 : f32 to vector<16x16x144xf32>
    %c0_18 = arith.constant 0 : index
    %c0_19 = arith.constant 0 : index
    %c0_20 = arith.constant 0 : index
    %c0_21 = arith.constant 0 : index
    %18 = vector.load %arg13[%c0_18, %c0_19, %c0_20, %c0_21] : memref<1x18x18x144xf32, #tpu.memory_space<vmem>>, vector<1x16x16x144xf32>
    %19 = vector.shape_cast %18 : vector<1x16x16x144xf32> to vector<16x16x144xf32>
    %20 = vector.extract_strided_slice %16 {offsets = [0, 0], sizes = [1, 144], strides = [1, 1]} : vector<9x144xf32> to vector<1x144xf32>
    %21 = vector.shape_cast %20 : vector<1x144xf32> to vector<144xf32>
    %22 = vector.shape_cast %21 : vector<144xf32> to vector<1x1x144xf32>
    %23 = vector.broadcast %22 : vector<1x1x144xf32> to vector<16x16x144xf32>
    %24 = arith.mulf %19, %23 : vector<16x16x144xf32>
    %25 = arith.addf %17, %24 : vector<16x16x144xf32>
    %c0_22 = arith.constant 0 : index
    %c0_23 = arith.constant 0 : index
    %c1_24 = arith.constant 1 : index
    %c0_25 = arith.constant 0 : index
    %26 = vector.load %arg13[%c0_22, %c0_23, %c1_24, %c0_25] : memref<1x18x18x144xf32, #tpu.memory_space<vmem>>, vector<1x16x16x144xf32>
    %27 = vector.shape_cast %26 : vector<1x16x16x144xf32> to vector<16x16x144xf32>
    %28 = vector.extract_strided_slice %16 {offsets = [1, 0], sizes = [1, 144], strides = [1, 1]} : vector<9x144xf32> to vector<1x144xf32>
    %29 = vector.shape_cast %28 : vector<1x144xf32> to vector<144xf32>
    %30 = vector.shape_cast %29 : vector<144xf32> to vector<1x1x144xf32>
    %31 = vector.broadcast %30 : vector<1x1x144xf32> to vector<16x16x144xf32>
    %32 = arith.mulf %27, %31 : vector<16x16x144xf32>
    %33 = arith.addf %25, %32 : vector<16x16x144xf32>
    %c0_26 = arith.constant 0 : index
    %c0_27 = arith.constant 0 : index
    %c2 = arith.constant 2 : index
    %c0_28 = arith.constant 0 : index
    %34 = vector.load %arg13[%c0_26, %c0_27, %c2, %c0_28] : memref<1x18x18x144xf32, #tpu.memory_space<vmem>>, vector<1x16x16x144xf32>
    %35 = vector.shape_cast %34 : vector<1x16x16x144xf32> to vector<16x16x144xf32>
    %36 = vector.extract_strided_slice %16 {offsets = [2, 0], sizes = [1, 144], strides = [1, 1]} : vector<9x144xf32> to vector<1x144xf32>
    %37 = vector.shape_cast %36 : vector<1x144xf32> to vector<144xf32>
    %38 = vector.shape_cast %37 : vector<144xf32> to vector<1x1x144xf32>
    %39 = vector.broadcast %38 : vector<1x1x144xf32> to vector<16x16x144xf32>
    %40 = arith.mulf %35, %39 : vector<16x16x144xf32>
    %41 = arith.addf %33, %40 : vector<16x16x144xf32>
    %c0_29 = arith.constant 0 : index
    %c1_30 = arith.constant 1 : index
    %c0_31 = arith.constant 0 : index
    %c0_32 = arith.constant 0 : index
    %42 = vector.load %arg13[%c0_29, %c1_30, %c0_31, %c0_32] : memref<1x18x18x144xf32, #tpu.memory_space<vmem>>, vector<1x16x16x144xf32>
    %43 = vector.shape_cast %42 : vector<1x16x16x144xf32> to vector<16x16x144xf32>
    %44 = vector.extract_strided_slice %16 {offsets = [3, 0], sizes = [1, 144], strides = [1, 1]} : vector<9x144xf32> to vector<1x144xf32>
    %45 = vector.shape_cast %44 : vector<1x144xf32> to vector<144xf32>
    %46 = vector.shape_cast %45 : vector<144xf32> to vector<1x1x144xf32>
    %47 = vector.broadcast %46 : vector<1x1x144xf32> to vector<16x16x144xf32>
    %48 = arith.mulf %43, %47 : vector<16x16x144xf32>
    %49 = arith.addf %41, %48 : vector<16x16x144xf32>
    %c0_33 = arith.constant 0 : index
    %c1_34 = arith.constant 1 : index
    %c1_35 = arith.constant 1 : index
    %c0_36 = arith.constant 0 : index
    %50 = vector.load %arg13[%c0_33, %c1_34, %c1_35, %c0_36] : memref<1x18x18x144xf32, #tpu.memory_space<vmem>>, vector<1x16x16x144xf32>
    %51 = vector.shape_cast %50 : vector<1x16x16x144xf32> to vector<16x16x144xf32>
    %52 = vector.extract_strided_slice %16 {offsets = [4, 0], sizes = [1, 144], strides = [1, 1]} : vector<9x144xf32> to vector<1x144xf32>
    %53 = vector.shape_cast %52 : vector<1x144xf32> to vector<144xf32>
    %54 = vector.shape_cast %53 : vector<144xf32> to vector<1x1x144xf32>
    %55 = vector.broadcast %54 : vector<1x1x144xf32> to vector<16x16x144xf32>
    %56 = arith.mulf %51, %55 : vector<16x16x144xf32>
    %57 = arith.addf %49, %56 : vector<16x16x144xf32>
    %c0_37 = arith.constant 0 : index
    %c1_38 = arith.constant 1 : index
    %c2_39 = arith.constant 2 : index
    %c0_40 = arith.constant 0 : index
    %58 = vector.load %arg13[%c0_37, %c1_38, %c2_39, %c0_40] : memref<1x18x18x144xf32, #tpu.memory_space<vmem>>, vector<1x16x16x144xf32>
    %59 = vector.shape_cast %58 : vector<1x16x16x144xf32> to vector<16x16x144xf32>
    %60 = vector.extract_strided_slice %16 {offsets = [5, 0], sizes = [1, 144], strides = [1, 1]} : vector<9x144xf32> to vector<1x144xf32>
    %61 = vector.shape_cast %60 : vector<1x144xf32> to vector<144xf32>
    %62 = vector.shape_cast %61 : vector<144xf32> to vector<1x1x144xf32>
    %63 = vector.broadcast %62 : vector<1x1x144xf32> to vector<16x16x144xf32>
    %64 = arith.mulf %59, %63 : vector<16x16x144xf32>
    %65 = arith.addf %57, %64 : vector<16x16x144xf32>
    %c0_41 = arith.constant 0 : index
    %c2_42 = arith.constant 2 : index
    %c0_43 = arith.constant 0 : index
    %c0_44 = arith.constant 0 : index
    %66 = vector.load %arg13[%c0_41, %c2_42, %c0_43, %c0_44] : memref<1x18x18x144xf32, #tpu.memory_space<vmem>>, vector<1x16x16x144xf32>
    %67 = vector.shape_cast %66 : vector<1x16x16x144xf32> to vector<16x16x144xf32>
    %68 = vector.extract_strided_slice %16 {offsets = [6, 0], sizes = [1, 144], strides = [1, 1]} : vector<9x144xf32> to vector<1x144xf32>
    %69 = vector.shape_cast %68 : vector<1x144xf32> to vector<144xf32>
    %70 = vector.shape_cast %69 : vector<144xf32> to vector<1x1x144xf32>
    %71 = vector.broadcast %70 : vector<1x1x144xf32> to vector<16x16x144xf32>
    %72 = arith.mulf %67, %71 : vector<16x16x144xf32>
    %73 = arith.addf %65, %72 : vector<16x16x144xf32>
    %c0_45 = arith.constant 0 : index
    %c2_46 = arith.constant 2 : index
    %c1_47 = arith.constant 1 : index
    %c0_48 = arith.constant 0 : index
    %74 = vector.load %arg13[%c0_45, %c2_46, %c1_47, %c0_48] : memref<1x18x18x144xf32, #tpu.memory_space<vmem>>, vector<1x16x16x144xf32>
    %75 = vector.shape_cast %74 : vector<1x16x16x144xf32> to vector<16x16x144xf32>
    %76 = vector.extract_strided_slice %16 {offsets = [7, 0], sizes = [1, 144], strides = [1, 1]} : vector<9x144xf32> to vector<1x144xf32>
    %77 = vector.shape_cast %76 : vector<1x144xf32> to vector<144xf32>
    %78 = vector.shape_cast %77 : vector<144xf32> to vector<1x1x144xf32>
    %79 = vector.broadcast %78 : vector<1x1x144xf32> to vector<16x16x144xf32>
    %80 = arith.mulf %75, %79 : vector<16x16x144xf32>
    %81 = arith.addf %73, %80 : vector<16x16x144xf32>
    %c0_49 = arith.constant 0 : index
    %c2_50 = arith.constant 2 : index
    %c2_51 = arith.constant 2 : index
    %c0_52 = arith.constant 0 : index
    %82 = vector.load %arg13[%c0_49, %c2_50, %c2_51, %c0_52] : memref<1x18x18x144xf32, #tpu.memory_space<vmem>>, vector<1x16x16x144xf32>
    %83 = vector.shape_cast %82 : vector<1x16x16x144xf32> to vector<16x16x144xf32>
    %84 = vector.extract_strided_slice %16 {offsets = [8, 0], sizes = [1, 144], strides = [1, 1]} : vector<9x144xf32> to vector<1x144xf32>
    %85 = vector.shape_cast %84 : vector<1x144xf32> to vector<144xf32>
    %86 = vector.shape_cast %85 : vector<144xf32> to vector<1x1x144xf32>
    %87 = vector.broadcast %86 : vector<1x1x144xf32> to vector<16x16x144xf32>
    %88 = arith.mulf %83, %87 : vector<16x16x144xf32>
    %89 = arith.addf %81, %88 : vector<16x16x144xf32>
    %c0_53 = arith.constant 0 : index
    %c0_54 = arith.constant 0 : index
    %90 = vector.load %arg5[%c0_53, %c0_54] : memref<1x144xf32, #tpu.memory_space<vmem>>, vector<1x144xf32>
    %91 = vector.shape_cast %90 : vector<1x144xf32> to vector<1x1x144xf32>
    %92 = vector.broadcast %91 : vector<1x1x144xf32> to vector<16x16x144xf32>
    %93 = arith.addf %89, %92 : vector<16x16x144xf32>
    %cst_55 = arith.constant 0.000000e+00 : f32
    %94 = vector.broadcast %cst_55 : f32 to vector<16x16x144xf32>
    %95 = arith.maximumf %93, %94 : vector<16x16x144xf32>
    %96 = vector.shape_cast %95 : vector<16x16x144xf32> to vector<256x144xf32>
    %cst_56 = arith.constant dense<0.000000e+00> : vector<144xf32>
    %97 = vector.multi_reduction <add>, %96, %cst_56 [0] : vector<256x144xf32> to vector<144xf32>
    %98 = vector.shape_cast %97 : vector<144xf32> to vector<1x144xf32>
    %cst_57 = arith.constant 3.906250e-03 : f32
    %99 = vector.broadcast %cst_57 : f32 to vector<1x144xf32>
    %100 = arith.mulf %98, %99 : vector<1x144xf32>
    %c0_58 = arith.constant 0 : index
    %c0_59 = arith.constant 0 : index
    %101 = vector.load %arg6[%c0_58, %c0_59] : memref<144x6xf32, #tpu.memory_space<vmem>>, vector<144x6xf32>
    %cst_60 = arith.constant dense<0.000000e+00> : vector<1x6xf32>
    %102 = tpu.matmul %100, %101, %cst_60 {dimension_numbers = #tpu.dot_dimension_numbers<[1], [0], [0], [1], [0, 0, 1, 1], [], []>} : vector<1x144xf32>, vector<144x6xf32>, vector<1x6xf32> -> vector<1x6xf32>
    %c0_61 = arith.constant 0 : index
    %c0_62 = arith.constant 0 : index
    %103 = vector.load %arg7[%c0_61, %c0_62] : memref<1x6xf32, #tpu.memory_space<vmem>>, vector<1x6xf32>
    %104 = arith.addf %102, %103 : vector<1x6xf32>
    %cst_63 = arith.constant 0.000000e+00 : f32
    %105 = vector.broadcast %cst_63 : f32 to vector<1x6xf32>
    %106 = arith.maximumf %104, %105 : vector<1x6xf32>
    %c0_64 = arith.constant 0 : index
    %c0_65 = arith.constant 0 : index
    %107 = vector.load %arg8[%c0_64, %c0_65] : memref<6x144xf32, #tpu.memory_space<vmem>>, vector<6x144xf32>
    %cst_66 = arith.constant dense<0.000000e+00> : vector<1x144xf32>
    %108 = tpu.matmul %106, %107, %cst_66 {dimension_numbers = #tpu.dot_dimension_numbers<[1], [0], [0], [1], [0, 0, 1, 1], [], []>} : vector<1x6xf32>, vector<6x144xf32>, vector<1x144xf32> -> vector<1x144xf32>
    %c0_67 = arith.constant 0 : index
    %c0_68 = arith.constant 0 : index
    %109 = vector.load %arg9[%c0_67, %c0_68] : memref<1x144xf32, #tpu.memory_space<vmem>>, vector<1x144xf32>
    %110 = arith.addf %108, %109 : vector<1x144xf32>
    %cst_69 = arith.constant 0.000000e+00 : f32
    %111 = vector.broadcast %cst_69 : f32 to vector<1x144xf32>
    %112 = arith.subf %111, %110 : vector<1x144xf32>
    %113 = math.exp %112 : vector<1x144xf32>
    %cst_70 = arith.constant 1.000000e+00 : f32
    %114 = vector.broadcast %cst_70 : f32 to vector<1x144xf32>
    %115 = arith.addf %114, %113 : vector<1x144xf32>
    %116 = tpu.reciprocal %115 {approx = true} : vector<1x144xf32> -> vector<1x144xf32>
    %117 = vector.broadcast %116 : vector<1x144xf32> to vector<256x144xf32>
    %118 = arith.mulf %96, %117 : vector<256x144xf32>
    %119 = arith.truncf %118 : vector<256x144xf32> to vector<256x144xbf16>
    %c0_71 = arith.constant 0 : index
    %c0_72 = arith.constant 0 : index
    %120 = vector.load %arg10[%c0_71, %c0_72] : memref<144x24xbf16, #tpu.memory_space<vmem>>, vector<144x24xbf16>
    %cst_73 = arith.constant dense<0.000000e+00> : vector<256x24xf32>
    %121 = tpu.matmul %119, %120, %cst_73 {dimension_numbers = #tpu.dot_dimension_numbers<[1], [0], [0], [1], [0, 0, 1, 1], [], []>} : vector<256x144xbf16>, vector<144x24xbf16>, vector<256x24xf32> -> vector<256x24xf32>
    %c0_74 = arith.constant 0 : index
    %c0_75 = arith.constant 0 : index
    %122 = vector.load %arg11[%c0_74, %c0_75] : memref<1x24xf32, #tpu.memory_space<vmem>>, vector<1x24xf32>
    %123 = vector.broadcast %122 : vector<1x24xf32> to vector<256x24xf32>
    %124 = arith.addf %121, %123 : vector<256x24xf32>
    %125 = arith.extf %1 : vector<256x24xbf16> to vector<256x24xf32>
    %126 = arith.addf %124, %125 : vector<256x24xf32>
    %127 = arith.truncf %126 : vector<256x24xf32> to vector<256x24xbf16>
    %c0_76 = arith.constant 0 : index
    %c0_77 = arith.constant 0 : index
    %c0_78 = arith.constant 0 : index
    %128 = vector.load %arg12[%c0_76, %c0_77, %c0_78] : memref<1x256x24xbf16, #tpu.memory_space<vmem>>, vector<1x256x24xbf16>
    %129 = vector.shape_cast %128 : vector<1x256x24xbf16> to vector<256x24xbf16>
    %130 = vector.shape_cast %127 : vector<256x24xbf16> to vector<1x256x24xbf16>
    tpu.vector_store %arg12[%c0_76, %c0_77, %c0_78], %130 {strides = array<i32>} : memref<1x256x24xbf16, #tpu.memory_space<vmem>>, vector<1x256x24xbf16>,
    return
  }
  func.func @transform_0(%arg0: i32) -> (i32, i32, i32) {
    %c0_i32 = arith.constant 0 : i32
    %c0_i32_0 = arith.constant 0 : i32
    %c0_i32_1 = arith.constant 0 : i32
    return %arg0, %c0_i32, %c0_i32_0 : i32, i32, i32
  }
  func.func @transform_1(%arg0: i32) -> (i32, i32) {
    %c0_i32 = arith.constant 0 : i32
    %c0_i32_0 = arith.constant 0 : i32
    %c0_i32_1 = arith.constant 0 : i32
    return %c0_i32, %c0_i32_0 : i32, i32
  }
  func.func @transform_2(%arg0: i32) -> (i32, i32) {
    %c0_i32 = arith.constant 0 : i32
    %c0_i32_0 = arith.constant 0 : i32
    %c0_i32_1 = arith.constant 0 : i32
    return %c0_i32, %c0_i32_0 : i32, i32
  }
  func.func @transform_3(%arg0: i32) -> (i32, i32) {
    %c0_i32 = arith.constant 0 : i32
    %c0_i32_0 = arith.constant 0 : i32
    %c0_i32_1 = arith.constant 0 : i32
    return %c0_i32, %c0_i32_0 : i32, i32
  }
  func.func @transform_4(%arg0: i32) -> (i32, i32) {
    %c0_i32 = arith.constant 0 : i32
    %c0_i32_0 = arith.constant 0 : i32
    %c0_i32_1 = arith.constant 0 : i32
    return %c0_i32, %c0_i32_0 : i32, i32
  }
  func.func @transform_5(%arg0: i32) -> (i32, i32) {
    %c0_i32 = arith.constant 0 : i32
    %c0_i32_0 = arith.constant 0 : i32
    %c0_i32_1 = arith.constant 0 : i32
    return %c0_i32, %c0_i32_0 : i32, i32
  }
  func.func @transform_6(%arg0: i32) -> (i32, i32) {
    %c0_i32 = arith.constant 0 : i32
    %c0_i32_0 = arith.constant 0 : i32
    %c0_i32_1 = arith.constant 0 : i32
    return %c0_i32, %c0_i32_0 : i32, i32
  }
  func.func @transform_7(%arg0: i32) -> (i32, i32) {
    %c0_i32 = arith.constant 0 : i32
    %c0_i32_0 = arith.constant 0 : i32
    %c0_i32_1 = arith.constant 0 : i32
    return %c0_i32, %c0_i32_0 : i32, i32
  }
  func.func @transform_8(%arg0: i32) -> (i32, i32) {
    %c0_i32 = arith.constant 0 : i32
    %c0_i32_0 = arith.constant 0 : i32
    %c0_i32_1 = arith.constant 0 : i32
    return %c0_i32, %c0_i32_0 : i32, i32
  }
  func.func @transform_9(%arg0: i32) -> (i32, i32) {
    %c0_i32 = arith.constant 0 : i32
    %c0_i32_0 = arith.constant 0 : i32
    %c0_i32_1 = arith.constant 0 : i32
    return %c0_i32, %c0_i32_0 : i32, i32
  }
  func.func @transform_10(%arg0: i32) -> (i32, i32) {
    %c0_i32 = arith.constant 0 : i32
    %c0_i32_0 = arith.constant 0 : i32
    %c0_i32_1 = arith.constant 0 : i32
    return %c0_i32, %c0_i32_0 : i32, i32
  }
  func.func @transform_11(%arg0: i32) -> (i32, i32, i32) {
    %c0_i32 = arith.constant 0 : i32
    %c0_i32_0 = arith.constant 0 : i32
    %c0_i32_1 = arith.constant 0 : i32
    return %arg0, %c0_i32, %c0_i32_0 : i32, i32, i32
  }
}

</mosaic_0001>

<llo_original>
// kernel: mbconv_stage_forward.3
$region0: #{mbconv_stage_forward.3}
  #allocation0 [shape = 'u32[]', space=smem, size = 0x4, offset = 0x4, fixed_abs, tag = 'smem constant byte address 0x4 - core index']
  #allocation1 [shape = 'u32[144,128]{1,0:T(1,128)}', space=vmem, size = 0x12000, scoped, tag = 'internal scratch']
  #allocation2 [shape = 'f32[4,9,9,144]{3,2,1,0:T(8,128)}', space=vmem, size = 0x90000, scoped, tag = 'scratch operand']
  %s0 = inlined_call_operand.vmem [shape: bf16[2,256,24], index: 0, kind: input, shape index: {}]
  %s1 = inlined_call_operand.vmem [shape: bf16[24,144], index: 1, kind: input, shape index: {}]
  %s2 = inlined_call_operand.vmem [shape: f32[1,144], index: 2, kind: input, shape index: {}, may-alias: {2,4,8}]
  %s3 = inlined_call_operand.vmem [shape: f32[9,144], index: 3, kind: input, shape index: {}]
  %s4 = inlined_call_operand.vmem [shape: f32[1,144], index: 4, kind: input, shape index: {}, may-alias: {2,4,8}]
  %s5 = inlined_call_operand.vmem [shape: f32[144,6], index: 5, kind: input, shape index: {}]
  %s6 = inlined_call_operand.vmem [shape: f32[1,6], index: 6, kind: input, shape index: {}]
  %s7 = inlined_call_operand.vmem [shape: f32[6,144], index: 7, kind: input, shape index: {}]
  %s8 = inlined_call_operand.vmem [shape: f32[1,144], index: 8, kind: input, shape index: {}, may-alias: {2,4,8}]
  %s9 = inlined_call_operand.vmem [shape: bf16[144,24], index: 9, kind: input, shape index: {}]
  %s10 = inlined_call_operand.vmem [shape: f32[1,24], index: 10, kind: input, shape index: {}]
  %s11 = inlined_call_operand.vmem [shape: bf16[2,64,24], index: 11, kind: output, shape index: {}]
  %s12 = sld [smem:[#allocation0]]
  $region77: #{mbconv_stage_forward.3} parent=0
    _
  %s14 = ssub.s32 1, %s12
  %s15 = scalar_select 0, %s14, %s12
  loop: start=0, step=1, limit=4
  $region2: #{mbconv_stage_forward.3} parent=0 // loop_pre_header
    _
  $region3: #{mbconv_stage_forward.3} parent=0 // loop_header
    %s17 = sphi 0, %s21
    %p18 = scmp.ge.s32.totalorder %s17, 4
    %s27 = sphi 0, %s29
    %s30 = sphi 0, %s27
    %s31 = sphi 0, %s30
    %s47 = sphi 0, %s31
    %s51 = sphi 0, %s51
    %s53 = sphi 0, %s51
    %s54 = sphi 0, %s53
    %s68 = sphi 0, %s54
    %s72 = sphi 0, %s72
    %s74 = sphi 0, %s72
    %s75 = sphi 0, %s74
    %s89 = sphi 0, %s75
    %s93 = sphi 0, %s93
    %s95 = sphi 0, %s93
    %s96 = sphi 0, %s95
    %s110 = sphi 0, %s96
    %s114 = sphi 0, %s114
    %s116 = sphi 0, %s114
    %s117 = sphi 0, %s116
    %s131 = sphi 0, %s117
    %s135 = sphi 0, %s135
    %s137 = sphi 0, %s135
    %s138 = sphi 0, %s137
    %s152 = sphi 0, %s138
    %s156 = sphi 0, %s156
    %s158 = sphi 0, %s156
    %s159 = sphi 0, %s158
    %s173 = sphi 0, %s159
    %s177 = sphi 0, %s177
    %s179 = sphi 0, %s177
    %s180 = sphi 0, %s179
    %s194 = sphi 0, %s180
    %s198 = sphi 0, %s198
    %s200 = sphi 0, %s198
    %s201 = sphi 0, %s200
    %s215 = sphi 0, %s201
    %s219 = sphi 0, %s219
    %s221 = sphi 0, %s219
    %s222 = sphi 0, %s221
    %s236 = sphi 0, %s222
    %s240 = sphi 0, %s240
    %s242 = sphi 0, %s240
    %s243 = sphi 0, %s242
    %s257 = sphi 0, %s243
    %s263 = sphi 0, %s265
    %s266 = sphi 0, %s263
    %s267 = sphi 0, %s266
    %s283 = sphi 0, %s267
  $region4: #{mbconv_stage_forward.3} parent=0 // loop_header_branch
    %20 = sbr.rel (%p18) target = $region8
  $region5: #{mbconv_stage_forward.3} parent=0 // loop_body
    %s22 = ssub.s32 %s17, 1
    %s23 = ssub.s32 %s17, 2
    %s24 = sadd.s32 %s17, 1
    %s25 = ssub.s32 %s17, %s24
    %p26 = scmp.eq.s32.totalorder %s25, 0
    %s28 = sadd.s32 %s27, 1
    %s29 = scalar_select %p26, %s27, %s28
    %p32 = pneg %p26
    %p33 = scmp.eq.s32.totalorder %s17, 1
    %p34 = por %p32, %p33
    %p35 = scmp.ne.s32.totalorder %s27, %s30
    %p36 = scmp.eq.s32.totalorder %s17, 0
    %p37 = por %p35, %p36
    %p38 = scmp.ne.s32.totalorder %s27, %s30
    %p39 = scmp.eq.s32.totalorder %s22, 1
    %p40 = por %p38, %p39
    %p41 = scmp.ne.s32.totalorder %s30, %s31
    %p42 = scmp.eq.s32.totalorder %s22, 0
    %p43 = por %p41, %p42
    %p44 = scmp.ne.s32.totalorder %s30, %s31
    %p45 = scmp.eq.s32.totalorder %s23, 1
    %p46 = por %p44, %p45
    %p48 = scmp.ne.s32.totalorder %s31, %s47
    %p49 = scmp.eq.s32.totalorder %s23, 0
    %p50 = por %p48, %p49
    %s52 = sadd.s32 %s51, 1
    %p55 = scmp.eq.s32.totalorder %s17, 1
    %p56 = scmp.ne.s32.totalorder %s51, %s53
    %p57 = scmp.eq.s32.totalorder %s17, 0
    %p58 = por %p56, %p57
    %p59 = scmp.ne.s32.totalorder %s51, %s53
    %p60 = scmp.eq.s32.totalorder %s22, 1
    %p61 = por %p59, %p60
    %p62 = scmp.ne.s32.totalorder %s53, %s54
    %p63 = scmp.eq.s32.totalorder %s22, 0
    %p64 = por %p62, %p63
    %p65 = scmp.ne.s32.totalorder %s53, %s54
    %p66 = scmp.eq.s32.totalorder %s23, 1
    %p67 = por %p65, %p66
    %p69 = scmp.ne.s32.totalorder %s54, %s68
    %p70 = scmp.eq.s32.totalorder %s23, 0
    %p71 = por %p69, %p70
    %s73 = sadd.s32 %s72, 1
    %p76 = scmp.eq.s32.totalorder %s17, 1
    %p77 = scmp.ne.s32.totalorder %s72, %s74
    %p78 = scmp.eq.s32.totalorder %s17, 0
    %p79 = por %p77, %p78
    %p80 = scmp.ne.s32.totalorder %s72, %s74
    %p81 = scmp.eq.s32.totalorder %s22, 1
    %p82 = por %p80, %p81
    %p83 = scmp.ne.s32.totalorder %s74, %s75
    %p84 = scmp.eq.s32.totalorder %s22, 0
    %p85 = por %p83, %p84
    %p86 = scmp.ne.s32.totalorder %s74, %s75
    %p87 = scmp.eq.s32.totalorder %s23, 1
    %p88 = por %p86, %p87
    %p90 = scmp.ne.s32.totalorder %s75, %s89
    %p91 = scmp.eq.s32.totalorder %s23, 0
    %p92 = por %p90, %p91
    %s94 = sadd.s32 %s93, 1
    %p97 = scmp.eq.s32.totalorder %s17, 1
    %p98 = scmp.ne.s32.totalorder %s93, %s95
    %p99 = scmp.eq.s32.totalorder %s17, 0
    %p100 = por %p98, %p99
    %p101 = scmp.ne.s32.totalorder %s93, %s95
    %p102 = scmp.eq.s32.totalorder %s22, 1
    %p103 = por %p101, %p102
    %p104 = scmp.ne.s32.totalorder %s95, %s96
    %p105 = scmp.eq.s32.totalorder %s22, 0
    %p106 = por %p104, %p105
    %p107 = scmp.ne.s32.totalorder %s95, %s96
    %p108 = scmp.eq.s32.totalorder %s23, 1
    %p109 = por %p107, %p108
    %p111 = scmp.ne.s32.totalorder %s96, %s110
    %p112 = scmp.eq.s32.totalorder %s23, 0
    %p113 = por %p111, %p112
    %s115 = sadd.s32 %s114, 1
    %p118 = scmp.eq.s32.totalorder %s17, 1
    %p119 = scmp.ne.s32.totalorder %s114, %s116
    %p120 = scmp.eq.s32.totalorder %s17, 0
    %p121 = por %p119, %p120
    %p122 = scmp.ne.s32.totalorder %s114, %s116
    %p123 = scmp.eq.s32.totalorder %s22, 1
    %p124 = por %p122, %p123
    %p125 = scmp.ne.s32.totalorder %s116, %s117
    %p126 = scmp.eq.s32.totalorder %s22, 0
    %p127 = por %p125, %p126
    %p128 = scmp.ne.s32.totalorder %s116, %s117
    %p129 = scmp.eq.s32.totalorder %s23, 1
    %p130 = por %p128, %p129
    %p132 = scmp.ne.s32.totalorder %s117, %s131
    %p133 = scmp.eq.s32.totalorder %s23, 0
    %p134 = por %p132, %p133
    %s136 = sadd.s32 %s135, 1
    %p139 = scmp.eq.s32.totalorder %s17, 1
    %p140 = scmp.ne.s32.totalorder %s135, %s137
    %p141 = scmp.eq.s32.totalorder %s17, 0
    %p142 = por %p140, %p141
    %p143 = scmp.ne.s32.totalorder %s135, %s137
    %p144 = scmp.eq.s32.totalorder %s22, 1
    %p145 = por %p143, %p144
    %p146 = scmp.ne.s32.totalorder %s137, %s138
    %p147 = scmp.eq.s32.totalorder %s22, 0
    %p148 = por %p146, %p147
    %p149 = scmp.ne.s32.totalorder %s137, %s138
    %p150 = scmp.eq.s32.totalorder %s23, 1
    %p151 = por %p149, %p150
    %p153 = scmp.ne.s32.totalorder %s138, %s152
    %p154 = scmp.eq.s32.totalorder %s23, 0
    %p155 = por %p153, %p154
    %s157 = sadd.s32 %s156, 1
    %p160 = scmp.eq.s32.totalorder %s17, 1
    %p161 = scmp.ne.s32.totalorder %s156, %s158
    %p162 = scmp.eq.s32.totalorder %s17, 0
    %p163 = por %p161, %p162
    %p164 = scmp.ne.s32.totalorder %s156, %s158
    %p165 = scmp.eq.s32.totalorder %s22, 1
    %p166 = por %p164, %p165
    %p167 = scmp.ne.s32.totalorder %s158, %s159
    %p168 = scmp.eq.s32.totalorder %s22, 0
    %p169 = por %p167, %p168
    %p170 = scmp.ne.s32.totalorder %s158, %s159
    %p171 = scmp.eq.s32.totalorder %s23, 1
    %p172 = por %p170, %p171
    %p174 = scmp.ne.s32.totalorder %s159, %s173
    %p175 = scmp.eq.s32.totalorder %s23, 0
    %p176 = por %p174, %p175
    %s178 = sadd.s32 %s177, 1
    %p181 = scmp.eq.s32.totalorder %s17, 1
    %p182 = scmp.ne.s32.totalorder %s177, %s179
    %p183 = scmp.eq.s32.totalorder %s17, 0
    %p184 = por %p182, %p183
    %p185 = scmp.ne.s32.totalorder %s177, %s179
    %p186 = scmp.eq.s32.totalorder %s22, 1
    %p187 = por %p185, %p186
    %p188 = scmp.ne.s32.totalorder %s179, %s180
    %p189 = scmp.eq.s32.totalorder %s22, 0
    %p190 = por %p188, %p189
    %p191 = scmp.ne.s32.totalorder %s179, %s180
    %p192 = scmp.eq.s32.totalorder %s23, 1
    %p193 = por %p191, %p192
    %p195 = scmp.ne.s32.totalorder %s180, %s194
    %p196 = scmp.eq.s32.totalorder %s23, 0
    %p197 = por %p195, %p196
    %s199 = sadd.s32 %s198, 1
    %p202 = scmp.eq.s32.totalorder %s17, 1
    %p203 = scmp.ne.s32.totalorder %s198, %s200
    %p204 = scmp.eq.s32.totalorder %s17, 0
    %p205 = por %p203, %p204
    %p206 = scmp.ne.s32.totalorder %s198, %s200
    %p207 = scmp.eq.s32.totalorder %s22, 1
    %p208 = por %p206, %p207
    %p209 = scmp.ne.s32.totalorder %s200, %s201
    %p210 = scmp.eq.s32.totalorder %s22, 0
    %p211 = por %p209, %p210
    %p212 = scmp.ne.s32.totalorder %s200, %s201
    %p213 = scmp.eq.s32.totalorder %s23, 1
    %p214 = por %p212, %p213
    %p216 = scmp.ne.s32.totalorder %s201, %s215
    %p217 = scmp.eq.s32.totalorder %s23, 0
    %p218 = por %p216, %p217
    %s220 = sadd.s32 %s219, 1
    %p223 = scmp.eq.s32.totalorder %s17, 1
    %p224 = scmp.ne.s32.totalorder %s219, %s221
    %p225 = scmp.eq.s32.totalorder %s17, 0
    %p226 = por %p224, %p225
    %p227 = scmp.ne.s32.totalorder %s219, %s221
    %p228 = scmp.eq.s32.totalorder %s22, 1
    %p229 = por %p227, %p228
    %p230 = scmp.ne.s32.totalorder %s221, %s222
    %p231 = scmp.eq.s32.totalorder %s22, 0
    %p232 = por %p230, %p231
    %p233 = scmp.ne.s32.totalorder %s221, %s222
    %p234 = scmp.eq.s32.totalorder %s23, 1
    %p235 = por %p233, %p234
    %p237 = scmp.ne.s32.totalorder %s222, %s236
    %p238 = scmp.eq.s32.totalorder %s23, 0
    %p239 = por %p237, %p238
    %s241 = sadd.s32 %s240, 1
    %p244 = scmp.eq.s32.totalorder %s17, 1
    %p245 = scmp.ne.s32.totalorder %s240, %s242
    %p246 = scmp.eq.s32.totalorder %s17, 0
    %p247 = por %p245, %p246
    %p248 = scmp.ne.s32.totalorder %s240, %s242
    %p249 = scmp.eq.s32.totalorder %s22, 1
    %p250 = por %p248, %p249
    %p251 = scmp.ne.s32.totalorder %s242, %s243
    %p252 = scmp.eq.s32.totalorder %s22, 0
    %p253 = por %p251, %p252
    %p254 = scmp.ne.s32.totalorder %s242, %s243
    %p255 = scmp.eq.s32.totalorder %s23, 1
    %p256 = por %p254, %p255
    %p258 = scmp.ne.s32.totalorder %s243, %s257
    %p259 = scmp.eq.s32.totalorder %s23, 0
    %p260 = por %p258, %p259
    %s261 = ssub.s32 %s17, %s24
    %p262 = scmp.eq.s32.totalorder %s261, 0
    %s264 = sadd.s32 %s263, 1
    %s265 = scalar_select %p262, %s263, %s264
    %p268 = pneg %p262
    %p269 = scmp.eq.s32.totalorder %s17, 1
    %p270 = por %p268, %p269
    %p271 = scmp.ne.s32.totalorder %s263, %s266
    %p272 = scmp.eq.s32.totalorder %s17, 0
    %p273 = por %p271, %p272
    %p274 = scmp.ne.s32.totalorder %s263, %s266
    %p275 = scmp.eq.s32.totalorder %s22, 1
    %p276 = por %p274, %p275
    %p277 = scmp.ne.s32.totalorder %s266, %s267
    %p278 = scmp.eq.s32.totalorder %s22, 0
    %p279 = por %p277, %p278
    %p280 = scmp.ne.s32.totalorder %s266, %s267
    %p281 = scmp.eq.s32.totalorder %s23, 1
    %p282 = por %p280, %p281
    %p284 = scmp.ne.s32.totalorder %s267, %s283
    %p285 = scmp.eq.s32.totalorder %s23, 0
    %p286 = por %p284, %p285
    %p287 = scmp.le.s32.totalorder 1, %s17
    %p288 = scmp.lt.s32.totalorder %s17, 3
    %p289 = pnand %p287, %p288
    %p290 = pneg %p289
    // Predicated region
    $region9: #{mbconv_stage_forward.3} parent=5 // pred_check
      _
    $region10: #{mbconv_stage_forward.3} parent=5 // pred_check_branch
      %292 = sbr.rel (%p289) target = $region12
    $region11: #{mbconv_stage_forward.3} parent=5 // pred_region
      %s293 = ssub.s32 %s17, 1
      // Predicated region
      $region13: #{mbconv_stage_forward.3} parent=11 // pred_check
        %p294 = pneg %p64
      $region14: #{mbconv_stage_forward.3} parent=11 // pred_check_branch
        %296 = sbr.rel (%p294) target = $region16
      $region15: #{mbconv_stage_forward.3} parent=11 // pred_region
        _
      $region16: #{mbconv_stage_forward.3} parent=11 // pred_fallthru
        _
      // Predicated region
      $region17: #{mbconv_stage_forward.3} parent=11 // pred_check
        %p297 = pneg %p85
      $region18: #{mbconv_stage_forward.3} parent=11 // pred_check_branch
        %299 = sbr.rel (%p297) target = $region20
      $region19: #{mbconv_stage_forward.3} parent=11 // pred_region
        _
      $region20: #{mbconv_stage_forward.3} parent=11 // pred_fallthru
        _
      // Predicated region
      $region21: #{mbconv_stage_forward.3} parent=11 // pred_check
        %p300 = pneg %p106
      $region22: #{mbconv_stage_forward.3} parent=11 // pred_check_branch
        %302 = sbr.rel (%p300) target = $region24
      $region23: #{mbconv_stage_forward.3} parent=11 // pred_region
        _
      $region24: #{mbconv_stage_forward.3} parent=11 // pred_fallthru
        _
      // Predicated region
      $region25: #{mbconv_stage_forward.3} parent=11 // pred_check
        %p303 = pneg %p127
      $region26: #{mbconv_stage_forward.3} parent=11 // pred_check_branch
        %305 = sbr.rel (%p303) target = $region28
      $region27: #{mbconv_stage_forward.3} parent=11 // pred_region
        _
      $region28: #{mbconv_stage_forward.3} parent=11 // pred_fallthru
        _
      // Predicated region
      $region29: #{mbconv_stage_forward.3} parent=11 // pred_check
        %p306 = pneg %p148
      $region30: #{mbconv_stage_forward.3} parent=11 // pred_check_branch
        %308 = sbr.rel (%p306) target = $region32
      $region31: #{mbconv_stage_forward.3} parent=11 // pred_region
        _
      $region32: #{mbconv_stage_forward.3} parent=11 // pred_fallthru
        _
      // Predicated region
      $region33: #{mbconv_stage_forward.3} parent=11 // pred_check
        %p309 = pneg %p169
      $region34: #{mbconv_stage_forward.3} parent=11 // pred_check_branch
        %311 = sbr.rel (%p309) target = $region36
      $region35: #{mbconv_stage_forward.3} parent=11 // pred_region
        _
      $region36: #{mbconv_stage_forward.3} parent=11 // pred_fallthru
        _
      // Predicated region
      $region37: #{mbconv_stage_forward.3} parent=11 // pred_check
        %p312 = pneg %p190
      $region38: #{mbconv_stage_forward.3} parent=11 // pred_check_branch
        %314 = sbr.rel (%p312) target = $region40
      $region39: #{mbconv_stage_forward.3} parent=11 // pred_region
        _
      $region40: #{mbconv_stage_forward.3} parent=11 // pred_fallthru
        _
      // Predicated region
      $region41: #{mbconv_stage_forward.3} parent=11 // pred_check
        %p315 = pneg %p211
      $region42: #{mbconv_stage_forward.3} parent=11 // pred_check_branch
        %317 = sbr.rel (%p315) target = $region44
      $region43: #{mbconv_stage_forward.3} parent=11 // pred_region
        _
      $region44: #{mbconv_stage_forward.3} parent=11 // pred_fallthru
        _
      // Predicated region
      $region45: #{mbconv_stage_forward.3} parent=11 // pred_check
        %p318 = pneg %p232
      $region46: #{mbconv_stage_forward.3} parent=11 // pred_check_branch
        %320 = sbr.rel (%p318) target = $region48
      $region47: #{mbconv_stage_forward.3} parent=11 // pred_region
        _
      $region48: #{mbconv_stage_forward.3} parent=11 // pred_fallthru
        _
      // Predicated region
      $region49: #{mbconv_stage_forward.3} parent=11 // pred_check
        %p321 = pneg %p253
      $region50: #{mbconv_stage_forward.3} parent=11 // pred_check_branch
        %323 = sbr.rel (%p321) target = $region52
      $region51: #{mbconv_stage_forward.3} parent=11 // pred_region
        _
      $region52: #{mbconv_stage_forward.3} parent=11 // pred_fallthru
        _
    $region12: #{mbconv_stage_forward.3} parent=5 // pred_fallthru
      _
    %p324 = scmp.lt.s32.totalorder %s17, 2
    // Predicated region
    $region53: #{mbconv_stage_forward.3} parent=5 // pred_check
      %p325 = pneg %p324
    $region54: #{mbconv_stage_forward.3} parent=5 // pred_check_branch
      %327 = sbr.rel (%p325) target = $region56
    $region55: #{mbconv_stage_forward.3} parent=5 // pred_region
      // Predicated region
      $region57: #{mbconv_stage_forward.3} parent=55 // pred_check
        %p328 = pneg %p37
      $region58: #{mbconv_stage_forward.3} parent=55 // pred_check_branch
        %330 = sbr.rel (%p328) target = $region60
      $region59: #{mbconv_stage_forward.3} parent=55 // pred_region
        %p331 = scmp.lt.s32.totalorder %s17, 1
        %s332 = scalar_select %p331, %s17, 1
        %s333 = smul.addr %s332, 32
        %s334 = smul.addr %s333, 4
        %s335 = scalar_lea.vmem %s0, %s334
      $region60: #{mbconv_stage_forward.3} parent=55 // pred_fallthru
        _
    $region56: #{mbconv_stage_forward.3} parent=5 // pred_fallthru
      _
    %p336 = scmp.le.s32.totalorder 1, %s17
    %p337 = scmp.lt.s32.totalorder %s17, 3
    %p338 = pnand %p336, %p337
    %p339 = pneg %p338
    // Predicated region
    $region61: #{mbconv_stage_forward.3} parent=5 // pred_check
      _
    $region62: #{mbconv_stage_forward.3} parent=5 // pred_check_branch
      %341 = sbr.rel (%p338) target = $region64
    $region63: #{mbconv_stage_forward.3} parent=5 // pred_region
      %s342 = ssub.s32 %s17, 1
      %p343 = scmp.lt.s32.totalorder %s22, 1
      %s344 = scalar_select %p343, %s22, 1
      %s345 = smul.addr %s344, 32
      %s346 = smul.addr %s345, 4
      %s347 = scalar_lea.vmem %s0, %s346
      %p348 = pneg %p43
      %p349 = pneg %p40
      %p350 = pneg %p64
      %p351 = pneg %p61
      %p352 = pneg %p85
      %p353 = pneg %p82
      %p354 = pneg %p106
      %p355 = pneg %p103
      %p356 = pneg %p127
      %p357 = pneg %p124
      %p358 = pneg %p148
      %p359 = pneg %p145
      %p360 = pneg %p169
      %p361 = pneg %p166
      %p362 = pneg %p190
      %p363 = pneg %p187
      %p364 = pneg %p211
      %p365 = pneg %p208
      %p366 = pneg %p232
      %p367 = pneg %p229
      %p368 = pneg %p253
      %p369 = pneg %p250
      %p370 = pneg %p279
      %p371 = pneg %p276
      %p372 = scmp.lt.s32.totalorder %s22, 1
      %s373 = scalar_select %p372, %s22, 1
      %s374 = smul.addr %s373, 8
      %s375 = smul.addr %s374, 4
      %s376 = scalar_lea.vmem %s11, %s375
      %p377 = scmp.lt.s32.totalorder %s22, 1
      %s378 = scalar_select %p377, %s22, 1
      %s379 = smul.addr %s378, 32
      %s380 = smul.addr %s379, 4
      %s381 = scalar_lea.vmem %s0, %s380
      %p382 = scmp.lt.s32.totalorder %s22, 1
      %s383 = scalar_select %p382, %s22, 1
      %s384 = smul.addr %s383, 8
      %s385 = smul.addr %s384, 4
      %s386 = scalar_lea.vmem %s11, %s385
      %v388 = vld [vmem:[%s381] sm:$0xf]
      %v389 = vld [vmem:[%s381 + $0x4] sm:$0xf]
      %v390 = vld [vmem:[%s381 + $0x8] sm:$0xf]
      %v391 = vld [vmem:[%s381 + $0xc] sm:$0xf]
      %v392 = vld [vmem:[%s381 + $0x10] sm:$0xf]
      %v393 = vld [vmem:[%s381 + $0x14] sm:$0xf]
      %v394 = vld [vmem:[%s381 + $0x18] sm:$0xf]
      %v395 = vld [vmem:[%s381 + $0x1c] sm:$0xf]
      %v396 = vld [vmem:[%s381 + $0x20] sm:$0xf]
      %v397 = vld [vmem:[%s381 + $0x24] sm:$0xf]
      %v398 = vld [vmem:[%s381 + $0x28] sm:$0xf]
      %v399 = vld [vmem:[%s381 + $0x2c] sm:$0xf]
      %v400 = vld [vmem:[%s381 + $0x30] sm:$0xf]
      %v401 = vld [vmem:[%s381 + $0x34] sm:$0xf]
      %v402 = vld [vmem:[%s381 + $0x38] sm:$0xf]
      %v403 = vld [vmem:[%s381 + $0x3c] sm:$0xf]
      %v404 = vld [vmem:[%s381 + $0x40] sm:$0xf]
      %v405 = vld [vmem:[%s381 + $0x44] sm:$0xf]
      %v406 = vld [vmem:[%s381 + $0x48] sm:$0xf]
      %v407 = vld [vmem:[%s381 + $0x4c] sm:$0xf]
      %v408 = vld [vmem:[%s381 + $0x50] sm:$0xf]
      %v409 = vld [vmem:[%s381 + $0x54] sm:$0xf]
      %v410 = vld [vmem:[%s381 + $0x58] sm:$0xf]
      %v411 = vld [vmem:[%s381 + $0x5c] sm:$0xf]
      %v412 = vld [vmem:[%s381 + $0x60] sm:$0xf]
      %v413 = vld [vmem:[%s381 + $0x64] sm:$0xf]
      %v414 = vld [vmem:[%s381 + $0x68] sm:$0xf]
      %v415 = vld [vmem:[%s381 + $0x6c] sm:$0xf]
      %v416 = vld [vmem:[%s381 + $0x70] sm:$0xf]
      %v417 = vld [vmem:[%s381 + $0x74] sm:$0xf]
      %v418 = vld [vmem:[%s381 + $0x78] sm:$0xf]
      %v419 = vld [vmem:[%s381 + $0x7c] sm:$0xf]
      %v420 = vld [vmem:[%s1] sm:$0xff]
      %v421 = vld [vmem:[%s1 + $0x8] sm:$0xff]
      %v422 = vld [vmem:[%s1 + $0x10] sm:$0xff]
      %v423 = vld [vmem:[%s2] sm:$0x3]
      %v425 = vlaneseq
      %v426 = vshrl.u32 %v425, 7
      %v427 = vsub.s32 0, %v426
      %v428 = vrot.slane %v423, %v427
      %v429 = vlaneseq
      %v430 = vshrl.u32 %v429, 7
      %v431 = vsub.s32 1, %v430
      %v432 = vrot.slane %v423, %v431
      %v467 = vunpack.c.l.b16 %v388
      %v468 = vunpack.c.l.b16 %v389
      %v469 = vunpack.c.l.b16 %v390
      %v470 = vunpack.c.l.b16 %v391
      %v471 = vunpack.c.l.b16 %v392
      %v472 = vunpack.c.l.b16 %v393
      %v473 = vunpack.c.l.b16 %v394
      %v474 = vunpack.c.l.b16 %v395
      %v475 = vunpack.c.l.b16 %v396
      %v476 = vunpack.c.l.b16 %v397
      %v477 = vunpack.c.l.b16 %v398
      %v478 = vunpack.c.l.b16 %v399
      %v479 = vunpack.c.l.b16 %v400
      %v480 = vunpack.c.l.b16 %v401
      %v481 = vunpack.c.l.b16 %v402
      %v482 = vunpack.c.l.b16 %v403
      %v483 = vunpack.c.l.b16 %v404
      %v484 = vunpack.c.l.b16 %v405
      %v485 = vunpack.c.l.b16 %v406
      %v486 = vunpack.c.l.b16 %v407
      %v487 = vunpack.c.l.b16 %v408
      %v488 = vunpack.c.l.b16 %v409
      %v489 = vunpack.c.l.b16 %v410
      %v490 = vunpack.c.l.b16 %v411
      %v491 = vunpack.c.l.b16 %v412
      %v492 = vunpack.c.l.b16 %v413
      %v493 = vunpack.c.l.b16 %v414
      %v494 = vunpack.c.l.b16 %v415
      %v495 = vunpack.c.l.b16 %v416
      %v496 = vunpack.c.l.b16 %v417
      %v497 = vunpack.c.l.b16 %v418
      %v498 = vunpack.c.l.b16 %v419
      %v499 = vpack.c.b16 %v468, %v467
      %v500 = vpack.c.b16 %v470, %v469
      %v501 = vpack.c.b16 %v472, %v471
      %v502 = vpack.c.b16 %v474, %v473
      %v503 = vpack.c.b16 %v476, %v475
      %v504 = vpack.c.b16 %v478, %v477
      %v505 = vpack.c.b16 %v480, %v479
      %v506 = vpack.c.b16 %v482, %v481
      %v507 = vpack.c.b16 %v484, %v483
      %v508 = vpack.c.b16 %v486, %v485
      %v509 = vpack.c.b16 %v488, %v487
      %v510 = vpack.c.b16 %v490, %v489
      %v511 = vpack.c.b16 %v492, %v491
      %v512 = vpack.c.b16 %v494, %v493
      %v513 = vpack.c.b16 %v496, %v495
      %v514 = vpack.c.b16 %v498, %v497
      %v518 = vunpack.c.l.b16 %v420
      %v519 = vunpack.c.h.b16 %v420
      %v520 = vunpack.c.l.b16 %v421
      %v521 = vunpack.c.h.b16 %v421
      %v522 = vunpack.c.l.b16 %v422
      %v523 = vunpack.c.h.b16 %v422
      %v524 = vpack.c.b16 %v520, %v518
      %v525 = vpack.c.b16 %v521, %v519
      %v526 = vpack.c.b16 %v522, %v522
      %v527 = vpack.c.b16 %v523, %v523
      %vm530 = vcmask 195584
      %v532 = vsel %vm530, %v499, 0
      %v535 = vsel %vm530, %v500, 0
      %v538 = vsel %vm530, %v501, 0
      %v541 = vsel %vm530, %v502, 0
      %v544 = vsel %vm530, %v503, 0
      %v547 = vsel %vm530, %v504, 0
      %v550 = vsel %vm530, %v505, 0
      %v553 = vsel %vm530, %v506, 0
      %v556 = vsel %vm530, %v507, 0
      %v559 = vsel %vm530, %v508, 0
      %v562 = vsel %vm530, %v509, 0
      %v565 = vsel %vm530, %v510, 0
      %v568 = vsel %vm530, %v511, 0
      %v571 = vsel %vm530, %v512, 0
      %v574 = vsel %vm530, %v513, 0
      %v577 = vsel %vm530, %v514, 0
      %vm579 = vcmask 1043456
      %v581 = vsel %vm579, %v526, 0
      %v584 = vsel %vm579, %v527, 0
      %586 = vmatprep.subr.bf16.mxu0 %v525
      %587 = vmatpush1.bf16.msra.mxu0 %v524
      %588 = vmatprep.subr.bf16.mxu0 %v584
      %589 = vmatpush1.bf16.msra.mxu0 %v581
      %590 = vmatprep.subr.bf16.mxu0 0
      %591 = vmatpush1.bf16.msra.mxu0 0
      %592 = vmatprep.subr.bf16.mxu0 0
      %593 = vmatpush1.bf16.msra.mxu0 0
      %594 = vmatprep.subr.bf16.mxu0 0
      %595 = vmatpush1.bf16.msra.mxu0 0
      %596 = vmatprep.subr.bf16.mxu0 0
      %597 = vmatpush1.bf16.msra.mxu0 0
      %598 = vmatprep.subr.bf16.mxu0 0
      %599 = vmatpush1.bf16.msra.mxu0 0
      %600 = vmatprep.subr.bf16.mxu0 0
      %601 = vmatpush1.bf16.msra.mxu0 0
      %602 = vmatprep.subr.bf16.mxu0 0
      %603 = vmatpush1.bf16.msra.mxu0 0
      %604 = vmatprep.subr.bf16.mxu0 0
      %605 = vmatpush1.bf16.msra.mxu0 0
      %606 = vmatprep.subr.bf16.mxu0 0
      %607 = vmatpush1.bf16.msra.mxu0 0
      %608 = vmatprep.subr.bf16.mxu0 0
      %609 = vmatpush1.bf16.msra.mxu0 0
      %610 = vmatprep.subr.bf16.mxu0 0
      %611 = vmatpush1.bf16.msra.mxu0 0
      %612 = vmatprep.subr.bf16.mxu0 0
      %613 = vmatpush1.bf16.msra.mxu0 0
      %614 = vmatprep.subr.bf16.mxu0 0
      %615 = vmatpush1.bf16.msra.mxu0 0
      %616 = vmatprep.subr.bf16.mxu0 0
      %617 = vmatpush1.bf16.msra.mxu0 0
      %618 = vmatprep.mubr.bf16.mxu0 0
      %619 = vmatmul.mubr.bf16.gmra.mrb[0].mxu0 %v532
      %v620 = vpop.f32.mrb[0].mxu0
      %v621 = vadd.f32 %v428, %v620
      %v622 = vpop.f32.mrb[0].mxu0
      %v623 = vadd.f32 %v432, %v622
      %v624 = vpop.f32.mrb[0].mxu0
      %v625 = vadd.f32 %v428, %v624
      %v626 = vpop.f32.mrb[0].mxu0
      %v627 = vadd.f32 %v432, %v626
      %628 = vmatprep.mubr.bf16.mxu0 0
      %629 = vmatmul.mubr.bf16.gmra.mrb[0].mxu0 %v535
      %v630 = vpop.f32.mrb[0].mxu0
      %v631 = vadd.f32 %v428, %v630
      %v632 = vpop.f32.mrb[0].mxu0
      %v633 = vadd.f32 %v432, %v632
      %v634 = vpop.f32.mrb[0].mxu0
      %v635 = vadd.f32 %v428, %v634
      %v636 = vpop.f32.mrb[0].mxu0
      %v637 = vadd.f32 %v432, %v636
      %638 = vmatprep.mubr.bf16.mxu0 0
      %639 = vmatmul.mubr.bf16.gmra.mrb[0].mxu0 %v538
      %v640 = vpop.f32.mrb[0].mxu0
      %v641 = vadd.f32 %v428, %v640
      %v642 = vpop.f32.mrb[0].mxu0
      %v643 = vadd.f32 %v432, %v642
      %v644 = vpop.f32.mrb[0].mxu0
      %v645 = vadd.f32 %v428, %v644
      %v646 = vpop.f32.mrb[0].mxu0
      %v647 = vadd.f32 %v432, %v646
      %648 = vmatprep.mubr.bf16.mxu0 0
      %649 = vmatmul.mubr.bf16.gmra.mrb[0].mxu0 %v541
      %v650 = vpop.f32.mrb[0].mxu0
      %v651 = vadd.f32 %v428, %v650
      %v652 = vpop.f32.mrb[0].mxu0
      %v653 = vadd.f32 %v432, %v652
      %v654 = vpop.f32.mrb[0].mxu0
      %v655 = vadd.f32 %v428, %v654
      %v656 = vpop.f32.mrb[0].mxu0
      %v657 = vadd.f32 %v432, %v656
      %658 = vmatprep.mubr.bf16.mxu0 0
      %659 = vmatmul.mubr.bf16.gmra.mrb[0].mxu0 %v544
      %v660 = vpop.f32.mrb[0].mxu0
      %v661 = vadd.f32 %v428, %v660
      %v662 = vpop.f32.mrb[0].mxu0
      %v663 = vadd.f32 %v432, %v662
      %v664 = vpop.f32.mrb[0].mxu0
      %v665 = vadd.f32 %v428, %v664
      %v666 = vpop.f32.mrb[0].mxu0
      %v667 = vadd.f32 %v432, %v666
      %668 = vmatprep.mubr.bf16.mxu0 0
      %669 = vmatmul.mubr.bf16.gmra.mrb[0].mxu0 %v547
      %v670 = vpop.f32.mrb[0].mxu0
      %v671 = vadd.f32 %v428, %v670
      %v672 = vpop.f32.mrb[0].mxu0
      %v673 = vadd.f32 %v432, %v672
      %v674 = vpop.f32.mrb[0].mxu0
      %v675 = vadd.f32 %v428, %v674
      %v676 = vpop.f32.mrb[0].mxu0
      %v677 = vadd.f32 %v432, %v676
      %678 = vmatprep.mubr.bf16.mxu0 0
      %679 = vmatmul.mubr.bf16.gmra.mrb[0].mxu0 %v550
      %v680 = vpop.f32.mrb[0].mxu0
      %v681 = vadd.f32 %v428, %v680
      %v682 = vpop.f32.mrb[0].mxu0
      %v683 = vadd.f32 %v432, %v682
      %v684 = vpop.f32.mrb[0].mxu0
      %v685 = vadd.f32 %v428, %v684
      %v686 = vpop.f32.mrb[0].mxu0
      %v687 = vadd.f32 %v432, %v686
      %688 = vmatprep.mubr.bf16.mxu0 0
      %689 = vmatmul.mubr.bf16.gmra.mrb[0].mxu0 %v553
      %v690 = vpop.f32.mrb[0].mxu0
      %v691 = vadd.f32 %v428, %v690
      %v692 = vpop.f32.mrb[0].mxu0
      %v693 = vadd.f32 %v432, %v692
      %v694 = vpop.f32.mrb[0].mxu0
      %v695 = vadd.f32 %v428, %v694
      %v696 = vpop.f32.mrb[0].mxu0
      %v697 = vadd.f32 %v432, %v696
      %698 = vmatprep.mubr.bf16.mxu0 0
      %699 = vmatmul.mubr.bf16.gmra.mrb[0].mxu0 %v556
      %v700 = vpop.f32.mrb[0].mxu0
      %v701 = vadd.f32 %v428, %v700
      %v702 = vpop.f32.mrb[0].mxu0
      %v703 = vadd.f32 %v432, %v702
      %v704 = vpop.f32.mrb[0].mxu0
      %v705 = vadd.f32 %v428, %v704
      %v706 = vpop.f32.mrb[0].mxu0
      %v707 = vadd.f32 %v432, %v706
      %708 = vmatprep.mubr.bf16.mxu0 0
      %709 = vmatmul.mubr.bf16.gmra.mrb[0].mxu0 %v559
      %v710 = vpop.f32.mrb[0].mxu0
      %v711 = vadd.f32 %v428, %v710
      %v712 = vpop.f32.mrb[0].mxu0
      %v713 = vadd.f32 %v432, %v712
      %v714 = vpop.f32.mrb[0].mxu0
      %v715 = vadd.f32 %v428, %v714
      %v716 = vpop.f32.mrb[0].mxu0
      %v717 = vadd.f32 %v432, %v716
      %718 = vmatprep.mubr.bf16.mxu0 0
      %719 = vmatmul.mubr.bf16.gmra.mrb[0].mxu0 %v562
      %v720 = vpop.f32.mrb[0].mxu0
      %v721 = vadd.f32 %v428, %v720
      %v722 = vpop.f32.mrb[0].mxu0
      %v723 = vadd.f32 %v432, %v722
      %v724 = vpop.f32.mrb[0].mxu0
      %v725 = vadd.f32 %v428, %v724
      %v726 = vpop.f32.mrb[0].mxu0
      %v727 = vadd.f32 %v432, %v726
      %728 = vmatprep.mubr.bf16.mxu0 0
      %729 = vmatmul.mubr.bf16.gmra.mrb[0].mxu0 %v565
      %v730 = vpop.f32.mrb[0].mxu0
      %v731 = vadd.f32 %v428, %v730
      %v732 = vpop.f32.mrb[0].mxu0
      %v733 = vadd.f32 %v432, %v732
      %v734 = vpop.f32.mrb[0].mxu0
      %v735 = vadd.f32 %v428, %v734
      %v736 = vpop.f32.mrb[0].mxu0
      %v737 = vadd.f32 %v432, %v736
      %738 = vmatprep.mubr.bf16.mxu0 0
      %739 = vmatmul.mubr.bf16.gmra.mrb[0].mxu0 %v568
      %v740 = vpop.f32.mrb[0].mxu0
      %v741 = vadd.f32 %v428, %v740
      %v742 = vpop.f32.mrb[0].mxu0
      %v743 = vadd.f32 %v432, %v742
      %v744 = vpop.f32.mrb[0].mxu0
      %v745 = vadd.f32 %v428, %v744
      %v746 = vpop.f32.mrb[0].mxu0
      %v747 = vadd.f32 %v432, %v746
      %748 = vmatprep.mubr.bf16.mxu0 0
      %749 = vmatmul.mubr.bf16.gmra.mrb[0].mxu0 %v571
      %v750 = vpop.f32.mrb[0].mxu0
      %v751 = vadd.f32 %v428, %v750
      %v752 = vpop.f32.mrb[0].mxu0
      %v753 = vadd.f32 %v432, %v752
      %v754 = vpop.f32.mrb[0].mxu0
      %v755 = vadd.f32 %v428, %v754
      %v756 = vpop.f32.mrb[0].mxu0
      %v757 = vadd.f32 %v432, %v756
      %758 = vmatprep.mubr.bf16.mxu0 0
      %759 = vmatmul.mubr.bf16.gmra.mrb[0].mxu0 %v574
      %v760 = vpop.f32.mrb[0].mxu0
      %v761 = vadd.f32 %v428, %v760
      %v762 = vpop.f32.mrb[0].mxu0
      %v763 = vadd.f32 %v432, %v762
      %v764 = vpop.f32.mrb[0].mxu0
      %v765 = vadd.f32 %v428, %v764
      %v766 = vpop.f32.mrb[0].mxu0
      %v767 = vadd.f32 %v432, %v766
      %768 = vmatprep.mubr.bf16.mxu0 0
      %769 = vmatmul.mubr.bf16.gmra.mrb[0].mxu0 %v577
      %v770 = vpop.f32.mrb[0].mxu0
      %v771 = vadd.f32 %v428, %v770
      %v772 = vpop.f32.mrb[0].mxu0
      %v773 = vadd.f32 %v432, %v772
      %v774 = vpop.f32.mrb[0].mxu0
      %v775 = vadd.f32 %v428, %v774
      %v776 = vpop.f32.mrb[0].mxu0
      %v777 = vadd.f32 %v432, %v776
      %778 = vdwg.mxu0
      %v779 = vmax.f32 %v621, 0.0
      %v780 = vmax.f32 %v623, 0.0
      %v781 = vmax.f32 %v625, 0.0
      %v782 = vmax.f32 %v627, 0.0
      %v783 = vmax.f32 %v631, 0.0
      %v784 = vmax.f32 %v633, 0.0
      %v785 = vmax.f32 %v635, 0.0
      %v786 = vmax.f32 %v637, 0.0
      %v787 = vmax.f32 %v641, 0.0
      %v788 = vmax.f32 %v643, 0.0
      %v789 = vmax.f32 %v645, 0.0
      %v790 = vmax.f32 %v647, 0.0
      %v791 = vmax.f32 %v651, 0.0
      %v792 = vmax.f32 %v653, 0.0
      %v793 = vmax.f32 %v655, 0.0
      %v794 = vmax.f32 %v657, 0.0
      %v795 = vmax.f32 %v661, 0.0
      %v796 = vmax.f32 %v663, 0.0
      %v797 = vmax.f32 %v665, 0.0
      %v798 = vmax.f32 %v667, 0.0
      %v799 = vmax.f32 %v671, 0.0
      %v800 = vmax.f32 %v673, 0.0
      %v801 = vmax.f32 %v675, 0.0
      %v802 = vmax.f32 %v677, 0.0
      %v803 = vmax.f32 %v681, 0.0
      %v804 = vmax.f32 %v683, 0.0
      %v805 = vmax.f32 %v685, 0.0
      %v806 = vmax.f32 %v687, 0.0
      %v807 = vmax.f32 %v691, 0.0
      %v808 = vmax.f32 %v693, 0.0
      %v809 = vmax.f32 %v695, 0.0
      %v810 = vmax.f32 %v697, 0.0
      %v811 = vmax.f32 %v701, 0.0
      %v812 = vmax.f32 %v703, 0.0
      %v813 = vmax.f32 %v705, 0.0
      %v814 = vmax.f32 %v707, 0.0
      %v815 = vmax.f32 %v711, 0.0
      %v816 = vmax.f32 %v713, 0.0
      %v817 = vmax.f32 %v715, 0.0
      %v818 = vmax.f32 %v717, 0.0
      %v819 = vmax.f32 %v721, 0.0
      %v820 = vmax.f32 %v723, 0.0
      %v821 = vmax.f32 %v725, 0.0
      %v822 = vmax.f32 %v727, 0.0
      %v823 = vmax.f32 %v731, 0.0
      %v824 = vmax.f32 %v733, 0.0
      %v825 = vmax.f32 %v735, 0.0
      %v826 = vmax.f32 %v737, 0.0
      %v827 = vmax.f32 %v741, 0.0
      %v828 = vmax.f32 %v743, 0.0
      %v829 = vmax.f32 %v745, 0.0
      %v830 = vmax.f32 %v747, 0.0
      %v831 = vmax.f32 %v751, 0.0
      %v832 = vmax.f32 %v753, 0.0
      %v833 = vmax.f32 %v755, 0.0
      %v834 = vmax.f32 %v757, 0.0
      %v835 = vmax.f32 %v761, 0.0
      %v836 = vmax.f32 %v763, 0.0
      %v837 = vmax.f32 %v765, 0.0
      %v838 = vmax.f32 %v767, 0.0
      %v839 = vmax.f32 %v771, 0.0
      %v840 = vmax.f32 %v773, 0.0
      %v841 = vmax.f32 %v775, 0.0
      %v842 = vmax.f32 %v777, 0.0
      %843 = vst [vmem:[#allocation2] sm:$0xff] 0.0
      %vm844 = vcmask 130048
      %845 = vst.msk [vmem:[#allocation2 + $0x8] sm:$0xff] %vm844, 0.0
      %846 = vst [vmem:[#allocation2 + $0x10] sm:$0x1] 0.0
      %vm847 = vcmask 122880
      %848 = vst.msk [vmem:[#allocation2 + $0x18] sm:$0x1] %vm847, 0.0
      %849 = vst [vmem:[#allocation2 + $0x20] sm:$0xff] 0.0
      %850 = vst.msk [vmem:[#allocation2 + $0x28] sm:$0xff] %vm844, 0.0
      %851 = vst [vmem:[#allocation2 + $0x30] sm:$0x1] 0.0
      %852 = vst.msk [vmem:[#allocation2 + $0x38] sm:$0x1] %vm847, 0.0
      %853 = vst [vmem:[#allocation2 + $0x40] sm:$0xff] 0.0
      %854 = vst.msk [vmem:[#allocation2 + $0x48] sm:$0xff] %vm844, 0.0
      %855 = vst [vmem:[#allocation2 + $0x50] sm:$0x1] 0.0
      %856 = vst.msk [vmem:[#allocation2 + $0x58] sm:$0x1] %vm847, 0.0
      %857 = vst [vmem:[#allocation2 + $0x60] sm:$0xff] 0.0
      %858 = vst.msk [vmem:[#allocation2 + $0x68] sm:$0xff] %vm844, 0.0
      %859 = vst [vmem:[#allocation2 + $0x70] sm:$0x1] 0.0
      %860 = vst.msk [vmem:[#allocation2 + $0x78] sm:$0x1] %vm847, 0.0
      %861 = vst [vmem:[#allocation2 + $0x80] sm:$0xff] 0.0
      %862 = vst.msk [vmem:[#allocation2 + $0x88] sm:$0xff] %vm844, 0.0
      %863 = vst [vmem:[#allocation2 + $0x90] sm:$0x1] 0.0
      %864 = vst.msk [vmem:[#allocation2 + $0x98] sm:$0x1] %vm847, 0.0
      %865 = vst [vmem:[#allocation2 + $0xa0] sm:$0xff] 0.0
      %866 = vst.msk [vmem:[#allocation2 + $0xa8] sm:$0xff] %vm844, 0.0
      %867 = vst [vmem:[#allocation2 + $0xb0] sm:$0x1] 0.0
      %868 = vst.msk [vmem:[#allocation2 + $0xb8] sm:$0x1] %vm847, 0.0
      %869 = vst [vmem:[#allocation2 + $0xc0] sm:$0xff] 0.0
      %870 = vst.msk [vmem:[#allocation2 + $0xc8] sm:$0xff] %vm844, 0.0
      %871 = vst [vmem:[#allocation2 + $0xd0] sm:$0x1] 0.0
      %872 = vst.msk [vmem:[#allocation2 + $0xd8] sm:$0x1] %vm847, 0.0
      %873 = vst [vmem:[#allocation2 + $0xe0] sm:$0xff] 0.0
      %874 = vst.msk [vmem:[#allocation2 + $0xe8] sm:$0xff] %vm844, 0.0
      %875 = vst [vmem:[#allocation2 + $0xf0] sm:$0x1] 0.0
      %876 = vst.msk [vmem:[#allocation2 + $0xf8] sm:$0x1] %vm847, 0.0
      %877 = vst [vmem:[#allocation2 + $0x100] sm:$0xff] 0.0
      %878 = vst.msk [vmem:[#allocation2 + $0x108] sm:$0xff] %vm844, 0.0
      %879 = vst [vmem:[#allocation2 + $0x110] sm:$0x1] 0.0
      %880 = vst.msk [vmem:[#allocation2 + $0x118] sm:$0x1] %vm847, 0.0
      %881 = vst [vmem:[#allocation2 + $0x120] sm:$0xff] 0.0
      %882 = vst.msk [vmem:[#allocation2 + $0x128] sm:$0xff] %vm844, 0.0
      %883 = vst [vmem:[#allocation2 + $0x130] sm:$0x1] 0.0
      %884 = vst.msk [vmem:[#allocation2 + $0x138] sm:$0x1] %vm847, 0.0
      %885 = vst [vmem:[#allocation2 + $0x140] sm:$0xff] 0.0
      %886 = vst.msk [vmem:[#allocation2 + $0x148] sm:$0xff] %vm844, 0.0
      %887 = vst [vmem:[#allocation2 + $0x150] sm:$0x1] 0.0
      %888 = vst.msk [vmem:[#allocation2 + $0x158] sm:$0x1] %vm847, 0.0
      %889 = vst [vmem:[#allocation2 + $0x160] sm:$0xff] 0.0
      %890 = vst.msk [vmem:[#allocation2 + $0x168] sm:$0xff] %vm844, 0.0
      %891 = vst [vmem:[#allocation2 + $0x170] sm:$0x1] 0.0
      %892 = vst.msk [vmem:[#allocation2 + $0x178] sm:$0x1] %vm847, 0.0
      %893 = vst [vmem:[#allocation2 + $0x180] sm:$0xff] 0.0
      %894 = vst.msk [vmem:[#allocation2 + $0x188] sm:$0xff] %vm844, 0.0
      %895 = vst [vmem:[#allocation2 + $0x190] sm:$0x1] 0.0
      %896 = vst.msk [vmem:[#allocation2 + $0x198] sm:$0x1] %vm847, 0.0
      %897 = vst [vmem:[#allocation2 + $0x1a0] sm:$0xff] 0.0
      %898 = vst.msk [vmem:[#allocation2 + $0x1a8] sm:$0xff] %vm844, 0.0
      %899 = vst [vmem:[#allocation2 + $0x1b0] sm:$0x1] 0.0
      %900 = vst.msk [vmem:[#allocation2 + $0x1b8] sm:$0x1] %vm847, 0.0
      %901 = vst [vmem:[#allocation2 + $0x1c0] sm:$0xff] 0.0
      %902 = vst.msk [vmem:[#allocation2 + $0x1c8] sm:$0xff] %vm844, 0.0
      %903 = vst [vmem:[#allocation2 + $0x1d0] sm:$0x1] 0.0
      %904 = vst.msk [vmem:[#allocation2 + $0x1d8] sm:$0x1] %vm847, 0.0
      %905 = vst [vmem:[#allocation2 + $0x1e0] sm:$0xff] 0.0
      %906 = vst.msk [vmem:[#allocation2 + $0x1e8] sm:$0xff] %vm844, 0.0
      %907 = vst [vmem:[#allocation2 + $0x1f0] sm:$0x1] 0.0
      %908 = vst.msk [vmem:[#allocation2 + $0x1f8] sm:$0x1] %vm847, 0.0
      %909 = vst [vmem:[#allocation2 + $0x200] sm:$0xff] 0.0
      %910 = vst.msk [vmem:[#allocation2 + $0x208] sm:$0xff] %vm844, 0.0
      %911 = vst [vmem:[#allocation2 + $0x210] sm:$0x1] 0.0
      %912 = vst.msk [vmem:[#allocation2 + $0x218] sm:$0x1] %vm847, 0.0
      %913 = vst [vmem:[#allocation2 + $0x220] sm:$0xff] 0.0
      %914 = vst.msk [vmem:[#allocation2 + $0x228] sm:$0xff] %vm844, 0.0
      %915 = vst [vmem:[#allocation2 + $0x230] sm:$0x1] 0.0
      %916 = vst.msk [vmem:[#allocation2 + $0x238] sm:$0x1] %vm847, 0.0
      %917 = vst [vmem:[#allocation2 + $0x240] sm:$0xff] 0.0
      %918 = vst.msk [vmem:[#allocation2 + $0x248] sm:$0xff] %vm844, 0.0
      %919 = vst [vmem:[#allocation2 + $0x250] sm:$0x1] 0.0
      %920 = vst.msk [vmem:[#allocation2 + $0x258] sm:$0x1] %vm847, 0.0
      %921 = vst [vmem:[#allocation2 + $0x260] sm:$0xff] 0.0
      %922 = vst.msk [vmem:[#allocation2 + $0x268] sm:$0xff] %vm844, 0.0
      %923 = vst [vmem:[#allocation2 + $0x270] sm:$0x1] 0.0
      %924 = vst.msk [vmem:[#allocation2 + $0x278] sm:$0x1] %vm847, 0.0
      %925 = vst [vmem:[#allocation2 + $0x280] sm:$0xff] 0.0
      %926 = vst.msk [vmem:[#allocation2 + $0x288] sm:$0xff] %vm844, 0.0
      %927 = vst [vmem:[#allocation2 + $0x290] sm:$0x1] 0.0
      %928 = vst.msk [vmem:[#allocation2 + $0x298] sm:$0x1] %vm847, 0.0
      %929 = vst [vmem:[#allocation2 + $0x2a0] sm:$0xff] 0.0
      %930 = vst.msk [vmem:[#allocation2 + $0x2a8] sm:$0xff] %vm844, 0.0
      %931 = vst [vmem:[#allocation2 + $0x2b0] sm:$0x1] 0.0
      %932 = vst.msk [vmem:[#allocation2 + $0x2b8] sm:$0x1] %vm847, 0.0
      %933 = vst [vmem:[#allocation2 + $0x2c0] sm:$0xff] 0.0
      %934 = vst.msk [vmem:[#allocation2 + $0x2c8] sm:$0xff] %vm844, 0.0
      %935 = vst [vmem:[#allocation2 + $0x2d0] sm:$0x1] 0.0
      %936 = vst.msk [vmem:[#allocation2 + $0x2d8] sm:$0x1] %vm847, 0.0
      %937 = vst [vmem:[#allocation2 + $0x2e0] sm:$0xff] 0.0
      %938 = vst.msk [vmem:[#allocation2 + $0x2e8] sm:$0xff] %vm844, 0.0
      %939 = vst [vmem:[#allocation2 + $0x2f0] sm:$0x1] 0.0
      %940 = vst.msk [vmem:[#allocation2 + $0x2f8] sm:$0x1] %vm847, 0.0
      %941 = vst [vmem:[#allocation2 + $0x300] sm:$0xff] 0.0
      %942 = vst.msk [vmem:[#allocation2 + $0x308] sm:$0xff] %vm844, 0.0
      %943 = vst [vmem:[#allocation2 + $0x310] sm:$0x1] 0.0
      %944 = vst.msk [vmem:[#allocation2 + $0x318] sm:$0x1] %vm847, 0.0
      %945 = vst [vmem:[#allocation2 + $0x320] sm:$0xff] 0.0
      %946 = vst.msk [vmem:[#allocation2 + $0x328] sm:$0xff] %vm844, 0.0
      %947 = vst [vmem:[#allocation2 + $0x330] sm:$0x1] 0.0
      %948 = vst.msk [vmem:[#allocation2 + $0x338] sm:$0x1] %vm847, 0.0
      %949 = vst [vmem:[#allocation2 + $0x340] sm:$0xff] 0.0
      %950 = vst.msk [vmem:[#allocation2 + $0x348] sm:$0xff] %vm844, 0.0
      %951 = vst [vmem:[#allocation2 + $0x350] sm:$0x1] 0.0
      %952 = vst.msk [vmem:[#allocation2 + $0x358] sm:$0x1] %vm847, 0.0
      %953 = vst [vmem:[#allocation2 + $0x360] sm:$0xff] 0.0
      %954 = vst.msk [vmem:[#allocation2 + $0x368] sm:$0xff] %vm844, 0.0
      %955 = vst [vmem:[#allocation2 + $0x370] sm:$0x1] 0.0
      %956 = vst.msk [vmem:[#allocation2 + $0x378] sm:$0x1] %vm847, 0.0
      %957 = vst [vmem:[#allocation2 + $0x380] sm:$0xff] 0.0
      %958 = vst.msk [vmem:[#allocation2 + $0x388] sm:$0xff] %vm844, 0.0
      %959 = vst [vmem:[#allocation2 + $0x390] sm:$0x1] 0.0
      %960 = vst.msk [vmem:[#allocation2 + $0x398] sm:$0x1] %vm847, 0.0
      %961 = vst [vmem:[#allocation2 + $0x3a0] sm:$0xff] 0.0
      %962 = vst.msk [vmem:[#allocation2 + $0x3a8] sm:$0xff] %vm844, 0.0
      %963 = vst [vmem:[#allocation2 + $0x3b0] sm:$0x1] 0.0
      %964 = vst.msk [vmem:[#allocation2 + $0x3b8] sm:$0x1] %vm847, 0.0
      %965 = vst [vmem:[#allocation2 + $0x3c0] sm:$0xff] 0.0
      %966 = vst.msk [vmem:[#allocation2 + $0x3c8] sm:$0xff] %vm844, 0.0
      %967 = vst [vmem:[#allocation2 + $0x3d0] sm:$0x1] 0.0
      %968 = vst.msk [vmem:[#allocation2 + $0x3d8] sm:$0x1] %vm847, 0.0
      %969 = vst [vmem:[#allocation2 + $0x3e0] sm:$0xff] 0.0
      %970 = vst.msk [vmem:[#allocation2 + $0x3e8] sm:$0xff] %vm844, 0.0
      %971 = vst [vmem:[#allocation2 + $0x3f0] sm:$0x1] 0.0
      %972 = vst.msk [vmem:[#allocation2 + $0x3f8] sm:$0x1] %vm847, 0.0
      %973 = vst [vmem:[#allocation2 + $0x400] sm:$0xff] 0.0
      %974 = vst.msk [vmem:[#allocation2 + $0x408] sm:$0xff] %vm844, 0.0
      %975 = vst [vmem:[#allocation2 + $0x410] sm:$0x1] 0.0
      %976 = vst.msk [vmem:[#allocation2 + $0x418] sm:$0x1] %vm847, 0.0
      %977 = vst [vmem:[#allocation2 + $0x420] sm:$0xff] 0.0
      %978 = vst.msk [vmem:[#allocation2 + $0x428] sm:$0xff] %vm844, 0.0
      %979 = vst [vmem:[#allocation2 + $0x430] sm:$0x1] 0.0
      %980 = vst.msk [vmem:[#allocation2 + $0x438] sm:$0x1] %vm847, 0.0
      %981 = vst [vmem:[#allocation2 + $0x440] sm:$0xff] 0.0
      %982 = vst.msk [vmem:[#allocation2 + $0x448] sm:$0xff] %vm844, 0.0
      %983 = vst [vmem:[#allocation2 + $0x450] sm:$0x1] 0.0
      %984 = vst.msk [vmem:[#allocation2 + $0x458] sm:$0x1] %vm847, 0.0
      %985 = vst [vmem:[#allocation2 + $0x460] sm:$0xff] 0.0
      %986 = vst.msk [vmem:[#allocation2 + $0x468] sm:$0xff] %vm844, 0.0
      %987 = vst [vmem:[#allocation2 + $0x470] sm:$0x1] 0.0
      %988 = vst.msk [vmem:[#allocation2 + $0x478] sm:$0x1] %vm847, 0.0
      %v1005 = vrot.slane %v827, 7
      %v1006 = vrot.slane %v828, 7
      %v1007 = vrot.slane %v829, 7
      %v1008 = vrot.slane %v830, 7
      %v1009 = vrot.slane %v831, 7
      %v1010 = vrot.slane %v832, 7
      %v1011 = vrot.slane %v833, 7
      %v1012 = vrot.slane %v834, 7
      %v1013 = vrot.slane %v835, 7
      %v1014 = vrot.slane %v836, 7
      %v1015 = vrot.slane %v837, 7
      %v1016 = vrot.slane %v838, 7
      %v1017 = vrot.slane %v839, 7
      %v1018 = vrot.slane %v840, 7
      %v1019 = vrot.slane %v841, 7
      %v1020 = vrot.slane %v842, 7
      %s1037 = scalar_lea.vmem [#allocation2], 32
      %1038 = vst [vmem:[%s1037] sm:$0xfe] %v1005
      %vm1039 = vcmask 130049
      %1040 = vst.msk [vmem:[%s1037 + $0x8] sm:$0xfe] %vm1039, %v1006
      %1041 = vst [vmem:[%s1037 + $0x10] sm:$0x1] %v1005
      %1042 = vst.msk [vmem:[%s1037 + $0x18] sm:$0x1] %vm847, %v1006
      %1043 = vst [vmem:[%s1037 + $0x20] sm:$0xfe] %v1007
      %1044 = vst.msk [vmem:[%s1037 + $0x28] sm:$0xfe] %vm1039, %v1008
      %1045 = vst [vmem:[%s1037 + $0x30] sm:$0x1] %v1007
      %1046 = vst.msk [vmem:[%s1037 + $0x38] sm:$0x1] %vm847, %v1008
      %1047 = vst [vmem:[%s1037 + $0x40] sm:$0xfe] %v1009
      %1048 = vst.msk [vmem:[%s1037 + $0x48] sm:$0xfe] %vm1039, %v1010
      %1049 = vst [vmem:[%s1037 + $0x50] sm:$0x1] %v1009
      %1050 = vst.msk [vmem:[%s1037 + $0x58] sm:$0x1] %vm847, %v1010
      %1051 = vst [vmem:[%s1037 + $0x60] sm:$0xfe] %v1011
      %1052 = vst.msk [vmem:[%s1037 + $0x68] sm:$0xfe] %vm1039, %v1012
      %1053 = vst [vmem:[%s1037 + $0x70] sm:$0x1] %v1011
      %1054 = vst.msk [vmem:[%s1037 + $0x78] sm:$0x1] %vm847, %v1012
      %1055 = vst [vmem:[%s1037 + $0x80] sm:$0xfe] %v1013
      %1056 = vst.msk [vmem:[%s1037 + $0x88] sm:$0xfe] %vm1039, %v1014
      %1057 = vst [vmem:[%s1037 + $0x90] sm:$0x1] %v1013
      %1058 = vst.msk [vmem:[%s1037 + $0x98] sm:$0x1] %vm847, %v1014
      %1059 = vst [vmem:[%s1037 + $0xa0] sm:$0xfe] %v1015
      %1060 = vst.msk [vmem:[%s1037 + $0xa8] sm:$0xfe] %vm1039, %v1016
      %1061 = vst [vmem:[%s1037 + $0xb0] sm:$0x1] %v1015
      %1062 = vst.msk [vmem:[%s1037 + $0xb8] sm:$0x1] %vm847, %v1016
      %1063 = vst [vmem:[%s1037 + $0xc0] sm:$0xfe] %v1017
      %1064 = vst.msk [vmem:[%s1037 + $0xc8] sm:$0xfe] %vm1039, %v1018
      %1065 = vst [vmem:[%s1037 + $0xd0] sm:$0x1] %v1017
      %1066 = vst.msk [vmem:[%s1037 + $0xd8] sm:$0x1] %vm847, %v1018
      %1067 = vst [vmem:[%s1037 + $0xe0] sm:$0xfe] %v1019
      %1068 = vst.msk [vmem:[%s1037 + $0xe8] sm:$0xfe] %vm1039, %v1020
      %1069 = vst [vmem:[%s1037 + $0xf0] sm:$0x1] %v1019
      %1070 = vst.msk [vmem:[%s1037 + $0xf8] sm:$0x1] %vm847, %v1020
      %s1071 = scalar_lea.vmem [#allocation2], 320
      %1072 = vst [vmem:[%s1071] sm:$0xff] %v811
      %1073 = vst.msk [vmem:[%s1071 + $0x8] sm:$0xff] %vm844, %v812
      %1074 = vst [vmem:[%s1071 + $0x20] sm:$0xff] %v813
      %1075 = vst.msk [vmem:[%s1071 + $0x28] sm:$0xff] %vm844, %v814
      %1076 = vst [vmem:[%s1071 + $0x40] sm:$0xff] %v815
      %1077 = vst.msk [vmem:[%s1071 + $0x48] sm:$0xff] %vm844, %v816
      %1078 = vst [vmem:[%s1071 + $0x60] sm:$0xff] %v817
      %1079 = vst.msk [vmem:[%s1071 + $0x68] sm:$0xff] %vm844, %v818
      %1080 = vst [vmem:[%s1071 + $0x80] sm:$0xff] %v819
      %1081 = vst.msk [vmem:[%s1071 + $0x88] sm:$0xff] %vm844, %v820
      %1082 = vst [vmem:[%s1071 + $0xa0] sm:$0xff] %v821
      %1083 = vst.msk [vmem:[%s1071 + $0xa8] sm:$0xff] %vm844, %v822
      %1084 = vst [vmem:[%s1071 + $0xc0] sm:$0xff] %v823
      %1085 = vst.msk [vmem:[%s1071 + $0xc8] sm:$0xff] %vm844, %v824
      %1086 = vst [vmem:[%s1071 + $0xe0] sm:$0xff] %v825
      %1087 = vst.msk [vmem:[%s1071 + $0xe8] sm:$0xff] %vm844, %v826
      %v1104 = vrot.slane %v795, 7
      %v1105 = vrot.slane %v796, 7
      %v1106 = vrot.slane %v797, 7
      %v1107 = vrot.slane %v798, 7
      %v1108 = vrot.slane %v799, 7
      %v1109 = vrot.slane %v800, 7
      %v1110 = vrot.slane %v801, 7
      %v1111 = vrot.slane %v802, 7
      %v1112 = vrot.slane %v803, 7
      %v1113 = vrot.slane %v804, 7
      %v1114 = vrot.slane %v805, 7
      %v1115 = vrot.slane %v806, 7
      %v1116 = vrot.slane %v807, 7
      %v1117 = vrot.slane %v808, 7
      %v1118 = vrot.slane %v809, 7
      %v1119 = vrot.slane %v810, 7
      %s1136 = scalar_lea.vmem [#allocation2], 576
      %1137 = vst [vmem:[%s1136] sm:$0xfe] %v1104
      %1138 = vst.msk [vmem:[%s1136 + $0x8] sm:$0xfe] %vm1039, %v1105
      %1139 = vst [vmem:[%s1136 + $0x10] sm:$0x1] %v1104
      %1140 = vst.msk [vmem:[%s1136 + $0x18] sm:$0x1] %vm847, %v1105
      %1141 = vst [vmem:[%s1136 + $0x20] sm:$0xfe] %v1106
      %1142 = vst.msk [vmem:[%s1136 + $0x28] sm:$0xfe] %vm1039, %v1107
      %1143 = vst [vmem:[%s1136 + $0x30] sm:$0x1] %v1106
      %1144 = vst.msk [vmem:[%s1136 + $0x38] sm:$0x1] %vm847, %v1107
      %1145 = vst [vmem:[%s1136 + $0x40] sm:$0xfe] %v1108
      %1146 = vst.msk [vmem:[%s1136 + $0x48] sm:$0xfe] %vm1039, %v1109
      %1147 = vst [vmem:[%s1136 + $0x50] sm:$0x1] %v1108
      %1148 = vst.msk [vmem:[%s1136 + $0x58] sm:$0x1] %vm847, %v1109
      %1149 = vst [vmem:[%s1136 + $0x60] sm:$0xfe] %v1110
      %1150 = vst.msk [vmem:[%s1136 + $0x68] sm:$0xfe] %vm1039, %v1111
      %1151 = vst [vmem:[%s1136 + $0x70] sm:$0x1] %v1110
      %1152 = vst.msk [vmem:[%s1136 + $0x78] sm:$0x1] %vm847, %v1111
      %1153 = vst [vmem:[%s1136 + $0x80] sm:$0xfe] %v1112
      %1154 = vst.msk [vmem:[%s1136 + $0x88] sm:$0xfe] %vm1039, %v1113
      %1155 = vst [vmem:[%s1136 + $0x90] sm:$0x1] %v1112
      %1156 = vst.msk [vmem:[%s1136 + $0x98] sm:$0x1] %vm847, %v1113
      %1157 = vst [vmem:[%s1136 + $0xa0] sm:$0xfe] %v1114
      %1158 = vst.msk [vmem:[%s1136 + $0xa8] sm:$0xfe] %vm1039, %v1115
      %1159 = vst [vmem:[%s1136 + $0xb0] sm:$0x1] %v1114
      %1160 = vst.msk [vmem:[%s1136 + $0xb8] sm:$0x1] %vm847, %v1115
      %1161 = vst [vmem:[%s1136 + $0xc0] sm:$0xfe] %v1116
      %1162 = vst.msk [vmem:[%s1136 + $0xc8] sm:$0xfe] %vm1039, %v1117
      %1163 = vst [vmem:[%s1136 + $0xd0] sm:$0x1] %v1116
      %1164 = vst.msk [vmem:[%s1136 + $0xd8] sm:$0x1] %vm847, %v1117
      %1165 = vst [vmem:[%s1136 + $0xe0] sm:$0xfe] %v1118
      %1166 = vst.msk [vmem:[%s1136 + $0xe8] sm:$0xfe] %vm1039, %v1119
      %1167 = vst [vmem:[%s1136 + $0xf0] sm:$0x1] %v1118
      %1168 = vst.msk [vmem:[%s1136 + $0xf8] sm:$0x1] %vm847, %v1119
      %s1169 = scalar_lea.vmem [#allocation2], 864
      %1170 = vst [vmem:[%s1169] sm:$0xff] %v779
      %1171 = vst.msk [vmem:[%s1169 + $0x8] sm:$0xff] %vm844, %v780
      %1172 = vst [vmem:[%s1169 + $0x20] sm:$0xff] %v781
      %1173 = vst.msk [vmem:[%s1169 + $0x28] sm:$0xff] %vm844, %v782
      %1174 = vst [vmem:[%s1169 + $0x40] sm:$0xff] %v783
      %1175 = vst.msk [vmem:[%s1169 + $0x48] sm:$0xff] %vm844, %v784
      %1176 = vst [vmem:[%s1169 + $0x60] sm:$0xff] %v785
      %1177 = vst.msk [vmem:[%s1169 + $0x68] sm:$0xff] %vm844, %v786
      %1178 = vst [vmem:[%s1169 + $0x80] sm:$0xff] %v787
      %1179 = vst.msk [vmem:[%s1169 + $0x88] sm:$0xff] %vm844, %v788
      %1180 = vst [vmem:[%s1169 + $0xa0] sm:$0xff] %v789
      %1181 = vst.msk [vmem:[%s1169 + $0xa8] sm:$0xff] %vm844, %v790
      %1182 = vst [vmem:[%s1169 + $0xc0] sm:$0xff] %v791
      %1183 = vst.msk [vmem:[%s1169 + $0xc8] sm:$0xff] %vm844, %v792
      %1184 = vst [vmem:[%s1169 + $0xe0] sm:$0xff] %v793
      %1185 = vst.msk [vmem:[%s1169 + $0xe8] sm:$0xff] %vm844, %v794
      %v1186 = vld [vmem:[%s3] sm:$0xff]
      %v1187 = vld [vmem:[%s3 + $0x8] sm:$0xff]
      %v1188 = vld [vmem:[%s3 + $0x10] sm:$0x1]
      %v1189 = vld [vmem:[%s3 + $0x18] sm:$0x1]
      %v1190 = vld [vmem:[#allocation2] sm:$0xff]
      %v1191 = vld [vmem:[#allocation2 + $0x8] sm:$0xff]
      %v1192 = vld [vmem:[#allocation2 + $0x20] sm:$0xff]
      %v1193 = vld [vmem:[#allocation2 + $0x28] sm:$0xff]
      %v1194 = vld [vmem:[#allocation2 + $0x40] sm:$0xff]
      %v1195 = vld [vmem:[#allocation2 + $0x48] sm:$0xff]
      %v1196 = vld [vmem:[#allocation2 + $0x60] sm:$0xff]
      %v1197 = vld [vmem:[#allocation2 + $0x68] sm:$0xff]
      %v1198 = vld [vmem:[#allocation2 + $0x80] sm:$0xff]
      %v1199 = vld [vmem:[#allocation2 + $0x88] sm:$0xff]
      %v1200 = vld [vmem:[#allocation2 + $0xa0] sm:$0xff]
      %v1201 = vld [vmem:[#allocation2 + $0xa8] sm:$0xff]
      %v1202 = vld [vmem:[#allocation2 + $0xc0] sm:$0xff]
      %v1203 = vld [vmem:[#allocation2 + $0xc8] sm:$0xff]
      %v1204 = vld [vmem:[#allocation2 + $0xe0] sm:$0xff]
      %v1205 = vld [vmem:[#allocation2 + $0xe8] sm:$0xff]
      %v1206 = vlaneseq
      %v1207 = vshrl.u32 %v1206, 7
      %v1208 = vsub.s32 0, %v1207
      %v1209 = vrot.slane %v1186, %v1208
      %v1210 = vlaneseq
      %v1211 = vshrl.u32 %v1210, 7
      %v1212 = vsub.s32 0, %v1211
      %v1213 = vrot.slane %v1187, %v1212
      %v1214 = vmul.f32 %v1190, %v1209
      %v1215 = vmul.f32 %v1191, %v1213
      %v1216 = vmul.f32 %v1192, %v1209
      %v1217 = vmul.f32 %v1193, %v1213
      %v1218 = vmul.f32 %v1194, %v1209
      %v1219 = vmul.f32 %v1195, %v1213
      %v1220 = vmul.f32 %v1196, %v1209
      %v1221 = vmul.f32 %v1197, %v1213
      %v1222 = vmul.f32 %v1198, %v1209
      %v1223 = vmul.f32 %v1199, %v1213
      %v1224 = vmul.f32 %v1200, %v1209
      %v1225 = vmul.f32 %v1201, %v1213
      %v1226 = vmul.f32 %v1202, %v1209
      %v1227 = vmul.f32 %v1203, %v1213
      %v1228 = vmul.f32 %v1204, %v1209
      %v1229 = vmul.f32 %v1205, %v1213
      %v1230 = vadd.f32 %v1214, 0.0
      %v1231 = vadd.f32 %v1215, 0.0
      %v1232 = vadd.f32 %v1216, 0.0
      %v1233 = vadd.f32 %v1217, 0.0
      %v1234 = vadd.f32 %v1218, 0.0
      %v1235 = vadd.f32 %v1219, 0.0
      %v1236 = vadd.f32 %v1220, 0.0
      %v1237 = vadd.f32 %v1221, 0.0
      %v1238 = vadd.f32 %v1222, 0.0
      %v1239 = vadd.f32 %v1223, 0.0
      %v1240 = vadd.f32 %v1224, 0.0
      %v1241 = vadd.f32 %v1225, 0.0
      %v1242 = vadd.f32 %v1226, 0.0
      %v1243 = vadd.f32 %v1227, 0.0
      %v1244 = vadd.f32 %v1228, 0.0
      %v1245 = vadd.f32 %v1229, 0.0
      %s1246 = scalar_lea.vmem [#allocation2], 288
      %v1247 = vld [vmem:[%s1246] sm:$0xff]
      %v1248 = vld [vmem:[%s1246 + $0x8] sm:$0xff]
      %v1249 = vld [vmem:[%s1246 + $0x20] sm:$0xff]
      %v1250 = vld [vmem:[%s1246 + $0x28] sm:$0xff]
      %v1251 = vld [vmem:[%s1246 + $0x40] sm:$0xff]
      %v1252 = vld [vmem:[%s1246 + $0x48] sm:$0xff]
      %v1253 = vld [vmem:[%s1246 + $0x60] sm:$0xff]
      %v1254 = vld [vmem:[%s1246 + $0x68] sm:$0xff]
      %v1255 = vld [vmem:[%s1246 + $0x80] sm:$0xff]
      %v1256 = vld [vmem:[%s1246 + $0x88] sm:$0xff]
      %v1257 = vld [vmem:[%s1246 + $0xa0] sm:$0xff]
      %v1258 = vld [vmem:[%s1246 + $0xa8] sm:$0xff]
      %v1259 = vld [vmem:[%s1246 + $0xc0] sm:$0xff]
      %v1260 = vld [vmem:[%s1246 + $0xc8] sm:$0xff]
      %v1261 = vld [vmem:[%s1246 + $0xe0] sm:$0xff]
      %v1262 = vld [vmem:[%s1246 + $0xe8] sm:$0xff]
      %v1263 = vlaneseq
      %v1264 = vshrl.u32 %v1263, 7
      %v1265 = vsub.s32 1, %v1264
      %v1266 = vrot.slane %v1186, %v1265
      %v1267 = vlaneseq
      %v1268 = vshrl.u32 %v1267, 7
      %v1269 = vsub.s32 1, %v1268
      %v1270 = vrot.slane %v1187, %v1269
      %v1271 = vmul.f32 %v1247, %v1266
      %v1272 = vmul.f32 %v1248, %v1270
      %v1273 = vmul.f32 %v1249, %v1266
      %v1274 = vmul.f32 %v1250, %v1270
      %v1275 = vmul.f32 %v1251, %v1266
      %v1276 = vmul.f32 %v1252, %v1270
      %v1277 = vmul.f32 %v1253, %v1266
      %v1278 = vmul.f32 %v1254, %v1270
      %v1279 = vmul.f32 %v1255, %v1266
      %v1280 = vmul.f32 %v1256, %v1270
      %v1281 = vmul.f32 %v1257, %v1266
      %v1282 = vmul.f32 %v1258, %v1270
      %v1283 = vmul.f32 %v1259, %v1266
      %v1284 = vmul.f32 %v1260, %v1270
      %v1285 = vmul.f32 %v1261, %v1266
      %v1286 = vmul.f32 %v1262, %v1270
      %v1287 = vadd.f32 %v1230, %v1271
      %v1288 = vadd.f32 %v1231, %v1272
      %v1289 = vadd.f32 %v1232, %v1273
      %v1290 = vadd.f32 %v1233, %v1274
      %v1291 = vadd.f32 %v1234, %v1275
      %v1292 = vadd.f32 %v1235, %v1276
      %v1293 = vadd.f32 %v1236, %v1277
      %v1294 = vadd.f32 %v1237, %v1278
      %v1295 = vadd.f32 %v1238, %v1279
      %v1296 = vadd.f32 %v1239, %v1280
      %v1297 = vadd.f32 %v1240, %v1281
      %v1298 = vadd.f32 %v1241, %v1282
      %v1299 = vadd.f32 %v1242, %v1283
      %v1300 = vadd.f32 %v1243, %v1284
      %v1301 = vadd.f32 %v1244, %v1285
      %v1302 = vadd.f32 %v1245, %v1286
      %v1303 = vld [vmem:[#allocation2] sm:$0xfe]
      %v1304 = vld [vmem:[#allocation2 + $0x8] sm:$0xfe]
      %v1305 = vld [vmem:[#allocation2 + $0x10] sm:$0x1]
      %v1306 = vld [vmem:[#allocation2 + $0x18] sm:$0x1]
      %v1307 = vld [vmem:[#allocation2 + $0x20] sm:$0xfe]
      %v1308 = vld [vmem:[#allocation2 + $0x28] sm:$0xfe]
      %v1309 = vld [vmem:[#allocation2 + $0x30] sm:$0x1]
      %v1310 = vld [vmem:[#allocation2 + $0x38] sm:$0x1]
      %v1311 = vld [vmem:[#allocation2 + $0x40] sm:$0xfe]
      %v1312 = vld [vmem:[#allocation2 + $0x48] sm:$0xfe]
      %v1313 = vld [vmem:[#allocation2 + $0x50] sm:$0x1]
      %v1314 = vld [vmem:[#allocation2 + $0x58] sm:$0x1]
      %v1315 = vld [vmem:[#allocation2 + $0x60] sm:$0xfe]
      %v1316 = vld [vmem:[#allocation2 + $0x68] sm:$0xfe]
      %v1317 = vld [vmem:[#allocation2 + $0x70] sm:$0x1]
      %v1318 = vld [vmem:[#allocation2 + $0x78] sm:$0x1]
      %v1319 = vld [vmem:[#allocation2 + $0x80] sm:$0xfe]
      %v1320 = vld [vmem:[#allocation2 + $0x88] sm:$0xfe]
      %v1321 = vld [vmem:[#allocation2 + $0x90] sm:$0x1]
      %v1322 = vld [vmem:[#allocation2 + $0x98] sm:$0x1]
      %v1323 = vld [vmem:[#allocation2 + $0xa0] sm:$0xfe]
      %v1324 = vld [vmem:[#allocation2 + $0xa8] sm:$0xfe]
      %v1325 = vld [vmem:[#allocation2 + $0xb0] sm:$0x1]
      %v1326 = vld [vmem:[#allocation2 + $0xb8] sm:$0x1]
      %v1327 = vld [vmem:[#allocation2 + $0xc0] sm:$0xfe]
      %v1328 = vld [vmem:[#allocation2 + $0xc8] sm:$0xfe]
      %v1329 = vld [vmem:[#allocation2 + $0xd0] sm:$0x1]
      %v1330 = vld [vmem:[#allocation2 + $0xd8] sm:$0x1]
      %v1331 = vld [vmem:[#allocation2 + $0xe0] sm:$0xfe]
      %v1332 = vld [vmem:[#allocation2 + $0xe8] sm:$0xfe]
      %v1333 = vld [vmem:[#allocation2 + $0xf0] sm:$0x1]
      %v1334 = vld [vmem:[#allocation2 + $0xf8] sm:$0x1]
      %v1335 = vlaneseq
      %v1336 = vshrl.u32 %v1335, 7
      %v1337 = vsub.s32 2, %v1336
      %v1338 = vrot.slane %v1186, %v1337
      %v1339 = vlaneseq
      %v1340 = vshrl.u32 %v1339, 7
      %v1341 = vsub.s32 2, %v1340
      %v1342 = vrot.slane %v1187, %v1341
      %v1343 = vmul.f32 %v1303, %v1338
      %v1344 = vmul.f32 %v1304, %v1342
      %v1345 = vmul.f32 %v1305, %v1338
      %v1346 = vmul.f32 %v1306, %v1342
      %v1347 = vmul.f32 %v1307, %v1338
      %v1348 = vmul.f32 %v1308, %v1342
      %v1349 = vmul.f32 %v1309, %v1338
      %v1350 = vmul.f32 %v1310, %v1342
      %v1351 = vmul.f32 %v1311, %v1338
      %v1352 = vmul.f32 %v1312, %v1342
      %v1353 = vmul.f32 %v1313, %v1338
      %v1354 = vmul.f32 %v1314, %v1342
      %v1355 = vmul.f32 %v1315, %v1338
      %v1356 = vmul.f32 %v1316, %v1342
      %v1357 = vmul.f32 %v1317, %v1338
      %v1358 = vmul.f32 %v1318, %v1342
      %v1359 = vmul.f32 %v1319, %v1338
      %v1360 = vmul.f32 %v1320, %v1342
      %v1361 = vmul.f32 %v1321, %v1338
      %v1362 = vmul.f32 %v1322, %v1342
      %v1363 = vmul.f32 %v1323, %v1338
      %v1364 = vmul.f32 %v1324, %v1342
      %v1365 = vmul.f32 %v1325, %v1338
      %v1366 = vmul.f32 %v1326, %v1342
      %v1367 = vmul.f32 %v1327, %v1338
      %v1368 = vmul.f32 %v1328, %v1342
      %v1369 = vmul.f32 %v1329, %v1338
      %v1370 = vmul.f32 %v1330, %v1342
      %v1371 = vmul.f32 %v1331, %v1338
      %v1372 = vmul.f32 %v1332, %v1342
      %v1373 = vmul.f32 %v1333, %v1338
      %v1374 = vmul.f32 %v1334, %v1342
      %vm1407 = vcmask 1046528
      %v1408 = vrot.slane %v1343, 1
      %v1409 = vrot.slane %v1345, 1
      %v1410 = vsel %vm1407, %v1408, %v1409
      %v1411 = vrot.slane %v1344, 1
      %v1412 = vrot.slane %v1346, 1
      %v1413 = vsel %vm1407, %v1411, %v1412
      %v1414 = vrot.slane %v1347, 1
      %v1415 = vrot.slane %v1349, 1
      %v1416 = vsel %vm1407, %v1414, %v1415
      %v1417 = vrot.slane %v1348, 1
      %v1418 = vrot.slane %v1350, 1
      %v1419 = vsel %vm1407, %v1417, %v1418
      %v1420 = vrot.slane %v1351, 1
      %v1421 = vrot.slane %v1353, 1
      %v1422 = vsel %vm1407, %v1420, %v1421
      %v1423 = vrot.slane %v1352, 1
      %v1424 = vrot.slane %v1354, 1
      %v1425 = vsel %vm1407, %v1423, %v1424
      %v1426 = vrot.slane %v1355, 1
      %v1427 = vrot.slane %v1357, 1
      %v1428 = vsel %vm1407, %v1426, %v1427
      %v1429 = vrot.slane %v1356, 1
      %v1430 = vrot.slane %v1358, 1
      %v1431 = vsel %vm1407, %v1429, %v1430
      %v1432 = vrot.slane %v1359, 1
      %v1433 = vrot.slane %v1361, 1
      %v1434 = vsel %vm1407, %v1432, %v1433
      %v1435 = vrot.slane %v1360, 1
      %v1436 = vrot.slane %v1362, 1
      %v1437 = vsel %vm1407, %v1435, %v1436
      %v1438 = vrot.slane %v1363, 1
      %v1439 = vrot.slane %v1365, 1
      %v1440 = vsel %vm1407, %v1438, %v1439
      %v1441 = vrot.slane %v1364, 1
      %v1442 = vrot.slane %v1366, 1
      %v1443 = vsel %vm1407, %v1441, %v1442
      %v1444 = vrot.slane %v1367, 1
      %v1445 = vrot.slane %v1369, 1
      %v1446 = vsel %vm1407, %v1444, %v1445
      %v1447 = vrot.slane %v1368, 1
      %v1448 = vrot.slane %v1370, 1
      %v1449 = vsel %vm1407, %v1447, %v1448
      %v1450 = vrot.slane %v1371, 1
      %v1451 = vrot.slane %v1373, 1
      %v1452 = vsel %vm1407, %v1450, %v1451
      %v1453 = vrot.slane %v1372, 1
      %v1454 = vrot.slane %v1374, 1
      %v1455 = vsel %vm1407, %v1453, %v1454
      %v1472 = vadd.f32 %v1287, %v1410
      %v1473 = vadd.f32 %v1288, %v1413
      %v1474 = vadd.f32 %v1289, %v1416
      %v1475 = vadd.f32 %v1290, %v1419
      %v1476 = vadd.f32 %v1291, %v1422
      %v1477 = vadd.f32 %v1292, %v1425
      %v1478 = vadd.f32 %v1293, %v1428
      %v1479 = vadd.f32 %v1294, %v1431
      %v1480 = vadd.f32 %v1295, %v1434
      %v1481 = vadd.f32 %v1296, %v1437
      %v1482 = vadd.f32 %v1297, %v1440
      %v1483 = vadd.f32 %v1298, %v1443
      %v1484 = vadd.f32 %v1299, %v1446
      %v1485 = vadd.f32 %v1300, %v1449
      %v1486 = vadd.f32 %v1301, %v1452
      %v1487 = vadd.f32 %v1302, %v1455
      %v1488 = vld [vmem:[%s1136] sm:$0xff]
      %v1489 = vld [vmem:[%s1136 + $0x8] sm:$0xff]
      %v1490 = vld [vmem:[%s1136 + $0x20] sm:$0xff]
      %v1491 = vld [vmem:[%s1136 + $0x28] sm:$0xff]
      %v1492 = vld [vmem:[%s1136 + $0x40] sm:$0xff]
      %v1493 = vld [vmem:[%s1136 + $0x48] sm:$0xff]
      %v1494 = vld [vmem:[%s1136 + $0x60] sm:$0xff]
      %v1495 = vld [vmem:[%s1136 + $0x68] sm:$0xff]
      %v1496 = vld [vmem:[%s1136 + $0x80] sm:$0xff]
      %v1497 = vld [vmem:[%s1136 + $0x88] sm:$0xff]
      %v1498 = vld [vmem:[%s1136 + $0xa0] sm:$0xff]
      %v1499 = vld [vmem:[%s1136 + $0xa8] sm:$0xff]
      %v1500 = vld [vmem:[%s1136 + $0xc0] sm:$0xff]
      %v1501 = vld [vmem:[%s1136 + $0xc8] sm:$0xff]
      %v1502 = vld [vmem:[%s1136 + $0xe0] sm:$0xff]
      %v1503 = vld [vmem:[%s1136 + $0xe8] sm:$0xff]
      %v1504 = vlaneseq
      %v1505 = vshrl.u32 %v1504, 7
      %v1506 = vsub.s32 3, %v1505
      %v1507 = vrot.slane %v1186, %v1506
      %v1508 = vlaneseq
      %v1509 = vshrl.u32 %v1508, 7
      %v1510 = vsub.s32 3, %v1509
      %v1511 = vrot.slane %v1187, %v1510
      %v1512 = vmul.f32 %v1488, %v1507
      %v1513 = vmul.f32 %v1489, %v1511
      %v1514 = vmul.f32 %v1490, %v1507
      %v1515 = vmul.f32 %v1491, %v1511
      %v1516 = vmul.f32 %v1492, %v1507
      %v1517 = vmul.f32 %v1493, %v1511
      %v1518 = vmul.f32 %v1494, %v1507
      %v1519 = vmul.f32 %v1495, %v1511
      %v1520 = vmul.f32 %v1496, %v1507
      %v1521 = vmul.f32 %v1497, %v1511
      %v1522 = vmul.f32 %v1498, %v1507
      %v1523 = vmul.f32 %v1499, %v1511
      %v1524 = vmul.f32 %v1500, %v1507
      %v1525 = vmul.f32 %v1501, %v1511
      %v1526 = vmul.f32 %v1502, %v1507
      %v1527 = vmul.f32 %v1503, %v1511
      %v1528 = vadd.f32 %v1472, %v1512
      %v1529 = vadd.f32 %v1473, %v1513
      %v1530 = vadd.f32 %v1474, %v1514
      %v1531 = vadd.f32 %v1475, %v1515
      %v1532 = vadd.f32 %v1476, %v1516
      %v1533 = vadd.f32 %v1477, %v1517
      %v1534 = vadd.f32 %v1478, %v1518
      %v1535 = vadd.f32 %v1479, %v1519
      %v1536 = vadd.f32 %v1480, %v1520
      %v1537 = vadd.f32 %v1481, %v1521
      %v1538 = vadd.f32 %v1482, %v1522
      %v1539 = vadd.f32 %v1483, %v1523
      %v1540 = vadd.f32 %v1484, %v1524
      %v1541 = vadd.f32 %v1485, %v1525
      %v1542 = vadd.f32 %v1486, %v1526
      %v1543 = vadd.f32 %v1487, %v1527
      %v1544 = vld [vmem:[%s1169] sm:$0xff]
      %v1545 = vld [vmem:[%s1169 + $0x8] sm:$0xff]
      %v1546 = vld [vmem:[%s1169 + $0x20] sm:$0xff]
      %v1547 = vld [vmem:[%s1169 + $0x28] sm:$0xff]
      %v1548 = vld [vmem:[%s1169 + $0x40] sm:$0xff]
      %v1549 = vld [vmem:[%s1169 + $0x48] sm:$0xff]
      %v1550 = vld [vmem:[%s1169 + $0x60] sm:$0xff]
      %v1551 = vld [vmem:[%s1169 + $0x68] sm:$0xff]
      %v1552 = vld [vmem:[%s1169 + $0x80] sm:$0xff]
      %v1553 = vld [vmem:[%s1169 + $0x88] sm:$0xff]
      %v1554 = vld [vmem:[%s1169 + $0xa0] sm:$0xff]
      %v1555 = vld [vmem:[%s1169 + $0xa8] sm:$0xff]
      %v1556 = vld [vmem:[%s1169 + $0xc0] sm:$0xff]
      %v1557 = vld [vmem:[%s1169 + $0xc8] sm:$0xff]
      %v1558 = vld [vmem:[%s1169 + $0xe0] sm:$0xff]
      %v1559 = vld [vmem:[%s1169 + $0xe8] sm:$0xff]
      %v1560 = vlaneseq
      %v1561 = vshrl.u32 %v1560, 7
      %v1562 = vsub.s32 4, %v1561
      %v1563 = vrot.slane %v1186, %v1562
      %v1564 = vlaneseq
      %v1565 = vshrl.u32 %v1564, 7
      %v1566 = vsub.s32 4, %v1565
      %v1567 = vrot.slane %v1187, %v1566
      %v1568 = vmul.f32 %v1544, %v1563
      %v1569 = vmul.f32 %v1545, %v1567
      %v1570 = vmul.f32 %v1546, %v1563
      %v1571 = vmul.f32 %v1547, %v1567
      %v1572 = vmul.f32 %v1548, %v1563
      %v1573 = vmul.f32 %v1549, %v1567
      %v1574 = vmul.f32 %v1550, %v1563
      %v1575 = vmul.f32 %v1551, %v1567
      %v1576 = vmul.f32 %v1552, %v1563
      %v1577 = vmul.f32 %v1553, %v1567
      %v1578 = vmul.f32 %v1554, %v1563
      %v1579 = vmul.f32 %v1555, %v1567
      %v1580 = vmul.f32 %v1556, %v1563
      %v1581 = vmul.f32 %v1557, %v1567
      %v1582 = vmul.f32 %v1558, %v1563
      %v1583 = vmul.f32 %v1559, %v1567
      %v1584 = vadd.f32 %v1528, %v1568
      %v1585 = vadd.f32 %v1529, %v1569
      %v1586 = vadd.f32 %v1530, %v1570
      %v1587 = vadd.f32 %v1531, %v1571
      %v1588 = vadd.f32 %v1532, %v1572
      %v1589 = vadd.f32 %v1533, %v1573
      %v1590 = vadd.f32 %v1534, %v1574
      %v1591 = vadd.f32 %v1535, %v1575
      %v1592 = vadd.f32 %v1536, %v1576
      %v1593 = vadd.f32 %v1537, %v1577
      %v1594 = vadd.f32 %v1538, %v1578
      %v1595 = vadd.f32 %v1539, %v1579
      %v1596 = vadd.f32 %v1540, %v1580
      %v1597 = vadd.f32 %v1541, %v1581
      %v1598 = vadd.f32 %v1542, %v1582
      %v1599 = vadd.f32 %v1543, %v1583
      %v1600 = vld [vmem:[%s1136] sm:$0xfe]
      %v1601 = vld [vmem:[%s1136 + $0x8] sm:$0xfe]
      %v1602 = vld [vmem:[%s1136 + $0x10] sm:$0x1]
      %v1603 = vld [vmem:[%s1136 + $0x18] sm:$0x1]
      %v1604 = vld [vmem:[%s1136 + $0x20] sm:$0xfe]
      %v1605 = vld [vmem:[%s1136 + $0x28] sm:$0xfe]
      %v1606 = vld [vmem:[%s1136 + $0x30] sm:$0x1]
      %v1607 = vld [vmem:[%s1136 + $0x38] sm:$0x1]
      %v1608 = vld [vmem:[%s1136 + $0x40] sm:$0xfe]
      %v1609 = vld [vmem:[%s1136 + $0x48] sm:$0xfe]
      %v1610 = vld [vmem:[%s1136 + $0x50] sm:$0x1]
      %v1611 = vld [vmem:[%s1136 + $0x58] sm:$0x1]
      %v1612 = vld [vmem:[%s1136 + $0x60] sm:$0xfe]
      %v1613 = vld [vmem:[%s1136 + $0x68] sm:$0xfe]
      %v1614 = vld [vmem:[%s1136 + $0x70] sm:$0x1]
      %v1615 = vld [vmem:[%s1136 + $0x78] sm:$0x1]
      %v1616 = vld [vmem:[%s1136 + $0x80] sm:$0xfe]
      %v1617 = vld [vmem:[%s1136 + $0x88] sm:$0xfe]
      %v1618 = vld [vmem:[%s1136 + $0x90] sm:$0x1]
      %v1619 = vld [vmem:[%s1136 + $0x98] sm:$0x1]
      %v1620 = vld [vmem:[%s1136 + $0xa0] sm:$0xfe]
      %v1621 = vld [vmem:[%s1136 + $0xa8] sm:$0xfe]
      %v1622 = vld [vmem:[%s1136 + $0xb0] sm:$0x1]
      %v1623 = vld [vmem:[%s1136 + $0xb8] sm:$0x1]
      %v1624 = vld [vmem:[%s1136 + $0xc0] sm:$0xfe]
      %v1625 = vld [vmem:[%s1136 + $0xc8] sm:$0xfe]
      %v1626 = vld [vmem:[%s1136 + $0xd0] sm:$0x1]
      %v1627 = vld [vmem:[%s1136 + $0xd8] sm:$0x1]
      %v1628 = vld [vmem:[%s1136 + $0xe0] sm:$0xfe]
      %v1629 = vld [vmem:[%s1136 + $0xe8] sm:$0xfe]
      %v1630 = vld [vmem:[%s1136 + $0xf0] sm:$0x1]
      %v1631 = vld [vmem:[%s1136 + $0xf8] sm:$0x1]
      %v1632 = vlaneseq
      %v1633 = vshrl.u32 %v1632, 7
      %v1634 = vsub.s32 5, %v1633
      %v1635 = vrot.slane %v1186, %v1634
      %v1636 = vlaneseq
      %v1637 = vshrl.u32 %v1636, 7
      %v1638 = vsub.s32 5, %v1637
      %v1639 = vrot.slane %v1187, %v1638
      %v1640 = vmul.f32 %v1600, %v1635
      %v1641 = vmul.f32 %v1601, %v1639
      %v1642 = vmul.f32 %v1602, %v1635
      %v1643 = vmul.f32 %v1603, %v1639
      %v1644 = vmul.f32 %v1604, %v1635
      %v1645 = vmul.f32 %v1605, %v1639
      %v1646 = vmul.f32 %v1606, %v1635
      %v1647 = vmul.f32 %v1607, %v1639
      %v1648 = vmul.f32 %v1608, %v1635
      %v1649 = vmul.f32 %v1609, %v1639
      %v1650 = vmul.f32 %v1610, %v1635
      %v1651 = vmul.f32 %v1611, %v1639
      %v1652 = vmul.f32 %v1612, %v1635
      %v1653 = vmul.f32 %v1613, %v1639
      %v1654 = vmul.f32 %v1614, %v1635
      %v1655 = vmul.f32 %v1615, %v1639
      %v1656 = vmul.f32 %v1616, %v1635
      %v1657 = vmul.f32 %v1617, %v1639
      %v1658 = vmul.f32 %v1618, %v1635
      %v1659 = vmul.f32 %v1619, %v1639
      %v1660 = vmul.f32 %v1620, %v1635
      %v1661 = vmul.f32 %v1621, %v1639
      %v1662 = vmul.f32 %v1622, %v1635
      %v1663 = vmul.f32 %v1623, %v1639
      %v1664 = vmul.f32 %v1624, %v1635
      %v1665 = vmul.f32 %v1625, %v1639
      %v1666 = vmul.f32 %v1626, %v1635
      %v1667 = vmul.f32 %v1627, %v1639
      %v1668 = vmul.f32 %v1628, %v1635
      %v1669 = vmul.f32 %v1629, %v1639
      %v1670 = vmul.f32 %v1630, %v1635
      %v1671 = vmul.f32 %v1631, %v1639
      %v1704 = vrot.slane %v1640, 1
      %v1705 = vrot.slane %v1642, 1
      %v1706 = vsel %vm1407, %v1704, %v1705
      %v1707 = vrot.slane %v1641, 1
      %v1708 = vrot.slane %v1643, 1
      %v1709 = vsel %vm1407, %v1707, %v1708
      %v1710 = vrot.slane %v1644, 1
      %v1711 = vrot.slane %v1646, 1
      %v1712 = vsel %vm1407, %v1710, %v1711
      %v1713 = vrot.slane %v1645, 1
      %v1714 = vrot.slane %v1647, 1
      %v1715 = vsel %vm1407, %v1713, %v1714
      %v1716 = vrot.slane %v1648, 1
      %v1717 = vrot.slane %v1650, 1
      %v1718 = vsel %vm1407, %v1716, %v1717
      %v1719 = vrot.slane %v1649, 1
      %v1720 = vrot.slane %v1651, 1
      %v1721 = vsel %vm1407, %v1719, %v1720
      %v1722 = vrot.slane %v1652, 1
      %v1723 = vrot.slane %v1654, 1
      %v1724 = vsel %vm1407, %v1722, %v1723
      %v1725 = vrot.slane %v1653, 1
      %v1726 = vrot.slane %v1655, 1
      %v1727 = vsel %vm1407, %v1725, %v1726
      %v1728 = vrot.slane %v1656, 1
      %v1729 = vrot.slane %v1658, 1
      %v1730 = vsel %vm1407, %v1728, %v1729
      %v1731 = vrot.slane %v1657, 1
      %v1732 = vrot.slane %v1659, 1
      %v1733 = vsel %vm1407, %v1731, %v1732
      %v1734 = vrot.slane %v1660, 1
      %v1735 = vrot.slane %v1662, 1
      %v1736 = vsel %vm1407, %v1734, %v1735
      %v1737 = vrot.slane %v1661, 1
      %v1738 = vrot.slane %v1663, 1
      %v1739 = vsel %vm1407, %v1737, %v1738
      %v1740 = vrot.slane %v1664, 1
      %v1741 = vrot.slane %v1666, 1
      %v1742 = vsel %vm1407, %v1740, %v1741
      %v1743 = vrot.slane %v1665, 1
      %v1744 = vrot.slane %v1667, 1
      %v1745 = vsel %vm1407, %v1743, %v1744
      %v1746 = vrot.slane %v1668, 1
      %v1747 = vrot.slane %v1670, 1
      %v1748 = vsel %vm1407, %v1746, %v1747
      %v1749 = vrot.slane %v1669, 1
      %v1750 = vrot.slane %v1671, 1
      %v1751 = vsel %vm1407, %v1749, %v1750
      %v1768 = vadd.f32 %v1584, %v1706
      %v1769 = vadd.f32 %v1585, %v1709
      %v1770 = vadd.f32 %v1586, %v1712
      %v1771 = vadd.f32 %v1587, %v1715
      %v1772 = vadd.f32 %v1588, %v1718
      %v1773 = vadd.f32 %v1589, %v1721
      %v1774 = vadd.f32 %v1590, %v1724
      %v1775 = vadd.f32 %v1591, %v1727
      %v1776 = vadd.f32 %v1592, %v1730
      %v1777 = vadd.f32 %v1593, %v1733
      %v1778 = vadd.f32 %v1594, %v1736
      %v1779 = vadd.f32 %v1595, %v1739
      %v1780 = vadd.f32 %v1596, %v1742
      %v1781 = vadd.f32 %v1597, %v1745
      %v1782 = vadd.f32 %v1598, %v1748
      %v1783 = vadd.f32 %v1599, %v1751
      %v1784 = vld [vmem:[%s1037] sm:$0xff]
      %v1785 = vld [vmem:[%s1037 + $0x8] sm:$0xff]
      %v1786 = vld [vmem:[%s1037 + $0x20] sm:$0xff]
      %v1787 = vld [vmem:[%s1037 + $0x28] sm:$0xff]
      %v1788 = vld [vmem:[%s1037 + $0x40] sm:$0xff]
      %v1789 = vld [vmem:[%s1037 + $0x48] sm:$0xff]
      %v1790 = vld [vmem:[%s1037 + $0x60] sm:$0xff]
      %v1791 = vld [vmem:[%s1037 + $0x68] sm:$0xff]
      %v1792 = vld [vmem:[%s1037 + $0x80] sm:$0xff]
      %v1793 = vld [vmem:[%s1037 + $0x88] sm:$0xff]
      %v1794 = vld [vmem:[%s1037 + $0xa0] sm:$0xff]
      %v1795 = vld [vmem:[%s1037 + $0xa8] sm:$0xff]
      %v1796 = vld [vmem:[%s1037 + $0xc0] sm:$0xff]
      %v1797 = vld [vmem:[%s1037 + $0xc8] sm:$0xff]
      %v1798 = vld [vmem:[%s1037 + $0xe0] sm:$0xff]
      %v1799 = vld [vmem:[%s1037 + $0xe8] sm:$0xff]
      %v1800 = vlaneseq
      %v1801 = vshrl.u32 %v1800, 7
      %v1802 = vsub.s32 6, %v1801
      %v1803 = vrot.slane %v1186, %v1802
      %v1804 = vlaneseq
      %v1805 = vshrl.u32 %v1804, 7
      %v1806 = vsub.s32 6, %v1805
      %v1807 = vrot.slane %v1187, %v1806
      %v1808 = vmul.f32 %v1784, %v1803
      %v1809 = vmul.f32 %v1785, %v1807
      %v1810 = vmul.f32 %v1786, %v1803
      %v1811 = vmul.f32 %v1787, %v1807
      %v1812 = vmul.f32 %v1788, %v1803
      %v1813 = vmul.f32 %v1789, %v1807
      %v1814 = vmul.f32 %v1790, %v1803
      %v1815 = vmul.f32 %v1791, %v1807
      %v1816 = vmul.f32 %v1792, %v1803
      %v1817 = vmul.f32 %v1793, %v1807
      %v1818 = vmul.f32 %v1794, %v1803
      %v1819 = vmul.f32 %v1795, %v1807
      %v1820 = vmul.f32 %v1796, %v1803
      %v1821 = vmul.f32 %v1797, %v1807
      %v1822 = vmul.f32 %v1798, %v1803
      %v1823 = vmul.f32 %v1799, %v1807
      %v1824 = vadd.f32 %v1768, %v1808
      %v1825 = vadd.f32 %v1769, %v1809
      %v1826 = vadd.f32 %v1770, %v1810
      %v1827 = vadd.f32 %v1771, %v1811
      %v1828 = vadd.f32 %v1772, %v1812
      %v1829 = vadd.f32 %v1773, %v1813
      %v1830 = vadd.f32 %v1774, %v1814
      %v1831 = vadd.f32 %v1775, %v1815
      %v1832 = vadd.f32 %v1776, %v1816
      %v1833 = vadd.f32 %v1777, %v1817
      %v1834 = vadd.f32 %v1778, %v1818
      %v1835 = vadd.f32 %v1779, %v1819
      %v1836 = vadd.f32 %v1780, %v1820
      %v1837 = vadd.f32 %v1781, %v1821
      %v1838 = vadd.f32 %v1782, %v1822
      %v1839 = vadd.f32 %v1783, %v1823
      %v1840 = vld [vmem:[%s1071] sm:$0xff]
      %v1841 = vld [vmem:[%s1071 + $0x8] sm:$0xff]
      %v1842 = vld [vmem:[%s1071 + $0x20] sm:$0xff]
      %v1843 = vld [vmem:[%s1071 + $0x28] sm:$0xff]
      %v1844 = vld [vmem:[%s1071 + $0x40] sm:$0xff]
      %v1845 = vld [vmem:[%s1071 + $0x48] sm:$0xff]
      %v1846 = vld [vmem:[%s1071 + $0x60] sm:$0xff]
      %v1847 = vld [vmem:[%s1071 + $0x68] sm:$0xff]
      %v1848 = vld [vmem:[%s1071 + $0x80] sm:$0xff]
      %v1849 = vld [vmem:[%s1071 + $0x88] sm:$0xff]
      %v1850 = vld [vmem:[%s1071 + $0xa0] sm:$0xff]
      %v1851 = vld [vmem:[%s1071 + $0xa8] sm:$0xff]
      %v1852 = vld [vmem:[%s1071 + $0xc0] sm:$0xff]
      %v1853 = vld [vmem:[%s1071 + $0xc8] sm:$0xff]
      %v1854 = vld [vmem:[%s1071 + $0xe0] sm:$0xff]
      %v1855 = vld [vmem:[%s1071 + $0xe8] sm:$0xff]
      %v1856 = vlaneseq
      %v1857 = vshrl.u32 %v1856, 7
      %v1858 = vsub.s32 7, %v1857
      %v1859 = vrot.slane %v1186, %v1858
      %v1860 = vlaneseq
      %v1861 = vshrl.u32 %v1860, 7
      %v1862 = vsub.s32 7, %v1861
      %v1863 = vrot.slane %v1187, %v1862
      %v1864 = vmul.f32 %v1840, %v1859
      %v1865 = vmul.f32 %v1841, %v1863
      %v1866 = vmul.f32 %v1842, %v1859
      %v1867 = vmul.f32 %v1843, %v1863
      %v1868 = vmul.f32 %v1844, %v1859
      %v1869 = vmul.f32 %v1845, %v1863
      %v1870 = vmul.f32 %v1846, %v1859
      %v1871 = vmul.f32 %v1847, %v1863
      %v1872 = vmul.f32 %v1848, %v1859
      %v1873 = vmul.f32 %v1849, %v1863
      %v1874 = vmul.f32 %v1850, %v1859
      %v1875 = vmul.f32 %v1851, %v1863
      %v1876 = vmul.f32 %v1852, %v1859
      %v1877 = vmul.f32 %v1853, %v1863
      %v1878 = vmul.f32 %v1854, %v1859
      %v1879 = vmul.f32 %v1855, %v1863
      %v1880 = vadd.f32 %v1824, %v1864
      %v1881 = vadd.f32 %v1825, %v1865
      %v1882 = vadd.f32 %v1826, %v1866
      %v1883 = vadd.f32 %v1827, %v1867
      %v1884 = vadd.f32 %v1828, %v1868
      %v1885 = vadd.f32 %v1829, %v1869
      %v1886 = vadd.f32 %v1830, %v1870
      %v1887 = vadd.f32 %v1831, %v1871
      %v1888 = vadd.f32 %v1832, %v1872
      %v1889 = vadd.f32 %v1833, %v1873
      %v1890 = vadd.f32 %v1834, %v1874
      %v1891 = vadd.f32 %v1835, %v1875
      %v1892 = vadd.f32 %v1836, %v1876
      %v1893 = vadd.f32 %v1837, %v1877
      %v1894 = vadd.f32 %v1838, %v1878
      %v1895 = vadd.f32 %v1839, %v1879
      %v1896 = vld [vmem:[%s1037] sm:$0xfe]
      %v1897 = vld [vmem:[%s1037 + $0x8] sm:$0xfe]
      %v1898 = vld [vmem:[%s1037 + $0x10] sm:$0x1]
      %v1899 = vld [vmem:[%s1037 + $0x18] sm:$0x1]
      %v1900 = vld [vmem:[%s1037 + $0x20] sm:$0xfe]
      %v1901 = vld [vmem:[%s1037 + $0x28] sm:$0xfe]
      %v1902 = vld [vmem:[%s1037 + $0x30] sm:$0x1]
      %v1903 = vld [vmem:[%s1037 + $0x38] sm:$0x1]
      %v1904 = vld [vmem:[%s1037 + $0x40] sm:$0xfe]
      %v1905 = vld [vmem:[%s1037 + $0x48] sm:$0xfe]
      %v1906 = vld [vmem:[%s1037 + $0x50] sm:$0x1]
      %v1907 = vld [vmem:[%s1037 + $0x58] sm:$0x1]
      %v1908 = vld [vmem:[%s1037 + $0x60] sm:$0xfe]
      %v1909 = vld [vmem:[%s1037 + $0x68] sm:$0xfe]
      %v1910 = vld [vmem:[%s1037 + $0x70] sm:$0x1]
      %v1911 = vld [vmem:[%s1037 + $0x78] sm:$0x1]
      %v1912 = vld [vmem:[%s1037 + $0x80] sm:$0xfe]
      %v1913 = vld [vmem:[%s1037 + $0x88] sm:$0xfe]
      %v1914 = vld [vmem:[%s1037 + $0x90] sm:$0x1]
      %v1915 = vld [vmem:[%s1037 + $0x98] sm:$0x1]
      %v1916 = vld [vmem:[%s1037 + $0xa0] sm:$0xfe]
      %v1917 = vld [vmem:[%s1037 + $0xa8] sm:$0xfe]
      %v1918 = vld [vmem:[%s1037 + $0xb0] sm:$0x1]
      %v1919 = vld [vmem:[%s1037 + $0xb8] sm:$0x1]
      %v1920 = vld [vmem:[%s1037 + $0xc0] sm:$0xfe]
      %v1921 = vld [vmem:[%s1037 + $0xc8] sm:$0xfe]
      %v1922 = vld [vmem:[%s1037 + $0xd0] sm:$0x1]
      %v1923 = vld [vmem:[%s1037 + $0xd8] sm:$0x1]
      %v1924 = vld [vmem:[%s1037 + $0xe0] sm:$0xfe]
      %v1925 = vld [vmem:[%s1037 + $0xe8] sm:$0xfe]
      %v1926 = vld [vmem:[%s1037 + $0xf0] sm:$0x1]
      %v1927 = vld [vmem:[%s1037 + $0xf8] sm:$0x1]
      %v1928 = vlaneseq
      %v1929 = vshrl.u32 %v1928, 7
      %v1930 = vsub.s32 0, %v1929
      %v1931 = vrot.slane %v1188, %v1930
      %v1932 = vlaneseq
      %v1933 = vshrl.u32 %v1932, 7
      %v1934 = vsub.s32 0, %v1933
      %v1935 = vrot.slane %v1189, %v1934
      %v1936 = vmul.f32 %v1896, %v1931
      %v1937 = vmul.f32 %v1897, %v1935
      %v1938 = vmul.f32 %v1898, %v1931
      %v1939 = vmul.f32 %v1899, %v1935
      %v1940 = vmul.f32 %v1900, %v1931
      %v1941 = vmul.f32 %v1901, %v1935
      %v1942 = vmul.f32 %v1902, %v1931
      %v1943 = vmul.f32 %v1903, %v1935
      %v1944 = vmul.f32 %v1904, %v1931
      %v1945 = vmul.f32 %v1905, %v1935
      %v1946 = vmul.f32 %v1906, %v1931
      %v1947 = vmul.f32 %v1907, %v1935
      %v1948 = vmul.f32 %v1908, %v1931
      %v1949 = vmul.f32 %v1909, %v1935
      %v1950 = vmul.f32 %v1910, %v1931
      %v1951 = vmul.f32 %v1911, %v1935
      %v1952 = vmul.f32 %v1912, %v1931
      %v1953 = vmul.f32 %v1913, %v1935
      %v1954 = vmul.f32 %v1914, %v1931
      %v1955 = vmul.f32 %v1915, %v1935
      %v1956 = vmul.f32 %v1916, %v1931
      %v1957 = vmul.f32 %v1917, %v1935
      %v1958 = vmul.f32 %v1918, %v1931
      %v1959 = vmul.f32 %v1919, %v1935
      %v1960 = vmul.f32 %v1920, %v1931
      %v1961 = vmul.f32 %v1921, %v1935
      %v1962 = vmul.f32 %v1922, %v1931
      %v1963 = vmul.f32 %v1923, %v1935
      %v1964 = vmul.f32 %v1924, %v1931
      %v1965 = vmul.f32 %v1925, %v1935
      %v1966 = vmul.f32 %v1926, %v1931
      %v1967 = vmul.f32 %v1927, %v1935
      %v2000 = vrot.slane %v1936, 1
      %v2001 = vrot.slane %v1938, 1
      %v2002 = vsel %vm1407, %v2000, %v2001
      %v2003 = vrot.slane %v1937, 1
      %v2004 = vrot.slane %v1939, 1
      %v2005 = vsel %vm1407, %v2003, %v2004
      %v2006 = vrot.slane %v1940, 1
      %v2007 = vrot.slane %v1942, 1
      %v2008 = vsel %vm1407, %v2006, %v2007
      %v2009 = vrot.slane %v1941, 1
      %v2010 = vrot.slane %v1943, 1
      %v2011 = vsel %vm1407, %v2009, %v2010
      %v2012 = vrot.slane %v1944, 1
      %v2013 = vrot.slane %v1946, 1
      %v2014 = vsel %vm1407, %v2012, %v2013
      %v2015 = vrot.slane %v1945, 1
      %v2016 = vrot.slane %v1947, 1
      %v2017 = vsel %vm1407, %v2015, %v2016
      %v2018 = vrot.slane %v1948, 1
      %v2019 = vrot.slane %v1950, 1
      %v2020 = vsel %vm1407, %v2018, %v2019
      %v2021 = vrot.slane %v1949, 1
      %v2022 = vrot.slane %v1951, 1
      %v2023 = vsel %vm1407, %v2021, %v2022
      %v2024 = vrot.slane %v1952, 1
      %v2025 = vrot.slane %v1954, 1
      %v2026 = vsel %vm1407, %v2024, %v2025
      %v2027 = vrot.slane %v1953, 1
      %v2028 = vrot.slane %v1955, 1
      %v2029 = vsel %vm1407, %v2027, %v2028
      %v2030 = vrot.slane %v1956, 1
      %v2031 = vrot.slane %v1958, 1
      %v2032 = vsel %vm1407, %v2030, %v2031
      %v2033 = vrot.slane %v1957, 1
      %v2034 = vrot.slane %v1959, 1
      %v2035 = vsel %vm1407, %v2033, %v2034
      %v2036 = vrot.slane %v1960, 1
      %v2037 = vrot.slane %v1962, 1
      %v2038 = vsel %vm1407, %v2036, %v2037
      %v2039 = vrot.slane %v1961, 1
      %v2040 = vrot.slane %v1963, 1
      %v2041 = vsel %vm1407, %v2039, %v2040
      %v2042 = vrot.slane %v1964, 1
      %v2043 = vrot.slane %v1966, 1
      %v2044 = vsel %vm1407, %v2042, %v2043
      %v2045 = vrot.slane %v1965, 1
      %v2046 = vrot.slane %v1967, 1
      %v2047 = vsel %vm1407, %v2045, %v2046
      %v2064 = vadd.f32 %v1880, %v2002
      %v2065 = vadd.f32 %v1881, %v2005
      %v2066 = vadd.f32 %v1882, %v2008
      %v2067 = vadd.f32 %v1883, %v2011
      %v2068 = vadd.f32 %v1884, %v2014
      %v2069 = vadd.f32 %v1885, %v2017
      %v2070 = vadd.f32 %v1886, %v2020
      %v2071 = vadd.f32 %v1887, %v2023
      %v2072 = vadd.f32 %v1888, %v2026
      %v2073 = vadd.f32 %v1889, %v2029
      %v2074 = vadd.f32 %v1890, %v2032
      %v2075 = vadd.f32 %v1891, %v2035
      %v2076 = vadd.f32 %v1892, %v2038
      %v2077 = vadd.f32 %v1893, %v2041
      %v2078 = vadd.f32 %v1894, %v2044
      %v2079 = vadd.f32 %v1895, %v2047
      %v2080 = vld [vmem:[%s4] sm:$0x3]
      %v2082 = vlaneseq
      %v2083 = vshrl.u32 %v2082, 7
      %v2084 = vsub.s32 0, %v2083
      %v2085 = vrot.slane %v2080, %v2084
      %v2086 = vlaneseq
      %v2087 = vshrl.u32 %v2086, 7
      %v2088 = vsub.s32 1, %v2087
      %v2089 = vrot.slane %v2080, %v2088
      %v2092 = vadd.f32 %v2064, %v2085
      %v2093 = vadd.f32 %v2065, %v2089
      %v2094 = vadd.f32 %v2066, %v2085
      %v2095 = vadd.f32 %v2067, %v2089
      %v2096 = vadd.f32 %v2068, %v2085
      %v2097 = vadd.f32 %v2069, %v2089
      %v2098 = vadd.f32 %v2070, %v2085
      %v2099 = vadd.f32 %v2071, %v2089
      %v2100 = vadd.f32 %v2072, %v2085
      %v2101 = vadd.f32 %v2073, %v2089
      %v2102 = vadd.f32 %v2074, %v2085
      %v2103 = vadd.f32 %v2075, %v2089
      %v2104 = vadd.f32 %v2076, %v2085
      %v2105 = vadd.f32 %v2077, %v2089
      %v2106 = vadd.f32 %v2078, %v2085
      %v2107 = vadd.f32 %v2079, %v2089
      %v2108 = vmax.f32 %v2092, 0.0
      %v2109 = vmax.f32 %v2093, 0.0
      %v2110 = vmax.f32 %v2094, 0.0
      %v2111 = vmax.f32 %v2095, 0.0
      %v2112 = vmax.f32 %v2096, 0.0
      %v2113 = vmax.f32 %v2097, 0.0
      %v2114 = vmax.f32 %v2098, 0.0
      %v2115 = vmax.f32 %v2099, 0.0
      %v2116 = vmax.f32 %v2100, 0.0
      %v2117 = vmax.f32 %v2101, 0.0
      %v2118 = vmax.f32 %v2102, 0.0
      %v2119 = vmax.f32 %v2103, 0.0
      %v2120 = vmax.f32 %v2104, 0.0
      %v2121 = vmax.f32 %v2105, 0.0
      %v2122 = vmax.f32 %v2106, 0.0
      %v2123 = vmax.f32 %v2107, 0.0
      %v2124 = vadd.f32 %v2108, %v2110
      %v2125 = vadd.f32 %v2124, %v2112
      %v2126 = vadd.f32 %v2125, %v2114
      %v2127 = vadd.f32 %v2126, %v2116
      %v2128 = vadd.f32 %v2127, %v2118
      %v2129 = vadd.f32 %v2128, %v2120
      %v2130 = vadd.f32 %v2129, %v2122
      %v2131 = vrot.slane %v2130, 4
      %v2132 = vadd.f32 %v2130, %v2131
      %v2133 = vrot.slane %v2132, 2
      %v2134 = vadd.f32 %v2132, %v2133
      %v2135 = vrot.slane %v2134, 1
      %v2136 = vadd.f32 %v2134, %v2135
      %v2137 = vsel %vm844, %v2109, 0.0
      %v2138 = vsel %vm844, %v2111, 0.0
      %v2139 = vadd.f32 %v2137, %v2138
      %v2140 = vsel %vm844, %v2113, 0.0
      %v2141 = vadd.f32 %v2139, %v2140
      %v2142 = vsel %vm844, %v2115, 0.0
      %v2143 = vadd.f32 %v2141, %v2142
      %v2144 = vsel %vm844, %v2117, 0.0
      %v2145 = vadd.f32 %v2143, %v2144
      %v2146 = vsel %vm844, %v2119, 0.0
      %v2147 = vadd.f32 %v2145, %v2146
      %v2148 = vsel %vm844, %v2121, 0.0
      %v2149 = vadd.f32 %v2147, %v2148
      %v2150 = vsel %vm844, %v2123, 0.0
      %v2151 = vadd.f32 %v2149, %v2150
      %v2152 = vrot.slane %v2151, 4
      %v2153 = vadd.f32 %v2151, %v2152
      %v2154 = vrot.slane %v2153, 2
      %v2155 = vadd.f32 %v2153, %v2154
      %v2156 = vrot.slane %v2155, 1
      %v2157 = vadd.f32 %v2155, %v2156
      %v2158 = vmul.f32 %v2136, 0.015625
      %v2159 = vmul.f32 %v2157, 0.015625
      %v2160 = vld [vmem:[%s5] sm:$0xff]
      %v2161 = vld [vmem:[%s5 + $0x8] sm:$0xff]
      %v2162 = vld [vmem:[%s5 + $0x10] sm:$0xff]
      %v2163 = vld [vmem:[%s5 + $0x18] sm:$0xff]
      %v2164 = vld [vmem:[%s5 + $0x20] sm:$0xff]
      %v2165 = vld [vmem:[%s5 + $0x28] sm:$0xff]
      %v2166 = vld [vmem:[%s5 + $0x30] sm:$0xff]
      %v2167 = vld [vmem:[%s5 + $0x38] sm:$0xff]
      %v2168 = vld [vmem:[%s5 + $0x40] sm:$0xff]
      %v2169 = vld [vmem:[%s5 + $0x48] sm:$0xff]
      %v2170 = vld [vmem:[%s5 + $0x50] sm:$0xff]
      %v2171 = vld [vmem:[%s5 + $0x58] sm:$0xff]
      %v2172 = vld [vmem:[%s5 + $0x60] sm:$0xff]
      %v2173 = vld [vmem:[%s5 + $0x68] sm:$0xff]
      %v2174 = vld [vmem:[%s5 + $0x70] sm:$0xff]
      %v2175 = vld [vmem:[%s5 + $0x78] sm:$0xff]
      %v2176 = vld [vmem:[%s5 + $0x80] sm:$0xff]
      %v2177 = vld [vmem:[%s5 + $0x88] sm:$0xff]
      %v2178 = vld [vmem:[%s6] sm:$0x1]
      %v2180 = vsel %vm844, %v2159, 0
      %2182 = vmatprep.subr.mxu0 0.0
      %2183 = vmatpush1.msra.mxu0 %v2160
      %2184 = vmatprep.subr.mxu0 0.0
      %2185 = vmatpush1.msra.mxu0 %v2161
      %2186 = vmatprep.subr.mxu0 0.0
      %2187 = vmatpush1.msra.mxu0 %v2162
      %2188 = vmatprep.subr.mxu0 0.0
      %2189 = vmatpush1.msra.mxu0 %v2163
      %2190 = vmatprep.subr.mxu0 0.0
      %2191 = vmatpush1.msra.mxu0 %v2164
      %2192 = vmatprep.subr.mxu0 0.0
      %2193 = vmatpush1.msra.mxu0 %v2165
      %2194 = vmatprep.subr.mxu0 0.0
      %2195 = vmatpush1.msra.mxu0 %v2166
      %2196 = vmatprep.subr.mxu0 0.0
      %2197 = vmatpush1.msra.mxu0 %v2167
      %2198 = vmatprep.subr.mxu0 0.0
      %2199 = vmatpush1.msra.mxu0 %v2168
      %2200 = vmatprep.subr.mxu0 0.0
      %2201 = vmatpush1.msra.mxu0 %v2169
      %2202 = vmatprep.subr.mxu0 0.0
      %2203 = vmatpush1.msra.mxu0 %v2170
      %2204 = vmatprep.subr.mxu0 0.0
      %2205 = vmatpush1.msra.mxu0 %v2171
      %2206 = vmatprep.subr.mxu0 0.0
      %2207 = vmatpush1.msra.mxu0 %v2172
      %2208 = vmatprep.subr.mxu0 0.0
      %2209 = vmatpush1.msra.mxu0 %v2173
      %2210 = vmatprep.subr.mxu0 0.0
      %2211 = vmatpush1.msra.mxu0 %v2174
      %2212 = vmatprep.subr.mxu0 0.0
      %2213 = vmatpush1.msra.mxu0 %v2175
      %2214 = vmatprep.subr.mxu0 0.0
      %2215 = vmatpush1.msra.mxu0 %v2176
      %2216 = vmatprep.subr.mxu0 0.0
      %2217 = vmatpush1.msra.mxu0 %v2177
      %2218 = vmatprep.subr.mxu0 0.0
      %2219 = vmatpush1.msra.mxu0 0.0
      %2220 = vmatprep.subr.mxu0 0.0
      %2221 = vmatpush1.msra.mxu0 0.0
      %2222 = vmatprep.subr.mxu0 0.0
      %2223 = vmatpush1.msra.mxu0 0.0
      %2224 = vmatprep.subr.mxu0 0.0
      %2225 = vmatpush1.msra.mxu0 0.0
      %2226 = vmatprep.subr.mxu0 0.0
      %2227 = vmatpush1.msra.mxu0 0.0
      %2228 = vmatprep.subr.mxu0 0.0
      %2229 = vmatpush1.msra.mxu0 0.0
      %2230 = vmatprep.subr.mxu0 0.0
      %2231 = vmatpush1.msra.mxu0 0.0
      %2232 = vmatprep.subr.mxu0 0.0
      %2233 = vmatpush1.msra.mxu0 0.0
      %2234 = vmatprep.subr.mxu0 0.0
      %2235 = vmatpush1.msra.mxu0 0.0
      %2236 = vmatprep.subr.mxu0 0.0
      %2237 = vmatpush1.msra.mxu0 0.0
      %2238 = vmatprep.subr.mxu0 0.0
      %2239 = vmatpush1.msra.mxu0 0.0
      %2240 = vmatprep.subr.mxu0 0.0
      %2241 = vmatpush1.msra.mxu0 0.0
      %2242 = vmatprep.subr.mxu0 0.0
      %2243 = vmatpush1.msra.mxu0 0.0
      %2244 = vmatprep.subr.mxu0 0.0
      %2245 = vmatpush1.msra.mxu0 0.0
      %2246 = vmatprep.mubr.f32.mxu0 %v2180
      %2247 = vmatmul.mubr.f32.gmra.mrb[0].mxu0 %v2158
      %v2248 = vpop.f32.mrb[0].mxu0
      %v2249 = vadd.f32 %v2178, %v2248
      %v2250 = vpop.f32.mrb[0].mxu0
      %2251 = vdwg.mxu0
      %v2252 = vmax.f32 %v2249, 0.0
      %v2253 = vld [vmem:[%s7] sm:$0x3f]
      %v2254 = vld [vmem:[%s7 + $0x8] sm:$0x3f]
      %v2255 = vld [vmem:[%s8] sm:$0x3]
      %v2257 = vlaneseq
      %v2258 = vshrl.u32 %v2257, 7
      %v2259 = vsub.s32 0, %v2258
      %v2260 = vrot.slane %v2255, %v2259
      %v2261 = vlaneseq
      %v2262 = vshrl.u32 %v2261, 7
      %v2263 = vsub.s32 1, %v2262
      %v2264 = vrot.slane %v2255, %v2263
      %vm2267 = vcmask 48128
      %v2269 = vsel %vm2267, %v2252, 0
      %vm2271 = vcmask 1045504
      %v2273 = vsel %vm2271, %v2253, 0
      %v2276 = vsel %vm2271, %v2254, 0
      %2278 = vmatprep.subr.mxu0 %v2276
      %2279 = vmatpush1.msra.mxu0 %v2273
      %2280 = vmatprep.subr.mxu0 0.0
      %2281 = vmatpush1.msra.mxu0 0.0
      %2282 = vmatprep.subr.mxu0 0.0
      %2283 = vmatpush1.msra.mxu0 0.0
      %2284 = vmatprep.subr.mxu0 0.0
      %2285 = vmatpush1.msra.mxu0 0.0
      %2286 = vmatprep.subr.mxu0 0.0
      %2287 = vmatpush1.msra.mxu0 0.0
      %2288 = vmatprep.subr.mxu0 0.0
      %2289 = vmatpush1.msra.mxu0 0.0
      %2290 = vmatprep.subr.mxu0 0.0
      %2291 = vmatpush1.msra.mxu0 0.0
      %2292 = vmatprep.subr.mxu0 0.0
      %2293 = vmatpush1.msra.mxu0 0.0
      %2294 = vmatprep.subr.mxu0 0.0
      %2295 = vmatpush1.msra.mxu0 0.0
      %2296 = vmatprep.subr.mxu0 0.0
      %2297 = vmatpush1.msra.mxu0 0.0
      %2298 = vmatprep.subr.mxu0 0.0
      %2299 = vmatpush1.msra.mxu0 0.0
      %2300 = vmatprep.subr.mxu0 0.0
      %2301 = vmatpush1.msra.mxu0 0.0
      %2302 = vmatprep.subr.mxu0 0.0
      %2303 = vmatpush1.msra.mxu0 0.0
      %2304 = vmatprep.subr.mxu0 0.0
      %2305 = vmatpush1.msra.mxu0 0.0
      %2306 = vmatprep.subr.mxu0 0.0
      %2307 = vmatpush1.msra.mxu0 0.0
      %2308 = vmatprep.subr.mxu0 0.0
      %2309 = vmatpush1.msra.mxu0 0.0
      %2310 = vmatprep.subr.mxu0 0.0
      %2311 = vmatpush1.msra.mxu0 0.0
      %2312 = vmatprep.subr.mxu0 0.0
      %2313 = vmatpush1.msra.mxu0 0.0
      %2314 = vmatprep.subr.mxu0 0.0
      %2315 = vmatpush1.msra.mxu0 0.0
      %2316 = vmatprep.subr.mxu0 0.0
      %2317 = vmatpush1.msra.mxu0 0.0
      %2318 = vmatprep.subr.mxu0 0.0
      %2319 = vmatpush1.msra.mxu0 0.0
      %2320 = vmatprep.subr.mxu0 0.0
      %2321 = vmatpush1.msra.mxu0 0.0
      %2322 = vmatprep.subr.mxu0 0.0
      %2323 = vmatpush1.msra.mxu0 0.0
      %2324 = vmatprep.subr.mxu0 0.0
      %2325 = vmatpush1.msra.mxu0 0.0
      %2326 = vmatprep.subr.mxu0 0.0
      %2327 = vmatpush1.msra.mxu0 0.0
      %2328 = vmatprep.subr.mxu0 0.0
      %2329 = vmatpush1.msra.mxu0 0.0
      %2330 = vmatprep.subr.mxu0 0.0
      %2331 = vmatpush1.msra.mxu0 0.0
      %2332 = vmatprep.subr.mxu0 0.0
      %2333 = vmatpush1.msra.mxu0 0.0
      %2334 = vmatprep.subr.mxu0 0.0
      %2335 = vmatpush1.msra.mxu0 0.0
      %2336 = vmatprep.subr.mxu0 0.0
      %2337 = vmatpush1.msra.mxu0 0.0
      %2338 = vmatprep.subr.mxu0 0.0
      %2339 = vmatpush1.msra.mxu0 0.0
      %2340 = vmatprep.subr.mxu0 0.0
      %2341 = vmatpush1.msra.mxu0 0.0
      %2342 = vmatprep.mubr.f32.mxu0 0.0
      %2343 = vmatmul.mubr.f32.gmra.mrb[0].mxu0 %v2269
      %v2344 = vpop.f32.mrb[0].mxu0
      %v2345 = vadd.f32 %v2260, %v2344
      %v2346 = vpop.f32.mrb[0].mxu0
      %v2347 = vadd.f32 %v2264, %v2346
      %2348 = vdwg.mxu0
      %v2349 = vsub.f32 0.0, %v2345
      %v2350 = vsub.f32 0.0, %v2347
      %v2351 = vmul.f32 %v2349, 1.442695
      %v2352 = vpow.pop %v2351
      %v2353 = vmul.f32 %v2350, 1.442695
      %v2354 = vpow.pop %v2353
      %v2355 = vadd.f32 %v2352, 1.0
      %v2356 = vadd.f32 %v2354, 1.0
      %v2357 = vrcp.pop %v2355
      %v2358 = vrcp.pop %v2356
      %v2359 = vlaneseq
      %v2360 = vshrl.u32 %v2359, 7
      %v2361 = vsub.s32 0, %v2360
      %v2362 = vrot.slane %v2357, %v2361
      %v2363 = vlaneseq
      %v2364 = vshrl.u32 %v2363, 7
      %v2365 = vsub.s32 0, %v2364
      %v2366 = vrot.slane %v2358, %v2365
      %v2367 = vmul.f32 %v2108, %v2362
      %v2368 = vmul.f32 %v2109, %v2366
      %v2369 = vmul.f32 %v2110, %v2362
      %v2370 = vmul.f32 %v2111, %v2366
      %v2371 = vmul.f32 %v2112, %v2362
      %v2372 = vmul.f32 %v2113, %v2366
      %v2373 = vmul.f32 %v2114, %v2362
      %v2374 = vmul.f32 %v2115, %v2366
      %v2375 = vmul.f32 %v2116, %v2362
      %v2376 = vmul.f32 %v2117, %v2366
      %v2377 = vmul.f32 %v2118, %v2362
      %v2378 = vmul.f32 %v2119, %v2366
      %v2379 = vmul.f32 %v2120, %v2362
      %v2380 = vmul.f32 %v2121, %v2366
      %v2381 = vmul.f32 %v2122, %v2362
      %v2382 = vmul.f32 %v2123, %v2366
      %v2383 = vpack.c.bf16 %v2369, %v2367
      %v2384 = vpack.c.bf16 %v2370, %v2368
      %v2385 = vpack.c.bf16 %v2373, %v2371
      %v2386 = vpack.c.bf16 %v2374, %v2372
      %v2387 = vpack.c.bf16 %v2377, %v2375
      %v2388 = vpack.c.bf16 %v2378, %v2376
      %v2389 = vpack.c.bf16 %v2381, %v2379
      %v2390 = vpack.c.bf16 %v2382, %v2380
      %v2391 = vld [vmem:[%s9] sm:$0xf]
      %v2392 = vld [vmem:[%s9 + $0x4] sm:$0xf]
      %v2393 = vld [vmem:[%s9 + $0x8] sm:$0xf]
      %v2394 = vld [vmem:[%s9 + $0xc] sm:$0xf]
      %v2395 = vld [vmem:[%s9 + $0x10] sm:$0xf]
      %v2396 = vld [vmem:[%s9 + $0x14] sm:$0xf]
      %v2397 = vld [vmem:[%s9 + $0x18] sm:$0xf]
      %v2398 = vld [vmem:[%s9 + $0x1c] sm:$0xf]
      %v2399 = vld [vmem:[%s9 + $0x20] sm:$0xf]
      %v2400 = vld [vmem:[%s9 + $0x24] sm:$0xf]
      %v2401 = vld [vmem:[%s9 + $0x28] sm:$0xf]
      %v2402 = vld [vmem:[%s9 + $0x2c] sm:$0xf]
      %v2403 = vld [vmem:[%s9 + $0x30] sm:$0xf]
      %v2404 = vld [vmem:[%s9 + $0x34] sm:$0xf]
      %v2405 = vld [vmem:[%s9 + $0x38] sm:$0xf]
      %v2406 = vld [vmem:[%s9 + $0x3c] sm:$0xf]
      %v2407 = vld [vmem:[%s9 + $0x40] sm:$0xf]
      %v2408 = vld [vmem:[%s9 + $0x44] sm:$0xf]
      %v2409 = vld [vmem:[%s10] sm:$0x1]
      %v2411 = vlaneseq
      %v2412 = vshrl.u32 %v2411, 7
      %v2413 = vsub.s32 0, %v2412
      %v2414 = vrot.slane %v2409, %v2413
      %v2434 = vunpack.c.l.b16 %v2391
      %v2435 = vunpack.c.l.b16 %v2392
      %v2436 = vunpack.c.l.b16 %v2393
      %v2437 = vunpack.c.l.b16 %v2394
      %v2438 = vunpack.c.l.b16 %v2395
      %v2439 = vunpack.c.l.b16 %v2396
      %v2440 = vunpack.c.l.b16 %v2397
      %v2441 = vunpack.c.l.b16 %v2398
      %v2442 = vunpack.c.l.b16 %v2399
      %v2443 = vunpack.c.l.b16 %v2400
      %v2444 = vunpack.c.l.b16 %v2401
      %v2445 = vunpack.c.l.b16 %v2402
      %v2446 = vunpack.c.l.b16 %v2403
      %v2447 = vunpack.c.l.b16 %v2404
      %v2448 = vunpack.c.l.b16 %v2405
      %v2449 = vunpack.c.l.b16 %v2406
      %v2450 = vunpack.c.l.b16 %v2407
      %v2451 = vunpack.c.l.b16 %v2408
      %v2452 = vpack.c.b16 %v2435, %v2434
      %v2453 = vpack.c.b16 %v2437, %v2436
      %v2454 = vpack.c.b16 %v2439, %v2438
      %v2455 = vpack.c.b16 %v2441, %v2440
      %v2456 = vpack.c.b16 %v2443, %v2442
      %v2457 = vpack.c.b16 %v2445, %v2444
      %v2458 = vpack.c.b16 %v2447, %v2446
      %v2459 = vpack.c.b16 %v2449, %v2448
      %v2460 = vpack.c.b16 %v2451, %v2450
      %v2471 = vsel %vm844, %v2384, 0
      %v2474 = vsel %vm844, %v2386, 0
      %v2477 = vsel %vm844, %v2388, 0
      %v2480 = vsel %vm844, %v2390, 0
      %2482 = vmatprep.subr.bf16.mxu0 0
      %2483 = vmatpush1.bf16.msra.mxu0 %v2452
      %2484 = vmatprep.subr.bf16.mxu0 0
      %2485 = vmatpush1.bf16.msra.mxu0 %v2453
      %2486 = vmatprep.subr.bf16.mxu0 0
      %2487 = vmatpush1.bf16.msra.mxu0 %v2454
      %2488 = vmatprep.subr.bf16.mxu0 0
      %2489 = vmatpush1.bf16.msra.mxu0 %v2455
      %2490 = vmatprep.subr.bf16.mxu0 0
      %2491 = vmatpush1.bf16.msra.mxu0 %v2456
      %2492 = vmatprep.subr.bf16.mxu0 0
      %2493 = vmatpush1.bf16.msra.mxu0 %v2457
      %2494 = vmatprep.subr.bf16.mxu0 0
      %2495 = vmatpush1.bf16.msra.mxu0 %v2458
      %2496 = vmatprep.subr.bf16.mxu0 0
      %2497 = vmatpush1.bf16.msra.mxu0 %v2459
      %2498 = vmatprep.subr.bf16.mxu0 0
      %2499 = vmatpush1.bf16.msra.mxu0 %v2460
      %2500 = vmatprep.subr.bf16.mxu0 0
      %2501 = vmatpush1.bf16.msra.mxu0 0
      %2502 = vmatprep.subr.bf16.mxu0 0
      %2503 = vmatpush1.bf16.msra.mxu0 0
      %2504 = vmatprep.subr.bf16.mxu0 0
      %2505 = vmatpush1.bf16.msra.mxu0 0
      %2506 = vmatprep.subr.bf16.mxu0 0
      %2507 = vmatpush1.bf16.msra.mxu0 0
      %2508 = vmatprep.subr.bf16.mxu0 0
      %2509 = vmatpush1.bf16.msra.mxu0 0
      %2510 = vmatprep.subr.bf16.mxu0 0
      %2511 = vmatpush1.bf16.msra.mxu0 0
      %2512 = vmatprep.subr.bf16.mxu0 0
      %2513 = vmatpush1.bf16.msra.mxu0 0
      %2514 = vmatprep.mubr.bf16.mxu0 %v2471
      %2515 = vmatmul.mubr.bf16.gmra.mrb[0].mxu0 %v2383
      %v2516 = vpop.f32.mrb[0].mxu0
      %v2517 = vadd.f32 %v2414, %v2516
      %v2518 = vpop.f32.mrb[0].mxu0
      %v2519 = vpop.f32.mrb[0].mxu0
      %v2520 = vadd.f32 %v2414, %v2519
      %v2521 = vpop.f32.mrb[0].mxu0
      %2522 = vmatprep.mubr.bf16.mxu0 %v2474
      %2523 = vmatmul.mubr.bf16.gmra.mrb[0].mxu0 %v2385
      %v2524 = vpop.f32.mrb[0].mxu0
      %v2525 = vadd.f32 %v2414, %v2524
      %v2526 = vpop.f32.mrb[0].mxu0
      %v2527 = vpop.f32.mrb[0].mxu0
      %v2528 = vadd.f32 %v2414, %v2527
      %v2529 = vpop.f32.mrb[0].mxu0
      %2530 = vmatprep.mubr.bf16.mxu0 %v2477
      %2531 = vmatmul.mubr.bf16.gmra.mrb[0].mxu0 %v2387
      %v2532 = vpop.f32.mrb[0].mxu0
      %v2533 = vadd.f32 %v2414, %v2532
      %v2534 = vpop.f32.mrb[0].mxu0
      %v2535 = vpop.f32.mrb[0].mxu0
      %v2536 = vadd.f32 %v2414, %v2535
      %v2537 = vpop.f32.mrb[0].mxu0
      %2538 = vmatprep.mubr.bf16.mxu0 %v2480
      %2539 = vmatmul.mubr.bf16.gmra.mrb[0].mxu0 %v2389
      %v2540 = vpop.f32.mrb[0].mxu0
      %v2541 = vadd.f32 %v2414, %v2540
      %v2542 = vpop.f32.mrb[0].mxu0
      %v2543 = vpop.f32.mrb[0].mxu0
      %v2544 = vadd.f32 %v2414, %v2543
      %v2545 = vpop.f32.mrb[0].mxu0
      %2546 = vdwg.mxu0
      %v2547 = vpack.c.bf16 %v2520, %v2517
      %v2548 = vpack.c.bf16 %v2528, %v2525
      %v2549 = vpack.c.bf16 %v2536, %v2533
      %v2550 = vpack.c.bf16 %v2544, %v2541
      %v2555 = vunpack.c.l.b16 %v2547
      %v2556 = vunpack.c.h.b16 %v2547
      %v2557 = vunpack.c.l.b16 %v2548
      %v2558 = vunpack.c.h.b16 %v2548
      %v2559 = vunpack.c.l.b16 %v2549
      %v2560 = vunpack.c.h.b16 %v2549
      %v2561 = vunpack.c.l.b16 %v2550
      %v2562 = vunpack.c.h.b16 %v2550
      %v2563 = vpack.c.b16 %v2555, %v2555
      %v2564 = vpack.c.b16 %v2556, %v2556
      %v2565 = vpack.c.b16 %v2557, %v2557
      %v2566 = vpack.c.b16 %v2558, %v2558
      %v2567 = vpack.c.b16 %v2559, %v2559
      %v2568 = vpack.c.b16 %v2560, %v2560
      %v2569 = vpack.c.b16 %v2561, %v2561
      %v2570 = vpack.c.b16 %v2562, %v2562
      %vm2579 = vcmask 191488
      %2580 = vst.msk [vmem:[%s386] sm:$0xf] %vm2579, %v2563
      %2581 = vst.msk [vmem:[%s386 + $0x4] sm:$0xf] %vm2579, %v2564
      %2582 = vst.msk [vmem:[%s386 + $0x8] sm:$0xf] %vm2579, %v2565
      %2583 = vst.msk [vmem:[%s386 + $0xc] sm:$0xf] %vm2579, %v2566
      %2584 = vst.msk [vmem:[%s386 + $0x10] sm:$0xf] %vm2579, %v2567
      %2585 = vst.msk [vmem:[%s386 + $0x14] sm:$0xf] %vm2579, %v2568
      %2586 = vst.msk [vmem:[%s386 + $0x18] sm:$0xf] %vm2579, %v2569
      %2587 = vst.msk [vmem:[%s386 + $0x1c] sm:$0xf] %vm2579, %v2570
      %p2588 = scmp.lt.s32.totalorder %s22, 1
      %s2589 = scalar_select %p2588, %s22, 1
      %s2590 = smul.addr %s2589, 8
      %s2591 = smul.addr %s2590, 4
      %s2592 = scalar_lea.vmem %s11, %s2591
      // Predicated region
      $region65: #{mbconv_stage_forward.3} parent=63 // pred_check
        %p2593 = pneg %p276
      $region66: #{mbconv_stage_forward.3} parent=63 // pred_check_branch
        %2595 = sbr.rel (%p2593) target = $region68
      $region67: #{mbconv_stage_forward.3} parent=63 // pred_region
        _
      $region68: #{mbconv_stage_forward.3} parent=63 // pred_fallthru
        _
    $region64: #{mbconv_stage_forward.3} parent=5 // pred_fallthru
      _
    %p2596 = scmp.le.s32.totalorder 2, %s17
    // Predicated region
    $region69: #{mbconv_stage_forward.3} parent=5 // pred_check
      %p2597 = pneg %p2596
    $region70: #{mbconv_stage_forward.3} parent=5 // pred_check_branch
      %2599 = sbr.rel (%p2597) target = $region72
    $region71: #{mbconv_stage_forward.3} parent=5 // pred_region
      %s2600 = ssub.s32 %s17, 2
      // Predicated region
      $region73: #{mbconv_stage_forward.3} parent=71 // pred_check
        %p2601 = pneg %p282
      $region74: #{mbconv_stage_forward.3} parent=71 // pred_check_branch
        %2603 = sbr.rel (%p2601) target = $region76
      $region75: #{mbconv_stage_forward.3} parent=71 // pred_region
        %p2604 = scmp.lt.s32.totalorder %s23, 1
        %s2605 = scalar_select %p2604, %s23, 1
        %s2606 = smul.addr %s2605, 8
        %s2607 = smul.addr %s2606, 4
        %s2608 = scalar_lea.vmem %s11, %s2607
      $region76: #{mbconv_stage_forward.3} parent=71 // pred_fallthru
        _
    $region72: #{mbconv_stage_forward.3} parent=5 // pred_fallthru
      _
  $region6: #{mbconv_stage_forward.3} parent=0 // loop_footer
    %s21 = sadd.s32 1, %s17
  $region7: #{mbconv_stage_forward.3} parent=0 // loop_footer_branch
    %16 = sbr.rel target = $region3
  $region8: #{mbconv_stage_forward.3} parent=0 // loop_exit
    _

// kernel: mbconv_stage_forward.2
$region0: #{mbconv_stage_forward.2}
  #allocation0 [shape = 'u32[]', space=smem, size = 0x4, offset = 0x4, fixed_abs, tag = 'smem constant byte address 0x4 - core index']
  #allocation1 [shape = 'u32[144,128]{1,0:T(1,128)}', space=vmem, size = 0x12000, scoped, tag = 'internal scratch']
  #allocation2 [shape = 'f32[1,18,18,144]{3,2,1,0:T(8,128)}', space=vmem, size = 0x6c000, scoped, tag = 'scratch operand']
  %s0 = inlined_call_operand.vmem [shape: bf16[2,256,24], index: 0, kind: input, shape index: {}]
  %s1 = inlined_call_operand.vmem [shape: bf16[24,144], index: 1, kind: input, shape index: {}]
  %s2 = inlined_call_operand.vmem [shape: f32[1,144], index: 2, kind: input, shape index: {}, may-alias: {2,4,8}]
  %s3 = inlined_call_operand.vmem [shape: f32[9,144], index: 3, kind: input, shape index: {}]
  %s4 = inlined_call_operand.vmem [shape: f32[1,144], index: 4, kind: input, shape index: {}, may-alias: {2,4,8}]
  %s5 = inlined_call_operand.vmem [shape: f32[144,6], index: 5, kind: input, shape index: {}]
  %s6 = inlined_call_operand.vmem [shape: f32[1,6], index: 6, kind: input, shape index: {}]
  %s7 = inlined_call_operand.vmem [shape: f32[6,144], index: 7, kind: input, shape index: {}]
  %s8 = inlined_call_operand.vmem [shape: f32[1,144], index: 8, kind: input, shape index: {}, may-alias: {2,4,8}]
  %s9 = inlined_call_operand.vmem [shape: bf16[144,24], index: 9, kind: input, shape index: {}]
  %s10 = inlined_call_operand.vmem [shape: f32[1,24], index: 10, kind: input, shape index: {}]
  %s11 = inlined_call_operand.vmem [shape: bf16[2,256,24], index: 11, kind: output, shape index: {}]
  %s12 = sld [smem:[#allocation0]]
  $region77: #{mbconv_stage_forward.2} parent=0
    _
  %s14 = ssub.s32 1, %s12
  %s15 = scalar_select 0, %s14, %s12
  loop: start=0, step=1, limit=4
  $region2: #{mbconv_stage_forward.2} parent=0 // loop_pre_header
    _
  $region3: #{mbconv_stage_forward.2} parent=0 // loop_header
    %s17 = sphi 0, %s21
    %p18 = scmp.ge.s32.totalorder %s17, 4
    %s27 = sphi 0, %s29
    %s30 = sphi 0, %s27
    %s31 = sphi 0, %s30
    %s47 = sphi 0, %s31
    %s51 = sphi 0, %s51
    %s53 = sphi 0, %s51
    %s54 = sphi 0, %s53
    %s68 = sphi 0, %s54
    %s72 = sphi 0, %s72
    %s74 = sphi 0, %s72
    %s75 = sphi 0, %s74
    %s89 = sphi 0, %s75
    %s93 = sphi 0, %s93
    %s95 = sphi 0, %s93
    %s96 = sphi 0, %s95
    %s110 = sphi 0, %s96
    %s114 = sphi 0, %s114
    %s116 = sphi 0, %s114
    %s117 = sphi 0, %s116
    %s131 = sphi 0, %s117
    %s135 = sphi 0, %s135
    %s137 = sphi 0, %s135
    %s138 = sphi 0, %s137
    %s152 = sphi 0, %s138
    %s156 = sphi 0, %s156
    %s158 = sphi 0, %s156
    %s159 = sphi 0, %s158
    %s173 = sphi 0, %s159
    %s177 = sphi 0, %s177
    %s179 = sphi 0, %s177
    %s180 = sphi 0, %s179
    %s194 = sphi 0, %s180
    %s198 = sphi 0, %s198
    %s200 = sphi 0, %s198
    %s201 = sphi 0, %s200
    %s215 = sphi 0, %s201
    %s219 = sphi 0, %s219
    %s221 = sphi 0, %s219
    %s222 = sphi 0, %s221
    %s236 = sphi 0, %s222
    %s240 = sphi 0, %s240
    %s242 = sphi 0, %s240
    %s243 = sphi 0, %s242
    %s257 = sphi 0, %s243
    %s263 = sphi 0, %s265
    %s266 = sphi 0, %s263
    %s267 = sphi 0, %s266
    %s283 = sphi 0, %s267
  $region4: #{mbconv_stage_forward.2} parent=0 // loop_header_branch
    %20 = sbr.rel (%p18) target = $region8
  $region5: #{mbconv_stage_forward.2} parent=0 // loop_body
    %s22 = ssub.s32 %s17, 1
    %s23 = ssub.s32 %s17, 2
    %s24 = sadd.s32 %s17, 1
    %s25 = ssub.s32 %s17, %s24
    %p26 = scmp.eq.s32.totalorder %s25, 0
    %s28 = sadd.s32 %s27, 1
    %s29 = scalar_select %p26, %s27, %s28
    %p32 = pneg %p26
    %p33 = scmp.eq.s32.totalorder %s17, 1
    %p34 = por %p32, %p33
    %p35 = scmp.ne.s32.totalorder %s27, %s30
    %p36 = scmp.eq.s32.totalorder %s17, 0
    %p37 = por %p35, %p36
    %p38 = scmp.ne.s32.totalorder %s27, %s30
    %p39 = scmp.eq.s32.totalorder %s22, 1
    %p40 = por %p38, %p39
    %p41 = scmp.ne.s32.totalorder %s30, %s31
    %p42 = scmp.eq.s32.totalorder %s22, 0
    %p43 = por %p41, %p42
    %p44 = scmp.ne.s32.totalorder %s30, %s31
    %p45 = scmp.eq.s32.totalorder %s23, 1
    %p46 = por %p44, %p45
    %p48 = scmp.ne.s32.totalorder %s31, %s47
    %p49 = scmp.eq.s32.totalorder %s23, 0
    %p50 = por %p48, %p49
    %s52 = sadd.s32 %s51, 1
    %p55 = scmp.eq.s32.totalorder %s17, 1
    %p56 = scmp.ne.s32.totalorder %s51, %s53
    %p57 = scmp.eq.s32.totalorder %s17, 0
    %p58 = por %p56, %p57
    %p59 = scmp.ne.s32.totalorder %s51, %s53
    %p60 = scmp.eq.s32.totalorder %s22, 1
    %p61 = por %p59, %p60
    %p62 = scmp.ne.s32.totalorder %s53, %s54
    %p63 = scmp.eq.s32.totalorder %s22, 0
    %p64 = por %p62, %p63
    %p65 = scmp.ne.s32.totalorder %s53, %s54
    %p66 = scmp.eq.s32.totalorder %s23, 1
    %p67 = por %p65, %p66
    %p69 = scmp.ne.s32.totalorder %s54, %s68
    %p70 = scmp.eq.s32.totalorder %s23, 0
    %p71 = por %p69, %p70
    %s73 = sadd.s32 %s72, 1
    %p76 = scmp.eq.s32.totalorder %s17, 1
    %p77 = scmp.ne.s32.totalorder %s72, %s74
    %p78 = scmp.eq.s32.totalorder %s17, 0
    %p79 = por %p77, %p78
    %p80 = scmp.ne.s32.totalorder %s72, %s74
    %p81 = scmp.eq.s32.totalorder %s22, 1
    %p82 = por %p80, %p81
    %p83 = scmp.ne.s32.totalorder %s74, %s75
    %p84 = scmp.eq.s32.totalorder %s22, 0
    %p85 = por %p83, %p84
    %p86 = scmp.ne.s32.totalorder %s74, %s75
    %p87 = scmp.eq.s32.totalorder %s23, 1
    %p88 = por %p86, %p87
    %p90 = scmp.ne.s32.totalorder %s75, %s89
    %p91 = scmp.eq.s32.totalorder %s23, 0
    %p92 = por %p90, %p91
    %s94 = sadd.s32 %s93, 1
    %p97 = scmp.eq.s32.totalorder %s17, 1
    %p98 = scmp.ne.s32.totalorder %s93, %s95
    %p99 = scmp.eq.s32.totalorder %s17, 0
    %p100 = por %p98, %p99
    %p101 = scmp.ne.s32.totalorder %s93, %s95
    %p102 = scmp.eq.s32.totalorder %s22, 1
    %p103 = por %p101, %p102
    %p104 = scmp.ne.s32.totalorder %s95, %s96
    %p105 = scmp.eq.s32.totalorder %s22, 0
    %p106 = por %p104, %p105
    %p107 = scmp.ne.s32.totalorder %s95, %s96
    %p108 = scmp.eq.s32.totalorder %s23, 1
    %p109 = por %p107, %p108
    %p111 = scmp.ne.s32.totalorder %s96, %s110
    %p112 = scmp.eq.s32.totalorder %s23, 0
    %p113 = por %p111, %p112
    %s115 = sadd.s32 %s114, 1
    %p118 = scmp.eq.s32.totalorder %s17, 1
    %p119 = scmp.ne.s32.totalorder %s114, %s116
    %p120 = scmp.eq.s32.totalorder %s17, 0
    %p121 = por %p119, %p120
    %p122 = scmp.ne.s32.totalorder %s114, %s116
    %p123 = scmp.eq.s32.totalorder %s22, 1
    %p124 = por %p122, %p123
    %p125 = scmp.ne.s32.totalorder %s116, %s117
    %p126 = scmp.eq.s32.totalorder %s22, 0
    %p127 = por %p125, %p126
    %p128 = scmp.ne.s32.totalorder %s116, %s117
    %p129 = scmp.eq.s32.totalorder %s23, 1
    %p130 = por %p128, %p129
    %p132 = scmp.ne.s32.totalorder %s117, %s131
    %p133 = scmp.eq.s32.totalorder %s23, 0
    %p134 = por %p132, %p133
    %s136 = sadd.s32 %s135, 1
    %p139 = scmp.eq.s32.totalorder %s17, 1
    %p140 = scmp.ne.s32.totalorder %s135, %s137
    %p141 = scmp.eq.s32.totalorder %s17, 0
    %p142 = por %p140, %p141
    %p143 = scmp.ne.s32.totalorder %s135, %s137
    %p144 = scmp.eq.s32.totalorder %s22, 1
    %p145 = por %p143, %p144
    %p146 = scmp.ne.s32.totalorder %s137, %s138
    %p147 = scmp.eq.s32.totalorder %s22, 0
    %p148 = por %p146, %p147
    %p149 = scmp.ne.s32.totalorder %s137, %s138
    %p150 = scmp.eq.s32.totalorder %s23, 1
    %p151 = por %p149, %p150
    %p153 = scmp.ne.s32.totalorder %s138, %s152
    %p154 = scmp.eq.s32.totalorder %s23, 0
    %p155 = por %p153, %p154
    %s157 = sadd.s32 %s156, 1
    %p160 = scmp.eq.s32.totalorder %s17, 1
    %p161 = scmp.ne.s32.totalorder %s156, %s158
    %p162 = scmp.eq.s32.totalorder %s17, 0
    %p163 = por %p161, %p162
    %p164 = scmp.ne.s32.totalorder %s156, %s158
    %p165 = scmp.eq.s32.totalorder %s22, 1
    %p166 = por %p164, %p165
    %p167 = scmp.ne.s32.totalorder %s158, %s159
    %p168 = scmp.eq.s32.totalorder %s22, 0
    %p169 = por %p167, %p168
    %p170 = scmp.ne.s32.totalorder %s158, %s159
    %p171 = scmp.eq.s32.totalorder %s23, 1
    %p172 = por %p170, %p171
    %p174 = scmp.ne.s32.totalorder %s159, %s173
    %p175 = scmp.eq.s32.totalorder %s23, 0
    %p176 = por %p174, %p175
    %s178 = sadd.s32 %s177, 1
    %p181 = scmp.eq.s32.totalorder %s17, 1
    %p182 = scmp.ne.s32.totalorder %s177, %s179
    %p183 = scmp.eq.s32.totalorder %s17, 0
    %p184 = por %p182, %p183
    %p185 = scmp.ne.s32.totalorder %s177, %s179
    %p186 = scmp.eq.s32.totalorder %s22, 1
    %p187 = por %p185, %p186
    %p188 = scmp.ne.s32.totalorder %s179, %s180
    %p189 = scmp.eq.s32.totalorder %s22, 0
    %p190 = por %p188, %p189
    %p191 = scmp.ne.s32.totalorder %s179, %s180
    %p192 = scmp.eq.s32.totalorder %s23, 1
    %p193 = por %p191, %p192
    %p195 = scmp.ne.s32.totalorder %s180, %s194
    %p196 = scmp.eq.s32.totalorder %s23, 0
    %p197 = por %p195, %p196
    %s199 = sadd.s32 %s198, 1
    %p202 = scmp.eq.s32.totalorder %s17, 1
    %p203 = scmp.ne.s32.totalorder %s198, %s200
    %p204 = scmp.eq.s32.totalorder %s17, 0
    %p205 = por %p203, %p204
    %p206 = scmp.ne.s32.totalorder %s198, %s200
    %p207 = scmp.eq.s32.totalorder %s22, 1
    %p208 = por %p206, %p207
    %p209 = scmp.ne.s32.totalorder %s200, %s201
    %p210 = scmp.eq.s32.totalorder %s22, 0
    %p211 = por %p209, %p210
    %p212 = scmp.ne.s32.totalorder %s200, %s201
    %p213 = scmp.eq.s32.totalorder %s23, 1
    %p214 = por %p212, %p213
    %p216 = scmp.ne.s32.totalorder %s201, %s215
    %p217 = scmp.eq.s32.totalorder %s23, 0
    %p218 = por %p216, %p217
    %s220 = sadd.s32 %s219, 1
    %p223 = scmp.eq.s32.totalorder %s17, 1
    %p224 = scmp.ne.s32.totalorder %s219, %s221
    %p225 = scmp.eq.s32.totalorder %s17, 0
    %p226 = por %p224, %p225
    %p227 = scmp.ne.s32.totalorder %s219, %s221
    %p228 = scmp.eq.s32.totalorder %s22, 1
    %p229 = por %p227, %p228
    %p230 = scmp.ne.s32.totalorder %s221, %s222
    %p231 = scmp.eq.s32.totalorder %s22, 0
    %p232 = por %p230, %p231
    %p233 = scmp.ne.s32.totalorder %s221, %s222
    %p234 = scmp.eq.s32.totalorder %s23, 1
    %p235 = por %p233, %p234
    %p237 = scmp.ne.s32.totalorder %s222, %s236
    %p238 = scmp.eq.s32.totalorder %s23, 0
    %p239 = por %p237, %p238
    %s241 = sadd.s32 %s240, 1
    %p244 = scmp.eq.s32.totalorder %s17, 1
    %p245 = scmp.ne.s32.totalorder %s240, %s242
    %p246 = scmp.eq.s32.totalorder %s17, 0
    %p247 = por %p245, %p246
    %p248 = scmp.ne.s32.totalorder %s240, %s242
    %p249 = scmp.eq.s32.totalorder %s22, 1
    %p250 = por %p248, %p249
    %p251 = scmp.ne.s32.totalorder %s242, %s243
    %p252 = scmp.eq.s32.totalorder %s22, 0
    %p253 = por %p251, %p252
    %p254 = scmp.ne.s32.totalorder %s242, %s243
    %p255 = scmp.eq.s32.totalorder %s23, 1
    %p256 = por %p254, %p255
    %p258 = scmp.ne.s32.totalorder %s243, %s257
    %p259 = scmp.eq.s32.totalorder %s23, 0
    %p260 = por %p258, %p259
    %s261 = ssub.s32 %s17, %s24
    %p262 = scmp.eq.s32.totalorder %s261, 0
    %s264 = sadd.s32 %s263, 1
    %s265 = scalar_select %p262, %s263, %s264
    %p268 = pneg %p262
    %p269 = scmp.eq.s32.totalorder %s17, 1
    %p270 = por %p268, %p269
    %p271 = scmp.ne.s32.totalorder %s263, %s266
    %p272 = scmp.eq.s32.totalorder %s17, 0
    %p273 = por %p271, %p272
    %p274 = scmp.ne.s32.totalorder %s263, %s266
    %p275 = scmp.eq.s32.totalorder %s22, 1
    %p276 = por %p274, %p275
    %p277 = scmp.ne.s32.totalorder %s266, %s267
    %p278 = scmp.eq.s32.totalorder %s22, 0
    %p279 = por %p277, %p278
    %p280 = scmp.ne.s32.totalorder %s266, %s267
    %p281 = scmp.eq.s32.totalorder %s23, 1
    %p282 = por %p280, %p281
    %p284 = scmp.ne.s32.totalorder %s267, %s283
    %p285 = scmp.eq.s32.totalorder %s23, 0
    %p286 = por %p284, %p285
    %p287 = scmp.le.s32.totalorder 1, %s17
    %p288 = scmp.lt.s32.totalorder %s17, 3
    %p289 = pnand %p287, %p288
    %p290 = pneg %p289
    // Predicated region
    $region9: #{mbconv_stage_forward.2} parent=5 // pred_check
      _
    $region10: #{mbconv_stage_forward.2} parent=5 // pred_check_branch
      %292 = sbr.rel (%p289) target = $region12
    $region11: #{mbconv_stage_forward.2} parent=5 // pred_region
      %s293 = ssub.s32 %s17, 1
      // Predicated region
      $region13: #{mbconv_stage_forward.2} parent=11 // pred_check
        %p294 = pneg %p64
      $region14: #{mbconv_stage_forward.2} parent=11 // pred_check_branch
        %296 = sbr.rel (%p294) target = $region16
      $region15: #{mbconv_stage_forward.2} parent=11 // pred_region
        _
      $region16: #{mbconv_stage_forward.2} parent=11 // pred_fallthru
        _
      // Predicated region
      $region17: #{mbconv_stage_forward.2} parent=11 // pred_check
        %p297 = pneg %p85
      $region18: #{mbconv_stage_forward.2} parent=11 // pred_check_branch
        %299 = sbr.rel (%p297) target = $region20
      $region19: #{mbconv_stage_forward.2} parent=11 // pred_region
        _
      $region20: #{mbconv_stage_forward.2} parent=11 // pred_fallthru
        _
      // Predicated region
      $region21: #{mbconv_stage_forward.2} parent=11 // pred_check
        %p300 = pneg %p106
      $region22: #{mbconv_stage_forward.2} parent=11 // pred_check_branch
        %302 = sbr.rel (%p300) target = $region24
      $region23: #{mbconv_stage_forward.2} parent=11 // pred_region
        _
      $region24: #{mbconv_stage_forward.2} parent=11 // pred_fallthru
        _
      // Predicated region
      $region25: #{mbconv_stage_forward.2} parent=11 // pred_check
        %p303 = pneg %p127
      $region26: #{mbconv_stage_forward.2} parent=11 // pred_check_branch
        %305 = sbr.rel (%p303) target = $region28
      $region27: #{mbconv_stage_forward.2} parent=11 // pred_region
        _
      $region28: #{mbconv_stage_forward.2} parent=11 // pred_fallthru
        _
      // Predicated region
      $region29: #{mbconv_stage_forward.2} parent=11 // pred_check
        %p306 = pneg %p148
      $region30: #{mbconv_stage_forward.2} parent=11 // pred_check_branch
        %308 = sbr.rel (%p306) target = $region32
      $region31: #{mbconv_stage_forward.2} parent=11 // pred_region
        _
      $region32: #{mbconv_stage_forward.2} parent=11 // pred_fallthru
        _
      // Predicated region
      $region33: #{mbconv_stage_forward.2} parent=11 // pred_check
        %p309 = pneg %p169
      $region34: #{mbconv_stage_forward.2} parent=11 // pred_check_branch
        %311 = sbr.rel (%p309) target = $region36
      $region35: #{mbconv_stage_forward.2} parent=11 // pred_region
        _
      $region36: #{mbconv_stage_forward.2} parent=11 // pred_fallthru
        _
      // Predicated region
      $region37: #{mbconv_stage_forward.2} parent=11 // pred_check
        %p312 = pneg %p190
      $region38: #{mbconv_stage_forward.2} parent=11 // pred_check_branch
        %314 = sbr.rel (%p312) target = $region40
      $region39: #{mbconv_stage_forward.2} parent=11 // pred_region
        _
      $region40: #{mbconv_stage_forward.2} parent=11 // pred_fallthru
        _
      // Predicated region
      $region41: #{mbconv_stage_forward.2} parent=11 // pred_check
        %p315 = pneg %p211
      $region42: #{mbconv_stage_forward.2} parent=11 // pred_check_branch
        %317 = sbr.rel (%p315) target = $region44
      $region43: #{mbconv_stage_forward.2} parent=11 // pred_region
        _
      $region44: #{mbconv_stage_forward.2} parent=11 // pred_fallthru
        _
      // Predicated region
      $region45: #{mbconv_stage_forward.2} parent=11 // pred_check
        %p318 = pneg %p232
      $region46: #{mbconv_stage_forward.2} parent=11 // pred_check_branch
        %320 = sbr.rel (%p318) target = $region48
      $region47: #{mbconv_stage_forward.2} parent=11 // pred_region
        _
      $region48: #{mbconv_stage_forward.2} parent=11 // pred_fallthru
        _
      // Predicated region
      $region49: #{mbconv_stage_forward.2} parent=11 // pred_check
        %p321 = pneg %p253
      $region50: #{mbconv_stage_forward.2} parent=11 // pred_check_branch
        %323 = sbr.rel (%p321) target = $region52
      $region51: #{mbconv_stage_forward.2} parent=11 // pred_region
        _
      $region52: #{mbconv_stage_forward.2} parent=11 // pred_fallthru
        _
    $region12: #{mbconv_stage_forward.2} parent=5 // pred_fallthru
      _
    %p324 = scmp.lt.s32.totalorder %s17, 2
    // Predicated region
    $region53: #{mbconv_stage_forward.2} parent=5 // pred_check
      %p325 = pneg %p324
    $region54: #{mbconv_stage_forward.2} parent=5 // pred_check_branch
      %327 = sbr.rel (%p325) target = $region56
    $region55: #{mbconv_stage_forward.2} parent=5 // pred_region
      // Predicated region
      $region57: #{mbconv_stage_forward.2} parent=55 // pred_check
        %p328 = pneg %p37
      $region58: #{mbconv_stage_forward.2} parent=55 // pred_check_branch
        %330 = sbr.rel (%p328) target = $region60
      $region59: #{mbconv_stage_forward.2} parent=55 // pred_region
        %p331 = scmp.lt.s32.totalorder %s17, 1
        %s332 = scalar_select %p331, %s17, 1
        %s333 = smul.addr %s332, 32
        %s334 = smul.addr %s333, 4
        %s335 = scalar_lea.vmem %s0, %s334
      $region60: #{mbconv_stage_forward.2} parent=55 // pred_fallthru
        _
    $region56: #{mbconv_stage_forward.2} parent=5 // pred_fallthru
      _
    %p336 = scmp.le.s32.totalorder 1, %s17
    %p337 = scmp.lt.s32.totalorder %s17, 3
    %p338 = pnand %p336, %p337
    %p339 = pneg %p338
    // Predicated region
    $region61: #{mbconv_stage_forward.2} parent=5 // pred_check
      _
    $region62: #{mbconv_stage_forward.2} parent=5 // pred_check_branch
      %341 = sbr.rel (%p338) target = $region64
    $region63: #{mbconv_stage_forward.2} parent=5 // pred_region
      %s342 = ssub.s32 %s17, 1
      %p343 = scmp.lt.s32.totalorder %s22, 1
      %s344 = scalar_select %p343, %s22, 1
      %s345 = smul.addr %s344, 32
      %s346 = smul.addr %s345, 4
      %s347 = scalar_lea.vmem %s0, %s346
      %p348 = pneg %p43
      %p349 = pneg %p40
      %p350 = pneg %p64
      %p351 = pneg %p61
      %p352 = pneg %p85
      %p353 = pneg %p82
      %p354 = pneg %p106
      %p355 = pneg %p103
      %p356 = pneg %p127
      %p357 = pneg %p124
      %p358 = pneg %p148
      %p359 = pneg %p145
      %p360 = pneg %p169
      %p361 = pneg %p166
      %p362 = pneg %p190
      %p363 = pneg %p187
      %p364 = pneg %p211
      %p365 = pneg %p208
      %p366 = pneg %p232
      %p367 = pneg %p229
      %p368 = pneg %p253
      %p369 = pneg %p250
      %p370 = pneg %p279
      %p371 = pneg %p276
      %p372 = scmp.lt.s32.totalorder %s22, 1
      %s373 = scalar_select %p372, %s22, 1
      %s374 = smul.addr %s373, 32
      %s375 = smul.addr %s374, 4
      %s376 = scalar_lea.vmem %s11, %s375
      %p377 = scmp.lt.s32.totalorder %s22, 1
      %s378 = scalar_select %p377, %s22, 1
      %s379 = smul.addr %s378, 32
      %s380 = smul.addr %s379, 4
      %s381 = scalar_lea.vmem %s0, %s380
      %p382 = scmp.lt.s32.totalorder %s22, 1
      %s383 = scalar_select %p382, %s22, 1
      %s384 = smul.addr %s383, 32
      %s385 = smul.addr %s384, 4
      %s386 = scalar_lea.vmem %s11, %s385
      %v388 = vld [vmem:[%s381] sm:$0xf]
      %v389 = vld [vmem:[%s381 + $0x4] sm:$0xf]
      %v390 = vld [vmem:[%s381 + $0x8] sm:$0xf]
      %v391 = vld [vmem:[%s381 + $0xc] sm:$0xf]
      %v392 = vld [vmem:[%s381 + $0x10] sm:$0xf]
      %v393 = vld [vmem:[%s381 + $0x14] sm:$0xf]
      %v394 = vld [vmem:[%s381 + $0x18] sm:$0xf]
      %v395 = vld [vmem:[%s381 + $0x1c] sm:$0xf]
      %v396 = vld [vmem:[%s381 + $0x20] sm:$0xf]
      %v397 = vld [vmem:[%s381 + $0x24] sm:$0xf]
      %v398 = vld [vmem:[%s381 + $0x28] sm:$0xf]
      %v399 = vld [vmem:[%s381 + $0x2c] sm:$0xf]
      %v400 = vld [vmem:[%s381 + $0x30] sm:$0xf]
      %v401 = vld [vmem:[%s381 + $0x34] sm:$0xf]
      %v402 = vld [vmem:[%s381 + $0x38] sm:$0xf]
      %v403 = vld [vmem:[%s381 + $0x3c] sm:$0xf]
      %v404 = vld [vmem:[%s381 + $0x40] sm:$0xf]
      %v405 = vld [vmem:[%s381 + $0x44] sm:$0xf]
      %v406 = vld [vmem:[%s381 + $0x48] sm:$0xf]
      %v407 = vld [vmem:[%s381 + $0x4c] sm:$0xf]
      %v408 = vld [vmem:[%s381 + $0x50] sm:$0xf]
      %v409 = vld [vmem:[%s381 + $0x54] sm:$0xf]
      %v410 = vld [vmem:[%s381 + $0x58] sm:$0xf]
      %v411 = vld [vmem:[%s381 + $0x5c] sm:$0xf]
      %v412 = vld [vmem:[%s381 + $0x60] sm:$0xf]
      %v413 = vld [vmem:[%s381 + $0x64] sm:$0xf]
      %v414 = vld [vmem:[%s381 + $0x68] sm:$0xf]
      %v415 = vld [vmem:[%s381 + $0x6c] sm:$0xf]
      %v416 = vld [vmem:[%s381 + $0x70] sm:$0xf]
      %v417 = vld [vmem:[%s381 + $0x74] sm:$0xf]
      %v418 = vld [vmem:[%s381 + $0x78] sm:$0xf]
      %v419 = vld [vmem:[%s381 + $0x7c] sm:$0xf]
      %v420 = vld [vmem:[%s1] sm:$0xff]
      %v421 = vld [vmem:[%s1 + $0x8] sm:$0xff]
      %v422 = vld [vmem:[%s1 + $0x10] sm:$0xff]
      %v423 = vld [vmem:[%s2] sm:$0x3]
      %v425 = vlaneseq
      %v426 = vshrl.u32 %v425, 7
      %v427 = vsub.s32 0, %v426
      %v428 = vrot.slane %v423, %v427
      %v429 = vlaneseq
      %v430 = vshrl.u32 %v429, 7
      %v431 = vsub.s32 1, %v430
      %v432 = vrot.slane %v423, %v431
      %v467 = vunpack.c.l.b16 %v388
      %v468 = vunpack.c.l.b16 %v389
      %v469 = vunpack.c.l.b16 %v390
      %v470 = vunpack.c.l.b16 %v391
      %v471 = vunpack.c.l.b16 %v392
      %v472 = vunpack.c.l.b16 %v393
      %v473 = vunpack.c.l.b16 %v394
      %v474 = vunpack.c.l.b16 %v395
      %v475 = vunpack.c.l.b16 %v396
      %v476 = vunpack.c.l.b16 %v397
      %v477 = vunpack.c.l.b16 %v398
      %v478 = vunpack.c.l.b16 %v399
      %v479 = vunpack.c.l.b16 %v400
      %v480 = vunpack.c.l.b16 %v401
      %v481 = vunpack.c.l.b16 %v402
      %v482 = vunpack.c.l.b16 %v403
      %v483 = vunpack.c.l.b16 %v404
      %v484 = vunpack.c.l.b16 %v405
      %v485 = vunpack.c.l.b16 %v406
      %v486 = vunpack.c.l.b16 %v407
      %v487 = vunpack.c.l.b16 %v408
      %v488 = vunpack.c.l.b16 %v409
      %v489 = vunpack.c.l.b16 %v410
      %v490 = vunpack.c.l.b16 %v411
      %v491 = vunpack.c.l.b16 %v412
      %v492 = vunpack.c.l.b16 %v413
      %v493 = vunpack.c.l.b16 %v414
      %v494 = vunpack.c.l.b16 %v415
      %v495 = vunpack.c.l.b16 %v416
      %v496 = vunpack.c.l.b16 %v417
      %v497 = vunpack.c.l.b16 %v418
      %v498 = vunpack.c.l.b16 %v419
      %v499 = vpack.c.b16 %v468, %v467
      %v500 = vpack.c.b16 %v470, %v469
      %v501 = vpack.c.b16 %v472, %v471
      %v502 = vpack.c.b16 %v474, %v473
      %v503 = vpack.c.b16 %v476, %v475
      %v504 = vpack.c.b16 %v478, %v477
      %v505 = vpack.c.b16 %v480, %v479
      %v506 = vpack.c.b16 %v482, %v481
      %v507 = vpack.c.b16 %v484, %v483
      %v508 = vpack.c.b16 %v486, %v485
      %v509 = vpack.c.b16 %v488, %v487
      %v510 = vpack.c.b16 %v490, %v489
      %v511 = vpack.c.b16 %v492, %v491
      %v512 = vpack.c.b16 %v494, %v493
      %v513 = vpack.c.b16 %v496, %v495
      %v514 = vpack.c.b16 %v498, %v497
      %v518 = vunpack.c.l.b16 %v420
      %v519 = vunpack.c.h.b16 %v420
      %v520 = vunpack.c.l.b16 %v421
      %v521 = vunpack.c.h.b16 %v421
      %v522 = vunpack.c.l.b16 %v422
      %v523 = vunpack.c.h.b16 %v422
      %v524 = vpack.c.b16 %v520, %v518
      %v525 = vpack.c.b16 %v521, %v519
      %v526 = vpack.c.b16 %v522, %v522
      %v527 = vpack.c.b16 %v523, %v523
      %vm530 = vcmask 195584
      %v532 = vsel %vm530, %v499, 0
      %v535 = vsel %vm530, %v500, 0
      %v538 = vsel %vm530, %v501, 0
      %v541 = vsel %vm530, %v502, 0
      %v544 = vsel %vm530, %v503, 0
      %v547 = vsel %vm530, %v504, 0
      %v550 = vsel %vm530, %v505, 0
      %v553 = vsel %vm530, %v506, 0
      %v556 = vsel %vm530, %v507, 0
      %v559 = vsel %vm530, %v508, 0
      %v562 = vsel %vm530, %v509, 0
      %v565 = vsel %vm530, %v510, 0
      %v568 = vsel %vm530, %v511, 0
      %v571 = vsel %vm530, %v512, 0
      %v574 = vsel %vm530, %v513, 0
      %v577 = vsel %vm530, %v514, 0
      %vm579 = vcmask 1043456
      %v581 = vsel %vm579, %v526, 0
      %v584 = vsel %vm579, %v527, 0
      %586 = vmatprep.subr.bf16.mxu0 %v525
      %587 = vmatpush1.bf16.msra.mxu0 %v524
      %588 = vmatprep.subr.bf16.mxu0 %v584
      %589 = vmatpush1.bf16.msra.mxu0 %v581
      %590 = vmatprep.subr.bf16.mxu0 0
      %591 = vmatpush1.bf16.msra.mxu0 0
      %592 = vmatprep.subr.bf16.mxu0 0
      %593 = vmatpush1.bf16.msra.mxu0 0
      %594 = vmatprep.subr.bf16.mxu0 0
      %595 = vmatpush1.bf16.msra.mxu0 0
      %596 = vmatprep.subr.bf16.mxu0 0
      %597 = vmatpush1.bf16.msra.mxu0 0
      %598 = vmatprep.subr.bf16.mxu0 0
      %599 = vmatpush1.bf16.msra.mxu0 0
      %600 = vmatprep.subr.bf16.mxu0 0
      %601 = vmatpush1.bf16.msra.mxu0 0
      %602 = vmatprep.subr.bf16.mxu0 0
      %603 = vmatpush1.bf16.msra.mxu0 0
      %604 = vmatprep.subr.bf16.mxu0 0
      %605 = vmatpush1.bf16.msra.mxu0 0
      %606 = vmatprep.subr.bf16.mxu0 0
      %607 = vmatpush1.bf16.msra.mxu0 0
      %608 = vmatprep.subr.bf16.mxu0 0
      %609 = vmatpush1.bf16.msra.mxu0 0
      %610 = vmatprep.subr.bf16.mxu0 0
      %611 = vmatpush1.bf16.msra.mxu0 0
      %612 = vmatprep.subr.bf16.mxu0 0
      %613 = vmatpush1.bf16.msra.mxu0 0
      %614 = vmatprep.subr.bf16.mxu0 0
      %615 = vmatpush1.bf16.msra.mxu0 0
      %616 = vmatprep.subr.bf16.mxu0 0
      %617 = vmatpush1.bf16.msra.mxu0 0
      %618 = vmatprep.mubr.bf16.mxu0 0
      %619 = vmatmul.mubr.bf16.gmra.mrb[0].mxu0 %v532
      %v620 = vpop.f32.mrb[0].mxu0
      %v621 = vadd.f32 %v428, %v620
      %v622 = vpop.f32.mrb[0].mxu0
      %v623 = vadd.f32 %v432, %v622
      %v624 = vpop.f32.mrb[0].mxu0
      %v625 = vadd.f32 %v428, %v624
      %v626 = vpop.f32.mrb[0].mxu0
      %v627 = vadd.f32 %v432, %v626
      %628 = vmatprep.mubr.bf16.mxu0 0
      %629 = vmatmul.mubr.bf16.gmra.mrb[0].mxu0 %v535
      %v630 = vpop.f32.mrb[0].mxu0
      %v631 = vadd.f32 %v428, %v630
      %v632 = vpop.f32.mrb[0].mxu0
      %v633 = vadd.f32 %v432, %v632
      %v634 = vpop.f32.mrb[0].mxu0
      %v635 = vadd.f32 %v428, %v634
      %v636 = vpop.f32.mrb[0].mxu0
      %v637 = vadd.f32 %v432, %v636
      %638 = vmatprep.mubr.bf16.mxu0 0
      %639 = vmatmul.mubr.bf16.gmra.mrb[0].mxu0 %v538
      %v640 = vpop.f32.mrb[0].mxu0
      %v641 = vadd.f32 %v428, %v640
      %v642 = vpop.f32.mrb[0].mxu0
      %v643 = vadd.f32 %v432, %v642
      %v644 = vpop.f32.mrb[0].mxu0
      %v645 = vadd.f32 %v428, %v644
      %v646 = vpop.f32.mrb[0].mxu0
      %v647 = vadd.f32 %v432, %v646
      %648 = vmatprep.mubr.bf16.mxu0 0
      %649 = vmatmul.mubr.bf16.gmra.mrb[0].mxu0 %v541
      %v650 = vpop.f32.mrb[0].mxu0
      %v651 = vadd.f32 %v428, %v650
      %v652 = vpop.f32.mrb[0].mxu0
      %v653 = vadd.f32 %v432, %v652
      %v654 = vpop.f32.mrb[0].mxu0
      %v655 = vadd.f32 %v428, %v654
      %v656 = vpop.f32.mrb[0].mxu0
      %v657 = vadd.f32 %v432, %v656
      %658 = vmatprep.mubr.bf16.mxu0 0
      %659 = vmatmul.mubr.bf16.gmra.mrb[0].mxu0 %v544
      %v660 = vpop.f32.mrb[0].mxu0
      %v661 = vadd.f32 %v428, %v660
      %v662 = vpop.f32.mrb[0].mxu0
      %v663 = vadd.f32 %v432, %v662
      %v664 = vpop.f32.mrb[0].mxu0
      %v665 = vadd.f32 %v428, %v664
      %v666 = vpop.f32.mrb[0].mxu0
      %v667 = vadd.f32 %v432, %v666
      %668 = vmatprep.mubr.bf16.mxu0 0
      %669 = vmatmul.mubr.bf16.gmra.mrb[0].mxu0 %v547
      %v670 = vpop.f32.mrb[0].mxu0
      %v671 = vadd.f32 %v428, %v670
      %v672 = vpop.f32.mrb[0].mxu0
      %v673 = vadd.f32 %v432, %v672
      %v674 = vpop.f32.mrb[0].mxu0
      %v675 = vadd.f32 %v428, %v674
      %v676 = vpop.f32.mrb[0].mxu0
      %v677 = vadd.f32 %v432, %v676
      %678 = vmatprep.mubr.bf16.mxu0 0
      %679 = vmatmul.mubr.bf16.gmra.mrb[0].mxu0 %v550
      %v680 = vpop.f32.mrb[0].mxu0
      %v681 = vadd.f32 %v428, %v680
      %v682 = vpop.f32.mrb[0].mxu0
      %v683 = vadd.f32 %v432, %v682
      %v684 = vpop.f32.mrb[0].mxu0
      %v685 = vadd.f32 %v428, %v684
      %v686 = vpop.f32.mrb[0].mxu0
      %v687 = vadd.f32 %v432, %v686
      %688 = vmatprep.mubr.bf16.mxu0 0
      %689 = vmatmul.mubr.bf16.gmra.mrb[0].mxu0 %v553
      %v690 = vpop.f32.mrb[0].mxu0
      %v691 = vadd.f32 %v428, %v690
      %v692 = vpop.f32.mrb[0].mxu0
      %v693 = vadd.f32 %v432, %v692
      %v694 = vpop.f32.mrb[0].mxu0
      %v695 = vadd.f32 %v428, %v694
      %v696 = vpop.f32.mrb[0].mxu0
      %v697 = vadd.f32 %v432, %v696
      %698 = vmatprep.mubr.bf16.mxu0 0
      %699 = vmatmul.mubr.bf16.gmra.mrb[0].mxu0 %v556
      %v700 = vpop.f32.mrb[0].mxu0
      %v701 = vadd.f32 %v428, %v700
      %v702 = vpop.f32.mrb[0].mxu0
      %v703 = vadd.f32 %v432, %v702
      %v704 = vpop.f32.mrb[0].mxu0
      %v705 = vadd.f32 %v428, %v704
      %v706 = vpop.f32.mrb[0].mxu0
      %v707 = vadd.f32 %v432, %v706
      %708 = vmatprep.mubr.bf16.mxu0 0
      %709 = vmatmul.mubr.bf16.gmra.mrb[0].mxu0 %v559
      %v710 = vpop.f32.mrb[0].mxu0
      %v711 = vadd.f32 %v428, %v710
      %v712 = vpop.f32.mrb[0].mxu0
      %v713 = vadd.f32 %v432, %v712
      %v714 = vpop.f32.mrb[0].mxu0
      %v715 = vadd.f32 %v428, %v714
      %v716 = vpop.f32.mrb[0].mxu0
      %v717 = vadd.f32 %v432, %v716
      %718 = vmatprep.mubr.bf16.mxu0 0
      %719 = vmatmul.mubr.bf16.gmra.mrb[0].mxu0 %v562
      %v720 = vpop.f32.mrb[0].mxu0
      %v721 = vadd.f32 %v428, %v720
      %v722 = vpop.f32.mrb[0].mxu0
      %v723 = vadd.f32 %v432, %v722
      %v724 = vpop.f32.mrb[0].mxu0
      %v725 = vadd.f32 %v428, %v724
      %v726 = vpop.f32.mrb[0].mxu0
      %v727 = vadd.f32 %v432, %v726
      %728 = vmatprep.mubr.bf16.mxu0 0
      %729 = vmatmul.mubr.bf16.gmra.mrb[0].mxu0 %v565
      %v730 = vpop.f32.mrb[0].mxu0
      %v731 = vadd.f32 %v428, %v730
      %v732 = vpop.f32.mrb[0].mxu0
      %v733 = vadd.f32 %v432, %v732
      %v734 = vpop.f32.mrb[0].mxu0
      %v735 = vadd.f32 %v428, %v734
      %v736 = vpop.f32.mrb[0].mxu0
      %v737 = vadd.f32 %v432, %v736
      %738 = vmatprep.mubr.bf16.mxu0 0
      %739 = vmatmul.mubr.bf16.gmra.mrb[0].mxu0 %v568
      %v740 = vpop.f32.mrb[0].mxu0
      %v741 = vadd.f32 %v428, %v740
      %v742 = vpop.f32.mrb[0].mxu0
      %v743 = vadd.f32 %v432, %v742
      %v744 = vpop.f32.mrb[0].mxu0
      %v745 = vadd.f32 %v428, %v744
      %v746 = vpop.f32.mrb[0].mxu0
      %v747 = vadd.f32 %v432, %v746
      %748 = vmatprep.mubr.bf16.mxu0 0
      %749 = vmatmul.mubr.bf16.gmra.mrb[0].mxu0 %v571
      %v750 = vpop.f32.mrb[0].mxu0
      %v751 = vadd.f32 %v428, %v750
      %v752 = vpop.f32.mrb[0].mxu0
      %v753 = vadd.f32 %v432, %v752
      %v754 = vpop.f32.mrb[0].mxu0
      %v755 = vadd.f32 %v428, %v754
      %v756 = vpop.f32.mrb[0].mxu0
      %v757 = vadd.f32 %v432, %v756
      %758 = vmatprep.mubr.bf16.mxu0 0
      %759 = vmatmul.mubr.bf16.gmra.mrb[0].mxu0 %v574
      %v760 = vpop.f32.mrb[0].mxu0
      %v761 = vadd.f32 %v428, %v760
      %v762 = vpop.f32.mrb[0].mxu0
      %v763 = vadd.f32 %v432, %v762
      %v764 = vpop.f32.mrb[0].mxu0
      %v765 = vadd.f32 %v428, %v764
      %v766 = vpop.f32.mrb[0].mxu0
      %v767 = vadd.f32 %v432, %v766
      %768 = vmatprep.mubr.bf16.mxu0 0
      %769 = vmatmul.mubr.bf16.gmra.mrb[0].mxu0 %v577
      %v770 = vpop.f32.mrb[0].mxu0
      %v771 = vadd.f32 %v428, %v770
      %v772 = vpop.f32.mrb[0].mxu0
      %v773 = vadd.f32 %v432, %v772
      %v774 = vpop.f32.mrb[0].mxu0
      %v775 = vadd.f32 %v428, %v774
      %v776 = vpop.f32.mrb[0].mxu0
      %v777 = vadd.f32 %v432, %v776
      %778 = vdwg.mxu0
      %v779 = vmax.f32 %v621, 0.0
      %v780 = vmax.f32 %v623, 0.0
      %v781 = vmax.f32 %v625, 0.0
      %v782 = vmax.f32 %v627, 0.0
      %v783 = vmax.f32 %v631, 0.0
      %v784 = vmax.f32 %v633, 0.0
      %v785 = vmax.f32 %v635, 0.0
      %v786 = vmax.f32 %v637, 0.0
      %v787 = vmax.f32 %v641, 0.0
      %v788 = vmax.f32 %v643, 0.0
      %v789 = vmax.f32 %v645, 0.0
      %v790 = vmax.f32 %v647, 0.0
      %v791 = vmax.f32 %v651, 0.0
      %v792 = vmax.f32 %v653, 0.0
      %v793 = vmax.f32 %v655, 0.0
      %v794 = vmax.f32 %v657, 0.0
      %v795 = vmax.f32 %v661, 0.0
      %v796 = vmax.f32 %v663, 0.0
      %v797 = vmax.f32 %v665, 0.0
      %v798 = vmax.f32 %v667, 0.0
      %v799 = vmax.f32 %v671, 0.0
      %v800 = vmax.f32 %v673, 0.0
      %v801 = vmax.f32 %v675, 0.0
      %v802 = vmax.f32 %v677, 0.0
      %v803 = vmax.f32 %v681, 0.0
      %v804 = vmax.f32 %v683, 0.0
      %v805 = vmax.f32 %v685, 0.0
      %v806 = vmax.f32 %v687, 0.0
      %v807 = vmax.f32 %v691, 0.0
      %v808 = vmax.f32 %v693, 0.0
      %v809 = vmax.f32 %v695, 0.0
      %v810 = vmax.f32 %v697, 0.0
      %v811 = vmax.f32 %v701, 0.0
      %v812 = vmax.f32 %v703, 0.0
      %v813 = vmax.f32 %v705, 0.0
      %v814 = vmax.f32 %v707, 0.0
      %v815 = vmax.f32 %v711, 0.0
      %v816 = vmax.f32 %v713, 0.0
      %v817 = vmax.f32 %v715, 0.0
      %v818 = vmax.f32 %v717, 0.0
      %v819 = vmax.f32 %v721, 0.0
      %v820 = vmax.f32 %v723, 0.0
      %v821 = vmax.f32 %v725, 0.0
      %v822 = vmax.f32 %v727, 0.0
      %v823 = vmax.f32 %v731, 0.0
      %v824 = vmax.f32 %v733, 0.0
      %v825 = vmax.f32 %v735, 0.0
      %v826 = vmax.f32 %v737, 0.0
      %v827 = vmax.f32 %v741, 0.0
      %v828 = vmax.f32 %v743, 0.0
      %v829 = vmax.f32 %v745, 0.0
      %v830 = vmax.f32 %v747, 0.0
      %v831 = vmax.f32 %v751, 0.0
      %v832 = vmax.f32 %v753, 0.0
      %v833 = vmax.f32 %v755, 0.0
      %v834 = vmax.f32 %v757, 0.0
      %v835 = vmax.f32 %v761, 0.0
      %v836 = vmax.f32 %v763, 0.0
      %v837 = vmax.f32 %v765, 0.0
      %v838 = vmax.f32 %v767, 0.0
      %v839 = vmax.f32 %v771, 0.0
      %v840 = vmax.f32 %v773, 0.0
      %v841 = vmax.f32 %v775, 0.0
      %v842 = vmax.f32 %v777, 0.0
      %843 = vst [vmem:[#allocation2] sm:$0xff] 0.0
      %vm844 = vcmask 130048
      %845 = vst.msk [vmem:[#allocation2 + $0x8] sm:$0xff] %vm844, 0.0
      %846 = vst [vmem:[#allocation2 + $0x10] sm:$0xff] 0.0
      %847 = vst.msk [vmem:[#allocation2 + $0x18] sm:$0xff] %vm844, 0.0
      %848 = vst [vmem:[#allocation2 + $0x20] sm:$0x3] 0.0
      %vm849 = vcmask 123904
      %850 = vst.msk [vmem:[#allocation2 + $0x28] sm:$0x3] %vm849, 0.0
      %851 = vst [vmem:[#allocation2 + $0x30] sm:$0xff] 0.0
      %852 = vst.msk [vmem:[#allocation2 + $0x38] sm:$0xff] %vm844, 0.0
      %853 = vst [vmem:[#allocation2 + $0x40] sm:$0xff] 0.0
      %854 = vst.msk [vmem:[#allocation2 + $0x48] sm:$0xff] %vm844, 0.0
      %855 = vst [vmem:[#allocation2 + $0x50] sm:$0x3] 0.0
      %856 = vst.msk [vmem:[#allocation2 + $0x58] sm:$0x3] %vm849, 0.0
      %857 = vst [vmem:[#allocation2 + $0x60] sm:$0xff] 0.0
      %858 = vst.msk [vmem:[#allocation2 + $0x68] sm:$0xff] %vm844, 0.0
      %859 = vst [vmem:[#allocation2 + $0x70] sm:$0xff] 0.0
      %860 = vst.msk [vmem:[#allocation2 + $0x78] sm:$0xff] %vm844, 0.0
      %861 = vst [vmem:[#allocation2 + $0x80] sm:$0x3] 0.0
      %862 = vst.msk [vmem:[#allocation2 + $0x88] sm:$0x3] %vm849, 0.0
      %863 = vst [vmem:[#allocation2 + $0x90] sm:$0xff] 0.0
      %864 = vst.msk [vmem:[#allocation2 + $0x98] sm:$0xff] %vm844, 0.0
      %865 = vst [vmem:[#allocation2 + $0xa0] sm:$0xff] 0.0
      %866 = vst.msk [vmem:[#allocation2 + $0xa8] sm:$0xff] %vm844, 0.0
      %867 = vst [vmem:[#allocation2 + $0xb0] sm:$0x3] 0.0
      %868 = vst.msk [vmem:[#allocation2 + $0xb8] sm:$0x3] %vm849, 0.0
      %869 = vst [vmem:[#allocation2 + $0xc0] sm:$0xff] 0.0
      %870 = vst.msk [vmem:[#allocation2 + $0xc8] sm:$0xff] %vm844, 0.0
      %871 = vst [vmem:[#allocation2 + $0xd0] sm:$0xff] 0.0
      %872 = vst.msk [vmem:[#allocation2 + $0xd8] sm:$0xff] %vm844, 0.0
      %873 = vst [vmem:[#allocation2 + $0xe0] sm:$0x3] 0.0
      %874 = vst.msk [vmem:[#allocation2 + $0xe8] sm:$0x3] %vm849, 0.0
      %875 = vst [vmem:[#allocation2 + $0xf0] sm:$0xff] 0.0
      %876 = vst.msk [vmem:[#allocation2 + $0xf8] sm:$0xff] %vm844, 0.0
      %877 = vst [vmem:[#allocation2 + $0x100] sm:$0xff] 0.0
      %878 = vst.msk [vmem:[#allocation2 + $0x108] sm:$0xff] %vm844, 0.0
      %879 = vst [vmem:[#allocation2 + $0x110] sm:$0x3] 0.0
      %880 = vst.msk [vmem:[#allocation2 + $0x118] sm:$0x3] %vm849, 0.0
      %881 = vst [vmem:[#allocation2 + $0x120] sm:$0xff] 0.0
      %882 = vst.msk [vmem:[#allocation2 + $0x128] sm:$0xff] %vm844, 0.0
      %883 = vst [vmem:[#allocation2 + $0x130] sm:$0xff] 0.0
      %884 = vst.msk [vmem:[#allocation2 + $0x138] sm:$0xff] %vm844, 0.0
      %885 = vst [vmem:[#allocation2 + $0x140] sm:$0x3] 0.0
      %886 = vst.msk [vmem:[#allocation2 + $0x148] sm:$0x3] %vm849, 0.0
      %887 = vst [vmem:[#allocation2 + $0x150] sm:$0xff] 0.0
      %888 = vst.msk [vmem:[#allocation2 + $0x158] sm:$0xff] %vm844, 0.0
      %889 = vst [vmem:[#allocation2 + $0x160] sm:$0xff] 0.0
      %890 = vst.msk [vmem:[#allocation2 + $0x168] sm:$0xff] %vm844, 0.0
      %891 = vst [vmem:[#allocation2 + $0x170] sm:$0x3] 0.0
      %892 = vst.msk [vmem:[#allocation2 + $0x178] sm:$0x3] %vm849, 0.0
      %893 = vst [vmem:[#allocation2 + $0x180] sm:$0xff] 0.0
      %894 = vst.msk [vmem:[#allocation2 + $0x188] sm:$0xff] %vm844, 0.0
      %895 = vst [vmem:[#allocation2 + $0x190] sm:$0xff] 0.0
      %896 = vst.msk [vmem:[#allocation2 + $0x198] sm:$0xff] %vm844, 0.0
      %897 = vst [vmem:[#allocation2 + $0x1a0] sm:$0x3] 0.0
      %898 = vst.msk [vmem:[#allocation2 + $0x1a8] sm:$0x3] %vm849, 0.0
      %899 = vst [vmem:[#allocation2 + $0x1b0] sm:$0xff] 0.0
      %900 = vst.msk [vmem:[#allocation2 + $0x1b8] sm:$0xff] %vm844, 0.0
      %901 = vst [vmem:[#allocation2 + $0x1c0] sm:$0xff] 0.0
      %902 = vst.msk [vmem:[#allocation2 + $0x1c8] sm:$0xff] %vm844, 0.0
      %903 = vst [vmem:[#allocation2 + $0x1d0] sm:$0x3] 0.0
      %904 = vst.msk [vmem:[#allocation2 + $0x1d8] sm:$0x3] %vm849, 0.0
      %905 = vst [vmem:[#allocation2 + $0x1e0] sm:$0xff] 0.0
      %906 = vst.msk [vmem:[#allocation2 + $0x1e8] sm:$0xff] %vm844, 0.0
      %907 = vst [vmem:[#allocation2 + $0x1f0] sm:$0xff] 0.0
      %908 = vst.msk [vmem:[#allocation2 + $0x1f8] sm:$0xff] %vm844, 0.0
      %909 = vst [vmem:[#allocation2 + $0x200] sm:$0x3] 0.0
      %910 = vst.msk [vmem:[#allocation2 + $0x208] sm:$0x3] %vm849, 0.0
      %911 = vst [vmem:[#allocation2 + $0x210] sm:$0xff] 0.0
      %912 = vst.msk [vmem:[#allocation2 + $0x218] sm:$0xff] %vm844, 0.0
      %913 = vst [vmem:[#allocation2 + $0x220] sm:$0xff] 0.0
      %914 = vst.msk [vmem:[#allocation2 + $0x228] sm:$0xff] %vm844, 0.0
      %915 = vst [vmem:[#allocation2 + $0x230] sm:$0x3] 0.0
      %916 = vst.msk [vmem:[#allocation2 + $0x238] sm:$0x3] %vm849, 0.0
      %917 = vst [vmem:[#allocation2 + $0x240] sm:$0xff] 0.0
      %918 = vst.msk [vmem:[#allocation2 + $0x248] sm:$0xff] %vm844, 0.0
      %919 = vst [vmem:[#allocation2 + $0x250] sm:$0xff] 0.0
      %920 = vst.msk [vmem:[#allocation2 + $0x258] sm:$0xff] %vm844, 0.0
      %921 = vst [vmem:[#allocation2 + $0x260] sm:$0x3] 0.0
      %922 = vst.msk [vmem:[#allocation2 + $0x268] sm:$0x3] %vm849, 0.0
      %923 = vst [vmem:[#allocation2 + $0x270] sm:$0xff] 0.0
      %924 = vst.msk [vmem:[#allocation2 + $0x278] sm:$0xff] %vm844, 0.0
      %925 = vst [vmem:[#allocation2 + $0x280] sm:$0xff] 0.0
      %926 = vst.msk [vmem:[#allocation2 + $0x288] sm:$0xff] %vm844, 0.0
      %927 = vst [vmem:[#allocation2 + $0x290] sm:$0x3] 0.0
      %928 = vst.msk [vmem:[#allocation2 + $0x298] sm:$0x3] %vm849, 0.0
      %929 = vst [vmem:[#allocation2 + $0x2a0] sm:$0xff] 0.0
      %930 = vst.msk [vmem:[#allocation2 + $0x2a8] sm:$0xff] %vm844, 0.0
      %931 = vst [vmem:[#allocation2 + $0x2b0] sm:$0xff] 0.0
      %932 = vst.msk [vmem:[#allocation2 + $0x2b8] sm:$0xff] %vm844, 0.0
      %933 = vst [vmem:[#allocation2 + $0x2c0] sm:$0x3] 0.0
      %934 = vst.msk [vmem:[#allocation2 + $0x2c8] sm:$0x3] %vm849, 0.0
      %935 = vst [vmem:[#allocation2 + $0x2d0] sm:$0xff] 0.0
      %936 = vst.msk [vmem:[#allocation2 + $0x2d8] sm:$0xff] %vm844, 0.0
      %937 = vst [vmem:[#allocation2 + $0x2e0] sm:$0xff] 0.0
      %938 = vst.msk [vmem:[#allocation2 + $0x2e8] sm:$0xff] %vm844, 0.0
      %939 = vst [vmem:[#allocation2 + $0x2f0] sm:$0x3] 0.0
      %940 = vst.msk [vmem:[#allocation2 + $0x2f8] sm:$0x3] %vm849, 0.0
      %941 = vst [vmem:[#allocation2 + $0x300] sm:$0xff] 0.0
      %942 = vst.msk [vmem:[#allocation2 + $0x308] sm:$0xff] %vm844, 0.0
      %943 = vst [vmem:[#allocation2 + $0x310] sm:$0xff] 0.0
      %944 = vst.msk [vmem:[#allocation2 + $0x318] sm:$0xff] %vm844, 0.0
      %945 = vst [vmem:[#allocation2 + $0x320] sm:$0x3] 0.0
      %946 = vst.msk [vmem:[#allocation2 + $0x328] sm:$0x3] %vm849, 0.0
      %947 = vst [vmem:[#allocation2 + $0x330] sm:$0xff] 0.0
      %948 = vst.msk [vmem:[#allocation2 + $0x338] sm:$0xff] %vm844, 0.0
      %949 = vst [vmem:[#allocation2 + $0x340] sm:$0xff] 0.0
      %950 = vst.msk [vmem:[#allocation2 + $0x348] sm:$0xff] %vm844, 0.0
      %951 = vst [vmem:[#allocation2 + $0x350] sm:$0x3] 0.0
      %952 = vst.msk [vmem:[#allocation2 + $0x358] sm:$0x3] %vm849, 0.0
      %vm1017 = vcmask 1040384
      %v1018 = vrot.slane %v779, 7
      %v1019 = vrot.slane %v780, 7
      %v1020 = vrot.slane %v781, 7
      %v1021 = vsel %vm1017, %v1018, %v1020
      %v1022 = vrot.slane %v782, 7
      %v1023 = vsel %vm1017, %v1019, %v1022
      %v1024 = vrot.slane %v783, 7
      %v1025 = vrot.slane %v784, 7
      %v1026 = vrot.slane %v785, 7
      %v1027 = vsel %vm1017, %v1024, %v1026
      %v1028 = vrot.slane %v786, 7
      %v1029 = vsel %vm1017, %v1025, %v1028
      %v1030 = vrot.slane %v787, 7
      %v1031 = vrot.slane %v788, 7
      %v1032 = vrot.slane %v789, 7
      %v1033 = vsel %vm1017, %v1030, %v1032
      %v1034 = vrot.slane %v790, 7
      %v1035 = vsel %vm1017, %v1031, %v1034
      %v1036 = vrot.slane %v791, 7
      %v1037 = vrot.slane %v792, 7
      %v1038 = vrot.slane %v793, 7
      %v1039 = vsel %vm1017, %v1036, %v1038
      %v1040 = vrot.slane %v794, 7
      %v1041 = vsel %vm1017, %v1037, %v1040
      %v1042 = vrot.slane %v795, 7
      %v1043 = vrot.slane %v796, 7
      %v1044 = vrot.slane %v797, 7
      %v1045 = vsel %vm1017, %v1042, %v1044
      %v1046 = vrot.slane %v798, 7
      %v1047 = vsel %vm1017, %v1043, %v1046
      %v1048 = vrot.slane %v799, 7
      %v1049 = vrot.slane %v800, 7
      %v1050 = vrot.slane %v801, 7
      %v1051 = vsel %vm1017, %v1048, %v1050
      %v1052 = vrot.slane %v802, 7
      %v1053 = vsel %vm1017, %v1049, %v1052
      %v1054 = vrot.slane %v803, 7
      %v1055 = vrot.slane %v804, 7
      %v1056 = vrot.slane %v805, 7
      %v1057 = vsel %vm1017, %v1054, %v1056
      %v1058 = vrot.slane %v806, 7
      %v1059 = vsel %vm1017, %v1055, %v1058
      %v1060 = vrot.slane %v807, 7
      %v1061 = vrot.slane %v808, 7
      %v1062 = vrot.slane %v809, 7
      %v1063 = vsel %vm1017, %v1060, %v1062
      %v1064 = vrot.slane %v810, 7
      %v1065 = vsel %vm1017, %v1061, %v1064
      %v1066 = vrot.slane %v811, 7
      %v1067 = vrot.slane %v812, 7
      %v1068 = vrot.slane %v813, 7
      %v1069 = vsel %vm1017, %v1066, %v1068
      %v1070 = vrot.slane %v814, 7
      %v1071 = vsel %vm1017, %v1067, %v1070
      %v1072 = vrot.slane %v815, 7
      %v1073 = vrot.slane %v816, 7
      %v1074 = vrot.slane %v817, 7
      %v1075 = vsel %vm1017, %v1072, %v1074
      %v1076 = vrot.slane %v818, 7
      %v1077 = vsel %vm1017, %v1073, %v1076
      %v1078 = vrot.slane %v819, 7
      %v1079 = vrot.slane %v820, 7
      %v1080 = vrot.slane %v821, 7
      %v1081 = vsel %vm1017, %v1078, %v1080
      %v1082 = vrot.slane %v822, 7
      %v1083 = vsel %vm1017, %v1079, %v1082
      %v1084 = vrot.slane %v823, 7
      %v1085 = vrot.slane %v824, 7
      %v1086 = vrot.slane %v825, 7
      %v1087 = vsel %vm1017, %v1084, %v1086
      %v1088 = vrot.slane %v826, 7
      %v1089 = vsel %vm1017, %v1085, %v1088
      %v1090 = vrot.slane %v827, 7
      %v1091 = vrot.slane %v828, 7
      %v1092 = vrot.slane %v829, 7
      %v1093 = vsel %vm1017, %v1090, %v1092
      %v1094 = vrot.slane %v830, 7
      %v1095 = vsel %vm1017, %v1091, %v1094
      %v1096 = vrot.slane %v831, 7
      %v1097 = vrot.slane %v832, 7
      %v1098 = vrot.slane %v833, 7
      %v1099 = vsel %vm1017, %v1096, %v1098
      %v1100 = vrot.slane %v834, 7
      %v1101 = vsel %vm1017, %v1097, %v1100
      %v1102 = vrot.slane %v835, 7
      %v1103 = vrot.slane %v836, 7
      %v1104 = vrot.slane %v837, 7
      %v1105 = vsel %vm1017, %v1102, %v1104
      %v1106 = vrot.slane %v838, 7
      %v1107 = vsel %vm1017, %v1103, %v1106
      %v1108 = vrot.slane %v839, 7
      %v1109 = vrot.slane %v840, 7
      %v1110 = vrot.slane %v841, 7
      %v1111 = vsel %vm1017, %v1108, %v1110
      %v1112 = vrot.slane %v842, 7
      %v1113 = vsel %vm1017, %v1109, %v1112
      %s1210 = scalar_lea.vmem [#allocation2], 48
      %1211 = vst [vmem:[%s1210] sm:$0xfe] %v1018
      %vm1212 = vcmask 130049
      %1213 = vst.msk [vmem:[%s1210 + $0x8] sm:$0xfe] %vm1212, %v1019
      %1214 = vst [vmem:[%s1210 + $0x10] sm:$0xff] %v1021
      %1215 = vst.msk [vmem:[%s1210 + $0x18] sm:$0xff] %vm844, %v1023
      %1216 = vst [vmem:[%s1210 + $0x20] sm:$0x1] %v1020
      %vm1217 = vcmask 122880
      %1218 = vst.msk [vmem:[%s1210 + $0x28] sm:$0x1] %vm1217, %v1022
      %1219 = vst [vmem:[%s1210 + $0x30] sm:$0xfe] %v1024
      %1220 = vst.msk [vmem:[%s1210 + $0x38] sm:$0xfe] %vm1212, %v1025
      %1221 = vst [vmem:[%s1210 + $0x40] sm:$0xff] %v1027
      %1222 = vst.msk [vmem:[%s1210 + $0x48] sm:$0xff] %vm844, %v1029
      %1223 = vst [vmem:[%s1210 + $0x50] sm:$0x1] %v1026
      %1224 = vst.msk [vmem:[%s1210 + $0x58] sm:$0x1] %vm1217, %v1028
      %1225 = vst [vmem:[%s1210 + $0x60] sm:$0xfe] %v1030
      %1226 = vst.msk [vmem:[%s1210 + $0x68] sm:$0xfe] %vm1212, %v1031
      %1227 = vst [vmem:[%s1210 + $0x70] sm:$0xff] %v1033
      %1228 = vst.msk [vmem:[%s1210 + $0x78] sm:$0xff] %vm844, %v1035
      %1229 = vst [vmem:[%s1210 + $0x80] sm:$0x1] %v1032
      %1230 = vst.msk [vmem:[%s1210 + $0x88] sm:$0x1] %vm1217, %v1034
      %1231 = vst [vmem:[%s1210 + $0x90] sm:$0xfe] %v1036
      %1232 = vst.msk [vmem:[%s1210 + $0x98] sm:$0xfe] %vm1212, %v1037
      %1233 = vst [vmem:[%s1210 + $0xa0] sm:$0xff] %v1039
      %1234 = vst.msk [vmem:[%s1210 + $0xa8] sm:$0xff] %vm844, %v1041
      %1235 = vst [vmem:[%s1210 + $0xb0] sm:$0x1] %v1038
      %1236 = vst.msk [vmem:[%s1210 + $0xb8] sm:$0x1] %vm1217, %v1040
      %1237 = vst [vmem:[%s1210 + $0xc0] sm:$0xfe] %v1042
      %1238 = vst.msk [vmem:[%s1210 + $0xc8] sm:$0xfe] %vm1212, %v1043
      %1239 = vst [vmem:[%s1210 + $0xd0] sm:$0xff] %v1045
      %1240 = vst.msk [vmem:[%s1210 + $0xd8] sm:$0xff] %vm844, %v1047
      %1241 = vst [vmem:[%s1210 + $0xe0] sm:$0x1] %v1044
      %1242 = vst.msk [vmem:[%s1210 + $0xe8] sm:$0x1] %vm1217, %v1046
      %1243 = vst [vmem:[%s1210 + $0xf0] sm:$0xfe] %v1048
      %1244 = vst.msk [vmem:[%s1210 + $0xf8] sm:$0xfe] %vm1212, %v1049
      %1245 = vst [vmem:[%s1210 + $0x100] sm:$0xff] %v1051
      %1246 = vst.msk [vmem:[%s1210 + $0x108] sm:$0xff] %vm844, %v1053
      %1247 = vst [vmem:[%s1210 + $0x110] sm:$0x1] %v1050
      %1248 = vst.msk [vmem:[%s1210 + $0x118] sm:$0x1] %vm1217, %v1052
      %1249 = vst [vmem:[%s1210 + $0x120] sm:$0xfe] %v1054
      %1250 = vst.msk [vmem:[%s1210 + $0x128] sm:$0xfe] %vm1212, %v1055
      %1251 = vst [vmem:[%s1210 + $0x130] sm:$0xff] %v1057
      %1252 = vst.msk [vmem:[%s1210 + $0x138] sm:$0xff] %vm844, %v1059
      %1253 = vst [vmem:[%s1210 + $0x140] sm:$0x1] %v1056
      %1254 = vst.msk [vmem:[%s1210 + $0x148] sm:$0x1] %vm1217, %v1058
      %1255 = vst [vmem:[%s1210 + $0x150] sm:$0xfe] %v1060
      %1256 = vst.msk [vmem:[%s1210 + $0x158] sm:$0xfe] %vm1212, %v1061
      %1257 = vst [vmem:[%s1210 + $0x160] sm:$0xff] %v1063
      %1258 = vst.msk [vmem:[%s1210 + $0x168] sm:$0xff] %vm844, %v1065
      %1259 = vst [vmem:[%s1210 + $0x170] sm:$0x1] %v1062
      %1260 = vst.msk [vmem:[%s1210 + $0x178] sm:$0x1] %vm1217, %v1064
      %1261 = vst [vmem:[%s1210 + $0x180] sm:$0xfe] %v1066
      %1262 = vst.msk [vmem:[%s1210 + $0x188] sm:$0xfe] %vm1212, %v1067
      %1263 = vst [vmem:[%s1210 + $0x190] sm:$0xff] %v1069
      %1264 = vst.msk [vmem:[%s1210 + $0x198] sm:$0xff] %vm844, %v1071
      %1265 = vst [vmem:[%s1210 + $0x1a0] sm:$0x1] %v1068
      %1266 = vst.msk [vmem:[%s1210 + $0x1a8] sm:$0x1] %vm1217, %v1070
      %1267 = vst [vmem:[%s1210 + $0x1b0] sm:$0xfe] %v1072
      %1268 = vst.msk [vmem:[%s1210 + $0x1b8] sm:$0xfe] %vm1212, %v1073
      %1269 = vst [vmem:[%s1210 + $0x1c0] sm:$0xff] %v1075
      %1270 = vst.msk [vmem:[%s1210 + $0x1c8] sm:$0xff] %vm844, %v1077
      %1271 = vst [vmem:[%s1210 + $0x1d0] sm:$0x1] %v1074
      %1272 = vst.msk [vmem:[%s1210 + $0x1d8] sm:$0x1] %vm1217, %v1076
      %1273 = vst [vmem:[%s1210 + $0x1e0] sm:$0xfe] %v1078
      %1274 = vst.msk [vmem:[%s1210 + $0x1e8] sm:$0xfe] %vm1212, %v1079
      %1275 = vst [vmem:[%s1210 + $0x1f0] sm:$0xff] %v1081
      %1276 = vst.msk [vmem:[%s1210 + $0x1f8] sm:$0xff] %vm844, %v1083
      %1277 = vst [vmem:[%s1210 + $0x200] sm:$0x1] %v1080
      %1278 = vst.msk [vmem:[%s1210 + $0x208] sm:$0x1] %vm1217, %v1082
      %1279 = vst [vmem:[%s1210 + $0x210] sm:$0xfe] %v1084
      %1280 = vst.msk [vmem:[%s1210 + $0x218] sm:$0xfe] %vm1212, %v1085
      %1281 = vst [vmem:[%s1210 + $0x220] sm:$0xff] %v1087
      %1282 = vst.msk [vmem:[%s1210 + $0x228] sm:$0xff] %vm844, %v1089
      %1283 = vst [vmem:[%s1210 + $0x230] sm:$0x1] %v1086
      %1284 = vst.msk [vmem:[%s1210 + $0x238] sm:$0x1] %vm1217, %v1088
      %1285 = vst [vmem:[%s1210 + $0x240] sm:$0xfe] %v1090
      %1286 = vst.msk [vmem:[%s1210 + $0x248] sm:$0xfe] %vm1212, %v1091
      %1287 = vst [vmem:[%s1210 + $0x250] sm:$0xff] %v1093
      %1288 = vst.msk [vmem:[%s1210 + $0x258] sm:$0xff] %vm844, %v1095
      %1289 = vst [vmem:[%s1210 + $0x260] sm:$0x1] %v1092
      %1290 = vst.msk [vmem:[%s1210 + $0x268] sm:$0x1] %vm1217, %v1094
      %1291 = vst [vmem:[%s1210 + $0x270] sm:$0xfe] %v1096
      %1292 = vst.msk [vmem:[%s1210 + $0x278] sm:$0xfe] %vm1212, %v1097
      %1293 = vst [vmem:[%s1210 + $0x280] sm:$0xff] %v1099
      %1294 = vst.msk [vmem:[%s1210 + $0x288] sm:$0xff] %vm844, %v1101
      %1295 = vst [vmem:[%s1210 + $0x290] sm:$0x1] %v1098
      %1296 = vst.msk [vmem:[%s1210 + $0x298] sm:$0x1] %vm1217, %v1100
      %1297 = vst [vmem:[%s1210 + $0x2a0] sm:$0xfe] %v1102
      %1298 = vst.msk [vmem:[%s1210 + $0x2a8] sm:$0xfe] %vm1212, %v1103
      %1299 = vst [vmem:[%s1210 + $0x2b0] sm:$0xff] %v1105
      %1300 = vst.msk [vmem:[%s1210 + $0x2b8] sm:$0xff] %vm844, %v1107
      %1301 = vst [vmem:[%s1210 + $0x2c0] sm:$0x1] %v1104
      %1302 = vst.msk [vmem:[%s1210 + $0x2c8] sm:$0x1] %vm1217, %v1106
      %1303 = vst [vmem:[%s1210 + $0x2d0] sm:$0xfe] %v1108
      %1304 = vst.msk [vmem:[%s1210 + $0x2d8] sm:$0xfe] %vm1212, %v1109
      %1305 = vst [vmem:[%s1210 + $0x2e0] sm:$0xff] %v1111
      %1306 = vst.msk [vmem:[%s1210 + $0x2e8] sm:$0xff] %vm844, %v1113
      %1307 = vst [vmem:[%s1210 + $0x2f0] sm:$0x1] %v1110
      %1308 = vst.msk [vmem:[%s1210 + $0x2f8] sm:$0x1] %vm1217, %v1112
      %v1309 = vld [vmem:[%s3] sm:$0xff]
      %v1310 = vld [vmem:[%s3 + $0x8] sm:$0xff]
      %v1311 = vld [vmem:[%s3 + $0x10] sm:$0x1]
      %v1312 = vld [vmem:[%s3 + $0x18] sm:$0x1]
      %v1313 = vld [vmem:[#allocation2] sm:$0xff]
      %v1314 = vld [vmem:[#allocation2 + $0x8] sm:$0xff]
      %v1315 = vld [vmem:[#allocation2 + $0x10] sm:$0xff]
      %v1316 = vld [vmem:[#allocation2 + $0x18] sm:$0xff]
      %v1317 = vld [vmem:[#allocation2 + $0x30] sm:$0xff]
      %v1318 = vld [vmem:[#allocation2 + $0x38] sm:$0xff]
      %v1319 = vld [vmem:[#allocation2 + $0x40] sm:$0xff]
      %v1320 = vld [vmem:[#allocation2 + $0x48] sm:$0xff]
      %v1321 = vld [vmem:[#allocation2 + $0x60] sm:$0xff]
      %v1322 = vld [vmem:[#allocation2 + $0x68] sm:$0xff]
      %v1323 = vld [vmem:[#allocation2 + $0x70] sm:$0xff]
      %v1324 = vld [vmem:[#allocation2 + $0x78] sm:$0xff]
      %v1325 = vld [vmem:[#allocation2 + $0x90] sm:$0xff]
      %v1326 = vld [vmem:[#allocation2 + $0x98] sm:$0xff]
      %v1327 = vld [vmem:[#allocation2 + $0xa0] sm:$0xff]
      %v1328 = vld [vmem:[#allocation2 + $0xa8] sm:$0xff]
      %v1329 = vld [vmem:[#allocation2 + $0xc0] sm:$0xff]
      %v1330 = vld [vmem:[#allocation2 + $0xc8] sm:$0xff]
      %v1331 = vld [vmem:[#allocation2 + $0xd0] sm:$0xff]
      %v1332 = vld [vmem:[#allocation2 + $0xd8] sm:$0xff]
      %v1333 = vld [vmem:[#allocation2 + $0xf0] sm:$0xff]
      %v1334 = vld [vmem:[#allocation2 + $0xf8] sm:$0xff]
      %v1335 = vld [vmem:[#allocation2 + $0x100] sm:$0xff]
      %v1336 = vld [vmem:[#allocation2 + $0x108] sm:$0xff]
      %v1337 = vld [vmem:[#allocation2 + $0x120] sm:$0xff]
      %v1338 = vld [vmem:[#allocation2 + $0x128] sm:$0xff]
      %v1339 = vld [vmem:[#allocation2 + $0x130] sm:$0xff]
      %v1340 = vld [vmem:[#allocation2 + $0x138] sm:$0xff]
      %v1341 = vld [vmem:[#allocation2 + $0x150] sm:$0xff]
      %v1342 = vld [vmem:[#allocation2 + $0x158] sm:$0xff]
      %v1343 = vld [vmem:[#allocation2 + $0x160] sm:$0xff]
      %v1344 = vld [vmem:[#allocation2 + $0x168] sm:$0xff]
      %v1345 = vld [vmem:[#allocation2 + $0x180] sm:$0xff]
      %v1346 = vld [vmem:[#allocation2 + $0x188] sm:$0xff]
      %v1347 = vld [vmem:[#allocation2 + $0x190] sm:$0xff]
      %v1348 = vld [vmem:[#allocation2 + $0x198] sm:$0xff]
      %v1349 = vld [vmem:[#allocation2 + $0x1b0] sm:$0xff]
      %v1350 = vld [vmem:[#allocation2 + $0x1b8] sm:$0xff]
      %v1351 = vld [vmem:[#allocation2 + $0x1c0] sm:$0xff]
      %v1352 = vld [vmem:[#allocation2 + $0x1c8] sm:$0xff]
      %v1353 = vld [vmem:[#allocation2 + $0x1e0] sm:$0xff]
      %v1354 = vld [vmem:[#allocation2 + $0x1e8] sm:$0xff]
      %v1355 = vld [vmem:[#allocation2 + $0x1f0] sm:$0xff]
      %v1356 = vld [vmem:[#allocation2 + $0x1f8] sm:$0xff]
      %v1357 = vld [vmem:[#allocation2 + $0x210] sm:$0xff]
      %v1358 = vld [vmem:[#allocation2 + $0x218] sm:$0xff]
      %v1359 = vld [vmem:[#allocation2 + $0x220] sm:$0xff]
      %v1360 = vld [vmem:[#allocation2 + $0x228] sm:$0xff]
      %v1361 = vld [vmem:[#allocation2 + $0x240] sm:$0xff]
      %v1362 = vld [vmem:[#allocation2 + $0x248] sm:$0xff]
      %v1363 = vld [vmem:[#allocation2 + $0x250] sm:$0xff]
      %v1364 = vld [vmem:[#allocation2 + $0x258] sm:$0xff]
      %v1365 = vld [vmem:[#allocation2 + $0x270] sm:$0xff]
      %v1366 = vld [vmem:[#allocation2 + $0x278] sm:$0xff]
      %v1367 = vld [vmem:[#allocation2 + $0x280] sm:$0xff]
      %v1368 = vld [vmem:[#allocation2 + $0x288] sm:$0xff]
      %v1369 = vld [vmem:[#allocation2 + $0x2a0] sm:$0xff]
      %v1370 = vld [vmem:[#allocation2 + $0x2a8] sm:$0xff]
      %v1371 = vld [vmem:[#allocation2 + $0x2b0] sm:$0xff]
      %v1372 = vld [vmem:[#allocation2 + $0x2b8] sm:$0xff]
      %v1373 = vld [vmem:[#allocation2 + $0x2d0] sm:$0xff]
      %v1374 = vld [vmem:[#allocation2 + $0x2d8] sm:$0xff]
      %v1375 = vld [vmem:[#allocation2 + $0x2e0] sm:$0xff]
      %v1376 = vld [vmem:[#allocation2 + $0x2e8] sm:$0xff]
      %v1377 = vlaneseq
      %v1378 = vshrl.u32 %v1377, 7
      %v1379 = vsub.s32 0, %v1378
      %v1380 = vrot.slane %v1309, %v1379
      %v1381 = vlaneseq
      %v1382 = vshrl.u32 %v1381, 7
      %v1383 = vsub.s32 0, %v1382
      %v1384 = vrot.slane %v1310, %v1383
      %v1385 = vmul.f32 %v1313, %v1380
      %v1386 = vmul.f32 %v1314, %v1384
      %v1387 = vmul.f32 %v1315, %v1380
      %v1388 = vmul.f32 %v1316, %v1384
      %v1389 = vmul.f32 %v1317, %v1380
      %v1390 = vmul.f32 %v1318, %v1384
      %v1391 = vmul.f32 %v1319, %v1380
      %v1392 = vmul.f32 %v1320, %v1384
      %v1393 = vmul.f32 %v1321, %v1380
      %v1394 = vmul.f32 %v1322, %v1384
      %v1395 = vmul.f32 %v1323, %v1380
      %v1396 = vmul.f32 %v1324, %v1384
      %v1397 = vmul.f32 %v1325, %v1380
      %v1398 = vmul.f32 %v1326, %v1384
      %v1399 = vmul.f32 %v1327, %v1380
      %v1400 = vmul.f32 %v1328, %v1384
      %v1401 = vmul.f32 %v1329, %v1380
      %v1402 = vmul.f32 %v1330, %v1384
      %v1403 = vmul.f32 %v1331, %v1380
      %v1404 = vmul.f32 %v1332, %v1384
      %v1405 = vmul.f32 %v1333, %v1380
      %v1406 = vmul.f32 %v1334, %v1384
      %v1407 = vmul.f32 %v1335, %v1380
      %v1408 = vmul.f32 %v1336, %v1384
      %v1409 = vmul.f32 %v1337, %v1380
      %v1410 = vmul.f32 %v1338, %v1384
      %v1411 = vmul.f32 %v1339, %v1380
      %v1412 = vmul.f32 %v1340, %v1384
      %v1413 = vmul.f32 %v1341, %v1380
      %v1414 = vmul.f32 %v1342, %v1384
      %v1415 = vmul.f32 %v1343, %v1380
      %v1416 = vmul.f32 %v1344, %v1384
      %v1417 = vmul.f32 %v1345, %v1380
      %v1418 = vmul.f32 %v1346, %v1384
      %v1419 = vmul.f32 %v1347, %v1380
      %v1420 = vmul.f32 %v1348, %v1384
      %v1421 = vmul.f32 %v1349, %v1380
      %v1422 = vmul.f32 %v1350, %v1384
      %v1423 = vmul.f32 %v1351, %v1380
      %v1424 = vmul.f32 %v1352, %v1384
      %v1425 = vmul.f32 %v1353, %v1380
      %v1426 = vmul.f32 %v1354, %v1384
      %v1427 = vmul.f32 %v1355, %v1380
      %v1428 = vmul.f32 %v1356, %v1384
      %v1429 = vmul.f32 %v1357, %v1380
      %v1430 = vmul.f32 %v1358, %v1384
      %v1431 = vmul.f32 %v1359, %v1380
      %v1432 = vmul.f32 %v1360, %v1384
      %v1433 = vmul.f32 %v1361, %v1380
      %v1434 = vmul.f32 %v1362, %v1384
      %v1435 = vmul.f32 %v1363, %v1380
      %v1436 = vmul.f32 %v1364, %v1384
      %v1437 = vmul.f32 %v1365, %v1380
      %v1438 = vmul.f32 %v1366, %v1384
      %v1439 = vmul.f32 %v1367, %v1380
      %v1440 = vmul.f32 %v1368, %v1384
      %v1441 = vmul.f32 %v1369, %v1380
      %v1442 = vmul.f32 %v1370, %v1384
      %v1443 = vmul.f32 %v1371, %v1380
      %v1444 = vmul.f32 %v1372, %v1384
      %v1445 = vmul.f32 %v1373, %v1380
      %v1446 = vmul.f32 %v1374, %v1384
      %v1447 = vmul.f32 %v1375, %v1380
      %v1448 = vmul.f32 %v1376, %v1384
      %v1449 = vadd.f32 %v1385, 0.0
      %v1450 = vadd.f32 %v1386, 0.0
      %v1451 = vadd.f32 %v1387, 0.0
      %v1452 = vadd.f32 %v1388, 0.0
      %v1453 = vadd.f32 %v1389, 0.0
      %v1454 = vadd.f32 %v1390, 0.0
      %v1455 = vadd.f32 %v1391, 0.0
      %v1456 = vadd.f32 %v1392, 0.0
      %v1457 = vadd.f32 %v1393, 0.0
      %v1458 = vadd.f32 %v1394, 0.0
      %v1459 = vadd.f32 %v1395, 0.0
      %v1460 = vadd.f32 %v1396, 0.0
      %v1461 = vadd.f32 %v1397, 0.0
      %v1462 = vadd.f32 %v1398, 0.0
      %v1463 = vadd.f32 %v1399, 0.0
      %v1464 = vadd.f32 %v1400, 0.0
      %v1465 = vadd.f32 %v1401, 0.0
      %v1466 = vadd.f32 %v1402, 0.0
      %v1467 = vadd.f32 %v1403, 0.0
      %v1468 = vadd.f32 %v1404, 0.0
      %v1469 = vadd.f32 %v1405, 0.0
      %v1470 = vadd.f32 %v1406, 0.0
      %v1471 = vadd.f32 %v1407, 0.0
      %v1472 = vadd.f32 %v1408, 0.0
      %v1473 = vadd.f32 %v1409, 0.0
      %v1474 = vadd.f32 %v1410, 0.0
      %v1475 = vadd.f32 %v1411, 0.0
      %v1476 = vadd.f32 %v1412, 0.0
      %v1477 = vadd.f32 %v1413, 0.0
      %v1478 = vadd.f32 %v1414, 0.0
      %v1479 = vadd.f32 %v1415, 0.0
      %v1480 = vadd.f32 %v1416, 0.0
      %v1481 = vadd.f32 %v1417, 0.0
      %v1482 = vadd.f32 %v1418, 0.0
      %v1483 = vadd.f32 %v1419, 0.0
      %v1484 = vadd.f32 %v1420, 0.0
      %v1485 = vadd.f32 %v1421, 0.0
      %v1486 = vadd.f32 %v1422, 0.0
      %v1487 = vadd.f32 %v1423, 0.0
      %v1488 = vadd.f32 %v1424, 0.0
      %v1489 = vadd.f32 %v1425, 0.0
      %v1490 = vadd.f32 %v1426, 0.0
      %v1491 = vadd.f32 %v1427, 0.0
      %v1492 = vadd.f32 %v1428, 0.0
      %v1493 = vadd.f32 %v1429, 0.0
      %v1494 = vadd.f32 %v1430, 0.0
      %v1495 = vadd.f32 %v1431, 0.0
      %v1496 = vadd.f32 %v1432, 0.0
      %v1497 = vadd.f32 %v1433, 0.0
      %v1498 = vadd.f32 %v1434, 0.0
      %v1499 = vadd.f32 %v1435, 0.0
      %v1500 = vadd.f32 %v1436, 0.0
      %v1501 = vadd.f32 %v1437, 0.0
      %v1502 = vadd.f32 %v1438, 0.0
      %v1503 = vadd.f32 %v1439, 0.0
      %v1504 = vadd.f32 %v1440, 0.0
      %v1505 = vadd.f32 %v1441, 0.0
      %v1506 = vadd.f32 %v1442, 0.0
      %v1507 = vadd.f32 %v1443, 0.0
      %v1508 = vadd.f32 %v1444, 0.0
      %v1509 = vadd.f32 %v1445, 0.0
      %v1510 = vadd.f32 %v1446, 0.0
      %v1511 = vadd.f32 %v1447, 0.0
      %v1512 = vadd.f32 %v1448, 0.0
      %v1513 = vld [vmem:[#allocation2] sm:$0xfe]
      %v1514 = vld [vmem:[#allocation2 + $0x8] sm:$0xfe]
      %v1515 = vld [vmem:[#allocation2 + $0x20] sm:$0x1]
      %v1516 = vld [vmem:[#allocation2 + $0x28] sm:$0x1]
      %v1517 = vld [vmem:[#allocation2 + $0x30] sm:$0xfe]
      %v1518 = vld [vmem:[#allocation2 + $0x38] sm:$0xfe]
      %v1519 = vld [vmem:[#allocation2 + $0x50] sm:$0x1]
      %v1520 = vld [vmem:[#allocation2 + $0x58] sm:$0x1]
      %v1521 = vld [vmem:[#allocation2 + $0x60] sm:$0xfe]
      %v1522 = vld [vmem:[#allocation2 + $0x68] sm:$0xfe]
      %v1523 = vld [vmem:[#allocation2 + $0x80] sm:$0x1]
      %v1524 = vld [vmem:[#allocation2 + $0x88] sm:$0x1]
      %v1525 = vld [vmem:[#allocation2 + $0x90] sm:$0xfe]
      %v1526 = vld [vmem:[#allocation2 + $0x98] sm:$0xfe]
      %v1527 = vld [vmem:[#allocation2 + $0xb0] sm:$0x1]
      %v1528 = vld [vmem:[#allocation2 + $0xb8] sm:$0x1]
      %v1529 = vld [vmem:[#allocation2 + $0xc0] sm:$0xfe]
      %v1530 = vld [vmem:[#allocation2 + $0xc8] sm:$0xfe]
      %v1531 = vld [vmem:[#allocation2 + $0xe0] sm:$0x1]
      %v1532 = vld [vmem:[#allocation2 + $0xe8] sm:$0x1]
      %v1533 = vld [vmem:[#allocation2 + $0xf0] sm:$0xfe]
      %v1534 = vld [vmem:[#allocation2 + $0xf8] sm:$0xfe]
      %v1535 = vld [vmem:[#allocation2 + $0x110] sm:$0x1]
      %v1536 = vld [vmem:[#allocation2 + $0x118] sm:$0x1]
      %v1537 = vld [vmem:[#allocation2 + $0x120] sm:$0xfe]
      %v1538 = vld [vmem:[#allocation2 + $0x128] sm:$0xfe]
      %v1539 = vld [vmem:[#allocation2 + $0x140] sm:$0x1]
      %v1540 = vld [vmem:[#allocation2 + $0x148] sm:$0x1]
      %v1541 = vld [vmem:[#allocation2 + $0x150] sm:$0xfe]
      %v1542 = vld [vmem:[#allocation2 + $0x158] sm:$0xfe]
      %v1543 = vld [vmem:[#allocation2 + $0x170] sm:$0x1]
      %v1544 = vld [vmem:[#allocation2 + $0x178] sm:$0x1]
      %v1545 = vld [vmem:[#allocation2 + $0x180] sm:$0xfe]
      %v1546 = vld [vmem:[#allocation2 + $0x188] sm:$0xfe]
      %v1547 = vld [vmem:[#allocation2 + $0x1a0] sm:$0x1]
      %v1548 = vld [vmem:[#allocation2 + $0x1a8] sm:$0x1]
      %v1549 = vld [vmem:[#allocation2 + $0x1b0] sm:$0xfe]
      %v1550 = vld [vmem:[#allocation2 + $0x1b8] sm:$0xfe]
      %v1551 = vld [vmem:[#allocation2 + $0x1d0] sm:$0x1]
      %v1552 = vld [vmem:[#allocation2 + $0x1d8] sm:$0x1]
      %v1553 = vld [vmem:[#allocation2 + $0x1e0] sm:$0xfe]
      %v1554 = vld [vmem:[#allocation2 + $0x1e8] sm:$0xfe]
      %v1555 = vld [vmem:[#allocation2 + $0x200] sm:$0x1]
      %v1556 = vld [vmem:[#allocation2 + $0x208] sm:$0x1]
      %v1557 = vld [vmem:[#allocation2 + $0x210] sm:$0xfe]
      %v1558 = vld [vmem:[#allocation2 + $0x218] sm:$0xfe]
      %v1559 = vld [vmem:[#allocation2 + $0x230] sm:$0x1]
      %v1560 = vld [vmem:[#allocation2 + $0x238] sm:$0x1]
      %v1561 = vld [vmem:[#allocation2 + $0x240] sm:$0xfe]
      %v1562 = vld [vmem:[#allocation2 + $0x248] sm:$0xfe]
      %v1563 = vld [vmem:[#allocation2 + $0x260] sm:$0x1]
      %v1564 = vld [vmem:[#allocation2 + $0x268] sm:$0x1]
      %v1565 = vld [vmem:[#allocation2 + $0x270] sm:$0xfe]
      %v1566 = vld [vmem:[#allocation2 + $0x278] sm:$0xfe]
      %v1567 = vld [vmem:[#allocation2 + $0x290] sm:$0x1]
      %v1568 = vld [vmem:[#allocation2 + $0x298] sm:$0x1]
      %v1569 = vld [vmem:[#allocation2 + $0x2a0] sm:$0xfe]
      %v1570 = vld [vmem:[#allocation2 + $0x2a8] sm:$0xfe]
      %v1571 = vld [vmem:[#allocation2 + $0x2c0] sm:$0x1]
      %v1572 = vld [vmem:[#allocation2 + $0x2c8] sm:$0x1]
      %v1573 = vld [vmem:[#allocation2 + $0x2d0] sm:$0xfe]
      %v1574 = vld [vmem:[#allocation2 + $0x2d8] sm:$0xfe]
      %v1575 = vld [vmem:[#allocation2 + $0x2f0] sm:$0x1]
      %v1576 = vld [vmem:[#allocation2 + $0x2f8] sm:$0x1]
      %v1577 = vlaneseq
      %v1578 = vshrl.u32 %v1577, 7
      %v1579 = vsub.s32 1, %v1578
      %v1580 = vrot.slane %v1309, %v1579
      %v1581 = vlaneseq
      %v1582 = vshrl.u32 %v1581, 7
      %v1583 = vsub.s32 1, %v1582
      %v1584 = vrot.slane %v1310, %v1583
      %v1585 = vmul.f32 %v1513, %v1580
      %v1586 = vmul.f32 %v1514, %v1584
      %v1587 = vmul.f32 %v1315, %v1580
      %v1588 = vmul.f32 %v1316, %v1584
      %v1589 = vmul.f32 %v1515, %v1580
      %v1590 = vmul.f32 %v1516, %v1584
      %v1591 = vmul.f32 %v1517, %v1580
      %v1592 = vmul.f32 %v1518, %v1584
      %v1593 = vmul.f32 %v1319, %v1580
      %v1594 = vmul.f32 %v1320, %v1584
      %v1595 = vmul.f32 %v1519, %v1580
      %v1596 = vmul.f32 %v1520, %v1584
      %v1597 = vmul.f32 %v1521, %v1580
      %v1598 = vmul.f32 %v1522, %v1584
      %v1599 = vmul.f32 %v1323, %v1580
      %v1600 = vmul.f32 %v1324, %v1584
      %v1601 = vmul.f32 %v1523, %v1580
      %v1602 = vmul.f32 %v1524, %v1584
      %v1603 = vmul.f32 %v1525, %v1580
      %v1604 = vmul.f32 %v1526, %v1584
      %v1605 = vmul.f32 %v1327, %v1580
      %v1606 = vmul.f32 %v1328, %v1584
      %v1607 = vmul.f32 %v1527, %v1580
      %v1608 = vmul.f32 %v1528, %v1584
      %v1609 = vmul.f32 %v1529, %v1580
      %v1610 = vmul.f32 %v1530, %v1584
      %v1611 = vmul.f32 %v1331, %v1580
      %v1612 = vmul.f32 %v1332, %v1584
      %v1613 = vmul.f32 %v1531, %v1580
      %v1614 = vmul.f32 %v1532, %v1584
      %v1615 = vmul.f32 %v1533, %v1580
      %v1616 = vmul.f32 %v1534, %v1584
      %v1617 = vmul.f32 %v1335, %v1580
      %v1618 = vmul.f32 %v1336, %v1584
      %v1619 = vmul.f32 %v1535, %v1580
      %v1620 = vmul.f32 %v1536, %v1584
      %v1621 = vmul.f32 %v1537, %v1580
      %v1622 = vmul.f32 %v1538, %v1584
      %v1623 = vmul.f32 %v1339, %v1580
      %v1624 = vmul.f32 %v1340, %v1584
      %v1625 = vmul.f32 %v1539, %v1580
      %v1626 = vmul.f32 %v1540, %v1584
      %v1627 = vmul.f32 %v1541, %v1580
      %v1628 = vmul.f32 %v1542, %v1584
      %v1629 = vmul.f32 %v1343, %v1580
      %v1630 = vmul.f32 %v1344, %v1584
      %v1631 = vmul.f32 %v1543, %v1580
      %v1632 = vmul.f32 %v1544, %v1584
      %v1633 = vmul.f32 %v1545, %v1580
      %v1634 = vmul.f32 %v1546, %v1584
      %v1635 = vmul.f32 %v1347, %v1580
      %v1636 = vmul.f32 %v1348, %v1584
      %v1637 = vmul.f32 %v1547, %v1580
      %v1638 = vmul.f32 %v1548, %v1584
      %v1639 = vmul.f32 %v1549, %v1580
      %v1640 = vmul.f32 %v1550, %v1584
      %v1641 = vmul.f32 %v1351, %v1580
      %v1642 = vmul.f32 %v1352, %v1584
      %v1643 = vmul.f32 %v1551, %v1580
      %v1644 = vmul.f32 %v1552, %v1584
      %v1645 = vmul.f32 %v1553, %v1580
      %v1646 = vmul.f32 %v1554, %v1584
      %v1647 = vmul.f32 %v1355, %v1580
      %v1648 = vmul.f32 %v1356, %v1584
      %v1649 = vmul.f32 %v1555, %v1580
      %v1650 = vmul.f32 %v1556, %v1584
      %v1651 = vmul.f32 %v1557, %v1580
      %v1652 = vmul.f32 %v1558, %v1584
      %v1653 = vmul.f32 %v1359, %v1580
      %v1654 = vmul.f32 %v1360, %v1584
      %v1655 = vmul.f32 %v1559, %v1580
      %v1656 = vmul.f32 %v1560, %v1584
      %v1657 = vmul.f32 %v1561, %v1580
      %v1658 = vmul.f32 %v1562, %v1584
      %v1659 = vmul.f32 %v1363, %v1580
      %v1660 = vmul.f32 %v1364, %v1584
      %v1661 = vmul.f32 %v1563, %v1580
      %v1662 = vmul.f32 %v1564, %v1584
      %v1663 = vmul.f32 %v1565, %v1580
      %v1664 = vmul.f32 %v1566, %v1584
      %v1665 = vmul.f32 %v1367, %v1580
      %v1666 = vmul.f32 %v1368, %v1584
      %v1667 = vmul.f32 %v1567, %v1580
      %v1668 = vmul.f32 %v1568, %v1584
      %v1669 = vmul.f32 %v1569, %v1580
      %v1670 = vmul.f32 %v1570, %v1584
      %v1671 = vmul.f32 %v1371, %v1580
      %v1672 = vmul.f32 %v1372, %v1584
      %v1673 = vmul.f32 %v1571, %v1580
      %v1674 = vmul.f32 %v1572, %v1584
      %v1675 = vmul.f32 %v1573, %v1580
      %v1676 = vmul.f32 %v1574, %v1584
      %v1677 = vmul.f32 %v1375, %v1580
      %v1678 = vmul.f32 %v1376, %v1584
      %v1679 = vmul.f32 %v1575, %v1580
      %v1680 = vmul.f32 %v1576, %v1584
      %vm1777 = vcmask 1046528
      %v1778 = vrot.slane %v1585, 1
      %v1779 = vrot.slane %v1587, 1
      %v1780 = vsel %vm1777, %v1778, %v1779
      %v1781 = vrot.slane %v1586, 1
      %v1782 = vrot.slane %v1588, 1
      %v1783 = vsel %vm1777, %v1781, %v1782
      %v1784 = vrot.slane %v1589, 1
      %v1785 = vsel %vm1777, %v1779, %v1784
      %v1786 = vrot.slane %v1590, 1
      %v1787 = vsel %vm1777, %v1782, %v1786
      %v1788 = vrot.slane %v1591, 1
      %v1789 = vrot.slane %v1593, 1
      %v1790 = vsel %vm1777, %v1788, %v1789
      %v1791 = vrot.slane %v1592, 1
      %v1792 = vrot.slane %v1594, 1
      %v1793 = vsel %vm1777, %v1791, %v1792
      %v1794 = vrot.slane %v1595, 1
      %v1795 = vsel %vm1777, %v1789, %v1794
      %v1796 = vrot.slane %v1596, 1
      %v1797 = vsel %vm1777, %v1792, %v1796
      %v1798 = vrot.slane %v1597, 1
      %v1799 = vrot.slane %v1599, 1
      %v1800 = vsel %vm1777, %v1798, %v1799
      %v1801 = vrot.slane %v1598, 1
      %v1802 = vrot.slane %v1600, 1
      %v1803 = vsel %vm1777, %v1801, %v1802
      %v1804 = vrot.slane %v1601, 1
      %v1805 = vsel %vm1777, %v1799, %v1804
      %v1806 = vrot.slane %v1602, 1
      %v1807 = vsel %vm1777, %v1802, %v1806
      %v1808 = vrot.slane %v1603, 1
      %v1809 = vrot.slane %v1605, 1
      %v1810 = vsel %vm1777, %v1808, %v1809
      %v1811 = vrot.slane %v1604, 1
      %v1812 = vrot.slane %v1606, 1
      %v1813 = vsel %vm1777, %v1811, %v1812
      %v1814 = vrot.slane %v1607, 1
      %v1815 = vsel %vm1777, %v1809, %v1814
      %v1816 = vrot.slane %v1608, 1
      %v1817 = vsel %vm1777, %v1812, %v1816
      %v1818 = vrot.slane %v1609, 1
      %v1819 = vrot.slane %v1611, 1
      %v1820 = vsel %vm1777, %v1818, %v1819
      %v1821 = vrot.slane %v1610, 1
      %v1822 = vrot.slane %v1612, 1
      %v1823 = vsel %vm1777, %v1821, %v1822
      %v1824 = vrot.slane %v1613, 1
      %v1825 = vsel %vm1777, %v1819, %v1824
      %v1826 = vrot.slane %v1614, 1
      %v1827 = vsel %vm1777, %v1822, %v1826
      %v1828 = vrot.slane %v1615, 1
      %v1829 = vrot.slane %v1617, 1
      %v1830 = vsel %vm1777, %v1828, %v1829
      %v1831 = vrot.slane %v1616, 1
      %v1832 = vrot.slane %v1618, 1
      %v1833 = vsel %vm1777, %v1831, %v1832
      %v1834 = vrot.slane %v1619, 1
      %v1835 = vsel %vm1777, %v1829, %v1834
      %v1836 = vrot.slane %v1620, 1
      %v1837 = vsel %vm1777, %v1832, %v1836
      %v1838 = vrot.slane %v1621, 1
      %v1839 = vrot.slane %v1623, 1
      %v1840 = vsel %vm1777, %v1838, %v1839
      %v1841 = vrot.slane %v1622, 1
      %v1842 = vrot.slane %v1624, 1
      %v1843 = vsel %vm1777, %v1841, %v1842
      %v1844 = vrot.slane %v1625, 1
      %v1845 = vsel %vm1777, %v1839, %v1844
      %v1846 = vrot.slane %v1626, 1
      %v1847 = vsel %vm1777, %v1842, %v1846
      %v1848 = vrot.slane %v1627, 1
      %v1849 = vrot.slane %v1629, 1
      %v1850 = vsel %vm1777, %v1848, %v1849
      %v1851 = vrot.slane %v1628, 1
      %v1852 = vrot.slane %v1630, 1
      %v1853 = vsel %vm1777, %v1851, %v1852
      %v1854 = vrot.slane %v1631, 1
      %v1855 = vsel %vm1777, %v1849, %v1854
      %v1856 = vrot.slane %v1632, 1
      %v1857 = vsel %vm1777, %v1852, %v1856
      %v1858 = vrot.slane %v1633, 1
      %v1859 = vrot.slane %v1635, 1
      %v1860 = vsel %vm1777, %v1858, %v1859
      %v1861 = vrot.slane %v1634, 1
      %v1862 = vrot.slane %v1636, 1
      %v1863 = vsel %vm1777, %v1861, %v1862
      %v1864 = vrot.slane %v1637, 1
      %v1865 = vsel %vm1777, %v1859, %v1864
      %v1866 = vrot.slane %v1638, 1
      %v1867 = vsel %vm1777, %v1862, %v1866
      %v1868 = vrot.slane %v1639, 1
      %v1869 = vrot.slane %v1641, 1
      %v1870 = vsel %vm1777, %v1868, %v1869
      %v1871 = vrot.slane %v1640, 1
      %v1872 = vrot.slane %v1642, 1
      %v1873 = vsel %vm1777, %v1871, %v1872
      %v1874 = vrot.slane %v1643, 1
      %v1875 = vsel %vm1777, %v1869, %v1874
      %v1876 = vrot.slane %v1644, 1
      %v1877 = vsel %vm1777, %v1872, %v1876
      %v1878 = vrot.slane %v1645, 1
      %v1879 = vrot.slane %v1647, 1
      %v1880 = vsel %vm1777, %v1878, %v1879
      %v1881 = vrot.slane %v1646, 1
      %v1882 = vrot.slane %v1648, 1
      %v1883 = vsel %vm1777, %v1881, %v1882
      %v1884 = vrot.slane %v1649, 1
      %v1885 = vsel %vm1777, %v1879, %v1884
      %v1886 = vrot.slane %v1650, 1
      %v1887 = vsel %vm1777, %v1882, %v1886
      %v1888 = vrot.slane %v1651, 1
      %v1889 = vrot.slane %v1653, 1
      %v1890 = vsel %vm1777, %v1888, %v1889
      %v1891 = vrot.slane %v1652, 1
      %v1892 = vrot.slane %v1654, 1
      %v1893 = vsel %vm1777, %v1891, %v1892
      %v1894 = vrot.slane %v1655, 1
      %v1895 = vsel %vm1777, %v1889, %v1894
      %v1896 = vrot.slane %v1656, 1
      %v1897 = vsel %vm1777, %v1892, %v1896
      %v1898 = vrot.slane %v1657, 1
      %v1899 = vrot.slane %v1659, 1
      %v1900 = vsel %vm1777, %v1898, %v1899
      %v1901 = vrot.slane %v1658, 1
      %v1902 = vrot.slane %v1660, 1
      %v1903 = vsel %vm1777, %v1901, %v1902
      %v1904 = vrot.slane %v1661, 1
      %v1905 = vsel %vm1777, %v1899, %v1904
      %v1906 = vrot.slane %v1662, 1
      %v1907 = vsel %vm1777, %v1902, %v1906
      %v1908 = vrot.slane %v1663, 1
      %v1909 = vrot.slane %v1665, 1
      %v1910 = vsel %vm1777, %v1908, %v1909
      %v1911 = vrot.slane %v1664, 1
      %v1912 = vrot.slane %v1666, 1
      %v1913 = vsel %vm1777, %v1911, %v1912
      %v1914 = vrot.slane %v1667, 1
      %v1915 = vsel %vm1777, %v1909, %v1914
      %v1916 = vrot.slane %v1668, 1
      %v1917 = vsel %vm1777, %v1912, %v1916
      %v1918 = vrot.slane %v1669, 1
      %v1919 = vrot.slane %v1671, 1
      %v1920 = vsel %vm1777, %v1918, %v1919
      %v1921 = vrot.slane %v1670, 1
      %v1922 = vrot.slane %v1672, 1
      %v1923 = vsel %vm1777, %v1921, %v1922
      %v1924 = vrot.slane %v1673, 1
      %v1925 = vsel %vm1777, %v1919, %v1924
      %v1926 = vrot.slane %v1674, 1
      %v1927 = vsel %vm1777, %v1922, %v1926
      %v1928 = vrot.slane %v1675, 1
      %v1929 = vrot.slane %v1677, 1
      %v1930 = vsel %vm1777, %v1928, %v1929
      %v1931 = vrot.slane %v1676, 1
      %v1932 = vrot.slane %v1678, 1
      %v1933 = vsel %vm1777, %v1931, %v1932
      %v1934 = vrot.slane %v1679, 1
      %v1935 = vsel %vm1777, %v1929, %v1934
      %v1936 = vrot.slane %v1680, 1
      %v1937 = vsel %vm1777, %v1932, %v1936
      %v2002 = vadd.f32 %v1449, %v1780
      %v2003 = vadd.f32 %v1450, %v1783
      %v2004 = vadd.f32 %v1451, %v1785
      %v2005 = vadd.f32 %v1452, %v1787
      %v2006 = vadd.f32 %v1453, %v1790
      %v2007 = vadd.f32 %v1454, %v1793
      %v2008 = vadd.f32 %v1455, %v1795
      %v2009 = vadd.f32 %v1456, %v1797
      %v2010 = vadd.f32 %v1457, %v1800
      %v2011 = vadd.f32 %v1458, %v1803
      %v2012 = vadd.f32 %v1459, %v1805
      %v2013 = vadd.f32 %v1460, %v1807
      %v2014 = vadd.f32 %v1461, %v1810
      %v2015 = vadd.f32 %v1462, %v1813
      %v2016 = vadd.f32 %v1463, %v1815
      %v2017 = vadd.f32 %v1464, %v1817
      %v2018 = vadd.f32 %v1465, %v1820
      %v2019 = vadd.f32 %v1466, %v1823
      %v2020 = vadd.f32 %v1467, %v1825
      %v2021 = vadd.f32 %v1468, %v1827
      %v2022 = vadd.f32 %v1469, %v1830
      %v2023 = vadd.f32 %v1470, %v1833
      %v2024 = vadd.f32 %v1471, %v1835
      %v2025 = vadd.f32 %v1472, %v1837
      %v2026 = vadd.f32 %v1473, %v1840
      %v2027 = vadd.f32 %v1474, %v1843
      %v2028 = vadd.f32 %v1475, %v1845
      %v2029 = vadd.f32 %v1476, %v1847
      %v2030 = vadd.f32 %v1477, %v1850
      %v2031 = vadd.f32 %v1478, %v1853
      %v2032 = vadd.f32 %v1479, %v1855
      %v2033 = vadd.f32 %v1480, %v1857
      %v2034 = vadd.f32 %v1481, %v1860
      %v2035 = vadd.f32 %v1482, %v1863
      %v2036 = vadd.f32 %v1483, %v1865
      %v2037 = vadd.f32 %v1484, %v1867
      %v2038 = vadd.f32 %v1485, %v1870
      %v2039 = vadd.f32 %v1486, %v1873
      %v2040 = vadd.f32 %v1487, %v1875
      %v2041 = vadd.f32 %v1488, %v1877
      %v2042 = vadd.f32 %v1489, %v1880
      %v2043 = vadd.f32 %v1490, %v1883
      %v2044 = vadd.f32 %v1491, %v1885
      %v2045 = vadd.f32 %v1492, %v1887
      %v2046 = vadd.f32 %v1493, %v1890
      %v2047 = vadd.f32 %v1494, %v1893
      %v2048 = vadd.f32 %v1495, %v1895
      %v2049 = vadd.f32 %v1496, %v1897
      %v2050 = vadd.f32 %v1497, %v1900
      %v2051 = vadd.f32 %v1498, %v1903
      %v2052 = vadd.f32 %v1499, %v1905
      %v2053 = vadd.f32 %v1500, %v1907
      %v2054 = vadd.f32 %v1501, %v1910
      %v2055 = vadd.f32 %v1502, %v1913
      %v2056 = vadd.f32 %v1503, %v1915
      %v2057 = vadd.f32 %v1504, %v1917
      %v2058 = vadd.f32 %v1505, %v1920
      %v2059 = vadd.f32 %v1506, %v1923
      %v2060 = vadd.f32 %v1507, %v1925
      %v2061 = vadd.f32 %v1508, %v1927
      %v2062 = vadd.f32 %v1509, %v1930
      %v2063 = vadd.f32 %v1510, %v1933
      %v2064 = vadd.f32 %v1511, %v1935
      %v2065 = vadd.f32 %v1512, %v1937
      %v2066 = vld [vmem:[#allocation2] sm:$0xfc]
      %v2067 = vld [vmem:[#allocation2 + $0x8] sm:$0xfc]
      %v2068 = vld [vmem:[#allocation2 + $0x20] sm:$0x3]
      %v2069 = vld [vmem:[#allocation2 + $0x28] sm:$0x3]
      %v2070 = vld [vmem:[#allocation2 + $0x30] sm:$0xfc]
      %v2071 = vld [vmem:[#allocation2 + $0x38] sm:$0xfc]
      %v2072 = vld [vmem:[#allocation2 + $0x50] sm:$0x3]
      %v2073 = vld [vmem:[#allocation2 + $0x58] sm:$0x3]
      %v2074 = vld [vmem:[#allocation2 + $0x60] sm:$0xfc]
      %v2075 = vld [vmem:[#allocation2 + $0x68] sm:$0xfc]
      %v2076 = vld [vmem:[#allocation2 + $0x80] sm:$0x3]
      %v2077 = vld [vmem:[#allocation2 + $0x88] sm:$0x3]
      %v2078 = vld [vmem:[#allocation2 + $0x90] sm:$0xfc]
      %v2079 = vld [vmem:[#allocation2 + $0x98] sm:$0xfc]
      %v2080 = vld [vmem:[#allocation2 + $0xb0] sm:$0x3]
      %v2081 = vld [vmem:[#allocation2 + $0xb8] sm:$0x3]
      %v2082 = vld [vmem:[#allocation2 + $0xc0] sm:$0xfc]
      %v2083 = vld [vmem:[#allocation2 + $0xc8] sm:$0xfc]
      %v2084 = vld [vmem:[#allocation2 + $0xe0] sm:$0x3]
      %v2085 = vld [vmem:[#allocation2 + $0xe8] sm:$0x3]
      %v2086 = vld [vmem:[#allocation2 + $0xf0] sm:$0xfc]
      %v2087 = vld [vmem:[#allocation2 + $0xf8] sm:$0xfc]
      %v2088 = vld [vmem:[#allocation2 + $0x110] sm:$0x3]
      %v2089 = vld [vmem:[#allocation2 + $0x118] sm:$0x3]
      %v2090 = vld [vmem:[#allocation2 + $0x120] sm:$0xfc]
      %v2091 = vld [vmem:[#allocation2 + $0x128] sm:$0xfc]
      %v2092 = vld [vmem:[#allocation2 + $0x140] sm:$0x3]
      %v2093 = vld [vmem:[#allocation2 + $0x148] sm:$0x3]
      %v2094 = vld [vmem:[#allocation2 + $0x150] sm:$0xfc]
      %v2095 = vld [vmem:[#allocation2 + $0x158] sm:$0xfc]
      %v2096 = vld [vmem:[#allocation2 + $0x170] sm:$0x3]
      %v2097 = vld [vmem:[#allocation2 + $0x178] sm:$0x3]
      %v2098 = vld [vmem:[#allocation2 + $0x180] sm:$0xfc]
      %v2099 = vld [vmem:[#allocation2 + $0x188] sm:$0xfc]
      %v2100 = vld [vmem:[#allocation2 + $0x1a0] sm:$0x3]
      %v2101 = vld [vmem:[#allocation2 + $0x1a8] sm:$0x3]
      %v2102 = vld [vmem:[#allocation2 + $0x1b0] sm:$0xfc]
      %v2103 = vld [vmem:[#allocation2 + $0x1b8] sm:$0xfc]
      %v2104 = vld [vmem:[#allocation2 + $0x1d0] sm:$0x3]
      %v2105 = vld [vmem:[#allocation2 + $0x1d8] sm:$0x3]
      %v2106 = vld [vmem:[#allocation2 + $0x1e0] sm:$0xfc]
      %v2107 = vld [vmem:[#allocation2 + $0x1e8] sm:$0xfc]
      %v2108 = vld [vmem:[#allocation2 + $0x200] sm:$0x3]
      %v2109 = vld [vmem:[#allocation2 + $0x208] sm:$0x3]
      %v2110 = vld [vmem:[#allocation2 + $0x210] sm:$0xfc]
      %v2111 = vld [vmem:[#allocation2 + $0x218] sm:$0xfc]
      %v2112 = vld [vmem:[#allocation2 + $0x230] sm:$0x3]
      %v2113 = vld [vmem:[#allocation2 + $0x238] sm:$0x3]
      %v2114 = vld [vmem:[#allocation2 + $0x240] sm:$0xfc]
      %v2115 = vld [vmem:[#allocation2 + $0x248] sm:$0xfc]
      %v2116 = vld [vmem:[#allocation2 + $0x260] sm:$0x3]
      %v2117 = vld [vmem:[#allocation2 + $0x268] sm:$0x3]
      %v2118 = vld [vmem:[#allocation2 + $0x270] sm:$0xfc]
      %v2119 = vld [vmem:[#allocation2 + $0x278] sm:$0xfc]
      %v2120 = vld [vmem:[#allocation2 + $0x290] sm:$0x3]
      %v2121 = vld [vmem:[#allocation2 + $0x298] sm:$0x3]
      %v2122 = vld [vmem:[#allocation2 + $0x2a0] sm:$0xfc]
      %v2123 = vld [vmem:[#allocation2 + $0x2a8] sm:$0xfc]
      %v2124 = vld [vmem:[#allocation2 + $0x2c0] sm:$0x3]
      %v2125 = vld [vmem:[#allocation2 + $0x2c8] sm:$0x3]
      %v2126 = vld [vmem:[#allocation2 + $0x2d0] sm:$0xfc]
      %v2127 = vld [vmem:[#allocation2 + $0x2d8] sm:$0xfc]
      %v2128 = vld [vmem:[#allocation2 + $0x2f0] sm:$0x3]
      %v2129 = vld [vmem:[#allocation2 + $0x2f8] sm:$0x3]
      %v2130 = vlaneseq
      %v2131 = vshrl.u32 %v2130, 7
      %v2132 = vsub.s32 2, %v2131
      %v2133 = vrot.slane %v1309, %v2132
      %v2134 = vlaneseq
      %v2135 = vshrl.u32 %v2134, 7
      %v2136 = vsub.s32 2, %v2135
      %v2137 = vrot.slane %v1310, %v2136
      %v2138 = vmul.f32 %v2066, %v2133
      %v2139 = vmul.f32 %v2067, %v2137
      %v2140 = vmul.f32 %v1315, %v2133
      %v2141 = vmul.f32 %v1316, %v2137
      %v2142 = vmul.f32 %v2068, %v2133
      %v2143 = vmul.f32 %v2069, %v2137
      %v2144 = vmul.f32 %v2070, %v2133
      %v2145 = vmul.f32 %v2071, %v2137
      %v2146 = vmul.f32 %v1319, %v2133
      %v2147 = vmul.f32 %v1320, %v2137
      %v2148 = vmul.f32 %v2072, %v2133
      %v2149 = vmul.f32 %v2073, %v2137
      %v2150 = vmul.f32 %v2074, %v2133
      %v2151 = vmul.f32 %v2075, %v2137
      %v2152 = vmul.f32 %v1323, %v2133
      %v2153 = vmul.f32 %v1324, %v2137
      %v2154 = vmul.f32 %v2076, %v2133
      %v2155 = vmul.f32 %v2077, %v2137
      %v2156 = vmul.f32 %v2078, %v2133
      %v2157 = vmul.f32 %v2079, %v2137
      %v2158 = vmul.f32 %v1327, %v2133
      %v2159 = vmul.f32 %v1328, %v2137
      %v2160 = vmul.f32 %v2080, %v2133
      %v2161 = vmul.f32 %v2081, %v2137
      %v2162 = vmul.f32 %v2082, %v2133
      %v2163 = vmul.f32 %v2083, %v2137
      %v2164 = vmul.f32 %v1331, %v2133
      %v2165 = vmul.f32 %v1332, %v2137
      %v2166 = vmul.f32 %v2084, %v2133
      %v2167 = vmul.f32 %v2085, %v2137
      %v2168 = vmul.f32 %v2086, %v2133
      %v2169 = vmul.f32 %v2087, %v2137
      %v2170 = vmul.f32 %v1335, %v2133
      %v2171 = vmul.f32 %v1336, %v2137
      %v2172 = vmul.f32 %v2088, %v2133
      %v2173 = vmul.f32 %v2089, %v2137
      %v2174 = vmul.f32 %v2090, %v2133
      %v2175 = vmul.f32 %v2091, %v2137
      %v2176 = vmul.f32 %v1339, %v2133
      %v2177 = vmul.f32 %v1340, %v2137
      %v2178 = vmul.f32 %v2092, %v2133
      %v2179 = vmul.f32 %v2093, %v2137
      %v2180 = vmul.f32 %v2094, %v2133
      %v2181 = vmul.f32 %v2095, %v2137
      %v2182 = vmul.f32 %v1343, %v2133
      %v2183 = vmul.f32 %v1344, %v2137
      %v2184 = vmul.f32 %v2096, %v2133
      %v2185 = vmul.f32 %v2097, %v2137
      %v2186 = vmul.f32 %v2098, %v2133
      %v2187 = vmul.f32 %v2099, %v2137
      %v2188 = vmul.f32 %v1347, %v2133
      %v2189 = vmul.f32 %v1348, %v2137
      %v2190 = vmul.f32 %v2100, %v2133
      %v2191 = vmul.f32 %v2101, %v2137
      %v2192 = vmul.f32 %v2102, %v2133
      %v2193 = vmul.f32 %v2103, %v2137
      %v2194 = vmul.f32 %v1351, %v2133
      %v2195 = vmul.f32 %v1352, %v2137
      %v2196 = vmul.f32 %v2104, %v2133
      %v2197 = vmul.f32 %v2105, %v2137
      %v2198 = vmul.f32 %v2106, %v2133
      %v2199 = vmul.f32 %v2107, %v2137
      %v2200 = vmul.f32 %v1355, %v2133
      %v2201 = vmul.f32 %v1356, %v2137
      %v2202 = vmul.f32 %v2108, %v2133
      %v2203 = vmul.f32 %v2109, %v2137
      %v2204 = vmul.f32 %v2110, %v2133
      %v2205 = vmul.f32 %v2111, %v2137
      %v2206 = vmul.f32 %v1359, %v2133
      %v2207 = vmul.f32 %v1360, %v2137
      %v2208 = vmul.f32 %v2112, %v2133
      %v2209 = vmul.f32 %v2113, %v2137
      %v2210 = vmul.f32 %v2114, %v2133
      %v2211 = vmul.f32 %v2115, %v2137
      %v2212 = vmul.f32 %v1363, %v2133
      %v2213 = vmul.f32 %v1364, %v2137
      %v2214 = vmul.f32 %v2116, %v2133
      %v2215 = vmul.f32 %v2117, %v2137
      %v2216 = vmul.f32 %v2118, %v2133
      %v2217 = vmul.f32 %v2119, %v2137
      %v2218 = vmul.f32 %v1367, %v2133
      %v2219 = vmul.f32 %v1368, %v2137
      %v2220 = vmul.f32 %v2120, %v2133
      %v2221 = vmul.f32 %v2121, %v2137
      %v2222 = vmul.f32 %v2122, %v2133
      %v2223 = vmul.f32 %v2123, %v2137
      %v2224 = vmul.f32 %v1371, %v2133
      %v2225 = vmul.f32 %v1372, %v2137
      %v2226 = vmul.f32 %v2124, %v2133
      %v2227 = vmul.f32 %v2125, %v2137
      %v2228 = vmul.f32 %v2126, %v2133
      %v2229 = vmul.f32 %v2127, %v2137
      %v2230 = vmul.f32 %v1375, %v2133
      %v2231 = vmul.f32 %v1376, %v2137
      %v2232 = vmul.f32 %v2128, %v2133
      %v2233 = vmul.f32 %v2129, %v2137
      %vm2330 = vcmask 1045504
      %v2331 = vrot.slane %v2138, 2
      %v2332 = vrot.slane %v2140, 2
      %v2333 = vsel %vm2330, %v2331, %v2332
      %v2334 = vrot.slane %v2139, 2
      %v2335 = vrot.slane %v2141, 2
      %v2336 = vsel %vm2330, %v2334, %v2335
      %v2337 = vrot.slane %v2142, 2
      %v2338 = vsel %vm2330, %v2332, %v2337
      %v2339 = vrot.slane %v2143, 2
      %v2340 = vsel %vm2330, %v2335, %v2339
      %v2341 = vrot.slane %v2144, 2
      %v2342 = vrot.slane %v2146, 2
      %v2343 = vsel %vm2330, %v2341, %v2342
      %v2344 = vrot.slane %v2145, 2
      %v2345 = vrot.slane %v2147, 2
      %v2346 = vsel %vm2330, %v2344, %v2345
      %v2347 = vrot.slane %v2148, 2
      %v2348 = vsel %vm2330, %v2342, %v2347
      %v2349 = vrot.slane %v2149, 2
      %v2350 = vsel %vm2330, %v2345, %v2349
      %v2351 = vrot.slane %v2150, 2
      %v2352 = vrot.slane %v2152, 2
      %v2353 = vsel %vm2330, %v2351, %v2352
      %v2354 = vrot.slane %v2151, 2
      %v2355 = vrot.slane %v2153, 2
      %v2356 = vsel %vm2330, %v2354, %v2355
      %v2357 = vrot.slane %v2154, 2
      %v2358 = vsel %vm2330, %v2352, %v2357
      %v2359 = vrot.slane %v2155, 2
      %v2360 = vsel %vm2330, %v2355, %v2359
      %v2361 = vrot.slane %v2156, 2
      %v2362 = vrot.slane %v2158, 2
      %v2363 = vsel %vm2330, %v2361, %v2362
      %v2364 = vrot.slane %v2157, 2
      %v2365 = vrot.slane %v2159, 2
      %v2366 = vsel %vm2330, %v2364, %v2365
      %v2367 = vrot.slane %v2160, 2
      %v2368 = vsel %vm2330, %v2362, %v2367
      %v2369 = vrot.slane %v2161, 2
      %v2370 = vsel %vm2330, %v2365, %v2369
      %v2371 = vrot.slane %v2162, 2
      %v2372 = vrot.slane %v2164, 2
      %v2373 = vsel %vm2330, %v2371, %v2372
      %v2374 = vrot.slane %v2163, 2
      %v2375 = vrot.slane %v2165, 2
      %v2376 = vsel %vm2330, %v2374, %v2375
      %v2377 = vrot.slane %v2166, 2
      %v2378 = vsel %vm2330, %v2372, %v2377
      %v2379 = vrot.slane %v2167, 2
      %v2380 = vsel %vm2330, %v2375, %v2379
      %v2381 = vrot.slane %v2168, 2
      %v2382 = vrot.slane %v2170, 2
      %v2383 = vsel %vm2330, %v2381, %v2382
      %v2384 = vrot.slane %v2169, 2
      %v2385 = vrot.slane %v2171, 2
      %v2386 = vsel %vm2330, %v2384, %v2385
      %v2387 = vrot.slane %v2172, 2
      %v2388 = vsel %vm2330, %v2382, %v2387
      %v2389 = vrot.slane %v2173, 2
      %v2390 = vsel %vm2330, %v2385, %v2389
      %v2391 = vrot.slane %v2174, 2
      %v2392 = vrot.slane %v2176, 2
      %v2393 = vsel %vm2330, %v2391, %v2392
      %v2394 = vrot.slane %v2175, 2
      %v2395 = vrot.slane %v2177, 2
      %v2396 = vsel %vm2330, %v2394, %v2395
      %v2397 = vrot.slane %v2178, 2
      %v2398 = vsel %vm2330, %v2392, %v2397
      %v2399 = vrot.slane %v2179, 2
      %v2400 = vsel %vm2330, %v2395, %v2399
      %v2401 = vrot.slane %v2180, 2
      %v2402 = vrot.slane %v2182, 2
      %v2403 = vsel %vm2330, %v2401, %v2402
      %v2404 = vrot.slane %v2181, 2
      %v2405 = vrot.slane %v2183, 2
      %v2406 = vsel %vm2330, %v2404, %v2405
      %v2407 = vrot.slane %v2184, 2
      %v2408 = vsel %vm2330, %v2402, %v2407
      %v2409 = vrot.slane %v2185, 2
      %v2410 = vsel %vm2330, %v2405, %v2409
      %v2411 = vrot.slane %v2186, 2
      %v2412 = vrot.slane %v2188, 2
      %v2413 = vsel %vm2330, %v2411, %v2412
      %v2414 = vrot.slane %v2187, 2
      %v2415 = vrot.slane %v2189, 2
      %v2416 = vsel %vm2330, %v2414, %v2415
      %v2417 = vrot.slane %v2190, 2
      %v2418 = vsel %vm2330, %v2412, %v2417
      %v2419 = vrot.slane %v2191, 2
      %v2420 = vsel %vm2330, %v2415, %v2419
      %v2421 = vrot.slane %v2192, 2
      %v2422 = vrot.slane %v2194, 2
      %v2423 = vsel %vm2330, %v2421, %v2422
      %v2424 = vrot.slane %v2193, 2
      %v2425 = vrot.slane %v2195, 2
      %v2426 = vsel %vm2330, %v2424, %v2425
      %v2427 = vrot.slane %v2196, 2
      %v2428 = vsel %vm2330, %v2422, %v2427
      %v2429 = vrot.slane %v2197, 2
      %v2430 = vsel %vm2330, %v2425, %v2429
      %v2431 = vrot.slane %v2198, 2
      %v2432 = vrot.slane %v2200, 2
      %v2433 = vsel %vm2330, %v2431, %v2432
      %v2434 = vrot.slane %v2199, 2
      %v2435 = vrot.slane %v2201, 2
      %v2436 = vsel %vm2330, %v2434, %v2435
      %v2437 = vrot.slane %v2202, 2
      %v2438 = vsel %vm2330, %v2432, %v2437
      %v2439 = vrot.slane %v2203, 2
      %v2440 = vsel %vm2330, %v2435, %v2439
      %v2441 = vrot.slane %v2204, 2
      %v2442 = vrot.slane %v2206, 2
      %v2443 = vsel %vm2330, %v2441, %v2442
      %v2444 = vrot.slane %v2205, 2
      %v2445 = vrot.slane %v2207, 2
      %v2446 = vsel %vm2330, %v2444, %v2445
      %v2447 = vrot.slane %v2208, 2
      %v2448 = vsel %vm2330, %v2442, %v2447
      %v2449 = vrot.slane %v2209, 2
      %v2450 = vsel %vm2330, %v2445, %v2449
      %v2451 = vrot.slane %v2210, 2
      %v2452 = vrot.slane %v2212, 2
      %v2453 = vsel %vm2330, %v2451, %v2452
      %v2454 = vrot.slane %v2211, 2
      %v2455 = vrot.slane %v2213, 2
      %v2456 = vsel %vm2330, %v2454, %v2455
      %v2457 = vrot.slane %v2214, 2
      %v2458 = vsel %vm2330, %v2452, %v2457
      %v2459 = vrot.slane %v2215, 2
      %v2460 = vsel %vm2330, %v2455, %v2459
      %v2461 = vrot.slane %v2216, 2
      %v2462 = vrot.slane %v2218, 2
      %v2463 = vsel %vm2330, %v2461, %v2462
      %v2464 = vrot.slane %v2217, 2
      %v2465 = vrot.slane %v2219, 2
      %v2466 = vsel %vm2330, %v2464, %v2465
      %v2467 = vrot.slane %v2220, 2
      %v2468 = vsel %vm2330, %v2462, %v2467
      %v2469 = vrot.slane %v2221, 2
      %v2470 = vsel %vm2330, %v2465, %v2469
      %v2471 = vrot.slane %v2222, 2
      %v2472 = vrot.slane %v2224, 2
      %v2473 = vsel %vm2330, %v2471, %v2472
      %v2474 = vrot.slane %v2223, 2
      %v2475 = vrot.slane %v2225, 2
      %v2476 = vsel %vm2330, %v2474, %v2475
      %v2477 = vrot.slane %v2226, 2
      %v2478 = vsel %vm2330, %v2472, %v2477
      %v2479 = vrot.slane %v2227, 2
      %v2480 = vsel %vm2330, %v2475, %v2479
      %v2481 = vrot.slane %v2228, 2
      %v2482 = vrot.slane %v2230, 2
      %v2483 = vsel %vm2330, %v2481, %v2482
      %v2484 = vrot.slane %v2229, 2
      %v2485 = vrot.slane %v2231, 2
      %v2486 = vsel %vm2330, %v2484, %v2485
      %v2487 = vrot.slane %v2232, 2
      %v2488 = vsel %vm2330, %v2482, %v2487
      %v2489 = vrot.slane %v2233, 2
      %v2490 = vsel %vm2330, %v2485, %v2489
      %v2555 = vadd.f32 %v2002, %v2333
      %v2556 = vadd.f32 %v2003, %v2336
      %v2557 = vadd.f32 %v2004, %v2338
      %v2558 = vadd.f32 %v2005, %v2340
      %v2559 = vadd.f32 %v2006, %v2343
      %v2560 = vadd.f32 %v2007, %v2346
      %v2561 = vadd.f32 %v2008, %v2348
      %v2562 = vadd.f32 %v2009, %v2350
      %v2563 = vadd.f32 %v2010, %v2353
      %v2564 = vadd.f32 %v2011, %v2356
      %v2565 = vadd.f32 %v2012, %v2358
      %v2566 = vadd.f32 %v2013, %v2360
      %v2567 = vadd.f32 %v2014, %v2363
      %v2568 = vadd.f32 %v2015, %v2366
      %v2569 = vadd.f32 %v2016, %v2368
      %v2570 = vadd.f32 %v2017, %v2370
      %v2571 = vadd.f32 %v2018, %v2373
      %v2572 = vadd.f32 %v2019, %v2376
      %v2573 = vadd.f32 %v2020, %v2378
      %v2574 = vadd.f32 %v2021, %v2380
      %v2575 = vadd.f32 %v2022, %v2383
      %v2576 = vadd.f32 %v2023, %v2386
      %v2577 = vadd.f32 %v2024, %v2388
      %v2578 = vadd.f32 %v2025, %v2390
      %v2579 = vadd.f32 %v2026, %v2393
      %v2580 = vadd.f32 %v2027, %v2396
      %v2581 = vadd.f32 %v2028, %v2398
      %v2582 = vadd.f32 %v2029, %v2400
      %v2583 = vadd.f32 %v2030, %v2403
      %v2584 = vadd.f32 %v2031, %v2406
      %v2585 = vadd.f32 %v2032, %v2408
      %v2586 = vadd.f32 %v2033, %v2410
      %v2587 = vadd.f32 %v2034, %v2413
      %v2588 = vadd.f32 %v2035, %v2416
      %v2589 = vadd.f32 %v2036, %v2418
      %v2590 = vadd.f32 %v2037, %v2420
      %v2591 = vadd.f32 %v2038, %v2423
      %v2592 = vadd.f32 %v2039, %v2426
      %v2593 = vadd.f32 %v2040, %v2428
      %v2594 = vadd.f32 %v2041, %v2430
      %v2595 = vadd.f32 %v2042, %v2433
      %v2596 = vadd.f32 %v2043, %v2436
      %v2597 = vadd.f32 %v2044, %v2438
      %v2598 = vadd.f32 %v2045, %v2440
      %v2599 = vadd.f32 %v2046, %v2443
      %v2600 = vadd.f32 %v2047, %v2446
      %v2601 = vadd.f32 %v2048, %v2448
      %v2602 = vadd.f32 %v2049, %v2450
      %v2603 = vadd.f32 %v2050, %v2453
      %v2604 = vadd.f32 %v2051, %v2456
      %v2605 = vadd.f32 %v2052, %v2458
      %v2606 = vadd.f32 %v2053, %v2460
      %v2607 = vadd.f32 %v2054, %v2463
      %v2608 = vadd.f32 %v2055, %v2466
      %v2609 = vadd.f32 %v2056, %v2468
      %v2610 = vadd.f32 %v2057, %v2470
      %v2611 = vadd.f32 %v2058, %v2473
      %v2612 = vadd.f32 %v2059, %v2476
      %v2613 = vadd.f32 %v2060, %v2478
      %v2614 = vadd.f32 %v2061, %v2480
      %v2615 = vadd.f32 %v2062, %v2483
      %v2616 = vadd.f32 %v2063, %v2486
      %v2617 = vadd.f32 %v2064, %v2488
      %v2618 = vadd.f32 %v2065, %v2490
      %v2619 = vld [vmem:[%s1210] sm:$0xff]
      %v2620 = vld [vmem:[%s1210 + $0x8] sm:$0xff]
      %v2621 = vld [vmem:[%s1210 + $0x10] sm:$0xff]
      %v2622 = vld [vmem:[%s1210 + $0x18] sm:$0xff]
      %v2623 = vld [vmem:[%s1210 + $0x30] sm:$0xff]
      %v2624 = vld [vmem:[%s1210 + $0x38] sm:$0xff]
      %v2625 = vld [vmem:[%s1210 + $0x40] sm:$0xff]
      %v2626 = vld [vmem:[%s1210 + $0x48] sm:$0xff]
      %v2627 = vld [vmem:[%s1210 + $0x60] sm:$0xff]
      %v2628 = vld [vmem:[%s1210 + $0x68] sm:$0xff]
      %v2629 = vld [vmem:[%s1210 + $0x70] sm:$0xff]
      %v2630 = vld [vmem:[%s1210 + $0x78] sm:$0xff]
      %v2631 = vld [vmem:[%s1210 + $0x90] sm:$0xff]
      %v2632 = vld [vmem:[%s1210 + $0x98] sm:$0xff]
      %v2633 = vld [vmem:[%s1210 + $0xa0] sm:$0xff]
      %v2634 = vld [vmem:[%s1210 + $0xa8] sm:$0xff]
      %v2635 = vld [vmem:[%s1210 + $0xc0] sm:$0xff]
      %v2636 = vld [vmem:[%s1210 + $0xc8] sm:$0xff]
      %v2637 = vld [vmem:[%s1210 + $0xd0] sm:$0xff]
      %v2638 = vld [vmem:[%s1210 + $0xd8] sm:$0xff]
      %v2639 = vld [vmem:[%s1210 + $0xf0] sm:$0xff]
      %v2640 = vld [vmem:[%s1210 + $0xf8] sm:$0xff]
      %v2641 = vld [vmem:[%s1210 + $0x100] sm:$0xff]
      %v2642 = vld [vmem:[%s1210 + $0x108] sm:$0xff]
      %v2643 = vld [vmem:[%s1210 + $0x120] sm:$0xff]
      %v2644 = vld [vmem:[%s1210 + $0x128] sm:$0xff]
      %v2645 = vld [vmem:[%s1210 + $0x130] sm:$0xff]
      %v2646 = vld [vmem:[%s1210 + $0x138] sm:$0xff]
      %v2647 = vld [vmem:[%s1210 + $0x150] sm:$0xff]
      %v2648 = vld [vmem:[%s1210 + $0x158] sm:$0xff]
      %v2649 = vld [vmem:[%s1210 + $0x160] sm:$0xff]
      %v2650 = vld [vmem:[%s1210 + $0x168] sm:$0xff]
      %v2651 = vld [vmem:[%s1210 + $0x180] sm:$0xff]
      %v2652 = vld [vmem:[%s1210 + $0x188] sm:$0xff]
      %v2653 = vld [vmem:[%s1210 + $0x190] sm:$0xff]
      %v2654 = vld [vmem:[%s1210 + $0x198] sm:$0xff]
      %v2655 = vld [vmem:[%s1210 + $0x1b0] sm:$0xff]
      %v2656 = vld [vmem:[%s1210 + $0x1b8] sm:$0xff]
      %v2657 = vld [vmem:[%s1210 + $0x1c0] sm:$0xff]
      %v2658 = vld [vmem:[%s1210 + $0x1c8] sm:$0xff]
      %v2659 = vld [vmem:[%s1210 + $0x1e0] sm:$0xff]
      %v2660 = vld [vmem:[%s1210 + $0x1e8] sm:$0xff]
      %v2661 = vld [vmem:[%s1210 + $0x1f0] sm:$0xff]
      %v2662 = vld [vmem:[%s1210 + $0x1f8] sm:$0xff]
      %v2663 = vld [vmem:[%s1210 + $0x210] sm:$0xff]
      %v2664 = vld [vmem:[%s1210 + $0x218] sm:$0xff]
      %v2665 = vld [vmem:[%s1210 + $0x220] sm:$0xff]
      %v2666 = vld [vmem:[%s1210 + $0x228] sm:$0xff]
      %v2667 = vld [vmem:[%s1210 + $0x240] sm:$0xff]
      %v2668 = vld [vmem:[%s1210 + $0x248] sm:$0xff]
      %v2669 = vld [vmem:[%s1210 + $0x250] sm:$0xff]
      %v2670 = vld [vmem:[%s1210 + $0x258] sm:$0xff]
      %v2671 = vld [vmem:[%s1210 + $0x270] sm:$0xff]
      %v2672 = vld [vmem:[%s1210 + $0x278] sm:$0xff]
      %v2673 = vld [vmem:[%s1210 + $0x280] sm:$0xff]
      %v2674 = vld [vmem:[%s1210 + $0x288] sm:$0xff]
      %v2675 = vld [vmem:[%s1210 + $0x2a0] sm:$0xff]
      %v2676 = vld [vmem:[%s1210 + $0x2a8] sm:$0xff]
      %v2677 = vld [vmem:[%s1210 + $0x2b0] sm:$0xff]
      %v2678 = vld [vmem:[%s1210 + $0x2b8] sm:$0xff]
      %v2679 = vld [vmem:[%s1210 + $0x2d0] sm:$0xff]
      %v2680 = vld [vmem:[%s1210 + $0x2d8] sm:$0xff]
      %v2681 = vld [vmem:[%s1210 + $0x2e0] sm:$0xff]
      %v2682 = vld [vmem:[%s1210 + $0x2e8] sm:$0xff]
      %v2683 = vlaneseq
      %v2684 = vshrl.u32 %v2683, 7
      %v2685 = vsub.s32 3, %v2684
      %v2686 = vrot.slane %v1309, %v2685
      %v2687 = vlaneseq
      %v2688 = vshrl.u32 %v2687, 7
      %v2689 = vsub.s32 3, %v2688
      %v2690 = vrot.slane %v1310, %v2689
      %v2691 = vmul.f32 %v2619, %v2686
      %v2692 = vmul.f32 %v2620, %v2690
      %v2693 = vmul.f32 %v2621, %v2686
      %v2694 = vmul.f32 %v2622, %v2690
      %v2695 = vmul.f32 %v2623, %v2686
      %v2696 = vmul.f32 %v2624, %v2690
      %v2697 = vmul.f32 %v2625, %v2686
      %v2698 = vmul.f32 %v2626, %v2690
      %v2699 = vmul.f32 %v2627, %v2686
      %v2700 = vmul.f32 %v2628, %v2690
      %v2701 = vmul.f32 %v2629, %v2686
      %v2702 = vmul.f32 %v2630, %v2690
      %v2703 = vmul.f32 %v2631, %v2686
      %v2704 = vmul.f32 %v2632, %v2690
      %v2705 = vmul.f32 %v2633, %v2686
      %v2706 = vmul.f32 %v2634, %v2690
      %v2707 = vmul.f32 %v2635, %v2686
      %v2708 = vmul.f32 %v2636, %v2690
      %v2709 = vmul.f32 %v2637, %v2686
      %v2710 = vmul.f32 %v2638, %v2690
      %v2711 = vmul.f32 %v2639, %v2686
      %v2712 = vmul.f32 %v2640, %v2690
      %v2713 = vmul.f32 %v2641, %v2686
      %v2714 = vmul.f32 %v2642, %v2690
      %v2715 = vmul.f32 %v2643, %v2686
      %v2716 = vmul.f32 %v2644, %v2690
      %v2717 = vmul.f32 %v2645, %v2686
      %v2718 = vmul.f32 %v2646, %v2690
      %v2719 = vmul.f32 %v2647, %v2686
      %v2720 = vmul.f32 %v2648, %v2690
      %v2721 = vmul.f32 %v2649, %v2686
      %v2722 = vmul.f32 %v2650, %v2690
      %v2723 = vmul.f32 %v2651, %v2686
      %v2724 = vmul.f32 %v2652, %v2690
      %v2725 = vmul.f32 %v2653, %v2686
      %v2726 = vmul.f32 %v2654, %v2690
      %v2727 = vmul.f32 %v2655, %v2686
      %v2728 = vmul.f32 %v2656, %v2690
      %v2729 = vmul.f32 %v2657, %v2686
      %v2730 = vmul.f32 %v2658, %v2690
      %v2731 = vmul.f32 %v2659, %v2686
      %v2732 = vmul.f32 %v2660, %v2690
      %v2733 = vmul.f32 %v2661, %v2686
      %v2734 = vmul.f32 %v2662, %v2690
      %v2735 = vmul.f32 %v2663, %v2686
      %v2736 = vmul.f32 %v2664, %v2690
      %v2737 = vmul.f32 %v2665, %v2686
      %v2738 = vmul.f32 %v2666, %v2690
      %v2739 = vmul.f32 %v2667, %v2686
      %v2740 = vmul.f32 %v2668, %v2690
      %v2741 = vmul.f32 %v2669, %v2686
      %v2742 = vmul.f32 %v2670, %v2690
      %v2743 = vmul.f32 %v2671, %v2686
      %v2744 = vmul.f32 %v2672, %v2690
      %v2745 = vmul.f32 %v2673, %v2686
      %v2746 = vmul.f32 %v2674, %v2690
      %v2747 = vmul.f32 %v2675, %v2686
      %v2748 = vmul.f32 %v2676, %v2690
      %v2749 = vmul.f32 %v2677, %v2686
      %v2750 = vmul.f32 %v2678, %v2690
      %v2751 = vmul.f32 %v2679, %v2686
      %v2752 = vmul.f32 %v2680, %v2690
      %v2753 = vmul.f32 %v2681, %v2686
      %v2754 = vmul.f32 %v2682, %v2690
      %v2755 = vadd.f32 %v2555, %v2691
      %v2756 = vadd.f32 %v2556, %v2692
      %v2757 = vadd.f32 %v2557, %v2693
      %v2758 = vadd.f32 %v2558, %v2694
      %v2759 = vadd.f32 %v2559, %v2695
      %v2760 = vadd.f32 %v2560, %v2696
      %v2761 = vadd.f32 %v2561, %v2697
      %v2762 = vadd.f32 %v2562, %v2698
      %v2763 = vadd.f32 %v2563, %v2699
      %v2764 = vadd.f32 %v2564, %v2700
      %v2765 = vadd.f32 %v2565, %v2701
      %v2766 = vadd.f32 %v2566, %v2702
      %v2767 = vadd.f32 %v2567, %v2703
      %v2768 = vadd.f32 %v2568, %v2704
      %v2769 = vadd.f32 %v2569, %v2705
      %v2770 = vadd.f32 %v2570, %v2706
      %v2771 = vadd.f32 %v2571, %v2707
      %v2772 = vadd.f32 %v2572, %v2708
      %v2773 = vadd.f32 %v2573, %v2709
      %v2774 = vadd.f32 %v2574, %v2710
      %v2775 = vadd.f32 %v2575, %v2711
      %v2776 = vadd.f32 %v2576, %v2712
      %v2777 = vadd.f32 %v2577, %v2713
      %v2778 = vadd.f32 %v2578, %v2714
      %v2779 = vadd.f32 %v2579, %v2715
      %v2780 = vadd.f32 %v2580, %v2716
      %v2781 = vadd.f32 %v2581, %v2717
      %v2782 = vadd.f32 %v2582, %v2718
      %v2783 = vadd.f32 %v2583, %v2719
      %v2784 = vadd.f32 %v2584, %v2720
      %v2785 = vadd.f32 %v2585, %v2721
      %v2786 = vadd.f32 %v2586, %v2722
      %v2787 = vadd.f32 %v2587, %v2723
      %v2788 = vadd.f32 %v2588, %v2724
      %v2789 = vadd.f32 %v2589, %v2725
      %v2790 = vadd.f32 %v2590, %v2726
      %v2791 = vadd.f32 %v2591, %v2727
      %v2792 = vadd.f32 %v2592, %v2728
      %v2793 = vadd.f32 %v2593, %v2729
      %v2794 = vadd.f32 %v2594, %v2730
      %v2795 = vadd.f32 %v2595, %v2731
      %v2796 = vadd.f32 %v2596, %v2732
      %v2797 = vadd.f32 %v2597, %v2733
      %v2798 = vadd.f32 %v2598, %v2734
      %v2799 = vadd.f32 %v2599, %v2735
      %v2800 = vadd.f32 %v2600, %v2736
      %v2801 = vadd.f32 %v2601, %v2737
      %v2802 = vadd.f32 %v2602, %v2738
      %v2803 = vadd.f32 %v2603, %v2739
      %v2804 = vadd.f32 %v2604, %v2740
      %v2805 = vadd.f32 %v2605, %v2741
      %v2806 = vadd.f32 %v2606, %v2742
      %v2807 = vadd.f32 %v2607, %v2743
      %v2808 = vadd.f32 %v2608, %v2744
      %v2809 = vadd.f32 %v2609, %v2745
      %v2810 = vadd.f32 %v2610, %v2746
      %v2811 = vadd.f32 %v2611, %v2747
      %v2812 = vadd.f32 %v2612, %v2748
      %v2813 = vadd.f32 %v2613, %v2749
      %v2814 = vadd.f32 %v2614, %v2750
      %v2815 = vadd.f32 %v2615, %v2751
      %v2816 = vadd.f32 %v2616, %v2752
      %v2817 = vadd.f32 %v2617, %v2753
      %v2818 = vadd.f32 %v2618, %v2754
      %v2819 = vld [vmem:[%s1210] sm:$0xfe]
      %v2820 = vld [vmem:[%s1210 + $0x8] sm:$0xfe]
      %v2821 = vld [vmem:[%s1210 + $0x20] sm:$0x1]
      %v2822 = vld [vmem:[%s1210 + $0x28] sm:$0x1]
      %v2823 = vld [vmem:[%s1210 + $0x30] sm:$0xfe]
      %v2824 = vld [vmem:[%s1210 + $0x38] sm:$0xfe]
      %v2825 = vld [vmem:[%s1210 + $0x50] sm:$0x1]
      %v2826 = vld [vmem:[%s1210 + $0x58] sm:$0x1]
      %v2827 = vld [vmem:[%s1210 + $0x60] sm:$0xfe]
      %v2828 = vld [vmem:[%s1210 + $0x68] sm:$0xfe]
      %v2829 = vld [vmem:[%s1210 + $0x80] sm:$0x1]
      %v2830 = vld [vmem:[%s1210 + $0x88] sm:$0x1]
      %v2831 = vld [vmem:[%s1210 + $0x90] sm:$0xfe]
      %v2832 = vld [vmem:[%s1210 + $0x98] sm:$0xfe]
      %v2833 = vld [vmem:[%s1210 + $0xb0] sm:$0x1]
      %v2834 = vld [vmem:[%s1210 + $0xb8] sm:$0x1]
      %v2835 = vld [vmem:[%s1210 + $0xc0] sm:$0xfe]
      %v2836 = vld [vmem:[%s1210 + $0xc8] sm:$0xfe]
      %v2837 = vld [vmem:[%s1210 + $0xe0] sm:$0x1]
      %v2838 = vld [vmem:[%s1210 + $0xe8] sm:$0x1]
      %v2839 = vld [vmem:[%s1210 + $0xf0] sm:$0xfe]
      %v2840 = vld [vmem:[%s1210 + $0xf8] sm:$0xfe]
      %v2841 = vld [vmem:[%s1210 + $0x110] sm:$0x1]
      %v2842 = vld [vmem:[%s1210 + $0x118] sm:$0x1]
      %v2843 = vld [vmem:[%s1210 + $0x120] sm:$0xfe]
      %v2844 = vld [vmem:[%s1210 + $0x128] sm:$0xfe]
      %v2845 = vld [vmem:[%s1210 + $0x140] sm:$0x1]
      %v2846 = vld [vmem:[%s1210 + $0x148] sm:$0x1]
      %v2847 = vld [vmem:[%s1210 + $0x150] sm:$0xfe]
      %v2848 = vld [vmem:[%s1210 + $0x158] sm:$0xfe]
      %v2849 = vld [vmem:[%s1210 + $0x170] sm:$0x1]
      %v2850 = vld [vmem:[%s1210 + $0x178] sm:$0x1]
      %v2851 = vld [vmem:[%s1210 + $0x180] sm:$0xfe]
      %v2852 = vld [vmem:[%s1210 + $0x188] sm:$0xfe]
      %v2853 = vld [vmem:[%s1210 + $0x1a0] sm:$0x1]
      %v2854 = vld [vmem:[%s1210 + $0x1a8] sm:$0x1]
      %v2855 = vld [vmem:[%s1210 + $0x1b0] sm:$0xfe]
      %v2856 = vld [vmem:[%s1210 + $0x1b8] sm:$0xfe]
      %v2857 = vld [vmem:[%s1210 + $0x1d0] sm:$0x1]
      %v2858 = vld [vmem:[%s1210 + $0x1d8] sm:$0x1]
      %v2859 = vld [vmem:[%s1210 + $0x1e0] sm:$0xfe]
      %v2860 = vld [vmem:[%s1210 + $0x1e8] sm:$0xfe]
      %v2861 = vld [vmem:[%s1210 + $0x200] sm:$0x1]
      %v2862 = vld [vmem:[%s1210 + $0x208] sm:$0x1]
      %v2863 = vld [vmem:[%s1210 + $0x210] sm:$0xfe]
      %v2864 = vld [vmem:[%s1210 + $0x218] sm:$0xfe]
      %v2865 = vld [vmem:[%s1210 + $0x230] sm:$0x1]
      %v2866 = vld [vmem:[%s1210 + $0x238] sm:$0x1]
      %v2867 = vld [vmem:[%s1210 + $0x240] sm:$0xfe]
      %v2868 = vld [vmem:[%s1210 + $0x248] sm:$0xfe]
      %v2869 = vld [vmem:[%s1210 + $0x260] sm:$0x1]
      %v2870 = vld [vmem:[%s1210 + $0x268] sm:$0x1]
      %v2871 = vld [vmem:[%s1210 + $0x270] sm:$0xfe]
      %v2872 = vld [vmem:[%s1210 + $0x278] sm:$0xfe]
      %v2873 = vld [vmem:[%s1210 + $0x290] sm:$0x1]
      %v2874 = vld [vmem:[%s1210 + $0x298] sm:$0x1]
      %v2875 = vld [vmem:[%s1210 + $0x2a0] sm:$0xfe]
      %v2876 = vld [vmem:[%s1210 + $0x2a8] sm:$0xfe]
      %v2877 = vld [vmem:[%s1210 + $0x2c0] sm:$0x1]
      %v2878 = vld [vmem:[%s1210 + $0x2c8] sm:$0x1]
      %v2879 = vld [vmem:[%s1210 + $0x2d0] sm:$0xfe]
      %v2880 = vld [vmem:[%s1210 + $0x2d8] sm:$0xfe]
      %v2881 = vld [vmem:[%s1210 + $0x2f0] sm:$0x1]
      %v2882 = vld [vmem:[%s1210 + $0x2f8] sm:$0x1]
      %v2883 = vlaneseq
      %v2884 = vshrl.u32 %v2883, 7
      %v2885 = vsub.s32 4, %v2884
      %v2886 = vrot.slane %v1309, %v2885
      %v2887 = vlaneseq
      %v2888 = vshrl.u32 %v2887, 7
      %v2889 = vsub.s32 4, %v2888
      %v2890 = vrot.slane %v1310, %v2889
      %v2891 = vmul.f32 %v2819, %v2886
      %v2892 = vmul.f32 %v2820, %v2890
      %v2893 = vmul.f32 %v2621, %v2886
      %v2894 = vmul.f32 %v2622, %v2890
      %v2895 = vmul.f32 %v2821, %v2886
      %v2896 = vmul.f32 %v2822, %v2890
      %v2897 = vmul.f32 %v2823, %v2886
      %v2898 = vmul.f32 %v2824, %v2890
      %v2899 = vmul.f32 %v2625, %v2886
      %v2900 = vmul.f32 %v2626, %v2890
      %v2901 = vmul.f32 %v2825, %v2886
      %v2902 = vmul.f32 %v2826, %v2890
      %v2903 = vmul.f32 %v2827, %v2886
      %v2904 = vmul.f32 %v2828, %v2890
      %v2905 = vmul.f32 %v2629, %v2886
      %v2906 = vmul.f32 %v2630, %v2890
      %v2907 = vmul.f32 %v2829, %v2886
      %v2908 = vmul.f32 %v2830, %v2890
      %v2909 = vmul.f32 %v2831, %v2886
      %v2910 = vmul.f32 %v2832, %v2890
      %v2911 = vmul.f32 %v2633, %v2886
      %v2912 = vmul.f32 %v2634, %v2890
      %v2913 = vmul.f32 %v2833, %v2886
      %v2914 = vmul.f32 %v2834, %v2890
      %v2915 = vmul.f32 %v2835, %v2886
      %v2916 = vmul.f32 %v2836, %v2890
      %v2917 = vmul.f32 %v2637, %v2886
      %v2918 = vmul.f32 %v2638, %v2890
      %v2919 = vmul.f32 %v2837, %v2886
      %v2920 = vmul.f32 %v2838, %v2890
      %v2921 = vmul.f32 %v2839, %v2886
      %v2922 = vmul.f32 %v2840, %v2890
      %v2923 = vmul.f32 %v2641, %v2886
      %v2924 = vmul.f32 %v2642, %v2890
      %v2925 = vmul.f32 %v2841, %v2886
      %v2926 = vmul.f32 %v2842, %v2890
      %v2927 = vmul.f32 %v2843, %v2886
      %v2928 = vmul.f32 %v2844, %v2890
      %v2929 = vmul.f32 %v2645, %v2886
      %v2930 = vmul.f32 %v2646, %v2890
      %v2931 = vmul.f32 %v2845, %v2886
      %v2932 = vmul.f32 %v2846, %v2890
      %v2933 = vmul.f32 %v2847, %v2886
      %v2934 = vmul.f32 %v2848, %v2890
      %v2935 = vmul.f32 %v2649, %v2886
      %v2936 = vmul.f32 %v2650, %v2890
      %v2937 = vmul.f32 %v2849, %v2886
      %v2938 = vmul.f32 %v2850, %v2890
      %v2939 = vmul.f32 %v2851, %v2886
      %v2940 = vmul.f32 %v2852, %v2890
      %v2941 = vmul.f32 %v2653, %v2886
      %v2942 = vmul.f32 %v2654, %v2890
      %v2943 = vmul.f32 %v2853, %v2886
      %v2944 = vmul.f32 %v2854, %v2890
      %v2945 = vmul.f32 %v2855, %v2886
      %v2946 = vmul.f32 %v2856, %v2890
      %v2947 = vmul.f32 %v2657, %v2886
      %v2948 = vmul.f32 %v2658, %v2890
      %v2949 = vmul.f32 %v2857, %v2886
      %v2950 = vmul.f32 %v2858, %v2890
      %v2951 = vmul.f32 %v2859, %v2886
      %v2952 = vmul.f32 %v2860, %v2890
      %v2953 = vmul.f32 %v2661, %v2886
      %v2954 = vmul.f32 %v2662, %v2890
      %v2955 = vmul.f32 %v2861, %v2886
      %v2956 = vmul.f32 %v2862, %v2890
      %v2957 = vmul.f32 %v2863, %v2886
      %v2958 = vmul.f32 %v2864, %v2890
      %v2959 = vmul.f32 %v2665, %v2886
      %v2960 = vmul.f32 %v2666, %v2890
      %v2961 = vmul.f32 %v2865, %v2886
      %v2962 = vmul.f32 %v2866, %v2890
      %v2963 = vmul.f32 %v2867, %v2886
      %v2964 = vmul.f32 %v2868, %v2890
      %v2965 = vmul.f32 %v2669, %v2886
      %v2966 = vmul.f32 %v2670, %v2890
      %v2967 = vmul.f32 %v2869, %v2886
      %v2968 = vmul.f32 %v2870, %v2890
      %v2969 = vmul.f32 %v2871, %v2886
      %v2970 = vmul.f32 %v2872, %v2890
      %v2971 = vmul.f32 %v2673, %v2886
      %v2972 = vmul.f32 %v2674, %v2890
      %v2973 = vmul.f32 %v2873, %v2886
      %v2974 = vmul.f32 %v2874, %v2890
      %v2975 = vmul.f32 %v2875, %v2886
      %v2976 = vmul.f32 %v2876, %v2890
      %v2977 = vmul.f32 %v2677, %v2886
      %v2978 = vmul.f32 %v2678, %v2890
      %v2979 = vmul.f32 %v2877, %v2886
      %v2980 = vmul.f32 %v2878, %v2890
      %v2981 = vmul.f32 %v2879, %v2886
      %v2982 = vmul.f32 %v2880, %v2890
      %v2983 = vmul.f32 %v2681, %v2886
      %v2984 = vmul.f32 %v2682, %v2890
      %v2985 = vmul.f32 %v2881, %v2886
      %v2986 = vmul.f32 %v2882, %v2890
      %v3083 = vrot.slane %v2891, 1
      %v3084 = vrot.slane %v2893, 1
      %v3085 = vsel %vm1777, %v3083, %v3084
      %v3086 = vrot.slane %v2892, 1
      %v3087 = vrot.slane %v2894, 1
      %v3088 = vsel %vm1777, %v3086, %v3087
      %v3089 = vrot.slane %v2895, 1
      %v3090 = vsel %vm1777, %v3084, %v3089
      %v3091 = vrot.slane %v2896, 1
      %v3092 = vsel %vm1777, %v3087, %v3091
      %v3093 = vrot.slane %v2897, 1
      %v3094 = vrot.slane %v2899, 1
      %v3095 = vsel %vm1777, %v3093, %v3094
      %v3096 = vrot.slane %v2898, 1
      %v3097 = vrot.slane %v2900, 1
      %v3098 = vsel %vm1777, %v3096, %v3097
      %v3099 = vrot.slane %v2901, 1
      %v3100 = vsel %vm1777, %v3094, %v3099
      %v3101 = vrot.slane %v2902, 1
      %v3102 = vsel %vm1777, %v3097, %v3101
      %v3103 = vrot.slane %v2903, 1
      %v3104 = vrot.slane %v2905, 1
      %v3105 = vsel %vm1777, %v3103, %v3104
      %v3106 = vrot.slane %v2904, 1
      %v3107 = vrot.slane %v2906, 1
      %v3108 = vsel %vm1777, %v3106, %v3107
      %v3109 = vrot.slane %v2907, 1
      %v3110 = vsel %vm1777, %v3104, %v3109
      %v3111 = vrot.slane %v2908, 1
      %v3112 = vsel %vm1777, %v3107, %v3111
      %v3113 = vrot.slane %v2909, 1
      %v3114 = vrot.slane %v2911, 1
      %v3115 = vsel %vm1777, %v3113, %v3114
      %v3116 = vrot.slane %v2910, 1
      %v3117 = vrot.slane %v2912, 1
      %v3118 = vsel %vm1777, %v3116, %v3117
      %v3119 = vrot.slane %v2913, 1
      %v3120 = vsel %vm1777, %v3114, %v3119
      %v3121 = vrot.slane %v2914, 1
      %v3122 = vsel %vm1777, %v3117, %v3121
      %v3123 = vrot.slane %v2915, 1
      %v3124 = vrot.slane %v2917, 1
      %v3125 = vsel %vm1777, %v3123, %v3124
      %v3126 = vrot.slane %v2916, 1
      %v3127 = vrot.slane %v2918, 1
      %v3128 = vsel %vm1777, %v3126, %v3127
      %v3129 = vrot.slane %v2919, 1
      %v3130 = vsel %vm1777, %v3124, %v3129
      %v3131 = vrot.slane %v2920, 1
      %v3132 = vsel %vm1777, %v3127, %v3131
      %v3133 = vrot.slane %v2921, 1
      %v3134 = vrot.slane %v2923, 1
      %v3135 = vsel %vm1777, %v3133, %v3134
      %v3136 = vrot.slane %v2922, 1
      %v3137 = vrot.slane %v2924, 1
      %v3138 = vsel %vm1777, %v3136, %v3137
      %v3139 = vrot.slane %v2925, 1
      %v3140 = vsel %vm1777, %v3134, %v3139
      %v3141 = vrot.slane %v2926, 1
      %v3142 = vsel %vm1777, %v3137, %v3141
      %v3143 = vrot.slane %v2927, 1
      %v3144 = vrot.slane %v2929, 1
      %v3145 = vsel %vm1777, %v3143, %v3144
      %v3146 = vrot.slane %v2928, 1
      %v3147 = vrot.slane %v2930, 1
      %v3148 = vsel %vm1777, %v3146, %v3147
      %v3149 = vrot.slane %v2931, 1
      %v3150 = vsel %vm1777, %v3144, %v3149
      %v3151 = vrot.slane %v2932, 1
      %v3152 = vsel %vm1777, %v3147, %v3151
      %v3153 = vrot.slane %v2933, 1
      %v3154 = vrot.slane %v2935, 1
      %v3155 = vsel %vm1777, %v3153, %v3154
      %v3156 = vrot.slane %v2934, 1
      %v3157 = vrot.slane %v2936, 1
      %v3158 = vsel %vm1777, %v3156, %v3157
      %v3159 = vrot.slane %v2937, 1
      %v3160 = vsel %vm1777, %v3154, %v3159
      %v3161 = vrot.slane %v2938, 1
      %v3162 = vsel %vm1777, %v3157, %v3161
      %v3163 = vrot.slane %v2939, 1
      %v3164 = vrot.slane %v2941, 1
      %v3165 = vsel %vm1777, %v3163, %v3164
      %v3166 = vrot.slane %v2940, 1
      %v3167 = vrot.slane %v2942, 1
      %v3168 = vsel %vm1777, %v3166, %v3167
      %v3169 = vrot.slane %v2943, 1
      %v3170 = vsel %vm1777, %v3164, %v3169
      %v3171 = vrot.slane %v2944, 1
      %v3172 = vsel %vm1777, %v3167, %v3171
      %v3173 = vrot.slane %v2945, 1
      %v3174 = vrot.slane %v2947, 1
      %v3175 = vsel %vm1777, %v3173, %v3174
      %v3176 = vrot.slane %v2946, 1
      %v3177 = vrot.slane %v2948, 1
      %v3178 = vsel %vm1777, %v3176, %v3177
      %v3179 = vrot.slane %v2949, 1
      %v3180 = vsel %vm1777, %v3174, %v3179
      %v3181 = vrot.slane %v2950, 1
      %v3182 = vsel %vm1777, %v3177, %v3181
      %v3183 = vrot.slane %v2951, 1
      %v3184 = vrot.slane %v2953, 1
      %v3185 = vsel %vm1777, %v3183, %v3184
      %v3186 = vrot.slane %v2952, 1
      %v3187 = vrot.slane %v2954, 1
      %v3188 = vsel %vm1777, %v3186, %v3187
      %v3189 = vrot.slane %v2955, 1
      %v3190 = vsel %vm1777, %v3184, %v3189
      %v3191 = vrot.slane %v2956, 1
      %v3192 = vsel %vm1777, %v3187, %v3191
      %v3193 = vrot.slane %v2957, 1
      %v3194 = vrot.slane %v2959, 1
      %v3195 = vsel %vm1777, %v3193, %v3194
      %v3196 = vrot.slane %v2958, 1
      %v3197 = vrot.slane %v2960, 1
      %v3198 = vsel %vm1777, %v3196, %v3197
      %v3199 = vrot.slane %v2961, 1
      %v3200 = vsel %vm1777, %v3194, %v3199
      %v3201 = vrot.slane %v2962, 1
      %v3202 = vsel %vm1777, %v3197, %v3201
      %v3203 = vrot.slane %v2963, 1
      %v3204 = vrot.slane %v2965, 1
      %v3205 = vsel %vm1777, %v3203, %v3204
      %v3206 = vrot.slane %v2964, 1
      %v3207 = vrot.slane %v2966, 1
      %v3208 = vsel %vm1777, %v3206, %v3207
      %v3209 = vrot.slane %v2967, 1
      %v3210 = vsel %vm1777, %v3204, %v3209
      %v3211 = vrot.slane %v2968, 1
      %v3212 = vsel %vm1777, %v3207, %v3211
      %v3213 = vrot.slane %v2969, 1
      %v3214 = vrot.slane %v2971, 1
      %v3215 = vsel %vm1777, %v3213, %v3214
      %v3216 = vrot.slane %v2970, 1
      %v3217 = vrot.slane %v2972, 1
      %v3218 = vsel %vm1777, %v3216, %v3217
      %v3219 = vrot.slane %v2973, 1
      %v3220 = vsel %vm1777, %v3214, %v3219
      %v3221 = vrot.slane %v2974, 1
      %v3222 = vsel %vm1777, %v3217, %v3221
      %v3223 = vrot.slane %v2975, 1
      %v3224 = vrot.slane %v2977, 1
      %v3225 = vsel %vm1777, %v3223, %v3224
      %v3226 = vrot.slane %v2976, 1
      %v3227 = vrot.slane %v2978, 1
      %v3228 = vsel %vm1777, %v3226, %v3227
      %v3229 = vrot.slane %v2979, 1
      %v3230 = vsel %vm1777, %v3224, %v3229
      %v3231 = vrot.slane %v2980, 1
      %v3232 = vsel %vm1777, %v3227, %v3231
      %v3233 = vrot.slane %v2981, 1
      %v3234 = vrot.slane %v2983, 1
      %v3235 = vsel %vm1777, %v3233, %v3234
      %v3236 = vrot.slane %v2982, 1
      %v3237 = vrot.slane %v2984, 1
      %v3238 = vsel %vm1777, %v3236, %v3237
      %v3239 = vrot.slane %v2985, 1
      %v3240 = vsel %vm1777, %v3234, %v3239
      %v3241 = vrot.slane %v2986, 1
      %v3242 = vsel %vm1777, %v3237, %v3241
      %v3307 = vadd.f32 %v2755, %v3085
      %v3308 = vadd.f32 %v2756, %v3088
      %v3309 = vadd.f32 %v2757, %v3090
      %v3310 = vadd.f32 %v2758, %v3092
      %v3311 = vadd.f32 %v2759, %v3095
      %v3312 = vadd.f32 %v2760, %v3098
      %v3313 = vadd.f32 %v2761, %v3100
      %v3314 = vadd.f32 %v2762, %v3102
      %v3315 = vadd.f32 %v2763, %v3105
      %v3316 = vadd.f32 %v2764, %v3108
      %v3317 = vadd.f32 %v2765, %v3110
      %v3318 = vadd.f32 %v2766, %v3112
      %v3319 = vadd.f32 %v2767, %v3115
      %v3320 = vadd.f32 %v2768, %v3118
      %v3321 = vadd.f32 %v2769, %v3120
      %v3322 = vadd.f32 %v2770, %v3122
      %v3323 = vadd.f32 %v2771, %v3125
      %v3324 = vadd.f32 %v2772, %v3128
      %v3325 = vadd.f32 %v2773, %v3130
      %v3326 = vadd.f32 %v2774, %v3132
      %v3327 = vadd.f32 %v2775, %v3135
      %v3328 = vadd.f32 %v2776, %v3138
      %v3329 = vadd.f32 %v2777, %v3140
      %v3330 = vadd.f32 %v2778, %v3142
      %v3331 = vadd.f32 %v2779, %v3145
      %v3332 = vadd.f32 %v2780, %v3148
      %v3333 = vadd.f32 %v2781, %v3150
      %v3334 = vadd.f32 %v2782, %v3152
      %v3335 = vadd.f32 %v2783, %v3155
      %v3336 = vadd.f32 %v2784, %v3158
      %v3337 = vadd.f32 %v2785, %v3160
      %v3338 = vadd.f32 %v2786, %v3162
      %v3339 = vadd.f32 %v2787, %v3165
      %v3340 = vadd.f32 %v2788, %v3168
      %v3341 = vadd.f32 %v2789, %v3170
      %v3342 = vadd.f32 %v2790, %v3172
      %v3343 = vadd.f32 %v2791, %v3175
      %v3344 = vadd.f32 %v2792, %v3178
      %v3345 = vadd.f32 %v2793, %v3180
      %v3346 = vadd.f32 %v2794, %v3182
      %v3347 = vadd.f32 %v2795, %v3185
      %v3348 = vadd.f32 %v2796, %v3188
      %v3349 = vadd.f32 %v2797, %v3190
      %v3350 = vadd.f32 %v2798, %v3192
      %v3351 = vadd.f32 %v2799, %v3195
      %v3352 = vadd.f32 %v2800, %v3198
      %v3353 = vadd.f32 %v2801, %v3200
      %v3354 = vadd.f32 %v2802, %v3202
      %v3355 = vadd.f32 %v2803, %v3205
      %v3356 = vadd.f32 %v2804, %v3208
      %v3357 = vadd.f32 %v2805, %v3210
      %v3358 = vadd.f32 %v2806, %v3212
      %v3359 = vadd.f32 %v2807, %v3215
      %v3360 = vadd.f32 %v2808, %v3218
      %v3361 = vadd.f32 %v2809, %v3220
      %v3362 = vadd.f32 %v2810, %v3222
      %v3363 = vadd.f32 %v2811, %v3225
      %v3364 = vadd.f32 %v2812, %v3228
      %v3365 = vadd.f32 %v2813, %v3230
      %v3366 = vadd.f32 %v2814, %v3232
      %v3367 = vadd.f32 %v2815, %v3235
      %v3368 = vadd.f32 %v2816, %v3238
      %v3369 = vadd.f32 %v2817, %v3240
      %v3370 = vadd.f32 %v2818, %v3242
      %v3371 = vld [vmem:[%s1210] sm:$0xfc]
      %v3372 = vld [vmem:[%s1210 + $0x8] sm:$0xfc]
      %v3373 = vld [vmem:[%s1210 + $0x20] sm:$0x3]
      %v3374 = vld [vmem:[%s1210 + $0x28] sm:$0x3]
      %v3375 = vld [vmem:[%s1210 + $0x30] sm:$0xfc]
      %v3376 = vld [vmem:[%s1210 + $0x38] sm:$0xfc]
      %v3377 = vld [vmem:[%s1210 + $0x50] sm:$0x3]
      %v3378 = vld [vmem:[%s1210 + $0x58] sm:$0x3]
      %v3379 = vld [vmem:[%s1210 + $0x60] sm:$0xfc]
      %v3380 = vld [vmem:[%s1210 + $0x68] sm:$0xfc]
      %v3381 = vld [vmem:[%s1210 + $0x80] sm:$0x3]
      %v3382 = vld [vmem:[%s1210 + $0x88] sm:$0x3]
      %v3383 = vld [vmem:[%s1210 + $0x90] sm:$0xfc]
      %v3384 = vld [vmem:[%s1210 + $0x98] sm:$0xfc]
      %v3385 = vld [vmem:[%s1210 + $0xb0] sm:$0x3]
      %v3386 = vld [vmem:[%s1210 + $0xb8] sm:$0x3]
      %v3387 = vld [vmem:[%s1210 + $0xc0] sm:$0xfc]
      %v3388 = vld [vmem:[%s1210 + $0xc8] sm:$0xfc]
      %v3389 = vld [vmem:[%s1210 + $0xe0] sm:$0x3]
      %v3390 = vld [vmem:[%s1210 + $0xe8] sm:$0x3]
      %v3391 = vld [vmem:[%s1210 + $0xf0] sm:$0xfc]
      %v3392 = vld [vmem:[%s1210 + $0xf8] sm:$0xfc]
      %v3393 = vld [vmem:[%s1210 + $0x110] sm:$0x3]
      %v3394 = vld [vmem:[%s1210 + $0x118] sm:$0x3]
      %v3395 = vld [vmem:[%s1210 + $0x120] sm:$0xfc]
      %v3396 = vld [vmem:[%s1210 + $0x128] sm:$0xfc]
      %v3397 = vld [vmem:[%s1210 + $0x140] sm:$0x3]
      %v3398 = vld [vmem:[%s1210 + $0x148] sm:$0x3]
      %v3399 = vld [vmem:[%s1210 + $0x150] sm:$0xfc]
      %v3400 = vld [vmem:[%s1210 + $0x158] sm:$0xfc]
      %v3401 = vld [vmem:[%s1210 + $0x170] sm:$0x3]
      %v3402 = vld [vmem:[%s1210 + $0x178] sm:$0x3]
      %v3403 = vld [vmem:[%s1210 + $0x180] sm:$0xfc]
      %v3404 = vld [vmem:[%s1210 + $0x188] sm:$0xfc]
      %v3405 = vld [vmem:[%s1210 + $0x1a0] sm:$0x3]
      %v3406 = vld [vmem:[%s1210 + $0x1a8] sm:$0x3]
      %v3407 = vld [vmem:[%s1210 + $0x1b0] sm:$0xfc]
      %v3408 = vld [vmem:[%s1210 + $0x1b8] sm:$0xfc]
      %v3409 = vld [vmem:[%s1210 + $0x1d0] sm:$0x3]
      %v3410 = vld [vmem:[%s1210 + $0x1d8] sm:$0x3]
      %v3411 = vld [vmem:[%s1210 + $0x1e0] sm:$0xfc]
      %v3412 = vld [vmem:[%s1210 + $0x1e8] sm:$0xfc]
      %v3413 = vld [vmem:[%s1210 + $0x200] sm:$0x3]
      %v3414 = vld [vmem:[%s1210 + $0x208] sm:$0x3]
      %v3415 = vld [vmem:[%s1210 + $0x210] sm:$0xfc]
      %v3416 = vld [vmem:[%s1210 + $0x218] sm:$0xfc]
      %v3417 = vld [vmem:[%s1210 + $0x230] sm:$0x3]
      %v3418 = vld [vmem:[%s1210 + $0x238] sm:$0x3]
      %v3419 = vld [vmem:[%s1210 + $0x240] sm:$0xfc]
      %v3420 = vld [vmem:[%s1210 + $0x248] sm:$0xfc]
      %v3421 = vld [vmem:[%s1210 + $0x260] sm:$0x3]
      %v3422 = vld [vmem:[%s1210 + $0x268] sm:$0x3]
      %v3423 = vld [vmem:[%s1210 + $0x270] sm:$0xfc]
      %v3424 = vld [vmem:[%s1210 + $0x278] sm:$0xfc]
      %v3425 = vld [vmem:[%s1210 + $0x290] sm:$0x3]
      %v3426 = vld [vmem:[%s1210 + $0x298] sm:$0x3]
      %v3427 = vld [vmem:[%s1210 + $0x2a0] sm:$0xfc]
      %v3428 = vld [vmem:[%s1210 + $0x2a8] sm:$0xfc]
      %v3429 = vld [vmem:[%s1210 + $0x2c0] sm:$0x3]
      %v3430 = vld [vmem:[%s1210 + $0x2c8] sm:$0x3]
      %v3431 = vld [vmem:[%s1210 + $0x2d0] sm:$0xfc]
      %v3432 = vld [vmem:[%s1210 + $0x2d8] sm:$0xfc]
      %v3433 = vld [vmem:[%s1210 + $0x2f0] sm:$0x3]
      %v3434 = vld [vmem:[%s1210 + $0x2f8] sm:$0x3]
      %v3435 = vlaneseq
      %v3436 = vshrl.u32 %v3435, 7
      %v3437 = vsub.s32 5, %v3436
      %v3438 = vrot.slane %v1309, %v3437
      %v3439 = vlaneseq
      %v3440 = vshrl.u32 %v3439, 7
      %v3441 = vsub.s32 5, %v3440
      %v3442 = vrot.slane %v1310, %v3441
      %v3443 = vmul.f32 %v3371, %v3438
      %v3444 = vmul.f32 %v3372, %v3442
      %v3445 = vmul.f32 %v2621, %v3438
      %v3446 = vmul.f32 %v2622, %v3442
      %v3447 = vmul.f32 %v3373, %v3438
      %v3448 = vmul.f32 %v3374, %v3442
      %v3449 = vmul.f32 %v3375, %v3438
      %v3450 = vmul.f32 %v3376, %v3442
      %v3451 = vmul.f32 %v2625, %v3438
      %v3452 = vmul.f32 %v2626, %v3442
      %v3453 = vmul.f32 %v3377, %v3438
      %v3454 = vmul.f32 %v3378, %v3442
      %v3455 = vmul.f32 %v3379, %v3438
      %v3456 = vmul.f32 %v3380, %v3442
      %v3457 = vmul.f32 %v2629, %v3438
      %v3458 = vmul.f32 %v2630, %v3442
      %v3459 = vmul.f32 %v3381, %v3438
      %v3460 = vmul.f32 %v3382, %v3442
      %v3461 = vmul.f32 %v3383, %v3438
      %v3462 = vmul.f32 %v3384, %v3442
      %v3463 = vmul.f32 %v2633, %v3438
      %v3464 = vmul.f32 %v2634, %v3442
      %v3465 = vmul.f32 %v3385, %v3438
      %v3466 = vmul.f32 %v3386, %v3442
      %v3467 = vmul.f32 %v3387, %v3438
      %v3468 = vmul.f32 %v3388, %v3442
      %v3469 = vmul.f32 %v2637, %v3438
      %v3470 = vmul.f32 %v2638, %v3442
      %v3471 = vmul.f32 %v3389, %v3438
      %v3472 = vmul.f32 %v3390, %v3442
      %v3473 = vmul.f32 %v3391, %v3438
      %v3474 = vmul.f32 %v3392, %v3442
      %v3475 = vmul.f32 %v2641, %v3438
      %v3476 = vmul.f32 %v2642, %v3442
      %v3477 = vmul.f32 %v3393, %v3438
      %v3478 = vmul.f32 %v3394, %v3442
      %v3479 = vmul.f32 %v3395, %v3438
      %v3480 = vmul.f32 %v3396, %v3442
      %v3481 = vmul.f32 %v2645, %v3438
      %v3482 = vmul.f32 %v2646, %v3442
      %v3483 = vmul.f32 %v3397, %v3438
      %v3484 = vmul.f32 %v3398, %v3442
      %v3485 = vmul.f32 %v3399, %v3438
      %v3486 = vmul.f32 %v3400, %v3442
      %v3487 = vmul.f32 %v2649, %v3438
      %v3488 = vmul.f32 %v2650, %v3442
      %v3489 = vmul.f32 %v3401, %v3438
      %v3490 = vmul.f32 %v3402, %v3442
      %v3491 = vmul.f32 %v3403, %v3438
      %v3492 = vmul.f32 %v3404, %v3442
      %v3493 = vmul.f32 %v2653, %v3438
      %v3494 = vmul.f32 %v2654, %v3442
      %v3495 = vmul.f32 %v3405, %v3438
      %v3496 = vmul.f32 %v3406, %v3442
      %v3497 = vmul.f32 %v3407, %v3438
      %v3498 = vmul.f32 %v3408, %v3442
      %v3499 = vmul.f32 %v2657, %v3438
      %v3500 = vmul.f32 %v2658, %v3442
      %v3501 = vmul.f32 %v3409, %v3438
      %v3502 = vmul.f32 %v3410, %v3442
      %v3503 = vmul.f32 %v3411, %v3438
      %v3504 = vmul.f32 %v3412, %v3442
      %v3505 = vmul.f32 %v2661, %v3438
      %v3506 = vmul.f32 %v2662, %v3442
      %v3507 = vmul.f32 %v3413, %v3438
      %v3508 = vmul.f32 %v3414, %v3442
      %v3509 = vmul.f32 %v3415, %v3438
      %v3510 = vmul.f32 %v3416, %v3442
      %v3511 = vmul.f32 %v2665, %v3438
      %v3512 = vmul.f32 %v2666, %v3442
      %v3513 = vmul.f32 %v3417, %v3438
      %v3514 = vmul.f32 %v3418, %v3442
      %v3515 = vmul.f32 %v3419, %v3438
      %v3516 = vmul.f32 %v3420, %v3442
      %v3517 = vmul.f32 %v2669, %v3438
      %v3518 = vmul.f32 %v2670, %v3442
      %v3519 = vmul.f32 %v3421, %v3438
      %v3520 = vmul.f32 %v3422, %v3442
      %v3521 = vmul.f32 %v3423, %v3438
      %v3522 = vmul.f32 %v3424, %v3442
      %v3523 = vmul.f32 %v2673, %v3438
      %v3524 = vmul.f32 %v2674, %v3442
      %v3525 = vmul.f32 %v3425, %v3438
      %v3526 = vmul.f32 %v3426, %v3442
      %v3527 = vmul.f32 %v3427, %v3438
      %v3528 = vmul.f32 %v3428, %v3442
      %v3529 = vmul.f32 %v2677, %v3438
      %v3530 = vmul.f32 %v2678, %v3442
      %v3531 = vmul.f32 %v3429, %v3438
      %v3532 = vmul.f32 %v3430, %v3442
      %v3533 = vmul.f32 %v3431, %v3438
      %v3534 = vmul.f32 %v3432, %v3442
      %v3535 = vmul.f32 %v2681, %v3438
      %v3536 = vmul.f32 %v2682, %v3442
      %v3537 = vmul.f32 %v3433, %v3438
      %v3538 = vmul.f32 %v3434, %v3442
      %v3635 = vrot.slane %v3443, 2
      %v3636 = vrot.slane %v3445, 2
      %v3637 = vsel %vm2330, %v3635, %v3636
      %v3638 = vrot.slane %v3444, 2
      %v3639 = vrot.slane %v3446, 2
      %v3640 = vsel %vm2330, %v3638, %v3639
      %v3641 = vrot.slane %v3447, 2
      %v3642 = vsel %vm2330, %v3636, %v3641
      %v3643 = vrot.slane %v3448, 2
      %v3644 = vsel %vm2330, %v3639, %v3643
      %v3645 = vrot.slane %v3449, 2
      %v3646 = vrot.slane %v3451, 2
      %v3647 = vsel %vm2330, %v3645, %v3646
      %v3648 = vrot.slane %v3450, 2
      %v3649 = vrot.slane %v3452, 2
      %v3650 = vsel %vm2330, %v3648, %v3649
      %v3651 = vrot.slane %v3453, 2
      %v3652 = vsel %vm2330, %v3646, %v3651
      %v3653 = vrot.slane %v3454, 2
      %v3654 = vsel %vm2330, %v3649, %v3653
      %v3655 = vrot.slane %v3455, 2
      %v3656 = vrot.slane %v3457, 2
      %v3657 = vsel %vm2330, %v3655, %v3656
      %v3658 = vrot.slane %v3456, 2
      %v3659 = vrot.slane %v3458, 2
      %v3660 = vsel %vm2330, %v3658, %v3659
      %v3661 = vrot.slane %v3459, 2
      %v3662 = vsel %vm2330, %v3656, %v3661
      %v3663 = vrot.slane %v3460, 2
      %v3664 = vsel %vm2330, %v3659, %v3663
      %v3665 = vrot.slane %v3461, 2
      %v3666 = vrot.slane %v3463, 2
      %v3667 = vsel %vm2330, %v3665, %v3666
      %v3668 = vrot.slane %v3462, 2
      %v3669 = vrot.slane %v3464, 2
      %v3670 = vsel %vm2330, %v3668, %v3669
      %v3671 = vrot.slane %v3465, 2
      %v3672 = vsel %vm2330, %v3666, %v3671
      %v3673 = vrot.slane %v3466, 2
      %v3674 = vsel %vm2330, %v3669, %v3673
      %v3675 = vrot.slane %v3467, 2
      %v3676 = vrot.slane %v3469, 2
      %v3677 = vsel %vm2330, %v3675, %v3676
      %v3678 = vrot.slane %v3468, 2
      %v3679 = vrot.slane %v3470, 2
      %v3680 = vsel %vm2330, %v3678, %v3679
      %v3681 = vrot.slane %v3471, 2
      %v3682 = vsel %vm2330, %v3676, %v3681
      %v3683 = vrot.slane %v3472, 2
      %v3684 = vsel %vm2330, %v3679, %v3683
      %v3685 = vrot.slane %v3473, 2
      %v3686 = vrot.slane %v3475, 2
      %v3687 = vsel %vm2330, %v3685, %v3686
      %v3688 = vrot.slane %v3474, 2
      %v3689 = vrot.slane %v3476, 2
      %v3690 = vsel %vm2330, %v3688, %v3689
      %v3691 = vrot.slane %v3477, 2
      %v3692 = vsel %vm2330, %v3686, %v3691
      %v3693 = vrot.slane %v3478, 2
      %v3694 = vsel %vm2330, %v3689, %v3693
      %v3695 = vrot.slane %v3479, 2
      %v3696 = vrot.slane %v3481, 2
      %v3697 = vsel %vm2330, %v3695, %v3696
      %v3698 = vrot.slane %v3480, 2
      %v3699 = vrot.slane %v3482, 2
      %v3700 = vsel %vm2330, %v3698, %v3699
      %v3701 = vrot.slane %v3483, 2
      %v3702 = vsel %vm2330, %v3696, %v3701
      %v3703 = vrot.slane %v3484, 2
      %v3704 = vsel %vm2330, %v3699, %v3703
      %v3705 = vrot.slane %v3485, 2
      %v3706 = vrot.slane %v3487, 2
      %v3707 = vsel %vm2330, %v3705, %v3706
      %v3708 = vrot.slane %v3486, 2
      %v3709 = vrot.slane %v3488, 2
      %v3710 = vsel %vm2330, %v3708, %v3709
      %v3711 = vrot.slane %v3489, 2
      %v3712 = vsel %vm2330, %v3706, %v3711
      %v3713 = vrot.slane %v3490, 2
      %v3714 = vsel %vm2330, %v3709, %v3713
      %v3715 = vrot.slane %v3491, 2
      %v3716 = vrot.slane %v3493, 2
      %v3717 = vsel %vm2330, %v3715, %v3716
      %v3718 = vrot.slane %v3492, 2
      %v3719 = vrot.slane %v3494, 2
      %v3720 = vsel %vm2330, %v3718, %v3719
      %v3721 = vrot.slane %v3495, 2
      %v3722 = vsel %vm2330, %v3716, %v3721
      %v3723 = vrot.slane %v3496, 2
      %v3724 = vsel %vm2330, %v3719, %v3723
      %v3725 = vrot.slane %v3497, 2
      %v3726 = vrot.slane %v3499, 2
      %v3727 = vsel %vm2330, %v3725, %v3726
      %v3728 = vrot.slane %v3498, 2
      %v3729 = vrot.slane %v3500, 2
      %v3730 = vsel %vm2330, %v3728, %v3729
      %v3731 = vrot.slane %v3501, 2
      %v3732 = vsel %vm2330, %v3726, %v3731
      %v3733 = vrot.slane %v3502, 2
      %v3734 = vsel %vm2330, %v3729, %v3733
      %v3735 = vrot.slane %v3503, 2
      %v3736 = vrot.slane %v3505, 2
      %v3737 = vsel %vm2330, %v3735, %v3736
      %v3738 = vrot.slane %v3504, 2
      %v3739 = vrot.slane %v3506, 2
      %v3740 = vsel %vm2330, %v3738, %v3739
      %v3741 = vrot.slane %v3507, 2
      %v3742 = vsel %vm2330, %v3736, %v3741
      %v3743 = vrot.slane %v3508, 2
      %v3744 = vsel %vm2330, %v3739, %v3743
      %v3745 = vrot.slane %v3509, 2
      %v3746 = vrot.slane %v3511, 2
      %v3747 = vsel %vm2330, %v3745, %v3746
      %v3748 = vrot.slane %v3510, 2
      %v3749 = vrot.slane %v3512, 2
      %v3750 = vsel %vm2330, %v3748, %v3749
      %v3751 = vrot.slane %v3513, 2
      %v3752 = vsel %vm2330, %v3746, %v3751
      %v3753 = vrot.slane %v3514, 2
      %v3754 = vsel %vm2330, %v3749, %v3753
      %v3755 = vrot.slane %v3515, 2
      %v3756 = vrot.slane %v3517, 2
      %v3757 = vsel %vm2330, %v3755, %v3756
      %v3758 = vrot.slane %v3516, 2
      %v3759 = vrot.slane %v3518, 2
      %v3760 = vsel %vm2330, %v3758, %v3759
      %v3761 = vrot.slane %v3519, 2
      %v3762 = vsel %vm2330, %v3756, %v3761
      %v3763 = vrot.slane %v3520, 2
      %v3764 = vsel %vm2330, %v3759, %v3763
      %v3765 = vrot.slane %v3521, 2
      %v3766 = vrot.slane %v3523, 2
      %v3767 = vsel %vm2330, %v3765, %v3766
      %v3768 = vrot.slane %v3522, 2
      %v3769 = vrot.slane %v3524, 2
      %v3770 = vsel %vm2330, %v3768, %v3769
      %v3771 = vrot.slane %v3525, 2
      %v3772 = vsel %vm2330, %v3766, %v3771
      %v3773 = vrot.slane %v3526, 2
      %v3774 = vsel %vm2330, %v3769, %v3773
      %v3775 = vrot.slane %v3527, 2
      %v3776 = vrot.slane %v3529, 2
      %v3777 = vsel %vm2330, %v3775, %v3776
      %v3778 = vrot.slane %v3528, 2
      %v3779 = vrot.slane %v3530, 2
      %v3780 = vsel %vm2330, %v3778, %v3779
      %v3781 = vrot.slane %v3531, 2
      %v3782 = vsel %vm2330, %v3776, %v3781
      %v3783 = vrot.slane %v3532, 2
      %v3784 = vsel %vm2330, %v3779, %v3783
      %v3785 = vrot.slane %v3533, 2
      %v3786 = vrot.slane %v3535, 2
      %v3787 = vsel %vm2330, %v3785, %v3786
      %v3788 = vrot.slane %v3534, 2
      %v3789 = vrot.slane %v3536, 2
      %v3790 = vsel %vm2330, %v3788, %v3789
      %v3791 = vrot.slane %v3537, 2
      %v3792 = vsel %vm2330, %v3786, %v3791
      %v3793 = vrot.slane %v3538, 2
      %v3794 = vsel %vm2330, %v3789, %v3793
      %v3859 = vadd.f32 %v3307, %v3637
      %v3860 = vadd.f32 %v3308, %v3640
      %v3861 = vadd.f32 %v3309, %v3642
      %v3862 = vadd.f32 %v3310, %v3644
      %v3863 = vadd.f32 %v3311, %v3647
      %v3864 = vadd.f32 %v3312, %v3650
      %v3865 = vadd.f32 %v3313, %v3652
      %v3866 = vadd.f32 %v3314, %v3654
      %v3867 = vadd.f32 %v3315, %v3657
      %v3868 = vadd.f32 %v3316, %v3660
      %v3869 = vadd.f32 %v3317, %v3662
      %v3870 = vadd.f32 %v3318, %v3664
      %v3871 = vadd.f32 %v3319, %v3667
      %v3872 = vadd.f32 %v3320, %v3670
      %v3873 = vadd.f32 %v3321, %v3672
      %v3874 = vadd.f32 %v3322, %v3674
      %v3875 = vadd.f32 %v3323, %v3677
      %v3876 = vadd.f32 %v3324, %v3680
      %v3877 = vadd.f32 %v3325, %v3682
      %v3878 = vadd.f32 %v3326, %v3684
      %v3879 = vadd.f32 %v3327, %v3687
      %v3880 = vadd.f32 %v3328, %v3690
      %v3881 = vadd.f32 %v3329, %v3692
      %v3882 = vadd.f32 %v3330, %v3694
      %v3883 = vadd.f32 %v3331, %v3697
      %v3884 = vadd.f32 %v3332, %v3700
      %v3885 = vadd.f32 %v3333, %v3702
      %v3886 = vadd.f32 %v3334, %v3704
      %v3887 = vadd.f32 %v3335, %v3707
      %v3888 = vadd.f32 %v3336, %v3710
      %v3889 = vadd.f32 %v3337, %v3712
      %v3890 = vadd.f32 %v3338, %v3714
      %v3891 = vadd.f32 %v3339, %v3717
      %v3892 = vadd.f32 %v3340, %v3720
      %v3893 = vadd.f32 %v3341, %v3722
      %v3894 = vadd.f32 %v3342, %v3724
      %v3895 = vadd.f32 %v3343, %v3727
      %v3896 = vadd.f32 %v3344, %v3730
      %v3897 = vadd.f32 %v3345, %v3732
      %v3898 = vadd.f32 %v3346, %v3734
      %v3899 = vadd.f32 %v3347, %v3737
      %v3900 = vadd.f32 %v3348, %v3740
      %v3901 = vadd.f32 %v3349, %v3742
      %v3902 = vadd.f32 %v3350, %v3744
      %v3903 = vadd.f32 %v3351, %v3747
      %v3904 = vadd.f32 %v3352, %v3750
      %v3905 = vadd.f32 %v3353, %v3752
      %v3906 = vadd.f32 %v3354, %v3754
      %v3907 = vadd.f32 %v3355, %v3757
      %v3908 = vadd.f32 %v3356, %v3760
      %v3909 = vadd.f32 %v3357, %v3762
      %v3910 = vadd.f32 %v3358, %v3764
      %v3911 = vadd.f32 %v3359, %v3767
      %v3912 = vadd.f32 %v3360, %v3770
      %v3913 = vadd.f32 %v3361, %v3772
      %v3914 = vadd.f32 %v3362, %v3774
      %v3915 = vadd.f32 %v3363, %v3777
      %v3916 = vadd.f32 %v3364, %v3780
      %v3917 = vadd.f32 %v3365, %v3782
      %v3918 = vadd.f32 %v3366, %v3784
      %v3919 = vadd.f32 %v3367, %v3787
      %v3920 = vadd.f32 %v3368, %v3790
      %v3921 = vadd.f32 %v3369, %v3792
      %v3922 = vadd.f32 %v3370, %v3794
      %s3923 = scalar_lea.vmem [#allocation2], 96
      %v3924 = vld [vmem:[%s3923] sm:$0xff]
      %v3925 = vld [vmem:[%s3923 + $0x8] sm:$0xff]
      %v3926 = vld [vmem:[%s3923 + $0x10] sm:$0xff]
      %v3927 = vld [vmem:[%s3923 + $0x18] sm:$0xff]
      %v3928 = vld [vmem:[%s3923 + $0x30] sm:$0xff]
      %v3929 = vld [vmem:[%s3923 + $0x38] sm:$0xff]
      %v3930 = vld [vmem:[%s3923 + $0x40] sm:$0xff]
      %v3931 = vld [vmem:[%s3923 + $0x48] sm:$0xff]
      %v3932 = vld [vmem:[%s3923 + $0x60] sm:$0xff]
      %v3933 = vld [vmem:[%s3923 + $0x68] sm:$0xff]
      %v3934 = vld [vmem:[%s3923 + $0x70] sm:$0xff]
      %v3935 = vld [vmem:[%s3923 + $0x78] sm:$0xff]
      %v3936 = vld [vmem:[%s3923 + $0x90] sm:$0xff]
      %v3937 = vld [vmem:[%s3923 + $0x98] sm:$0xff]
      %v3938 = vld [vmem:[%s3923 + $0xa0] sm:$0xff]
      %v3939 = vld [vmem:[%s3923 + $0xa8] sm:$0xff]
      %v3940 = vld [vmem:[%s3923 + $0xc0] sm:$0xff]
      %v3941 = vld [vmem:[%s3923 + $0xc8] sm:$0xff]
      %v3942 = vld [vmem:[%s3923 + $0xd0] sm:$0xff]
      %v3943 = vld [vmem:[%s3923 + $0xd8] sm:$0xff]
      %v3944 = vld [vmem:[%s3923 + $0xf0] sm:$0xff]
      %v3945 = vld [vmem:[%s3923 + $0xf8] sm:$0xff]
      %v3946 = vld [vmem:[%s3923 + $0x100] sm:$0xff]
      %v3947 = vld [vmem:[%s3923 + $0x108] sm:$0xff]
      %v3948 = vld [vmem:[%s3923 + $0x120] sm:$0xff]
      %v3949 = vld [vmem:[%s3923 + $0x128] sm:$0xff]
      %v3950 = vld [vmem:[%s3923 + $0x130] sm:$0xff]
      %v3951 = vld [vmem:[%s3923 + $0x138] sm:$0xff]
      %v3952 = vld [vmem:[%s3923 + $0x150] sm:$0xff]
      %v3953 = vld [vmem:[%s3923 + $0x158] sm:$0xff]
      %v3954 = vld [vmem:[%s3923 + $0x160] sm:$0xff]
      %v3955 = vld [vmem:[%s3923 + $0x168] sm:$0xff]
      %v3956 = vld [vmem:[%s3923 + $0x180] sm:$0xff]
      %v3957 = vld [vmem:[%s3923 + $0x188] sm:$0xff]
      %v3958 = vld [vmem:[%s3923 + $0x190] sm:$0xff]
      %v3959 = vld [vmem:[%s3923 + $0x198] sm:$0xff]
      %v3960 = vld [vmem:[%s3923 + $0x1b0] sm:$0xff]
      %v3961 = vld [vmem:[%s3923 + $0x1b8] sm:$0xff]
      %v3962 = vld [vmem:[%s3923 + $0x1c0] sm:$0xff]
      %v3963 = vld [vmem:[%s3923 + $0x1c8] sm:$0xff]
      %v3964 = vld [vmem:[%s3923 + $0x1e0] sm:$0xff]
      %v3965 = vld [vmem:[%s3923 + $0x1e8] sm:$0xff]
      %v3966 = vld [vmem:[%s3923 + $0x1f0] sm:$0xff]
      %v3967 = vld [vmem:[%s3923 + $0x1f8] sm:$0xff]
      %v3968 = vld [vmem:[%s3923 + $0x210] sm:$0xff]
      %v3969 = vld [vmem:[%s3923 + $0x218] sm:$0xff]
      %v3970 = vld [vmem:[%s3923 + $0x220] sm:$0xff]
      %v3971 = vld [vmem:[%s3923 + $0x228] sm:$0xff]
      %v3972 = vld [vmem:[%s3923 + $0x240] sm:$0xff]
      %v3973 = vld [vmem:[%s3923 + $0x248] sm:$0xff]
      %v3974 = vld [vmem:[%s3923 + $0x250] sm:$0xff]
      %v3975 = vld [vmem:[%s3923 + $0x258] sm:$0xff]
      %v3976 = vld [vmem:[%s3923 + $0x270] sm:$0xff]
      %v3977 = vld [vmem:[%s3923 + $0x278] sm:$0xff]
      %v3978 = vld [vmem:[%s3923 + $0x280] sm:$0xff]
      %v3979 = vld [vmem:[%s3923 + $0x288] sm:$0xff]
      %v3980 = vld [vmem:[%s3923 + $0x2a0] sm:$0xff]
      %v3981 = vld [vmem:[%s3923 + $0x2a8] sm:$0xff]
      %v3982 = vld [vmem:[%s3923 + $0x2b0] sm:$0xff]
      %v3983 = vld [vmem:[%s3923 + $0x2b8] sm:$0xff]
      %v3984 = vld [vmem:[%s3923 + $0x2d0] sm:$0xff]
      %v3985 = vld [vmem:[%s3923 + $0x2d8] sm:$0xff]
      %v3986 = vld [vmem:[%s3923 + $0x2e0] sm:$0xff]
      %v3987 = vld [vmem:[%s3923 + $0x2e8] sm:$0xff]
      %v3988 = vlaneseq
      %v3989 = vshrl.u32 %v3988, 7
      %v3990 = vsub.s32 6, %v3989
      %v3991 = vrot.slane %v1309, %v3990
      %v3992 = vlaneseq
      %v3993 = vshrl.u32 %v3992, 7
      %v3994 = vsub.s32 6, %v3993
      %v3995 = vrot.slane %v1310, %v3994
      %v3996 = vmul.f32 %v3924, %v3991
      %v3997 = vmul.f32 %v3925, %v3995
      %v3998 = vmul.f32 %v3926, %v3991
      %v3999 = vmul.f32 %v3927, %v3995
      %v4000 = vmul.f32 %v3928, %v3991
      %v4001 = vmul.f32 %v3929, %v3995
      %v4002 = vmul.f32 %v3930, %v3991
      %v4003 = vmul.f32 %v3931, %v3995
      %v4004 = vmul.f32 %v3932, %v3991
      %v4005 = vmul.f32 %v3933, %v3995
      %v4006 = vmul.f32 %v3934, %v3991
      %v4007 = vmul.f32 %v3935, %v3995
      %v4008 = vmul.f32 %v3936, %v3991
      %v4009 = vmul.f32 %v3937, %v3995
      %v4010 = vmul.f32 %v3938, %v3991
      %v4011 = vmul.f32 %v3939, %v3995
      %v4012 = vmul.f32 %v3940, %v3991
      %v4013 = vmul.f32 %v3941, %v3995
      %v4014 = vmul.f32 %v3942, %v3991
      %v4015 = vmul.f32 %v3943, %v3995
      %v4016 = vmul.f32 %v3944, %v3991
      %v4017 = vmul.f32 %v3945, %v3995
      %v4018 = vmul.f32 %v3946, %v3991
      %v4019 = vmul.f32 %v3947, %v3995
      %v4020 = vmul.f32 %v3948, %v3991
      %v4021 = vmul.f32 %v3949, %v3995
      %v4022 = vmul.f32 %v3950, %v3991
      %v4023 = vmul.f32 %v3951, %v3995
      %v4024 = vmul.f32 %v3952, %v3991
      %v4025 = vmul.f32 %v3953, %v3995
      %v4026 = vmul.f32 %v3954, %v3991
      %v4027 = vmul.f32 %v3955, %v3995
      %v4028 = vmul.f32 %v3956, %v3991
      %v4029 = vmul.f32 %v3957, %v3995
      %v4030 = vmul.f32 %v3958, %v3991
      %v4031 = vmul.f32 %v3959, %v3995
      %v4032 = vmul.f32 %v3960, %v3991
      %v4033 = vmul.f32 %v3961, %v3995
      %v4034 = vmul.f32 %v3962, %v3991
      %v4035 = vmul.f32 %v3963, %v3995
      %v4036 = vmul.f32 %v3964, %v3991
      %v4037 = vmul.f32 %v3965, %v3995
      %v4038 = vmul.f32 %v3966, %v3991
      %v4039 = vmul.f32 %v3967, %v3995
      %v4040 = vmul.f32 %v3968, %v3991
      %v4041 = vmul.f32 %v3969, %v3995
      %v4042 = vmul.f32 %v3970, %v3991
      %v4043 = vmul.f32 %v3971, %v3995
      %v4044 = vmul.f32 %v3972, %v3991
      %v4045 = vmul.f32 %v3973, %v3995
      %v4046 = vmul.f32 %v3974, %v3991
      %v4047 = vmul.f32 %v3975, %v3995
      %v4048 = vmul.f32 %v3976, %v3991
      %v4049 = vmul.f32 %v3977, %v3995
      %v4050 = vmul.f32 %v3978, %v3991
      %v4051 = vmul.f32 %v3979, %v3995
      %v4052 = vmul.f32 %v3980, %v3991
      %v4053 = vmul.f32 %v3981, %v3995
      %v4054 = vmul.f32 %v3982, %v3991
      %v4055 = vmul.f32 %v3983, %v3995
      %v4056 = vmul.f32 %v3984, %v3991
      %v4057 = vmul.f32 %v3985, %v3995
      %v4058 = vmul.f32 %v3986, %v3991
      %v4059 = vmul.f32 %v3987, %v3995
      %v4060 = vadd.f32 %v3859, %v3996
      %v4061 = vadd.f32 %v3860, %v3997
      %v4062 = vadd.f32 %v3861, %v3998
      %v4063 = vadd.f32 %v3862, %v3999
      %v4064 = vadd.f32 %v3863, %v4000
      %v4065 = vadd.f32 %v3864, %v4001
      %v4066 = vadd.f32 %v3865, %v4002
      %v4067 = vadd.f32 %v3866, %v4003
      %v4068 = vadd.f32 %v3867, %v4004
      %v4069 = vadd.f32 %v3868, %v4005
      %v4070 = vadd.f32 %v3869, %v4006
      %v4071 = vadd.f32 %v3870, %v4007
      %v4072 = vadd.f32 %v3871, %v4008
      %v4073 = vadd.f32 %v3872, %v4009
      %v4074 = vadd.f32 %v3873, %v4010
      %v4075 = vadd.f32 %v3874, %v4011
      %v4076 = vadd.f32 %v3875, %v4012
      %v4077 = vadd.f32 %v3876, %v4013
      %v4078 = vadd.f32 %v3877, %v4014
      %v4079 = vadd.f32 %v3878, %v4015
      %v4080 = vadd.f32 %v3879, %v4016
      %v4081 = vadd.f32 %v3880, %v4017
      %v4082 = vadd.f32 %v3881, %v4018
      %v4083 = vadd.f32 %v3882, %v4019
      %v4084 = vadd.f32 %v3883, %v4020
      %v4085 = vadd.f32 %v3884, %v4021
      %v4086 = vadd.f32 %v3885, %v4022
      %v4087 = vadd.f32 %v3886, %v4023
      %v4088 = vadd.f32 %v3887, %v4024
      %v4089 = vadd.f32 %v3888, %v4025
      %v4090 = vadd.f32 %v3889, %v4026
      %v4091 = vadd.f32 %v3890, %v4027
      %v4092 = vadd.f32 %v3891, %v4028
      %v4093 = vadd.f32 %v3892, %v4029
      %v4094 = vadd.f32 %v3893, %v4030
      %v4095 = vadd.f32 %v3894, %v4031
      %v4096 = vadd.f32 %v3895, %v4032
      %v4097 = vadd.f32 %v3896, %v4033
      %v4098 = vadd.f32 %v3897, %v4034
      %v4099 = vadd.f32 %v3898, %v4035
      %v4100 = vadd.f32 %v3899, %v4036
      %v4101 = vadd.f32 %v3900, %v4037
      %v4102 = vadd.f32 %v3901, %v4038
      %v4103 = vadd.f32 %v3902, %v4039
      %v4104 = vadd.f32 %v3903, %v4040
      %v4105 = vadd.f32 %v3904, %v4041
      %v4106 = vadd.f32 %v3905, %v4042
      %v4107 = vadd.f32 %v3906, %v4043
      %v4108 = vadd.f32 %v3907, %v4044
      %v4109 = vadd.f32 %v3908, %v4045
      %v4110 = vadd.f32 %v3909, %v4046
      %v4111 = vadd.f32 %v3910, %v4047
      %v4112 = vadd.f32 %v3911, %v4048
      %v4113 = vadd.f32 %v3912, %v4049
      %v4114 = vadd.f32 %v3913, %v4050
      %v4115 = vadd.f32 %v3914, %v4051
      %v4116 = vadd.f32 %v3915, %v4052
      %v4117 = vadd.f32 %v3916, %v4053
      %v4118 = vadd.f32 %v3917, %v4054
      %v4119 = vadd.f32 %v3918, %v4055
      %v4120 = vadd.f32 %v3919, %v4056
      %v4121 = vadd.f32 %v3920, %v4057
      %v4122 = vadd.f32 %v3921, %v4058
      %v4123 = vadd.f32 %v3922, %v4059
      %v4124 = vld [vmem:[%s3923] sm:$0xfe]
      %v4125 = vld [vmem:[%s3923 + $0x8] sm:$0xfe]
      %v4126 = vld [vmem:[%s3923 + $0x20] sm:$0x1]
      %v4127 = vld [vmem:[%s3923 + $0x28] sm:$0x1]
      %v4128 = vld [vmem:[%s3923 + $0x30] sm:$0xfe]
      %v4129 = vld [vmem:[%s3923 + $0x38] sm:$0xfe]
      %v4130 = vld [vmem:[%s3923 + $0x50] sm:$0x1]
      %v4131 = vld [vmem:[%s3923 + $0x58] sm:$0x1]
      %v4132 = vld [vmem:[%s3923 + $0x60] sm:$0xfe]
      %v4133 = vld [vmem:[%s3923 + $0x68] sm:$0xfe]
      %v4134 = vld [vmem:[%s3923 + $0x80] sm:$0x1]
      %v4135 = vld [vmem:[%s3923 + $0x88] sm:$0x1]
      %v4136 = vld [vmem:[%s3923 + $0x90] sm:$0xfe]
      %v4137 = vld [vmem:[%s3923 + $0x98] sm:$0xfe]
      %v4138 = vld [vmem:[%s3923 + $0xb0] sm:$0x1]
      %v4139 = vld [vmem:[%s3923 + $0xb8] sm:$0x1]
      %v4140 = vld [vmem:[%s3923 + $0xc0] sm:$0xfe]
      %v4141 = vld [vmem:[%s3923 + $0xc8] sm:$0xfe]
      %v4142 = vld [vmem:[%s3923 + $0xe0] sm:$0x1]
      %v4143 = vld [vmem:[%s3923 + $0xe8] sm:$0x1]
      %v4144 = vld [vmem:[%s3923 + $0xf0] sm:$0xfe]
      %v4145 = vld [vmem:[%s3923 + $0xf8] sm:$0xfe]
      %v4146 = vld [vmem:[%s3923 + $0x110] sm:$0x1]
      %v4147 = vld [vmem:[%s3923 + $0x118] sm:$0x1]
      %v4148 = vld [vmem:[%s3923 + $0x120] sm:$0xfe]
      %v4149 = vld [vmem:[%s3923 + $0x128] sm:$0xfe]
      %v4150 = vld [vmem:[%s3923 + $0x140] sm:$0x1]
      %v4151 = vld [vmem:[%s3923 + $0x148] sm:$0x1]
      %v4152 = vld [vmem:[%s3923 + $0x150] sm:$0xfe]
      %v4153 = vld [vmem:[%s3923 + $0x158] sm:$0xfe]
      %v4154 = vld [vmem:[%s3923 + $0x170] sm:$0x1]
      %v4155 = vld [vmem:[%s3923 + $0x178] sm:$0x1]
      %v4156 = vld [vmem:[%s3923 + $0x180] sm:$0xfe]
      %v4157 = vld [vmem:[%s3923 + $0x188] sm:$0xfe]
      %v4158 = vld [vmem:[%s3923 + $0x1a0] sm:$0x1]
      %v4159 = vld [vmem:[%s3923 + $0x1a8] sm:$0x1]
      %v4160 = vld [vmem:[%s3923 + $0x1b0] sm:$0xfe]
      %v4161 = vld [vmem:[%s3923 + $0x1b8] sm:$0xfe]
      %v4162 = vld [vmem:[%s3923 + $0x1d0] sm:$0x1]
      %v4163 = vld [vmem:[%s3923 + $0x1d8] sm:$0x1]
      %v4164 = vld [vmem:[%s3923 + $0x1e0] sm:$0xfe]
      %v4165 = vld [vmem:[%s3923 + $0x1e8] sm:$0xfe]
      %v4166 = vld [vmem:[%s3923 + $0x200] sm:$0x1]
      %v4167 = vld [vmem:[%s3923 + $0x208] sm:$0x1]
      %v4168 = vld [vmem:[%s3923 + $0x210] sm:$0xfe]
      %v4169 = vld [vmem:[%s3923 + $0x218] sm:$0xfe]
      %v4170 = vld [vmem:[%s3923 + $0x230] sm:$0x1]
      %v4171 = vld [vmem:[%s3923 + $0x238] sm:$0x1]
      %v4172 = vld [vmem:[%s3923 + $0x240] sm:$0xfe]
      %v4173 = vld [vmem:[%s3923 + $0x248] sm:$0xfe]
      %v4174 = vld [vmem:[%s3923 + $0x260] sm:$0x1]
      %v4175 = vld [vmem:[%s3923 + $0x268] sm:$0x1]
      %v4176 = vld [vmem:[%s3923 + $0x270] sm:$0xfe]
      %v4177 = vld [vmem:[%s3923 + $0x278] sm:$0xfe]
      %v4178 = vld [vmem:[%s3923 + $0x290] sm:$0x1]
      %v4179 = vld [vmem:[%s3923 + $0x298] sm:$0x1]
      %v4180 = vld [vmem:[%s3923 + $0x2a0] sm:$0xfe]
      %v4181 = vld [vmem:[%s3923 + $0x2a8] sm:$0xfe]
      %v4182 = vld [vmem:[%s3923 + $0x2c0] sm:$0x1]
      %v4183 = vld [vmem:[%s3923 + $0x2c8] sm:$0x1]
      %v4184 = vld [vmem:[%s3923 + $0x2d0] sm:$0xfe]
      %v4185 = vld [vmem:[%s3923 + $0x2d8] sm:$0xfe]
      %v4186 = vld [vmem:[%s3923 + $0x2f0] sm:$0x1]
      %v4187 = vld [vmem:[%s3923 + $0x2f8] sm:$0x1]
      %v4188 = vlaneseq
      %v4189 = vshrl.u32 %v4188, 7
      %v4190 = vsub.s32 7, %v4189
      %v4191 = vrot.slane %v1309, %v4190
      %v4192 = vlaneseq
      %v4193 = vshrl.u32 %v4192, 7
      %v4194 = vsub.s32 7, %v4193
      %v4195 = vrot.slane %v1310, %v4194
      %v4196 = vmul.f32 %v4124, %v4191
      %v4197 = vmul.f32 %v4125, %v4195
      %v4198 = vmul.f32 %v3926, %v4191
      %v4199 = vmul.f32 %v3927, %v4195
      %v4200 = vmul.f32 %v4126, %v4191
      %v4201 = vmul.f32 %v4127, %v4195
      %v4202 = vmul.f32 %v4128, %v4191
      %v4203 = vmul.f32 %v4129, %v4195
      %v4204 = vmul.f32 %v3930, %v4191
      %v4205 = vmul.f32 %v3931, %v4195
      %v4206 = vmul.f32 %v4130, %v4191
      %v4207 = vmul.f32 %v4131, %v4195
      %v4208 = vmul.f32 %v4132, %v4191
      %v4209 = vmul.f32 %v4133, %v4195
      %v4210 = vmul.f32 %v3934, %v4191
      %v4211 = vmul.f32 %v3935, %v4195
      %v4212 = vmul.f32 %v4134, %v4191
      %v4213 = vmul.f32 %v4135, %v4195
      %v4214 = vmul.f32 %v4136, %v4191
      %v4215 = vmul.f32 %v4137, %v4195
      %v4216 = vmul.f32 %v3938, %v4191
      %v4217 = vmul.f32 %v3939, %v4195
      %v4218 = vmul.f32 %v4138, %v4191
      %v4219 = vmul.f32 %v4139, %v4195
      %v4220 = vmul.f32 %v4140, %v4191
      %v4221 = vmul.f32 %v4141, %v4195
      %v4222 = vmul.f32 %v3942, %v4191
      %v4223 = vmul.f32 %v3943, %v4195
      %v4224 = vmul.f32 %v4142, %v4191
      %v4225 = vmul.f32 %v4143, %v4195
      %v4226 = vmul.f32 %v4144, %v4191
      %v4227 = vmul.f32 %v4145, %v4195
      %v4228 = vmul.f32 %v3946, %v4191
      %v4229 = vmul.f32 %v3947, %v4195
      %v4230 = vmul.f32 %v4146, %v4191
      %v4231 = vmul.f32 %v4147, %v4195
      %v4232 = vmul.f32 %v4148, %v4191
      %v4233 = vmul.f32 %v4149, %v4195
      %v4234 = vmul.f32 %v3950, %v4191
      %v4235 = vmul.f32 %v3951, %v4195
      %v4236 = vmul.f32 %v4150, %v4191
      %v4237 = vmul.f32 %v4151, %v4195
      %v4238 = vmul.f32 %v4152, %v4191
      %v4239 = vmul.f32 %v4153, %v4195
      %v4240 = vmul.f32 %v3954, %v4191
      %v4241 = vmul.f32 %v3955, %v4195
      %v4242 = vmul.f32 %v4154, %v4191
      %v4243 = vmul.f32 %v4155, %v4195
      %v4244 = vmul.f32 %v4156, %v4191
      %v4245 = vmul.f32 %v4157, %v4195
      %v4246 = vmul.f32 %v3958, %v4191
      %v4247 = vmul.f32 %v3959, %v4195
      %v4248 = vmul.f32 %v4158, %v4191
      %v4249 = vmul.f32 %v4159, %v4195
      %v4250 = vmul.f32 %v4160, %v4191
      %v4251 = vmul.f32 %v4161, %v4195
      %v4252 = vmul.f32 %v3962, %v4191
      %v4253 = vmul.f32 %v3963, %v4195
      %v4254 = vmul.f32 %v4162, %v4191
      %v4255 = vmul.f32 %v4163, %v4195
      %v4256 = vmul.f32 %v4164, %v4191
      %v4257 = vmul.f32 %v4165, %v4195
      %v4258 = vmul.f32 %v3966, %v4191
      %v4259 = vmul.f32 %v3967, %v4195
      %v4260 = vmul.f32 %v4166, %v4191
      %v4261 = vmul.f32 %v4167, %v4195
      %v4262 = vmul.f32 %v4168, %v4191
      %v4263 = vmul.f32 %v4169, %v4195
      %v4264 = vmul.f32 %v3970, %v4191
      %v4265 = vmul.f32 %v3971, %v4195
      %v4266 = vmul.f32 %v4170, %v4191
      %v4267 = vmul.f32 %v4171, %v4195
      %v4268 = vmul.f32 %v4172, %v4191
      %v4269 = vmul.f32 %v4173, %v4195
      %v4270 = vmul.f32 %v3974, %v4191
      %v4271 = vmul.f32 %v3975, %v4195
      %v4272 = vmul.f32 %v4174, %v4191
      %v4273 = vmul.f32 %v4175, %v4195
      %v4274 = vmul.f32 %v4176, %v4191
      %v4275 = vmul.f32 %v4177, %v4195
      %v4276 = vmul.f32 %v3978, %v4191
      %v4277 = vmul.f32 %v3979, %v4195
      %v4278 = vmul.f32 %v4178, %v4191
      %v4279 = vmul.f32 %v4179, %v4195
      %v4280 = vmul.f32 %v4180, %v4191
      %v4281 = vmul.f32 %v4181, %v4195
      %v4282 = vmul.f32 %v3982, %v4191
      %v4283 = vmul.f32 %v3983, %v4195
      %v4284 = vmul.f32 %v4182, %v4191
      %v4285 = vmul.f32 %v4183, %v4195
      %v4286 = vmul.f32 %v4184, %v4191
      %v4287 = vmul.f32 %v4185, %v4195
      %v4288 = vmul.f32 %v3986, %v4191
      %v4289 = vmul.f32 %v3987, %v4195
      %v4290 = vmul.f32 %v4186, %v4191
      %v4291 = vmul.f32 %v4187, %v4195
      %v4388 = vrot.slane %v4196, 1
      %v4389 = vrot.slane %v4198, 1
      %v4390 = vsel %vm1777, %v4388, %v4389
      %v4391 = vrot.slane %v4197, 1
      %v4392 = vrot.slane %v4199, 1
      %v4393 = vsel %vm1777, %v4391, %v4392
      %v4394 = vrot.slane %v4200, 1
      %v4395 = vsel %vm1777, %v4389, %v4394
      %v4396 = vrot.slane %v4201, 1
      %v4397 = vsel %vm1777, %v4392, %v4396
      %v4398 = vrot.slane %v4202, 1
      %v4399 = vrot.slane %v4204, 1
      %v4400 = vsel %vm1777, %v4398, %v4399
      %v4401 = vrot.slane %v4203, 1
      %v4402 = vrot.slane %v4205, 1
      %v4403 = vsel %vm1777, %v4401, %v4402
      %v4404 = vrot.slane %v4206, 1
      %v4405 = vsel %vm1777, %v4399, %v4404
      %v4406 = vrot.slane %v4207, 1
      %v4407 = vsel %vm1777, %v4402, %v4406
      %v4408 = vrot.slane %v4208, 1
      %v4409 = vrot.slane %v4210, 1
      %v4410 = vsel %vm1777, %v4408, %v4409
      %v4411 = vrot.slane %v4209, 1
      %v4412 = vrot.slane %v4211, 1
      %v4413 = vsel %vm1777, %v4411, %v4412
      %v4414 = vrot.slane %v4212, 1
      %v4415 = vsel %vm1777, %v4409, %v4414
      %v4416 = vrot.slane %v4213, 1
      %v4417 = vsel %vm1777, %v4412, %v4416
      %v4418 = vrot.slane %v4214, 1
      %v4419 = vrot.slane %v4216, 1
      %v4420 = vsel %vm1777, %v4418, %v4419
      %v4421 = vrot.slane %v4215, 1
      %v4422 = vrot.slane %v4217, 1
      %v4423 = vsel %vm1777, %v4421, %v4422
      %v4424 = vrot.slane %v4218, 1
      %v4425 = vsel %vm1777, %v4419, %v4424
      %v4426 = vrot.slane %v4219, 1
      %v4427 = vsel %vm1777, %v4422, %v4426
      %v4428 = vrot.slane %v4220, 1
      %v4429 = vrot.slane %v4222, 1
      %v4430 = vsel %vm1777, %v4428, %v4429
      %v4431 = vrot.slane %v4221, 1
      %v4432 = vrot.slane %v4223, 1
      %v4433 = vsel %vm1777, %v4431, %v4432
      %v4434 = vrot.slane %v4224, 1
      %v4435 = vsel %vm1777, %v4429, %v4434
      %v4436 = vrot.slane %v4225, 1
      %v4437 = vsel %vm1777, %v4432, %v4436
      %v4438 = vrot.slane %v4226, 1
      %v4439 = vrot.slane %v4228, 1
      %v4440 = vsel %vm1777, %v4438, %v4439
      %v4441 = vrot.slane %v4227, 1
      %v4442 = vrot.slane %v4229, 1
      %v4443 = vsel %vm1777, %v4441, %v4442
      %v4444 = vrot.slane %v4230, 1
      %v4445 = vsel %vm1777, %v4439, %v4444
      %v4446 = vrot.slane %v4231, 1
      %v4447 = vsel %vm1777, %v4442, %v4446
      %v4448 = vrot.slane %v4232, 1
      %v4449 = vrot.slane %v4234, 1
      %v4450 = vsel %vm1777, %v4448, %v4449
      %v4451 = vrot.slane %v4233, 1
      %v4452 = vrot.slane %v4235, 1
      %v4453 = vsel %vm1777, %v4451, %v4452
      %v4454 = vrot.slane %v4236, 1
      %v4455 = vsel %vm1777, %v4449, %v4454
      %v4456 = vrot.slane %v4237, 1
      %v4457 = vsel %vm1777, %v4452, %v4456
      %v4458 = vrot.slane %v4238, 1
      %v4459 = vrot.slane %v4240, 1
      %v4460 = vsel %vm1777, %v4458, %v4459
      %v4461 = vrot.slane %v4239, 1
      %v4462 = vrot.slane %v4241, 1
      %v4463 = vsel %vm1777, %v4461, %v4462
      %v4464 = vrot.slane %v4242, 1
      %v4465 = vsel %vm1777, %v4459, %v4464
      %v4466 = vrot.slane %v4243, 1
      %v4467 = vsel %vm1777, %v4462, %v4466
      %v4468 = vrot.slane %v4244, 1
      %v4469 = vrot.slane %v4246, 1
      %v4470 = vsel %vm1777, %v4468, %v4469
      %v4471 = vrot.slane %v4245, 1
      %v4472 = vrot.slane %v4247, 1
      %v4473 = vsel %vm1777, %v4471, %v4472
      %v4474 = vrot.slane %v4248, 1
      %v4475 = vsel %vm1777, %v4469, %v4474
      %v4476 = vrot.slane %v4249, 1
      %v4477 = vsel %vm1777, %v4472, %v4476
      %v4478 = vrot.slane %v4250, 1
      %v4479 = vrot.slane %v4252, 1
      %v4480 = vsel %vm1777, %v4478, %v4479
      %v4481 = vrot.slane %v4251, 1
      %v4482 = vrot.slane %v4253, 1
      %v4483 = vsel %vm1777, %v4481, %v4482
      %v4484 = vrot.slane %v4254, 1
      %v4485 = vsel %vm1777, %v4479, %v4484
      %v4486 = vrot.slane %v4255, 1
      %v4487 = vsel %vm1777, %v4482, %v4486
      %v4488 = vrot.slane %v4256, 1
      %v4489 = vrot.slane %v4258, 1
      %v4490 = vsel %vm1777, %v4488, %v4489
      %v4491 = vrot.slane %v4257, 1
      %v4492 = vrot.slane %v4259, 1
      %v4493 = vsel %vm1777, %v4491, %v4492
      %v4494 = vrot.slane %v4260, 1
      %v4495 = vsel %vm1777, %v4489, %v4494
      %v4496 = vrot.slane %v4261, 1
      %v4497 = vsel %vm1777, %v4492, %v4496
      %v4498 = vrot.slane %v4262, 1
      %v4499 = vrot.slane %v4264, 1
      %v4500 = vsel %vm1777, %v4498, %v4499
      %v4501 = vrot.slane %v4263, 1
      %v4502 = vrot.slane %v4265, 1
      %v4503 = vsel %vm1777, %v4501, %v4502
      %v4504 = vrot.slane %v4266, 1
      %v4505 = vsel %vm1777, %v4499, %v4504
      %v4506 = vrot.slane %v4267, 1
      %v4507 = vsel %vm1777, %v4502, %v4506
      %v4508 = vrot.slane %v4268, 1
      %v4509 = vrot.slane %v4270, 1
      %v4510 = vsel %vm1777, %v4508, %v4509
      %v4511 = vrot.slane %v4269, 1
      %v4512 = vrot.slane %v4271, 1
      %v4513 = vsel %vm1777, %v4511, %v4512
      %v4514 = vrot.slane %v4272, 1
      %v4515 = vsel %vm1777, %v4509, %v4514
      %v4516 = vrot.slane %v4273, 1
      %v4517 = vsel %vm1777, %v4512, %v4516
      %v4518 = vrot.slane %v4274, 1
      %v4519 = vrot.slane %v4276, 1
      %v4520 = vsel %vm1777, %v4518, %v4519
      %v4521 = vrot.slane %v4275, 1
      %v4522 = vrot.slane %v4277, 1
      %v4523 = vsel %vm1777, %v4521, %v4522
      %v4524 = vrot.slane %v4278, 1
      %v4525 = vsel %vm1777, %v4519, %v4524
      %v4526 = vrot.slane %v4279, 1
      %v4527 = vsel %vm1777, %v4522, %v4526
      %v4528 = vrot.slane %v4280, 1
      %v4529 = vrot.slane %v4282, 1
      %v4530 = vsel %vm1777, %v4528, %v4529
      %v4531 = vrot.slane %v4281, 1
      %v4532 = vrot.slane %v4283, 1
      %v4533 = vsel %vm1777, %v4531, %v4532
      %v4534 = vrot.slane %v4284, 1
      %v4535 = vsel %vm1777, %v4529, %v4534
      %v4536 = vrot.slane %v4285, 1
      %v4537 = vsel %vm1777, %v4532, %v4536
      %v4538 = vrot.slane %v4286, 1
      %v4539 = vrot.slane %v4288, 1
      %v4540 = vsel %vm1777, %v4538, %v4539
      %v4541 = vrot.slane %v4287, 1
      %v4542 = vrot.slane %v4289, 1
      %v4543 = vsel %vm1777, %v4541, %v4542
      %v4544 = vrot.slane %v4290, 1
      %v4545 = vsel %vm1777, %v4539, %v4544
      %v4546 = vrot.slane %v4291, 1
      %v4547 = vsel %vm1777, %v4542, %v4546
      %v4612 = vadd.f32 %v4060, %v4390
      %v4613 = vadd.f32 %v4061, %v4393
      %v4614 = vadd.f32 %v4062, %v4395
      %v4615 = vadd.f32 %v4063, %v4397
      %v4616 = vadd.f32 %v4064, %v4400
      %v4617 = vadd.f32 %v4065, %v4403
      %v4618 = vadd.f32 %v4066, %v4405
      %v4619 = vadd.f32 %v4067, %v4407
      %v4620 = vadd.f32 %v4068, %v4410
      %v4621 = vadd.f32 %v4069, %v4413
      %v4622 = vadd.f32 %v4070, %v4415
      %v4623 = vadd.f32 %v4071, %v4417
      %v4624 = vadd.f32 %v4072, %v4420
      %v4625 = vadd.f32 %v4073, %v4423
      %v4626 = vadd.f32 %v4074, %v4425
      %v4627 = vadd.f32 %v4075, %v4427
      %v4628 = vadd.f32 %v4076, %v4430
      %v4629 = vadd.f32 %v4077, %v4433
      %v4630 = vadd.f32 %v4078, %v4435
      %v4631 = vadd.f32 %v4079, %v4437
      %v4632 = vadd.f32 %v4080, %v4440
      %v4633 = vadd.f32 %v4081, %v4443
      %v4634 = vadd.f32 %v4082, %v4445
      %v4635 = vadd.f32 %v4083, %v4447
      %v4636 = vadd.f32 %v4084, %v4450
      %v4637 = vadd.f32 %v4085, %v4453
      %v4638 = vadd.f32 %v4086, %v4455
      %v4639 = vadd.f32 %v4087, %v4457
      %v4640 = vadd.f32 %v4088, %v4460
      %v4641 = vadd.f32 %v4089, %v4463
      %v4642 = vadd.f32 %v4090, %v4465
      %v4643 = vadd.f32 %v4091, %v4467
      %v4644 = vadd.f32 %v4092, %v4470
      %v4645 = vadd.f32 %v4093, %v4473
      %v4646 = vadd.f32 %v4094, %v4475
      %v4647 = vadd.f32 %v4095, %v4477
      %v4648 = vadd.f32 %v4096, %v4480
      %v4649 = vadd.f32 %v4097, %v4483
      %v4650 = vadd.f32 %v4098, %v4485
      %v4651 = vadd.f32 %v4099, %v4487
      %v4652 = vadd.f32 %v4100, %v4490
      %v4653 = vadd.f32 %v4101, %v4493
      %v4654 = vadd.f32 %v4102, %v4495
      %v4655 = vadd.f32 %v4103, %v4497
      %v4656 = vadd.f32 %v4104, %v4500
      %v4657 = vadd.f32 %v4105, %v4503
      %v4658 = vadd.f32 %v4106, %v4505
      %v4659 = vadd.f32 %v4107, %v4507
      %v4660 = vadd.f32 %v4108, %v4510
      %v4661 = vadd.f32 %v4109, %v4513
      %v4662 = vadd.f32 %v4110, %v4515
      %v4663 = vadd.f32 %v4111, %v4517
      %v4664 = vadd.f32 %v4112, %v4520
      %v4665 = vadd.f32 %v4113, %v4523
      %v4666 = vadd.f32 %v4114, %v4525
      %v4667 = vadd.f32 %v4115, %v4527
      %v4668 = vadd.f32 %v4116, %v4530
      %v4669 = vadd.f32 %v4117, %v4533
      %v4670 = vadd.f32 %v4118, %v4535
      %v4671 = vadd.f32 %v4119, %v4537
      %v4672 = vadd.f32 %v4120, %v4540
      %v4673 = vadd.f32 %v4121, %v4543
      %v4674 = vadd.f32 %v4122, %v4545
      %v4675 = vadd.f32 %v4123, %v4547
      %v4676 = vld [vmem:[%s3923] sm:$0xfc]
      %v4677 = vld [vmem:[%s3923 + $0x8] sm:$0xfc]
      %v4678 = vld [vmem:[%s3923 + $0x20] sm:$0x3]
      %v4679 = vld [vmem:[%s3923 + $0x28] sm:$0x3]
      %v4680 = vld [vmem:[%s3923 + $0x30] sm:$0xfc]
      %v4681 = vld [vmem:[%s3923 + $0x38] sm:$0xfc]
      %v4682 = vld [vmem:[%s3923 + $0x50] sm:$0x3]
      %v4683 = vld [vmem:[%s3923 + $0x58] sm:$0x3]
      %v4684 = vld [vmem:[%s3923 + $0x60] sm:$0xfc]
      %v4685 = vld [vmem:[%s3923 + $0x68] sm:$0xfc]
      %v4686 = vld [vmem:[%s3923 + $0x80] sm:$0x3]
      %v4687 = vld [vmem:[%s3923 + $0x88] sm:$0x3]
      %v4688 = vld [vmem:[%s3923 + $0x90] sm:$0xfc]
      %v4689 = vld [vmem:[%s3923 + $0x98] sm:$0xfc]
      %v4690 = vld [vmem:[%s3923 + $0xb0] sm:$0x3]
      %v4691 = vld [vmem:[%s3923 + $0xb8] sm:$0x3]
      %v4692 = vld [vmem:[%s3923 + $0xc0] sm:$0xfc]
      %v4693 = vld [vmem:[%s3923 + $0xc8] sm:$0xfc]
      %v4694 = vld [vmem:[%s3923 + $0xe0] sm:$0x3]
      %v4695 = vld [vmem:[%s3923 + $0xe8] sm:$0x3]
      %v4696 = vld [vmem:[%s3923 + $0xf0] sm:$0xfc]
      %v4697 = vld [vmem:[%s3923 + $0xf8] sm:$0xfc]
      %v4698 = vld [vmem:[%s3923 + $0x110] sm:$0x3]
      %v4699 = vld [vmem:[%s3923 + $0x118] sm:$0x3]
      %v4700 = vld [vmem:[%s3923 + $0x120] sm:$0xfc]
      %v4701 = vld [vmem:[%s3923 + $0x128] sm:$0xfc]
      %v4702 = vld [vmem:[%s3923 + $0x140] sm:$0x3]
      %v4703 = vld [vmem:[%s3923 + $0x148] sm:$0x3]
      %v4704 = vld [vmem:[%s3923 + $0x150] sm:$0xfc]
      %v4705 = vld [vmem:[%s3923 + $0x158] sm:$0xfc]
      %v4706 = vld [vmem:[%s3923 + $0x170] sm:$0x3]
      %v4707 = vld [vmem:[%s3923 + $0x178] sm:$0x3]
      %v4708 = vld [vmem:[%s3923 + $0x180] sm:$0xfc]
      %v4709 = vld [vmem:[%s3923 + $0x188] sm:$0xfc]
      %v4710 = vld [vmem:[%s3923 + $0x1a0] sm:$0x3]
      %v4711 = vld [vmem:[%s3923 + $0x1a8] sm:$0x3]
      %v4712 = vld [vmem:[%s3923 + $0x1b0] sm:$0xfc]
      %v4713 = vld [vmem:[%s3923 + $0x1b8] sm:$0xfc]
      %v4714 = vld [vmem:[%s3923 + $0x1d0] sm:$0x3]
      %v4715 = vld [vmem:[%s3923 + $0x1d8] sm:$0x3]
      %v4716 = vld [vmem:[%s3923 + $0x1e0] sm:$0xfc]
      %v4717 = vld [vmem:[%s3923 + $0x1e8] sm:$0xfc]
      %v4718 = vld [vmem:[%s3923 + $0x200] sm:$0x3]
      %v4719 = vld [vmem:[%s3923 + $0x208] sm:$0x3]
      %v4720 = vld [vmem:[%s3923 + $0x210] sm:$0xfc]
      %v4721 = vld [vmem:[%s3923 + $0x218] sm:$0xfc]
      %v4722 = vld [vmem:[%s3923 + $0x230] sm:$0x3]
      %v4723 = vld [vmem:[%s3923 + $0x238] sm:$0x3]
      %v4724 = vld [vmem:[%s3923 + $0x240] sm:$0xfc]
      %v4725 = vld [vmem:[%s3923 + $0x248] sm:$0xfc]
      %v4726 = vld [vmem:[%s3923 + $0x260] sm:$0x3]
      %v4727 = vld [vmem:[%s3923 + $0x268] sm:$0x3]
      %v4728 = vld [vmem:[%s3923 + $0x270] sm:$0xfc]
      %v4729 = vld [vmem:[%s3923 + $0x278] sm:$0xfc]
      %v4730 = vld [vmem:[%s3923 + $0x290] sm:$0x3]
      %v4731 = vld [vmem:[%s3923 + $0x298] sm:$0x3]
      %v4732 = vld [vmem:[%s3923 + $0x2a0] sm:$0xfc]
      %v4733 = vld [vmem:[%s3923 + $0x2a8] sm:$0xfc]
      %v4734 = vld [vmem:[%s3923 + $0x2c0] sm:$0x3]
      %v4735 = vld [vmem:[%s3923 + $0x2c8] sm:$0x3]
      %v4736 = vld [vmem:[%s3923 + $0x2d0] sm:$0xfc]
      %v4737 = vld [vmem:[%s3923 + $0x2d8] sm:$0xfc]
      %v4738 = vld [vmem:[%s3923 + $0x2f0] sm:$0x3]
      %v4739 = vld [vmem:[%s3923 + $0x2f8] sm:$0x3]
      %v4740 = vlaneseq
      %v4741 = vshrl.u32 %v4740, 7
      %v4742 = vsub.s32 0, %v4741
      %v4743 = vrot.slane %v1311, %v4742
      %v4744 = vlaneseq
      %v4745 = vshrl.u32 %v4744, 7
      %v4746 = vsub.s32 0, %v4745
      %v4747 = vrot.slane %v1312, %v4746
      %v4748 = vmul.f32 %v4676, %v4743
      %v4749 = vmul.f32 %v4677, %v4747
      %v4750 = vmul.f32 %v3926, %v4743
      %v4751 = vmul.f32 %v3927, %v4747
      %v4752 = vmul.f32 %v4678, %v4743
      %v4753 = vmul.f32 %v4679, %v4747
      %v4754 = vmul.f32 %v4680, %v4743
      %v4755 = vmul.f32 %v4681, %v4747
      %v4756 = vmul.f32 %v3930, %v4743
      %v4757 = vmul.f32 %v3931, %v4747
      %v4758 = vmul.f32 %v4682, %v4743
      %v4759 = vmul.f32 %v4683, %v4747
      %v4760 = vmul.f32 %v4684, %v4743
      %v4761 = vmul.f32 %v4685, %v4747
      %v4762 = vmul.f32 %v3934, %v4743
      %v4763 = vmul.f32 %v3935, %v4747
      %v4764 = vmul.f32 %v4686, %v4743
      %v4765 = vmul.f32 %v4687, %v4747
      %v4766 = vmul.f32 %v4688, %v4743
      %v4767 = vmul.f32 %v4689, %v4747
      %v4768 = vmul.f32 %v3938, %v4743
      %v4769 = vmul.f32 %v3939, %v4747
      %v4770 = vmul.f32 %v4690, %v4743
      %v4771 = vmul.f32 %v4691, %v4747
      %v4772 = vmul.f32 %v4692, %v4743
      %v4773 = vmul.f32 %v4693, %v4747
      %v4774 = vmul.f32 %v3942, %v4743
      %v4775 = vmul.f32 %v3943, %v4747
      %v4776 = vmul.f32 %v4694, %v4743
      %v4777 = vmul.f32 %v4695, %v4747
      %v4778 = vmul.f32 %v4696, %v4743
      %v4779 = vmul.f32 %v4697, %v4747
      %v4780 = vmul.f32 %v3946, %v4743
      %v4781 = vmul.f32 %v3947, %v4747
      %v4782 = vmul.f32 %v4698, %v4743
      %v4783 = vmul.f32 %v4699, %v4747
      %v4784 = vmul.f32 %v4700, %v4743
      %v4785 = vmul.f32 %v4701, %v4747
      %v4786 = vmul.f32 %v3950, %v4743
      %v4787 = vmul.f32 %v3951, %v4747
      %v4788 = vmul.f32 %v4702, %v4743
      %v4789 = vmul.f32 %v4703, %v4747
      %v4790 = vmul.f32 %v4704, %v4743
      %v4791 = vmul.f32 %v4705, %v4747
      %v4792 = vmul.f32 %v3954, %v4743
      %v4793 = vmul.f32 %v3955, %v4747
      %v4794 = vmul.f32 %v4706, %v4743
      %v4795 = vmul.f32 %v4707, %v4747
      %v4796 = vmul.f32 %v4708, %v4743
      %v4797 = vmul.f32 %v4709, %v4747
      %v4798 = vmul.f32 %v3958, %v4743
      %v4799 = vmul.f32 %v3959, %v4747
      %v4800 = vmul.f32 %v4710, %v4743
      %v4801 = vmul.f32 %v4711, %v4747
      %v4802 = vmul.f32 %v4712, %v4743
      %v4803 = vmul.f32 %v4713, %v4747
      %v4804 = vmul.f32 %v3962, %v4743
      %v4805 = vmul.f32 %v3963, %v4747
      %v4806 = vmul.f32 %v4714, %v4743
      %v4807 = vmul.f32 %v4715, %v4747
      %v4808 = vmul.f32 %v4716, %v4743
      %v4809 = vmul.f32 %v4717, %v4747
      %v4810 = vmul.f32 %v3966, %v4743
      %v4811 = vmul.f32 %v3967, %v4747
      %v4812 = vmul.f32 %v4718, %v4743
      %v4813 = vmul.f32 %v4719, %v4747
      %v4814 = vmul.f32 %v4720, %v4743
      %v4815 = vmul.f32 %v4721, %v4747
      %v4816 = vmul.f32 %v3970, %v4743
      %v4817 = vmul.f32 %v3971, %v4747
      %v4818 = vmul.f32 %v4722, %v4743
      %v4819 = vmul.f32 %v4723, %v4747
      %v4820 = vmul.f32 %v4724, %v4743
      %v4821 = vmul.f32 %v4725, %v4747
      %v4822 = vmul.f32 %v3974, %v4743
      %v4823 = vmul.f32 %v3975, %v4747
      %v4824 = vmul.f32 %v4726, %v4743
      %v4825 = vmul.f32 %v4727, %v4747
      %v4826 = vmul.f32 %v4728, %v4743
      %v4827 = vmul.f32 %v4729, %v4747
      %v4828 = vmul.f32 %v3978, %v4743
      %v4829 = vmul.f32 %v3979, %v4747
      %v4830 = vmul.f32 %v4730, %v4743
      %v4831 = vmul.f32 %v4731, %v4747
      %v4832 = vmul.f32 %v4732, %v4743
      %v4833 = vmul.f32 %v4733, %v4747
      %v4834 = vmul.f32 %v3982, %v4743
      %v4835 = vmul.f32 %v3983, %v4747
      %v4836 = vmul.f32 %v4734, %v4743
      %v4837 = vmul.f32 %v4735, %v4747
      %v4838 = vmul.f32 %v4736, %v4743
      %v4839 = vmul.f32 %v4737, %v4747
      %v4840 = vmul.f32 %v3986, %v4743
      %v4841 = vmul.f32 %v3987, %v4747
      %v4842 = vmul.f32 %v4738, %v4743
      %v4843 = vmul.f32 %v4739, %v4747
      %v4940 = vrot.slane %v4748, 2
      %v4941 = vrot.slane %v4750, 2
      %v4942 = vsel %vm2330, %v4940, %v4941
      %v4943 = vrot.slane %v4749, 2
      %v4944 = vrot.slane %v4751, 2
      %v4945 = vsel %vm2330, %v4943, %v4944
      %v4946 = vrot.slane %v4752, 2
      %v4947 = vsel %vm2330, %v4941, %v4946
      %v4948 = vrot.slane %v4753, 2
      %v4949 = vsel %vm2330, %v4944, %v4948
      %v4950 = vrot.slane %v4754, 2
      %v4951 = vrot.slane %v4756, 2
      %v4952 = vsel %vm2330, %v4950, %v4951
      %v4953 = vrot.slane %v4755, 2
      %v4954 = vrot.slane %v4757, 2
      %v4955 = vsel %vm2330, %v4953, %v4954
      %v4956 = vrot.slane %v4758, 2
      %v4957 = vsel %vm2330, %v4951, %v4956
      %v4958 = vrot.slane %v4759, 2
      %v4959 = vsel %vm2330, %v4954, %v4958
      %v4960 = vrot.slane %v4760, 2
      %v4961 = vrot.slane %v4762, 2
      %v4962 = vsel %vm2330, %v4960, %v4961
      %v4963 = vrot.slane %v4761, 2
      %v4964 = vrot.slane %v4763, 2
      %v4965 = vsel %vm2330, %v4963, %v4964
      %v4966 = vrot.slane %v4764, 2
      %v4967 = vsel %vm2330, %v4961, %v4966
      %v4968 = vrot.slane %v4765, 2
      %v4969 = vsel %vm2330, %v4964, %v4968
      %v4970 = vrot.slane %v4766, 2
      %v4971 = vrot.slane %v4768, 2
      %v4972 = vsel %vm2330, %v4970, %v4971
      %v4973 = vrot.slane %v4767, 2
      %v4974 = vrot.slane %v4769, 2
      %v4975 = vsel %vm2330, %v4973, %v4974
      %v4976 = vrot.slane %v4770, 2
      %v4977 = vsel %vm2330, %v4971, %v4976
      %v4978 = vrot.slane %v4771, 2
      %v4979 = vsel %vm2330, %v4974, %v4978
      %v4980 = vrot.slane %v4772, 2
      %v4981 = vrot.slane %v4774, 2
      %v4982 = vsel %vm2330, %v4980, %v4981
      %v4983 = vrot.slane %v4773, 2
      %v4984 = vrot.slane %v4775, 2
      %v4985 = vsel %vm2330, %v4983, %v4984
      %v4986 = vrot.slane %v4776, 2
      %v4987 = vsel %vm2330, %v4981, %v4986
      %v4988 = vrot.slane %v4777, 2
      %v4989 = vsel %vm2330, %v4984, %v4988
      %v4990 = vrot.slane %v4778, 2
      %v4991 = vrot.slane %v4780, 2
      %v4992 = vsel %vm2330, %v4990, %v4991
      %v4993 = vrot.slane %v4779, 2
      %v4994 = vrot.slane %v4781, 2
      %v4995 = vsel %vm2330, %v4993, %v4994
      %v4996 = vrot.slane %v4782, 2
      %v4997 = vsel %vm2330, %v4991, %v4996
      %v4998 = vrot.slane %v4783, 2
      %v4999 = vsel %vm2330, %v4994, %v4998
      %v5000 = vrot.slane %v4784, 2
      %v5001 = vrot.slane %v4786, 2
      %v5002 = vsel %vm2330, %v5000, %v5001
      %v5003 = vrot.slane %v4785, 2
      %v5004 = vrot.slane %v4787, 2
      %v5005 = vsel %vm2330, %v5003, %v5004
      %v5006 = vrot.slane %v4788, 2
      %v5007 = vsel %vm2330, %v5001, %v5006
      %v5008 = vrot.slane %v4789, 2
      %v5009 = vsel %vm2330, %v5004, %v5008
      %v5010 = vrot.slane %v4790, 2
      %v5011 = vrot.slane %v4792, 2
      %v5012 = vsel %vm2330, %v5010, %v5011
      %v5013 = vrot.slane %v4791, 2
      %v5014 = vrot.slane %v4793, 2
      %v5015 = vsel %vm2330, %v5013, %v5014
      %v5016 = vrot.slane %v4794, 2
      %v5017 = vsel %vm2330, %v5011, %v5016
      %v5018 = vrot.slane %v4795, 2
      %v5019 = vsel %vm2330, %v5014, %v5018
      %v5020 = vrot.slane %v4796, 2
      %v5021 = vrot.slane %v4798, 2
      %v5022 = vsel %vm2330, %v5020, %v5021
      %v5023 = vrot.slane %v4797, 2
      %v5024 = vrot.slane %v4799, 2
      %v5025 = vsel %vm2330, %v5023, %v5024
      %v5026 = vrot.slane %v4800, 2
      %v5027 = vsel %vm2330, %v5021, %v5026
      %v5028 = vrot.slane %v4801, 2
      %v5029 = vsel %vm2330, %v5024, %v5028
      %v5030 = vrot.slane %v4802, 2
      %v5031 = vrot.slane %v4804, 2
      %v5032 = vsel %vm2330, %v5030, %v5031
      %v5033 = vrot.slane %v4803, 2
      %v5034 = vrot.slane %v4805, 2
      %v5035 = vsel %vm2330, %v5033, %v5034
      %v5036 = vrot.slane %v4806, 2
      %v5037 = vsel %vm2330, %v5031, %v5036
      %v5038 = vrot.slane %v4807, 2
      %v5039 = vsel %vm2330, %v5034, %v5038
      %v5040 = vrot.slane %v4808, 2
      %v5041 = vrot.slane %v4810, 2
      %v5042 = vsel %vm2330, %v5040, %v5041
      %v5043 = vrot.slane %v4809, 2
      %v5044 = vrot.slane %v4811, 2
      %v5045 = vsel %vm2330, %v5043, %v5044
      %v5046 = vrot.slane %v4812, 2
      %v5047 = vsel %vm2330, %v5041, %v5046
      %v5048 = vrot.slane %v4813, 2
      %v5049 = vsel %vm2330, %v5044, %v5048
      %v5050 = vrot.slane %v4814, 2
      %v5051 = vrot.slane %v4816, 2
      %v5052 = vsel %vm2330, %v5050, %v5051
      %v5053 = vrot.slane %v4815, 2
      %v5054 = vrot.slane %v4817, 2
      %v5055 = vsel %vm2330, %v5053, %v5054
      %v5056 = vrot.slane %v4818, 2
      %v5057 = vsel %vm2330, %v5051, %v5056
      %v5058 = vrot.slane %v4819, 2
      %v5059 = vsel %vm2330, %v5054, %v5058
      %v5060 = vrot.slane %v4820, 2
      %v5061 = vrot.slane %v4822, 2
      %v5062 = vsel %vm2330, %v5060, %v5061
      %v5063 = vrot.slane %v4821, 2
      %v5064 = vrot.slane %v4823, 2
      %v5065 = vsel %vm2330, %v5063, %v5064
      %v5066 = vrot.slane %v4824, 2
      %v5067 = vsel %vm2330, %v5061, %v5066
      %v5068 = vrot.slane %v4825, 2
      %v5069 = vsel %vm2330, %v5064, %v5068
      %v5070 = vrot.slane %v4826, 2
      %v5071 = vrot.slane %v4828, 2
      %v5072 = vsel %vm2330, %v5070, %v5071
      %v5073 = vrot.slane %v4827, 2
      %v5074 = vrot.slane %v4829, 2
      %v5075 = vsel %vm2330, %v5073, %v5074
      %v5076 = vrot.slane %v4830, 2
      %v5077 = vsel %vm2330, %v5071, %v5076
      %v5078 = vrot.slane %v4831, 2
      %v5079 = vsel %vm2330, %v5074, %v5078
      %v5080 = vrot.slane %v4832, 2
      %v5081 = vrot.slane %v4834, 2
      %v5082 = vsel %vm2330, %v5080, %v5081
      %v5083 = vrot.slane %v4833, 2
      %v5084 = vrot.slane %v4835, 2
      %v5085 = vsel %vm2330, %v5083, %v5084
      %v5086 = vrot.slane %v4836, 2
      %v5087 = vsel %vm2330, %v5081, %v5086
      %v5088 = vrot.slane %v4837, 2
      %v5089 = vsel %vm2330, %v5084, %v5088
      %v5090 = vrot.slane %v4838, 2
      %v5091 = vrot.slane %v4840, 2
      %v5092 = vsel %vm2330, %v5090, %v5091
      %v5093 = vrot.slane %v4839, 2
      %v5094 = vrot.slane %v4841, 2
      %v5095 = vsel %vm2330, %v5093, %v5094
      %v5096 = vrot.slane %v4842, 2
      %v5097 = vsel %vm2330, %v5091, %v5096
      %v5098 = vrot.slane %v4843, 2
      %v5099 = vsel %vm2330, %v5094, %v5098
      %v5164 = vadd.f32 %v4612, %v4942
      %v5165 = vadd.f32 %v4613, %v4945
      %v5166 = vadd.f32 %v4614, %v4947
      %v5167 = vadd.f32 %v4615, %v4949
      %v5168 = vadd.f32 %v4616, %v4952
      %v5169 = vadd.f32 %v4617, %v4955
      %v5170 = vadd.f32 %v4618, %v4957
      %v5171 = vadd.f32 %v4619, %v4959
      %v5172 = vadd.f32 %v4620, %v4962
      %v5173 = vadd.f32 %v4621, %v4965
      %v5174 = vadd.f32 %v4622, %v4967
      %v5175 = vadd.f32 %v4623, %v4969
      %v5176 = vadd.f32 %v4624, %v4972
      %v5177 = vadd.f32 %v4625, %v4975
      %v5178 = vadd.f32 %v4626, %v4977
      %v5179 = vadd.f32 %v4627, %v4979
      %v5180 = vadd.f32 %v4628, %v4982
      %v5181 = vadd.f32 %v4629, %v4985
      %v5182 = vadd.f32 %v4630, %v4987
      %v5183 = vadd.f32 %v4631, %v4989
      %v5184 = vadd.f32 %v4632, %v4992
      %v5185 = vadd.f32 %v4633, %v4995
      %v5186 = vadd.f32 %v4634, %v4997
      %v5187 = vadd.f32 %v4635, %v4999
      %v5188 = vadd.f32 %v4636, %v5002
      %v5189 = vadd.f32 %v4637, %v5005
      %v5190 = vadd.f32 %v4638, %v5007
      %v5191 = vadd.f32 %v4639, %v5009
      %v5192 = vadd.f32 %v4640, %v5012
      %v5193 = vadd.f32 %v4641, %v5015
      %v5194 = vadd.f32 %v4642, %v5017
      %v5195 = vadd.f32 %v4643, %v5019
      %v5196 = vadd.f32 %v4644, %v5022
      %v5197 = vadd.f32 %v4645, %v5025
      %v5198 = vadd.f32 %v4646, %v5027
      %v5199 = vadd.f32 %v4647, %v5029
      %v5200 = vadd.f32 %v4648, %v5032
      %v5201 = vadd.f32 %v4649, %v5035
      %v5202 = vadd.f32 %v4650, %v5037
      %v5203 = vadd.f32 %v4651, %v5039
      %v5204 = vadd.f32 %v4652, %v5042
      %v5205 = vadd.f32 %v4653, %v5045
      %v5206 = vadd.f32 %v4654, %v5047
      %v5207 = vadd.f32 %v4655, %v5049
      %v5208 = vadd.f32 %v4656, %v5052
      %v5209 = vadd.f32 %v4657, %v5055
      %v5210 = vadd.f32 %v4658, %v5057
      %v5211 = vadd.f32 %v4659, %v5059
      %v5212 = vadd.f32 %v4660, %v5062
      %v5213 = vadd.f32 %v4661, %v5065
      %v5214 = vadd.f32 %v4662, %v5067
      %v5215 = vadd.f32 %v4663, %v5069
      %v5216 = vadd.f32 %v4664, %v5072
      %v5217 = vadd.f32 %v4665, %v5075
      %v5218 = vadd.f32 %v4666, %v5077
      %v5219 = vadd.f32 %v4667, %v5079
      %v5220 = vadd.f32 %v4668, %v5082
      %v5221 = vadd.f32 %v4669, %v5085
      %v5222 = vadd.f32 %v4670, %v5087
      %v5223 = vadd.f32 %v4671, %v5089
      %v5224 = vadd.f32 %v4672, %v5092
      %v5225 = vadd.f32 %v4673, %v5095
      %v5226 = vadd.f32 %v4674, %v5097
      %v5227 = vadd.f32 %v4675, %v5099
      %v5228 = vld [vmem:[%s4] sm:$0x3]
      %v5230 = vlaneseq
      %v5231 = vshrl.u32 %v5230, 7
      %v5232 = vsub.s32 0, %v5231
      %v5233 = vrot.slane %v5228, %v5232
      %v5234 = vlaneseq
      %v5235 = vshrl.u32 %v5234, 7
      %v5236 = vsub.s32 1, %v5235
      %v5237 = vrot.slane %v5228, %v5236
      %v5240 = vadd.f32 %v5164, %v5233
      %v5241 = vadd.f32 %v5165, %v5237
      %v5242 = vadd.f32 %v5166, %v5233
      %v5243 = vadd.f32 %v5167, %v5237
      %v5244 = vadd.f32 %v5168, %v5233
      %v5245 = vadd.f32 %v5169, %v5237
      %v5246 = vadd.f32 %v5170, %v5233
      %v5247 = vadd.f32 %v5171, %v5237
      %v5248 = vadd.f32 %v5172, %v5233
      %v5249 = vadd.f32 %v5173, %v5237
      %v5250 = vadd.f32 %v5174, %v5233
      %v5251 = vadd.f32 %v5175, %v5237
      %v5252 = vadd.f32 %v5176, %v5233
      %v5253 = vadd.f32 %v5177, %v5237
      %v5254 = vadd.f32 %v5178, %v5233
      %v5255 = vadd.f32 %v5179, %v5237
      %v5256 = vadd.f32 %v5180, %v5233
      %v5257 = vadd.f32 %v5181, %v5237
      %v5258 = vadd.f32 %v5182, %v5233
      %v5259 = vadd.f32 %v5183, %v5237
      %v5260 = vadd.f32 %v5184, %v5233
      %v5261 = vadd.f32 %v5185, %v5237
      %v5262 = vadd.f32 %v5186, %v5233
      %v5263 = vadd.f32 %v5187, %v5237
      %v5264 = vadd.f32 %v5188, %v5233
      %v5265 = vadd.f32 %v5189, %v5237
      %v5266 = vadd.f32 %v5190, %v5233
      %v5267 = vadd.f32 %v5191, %v5237
      %v5268 = vadd.f32 %v5192, %v5233
      %v5269 = vadd.f32 %v5193, %v5237
      %v5270 = vadd.f32 %v5194, %v5233
      %v5271 = vadd.f32 %v5195, %v5237
      %v5272 = vadd.f32 %v5196, %v5233
      %v5273 = vadd.f32 %v5197, %v5237
      %v5274 = vadd.f32 %v5198, %v5233
      %v5275 = vadd.f32 %v5199, %v5237
      %v5276 = vadd.f32 %v5200, %v5233
      %v5277 = vadd.f32 %v5201, %v5237
      %v5278 = vadd.f32 %v5202, %v5233
      %v5279 = vadd.f32 %v5203, %v5237
      %v5280 = vadd.f32 %v5204, %v5233
      %v5281 = vadd.f32 %v5205, %v5237
      %v5282 = vadd.f32 %v5206, %v5233
      %v5283 = vadd.f32 %v5207, %v5237
      %v5284 = vadd.f32 %v5208, %v5233
      %v5285 = vadd.f32 %v5209, %v5237
      %v5286 = vadd.f32 %v5210, %v5233
      %v5287 = vadd.f32 %v5211, %v5237
      %v5288 = vadd.f32 %v5212, %v5233
      %v5289 = vadd.f32 %v5213, %v5237
      %v5290 = vadd.f32 %v5214, %v5233
      %v5291 = vadd.f32 %v5215, %v5237
      %v5292 = vadd.f32 %v5216, %v5233
      %v5293 = vadd.f32 %v5217, %v5237
      %v5294 = vadd.f32 %v5218, %v5233
      %v5295 = vadd.f32 %v5219, %v5237
      %v5296 = vadd.f32 %v5220, %v5233
      %v5297 = vadd.f32 %v5221, %v5237
      %v5298 = vadd.f32 %v5222, %v5233
      %v5299 = vadd.f32 %v5223, %v5237
      %v5300 = vadd.f32 %v5224, %v5233
      %v5301 = vadd.f32 %v5225, %v5237
      %v5302 = vadd.f32 %v5226, %v5233
      %v5303 = vadd.f32 %v5227, %v5237
      %v5304 = vmax.f32 %v5240, 0.0
      %v5305 = vmax.f32 %v5241, 0.0
      %v5306 = vmax.f32 %v5242, 0.0
      %v5307 = vmax.f32 %v5243, 0.0
      %v5308 = vmax.f32 %v5244, 0.0
      %v5309 = vmax.f32 %v5245, 0.0
      %v5310 = vmax.f32 %v5246, 0.0
      %v5311 = vmax.f32 %v5247, 0.0
      %v5312 = vmax.f32 %v5248, 0.0
      %v5313 = vmax.f32 %v5249, 0.0
      %v5314 = vmax.f32 %v5250, 0.0
      %v5315 = vmax.f32 %v5251, 0.0
      %v5316 = vmax.f32 %v5252, 0.0
      %v5317 = vmax.f32 %v5253, 0.0
      %v5318 = vmax.f32 %v5254, 0.0
      %v5319 = vmax.f32 %v5255, 0.0
      %v5320 = vmax.f32 %v5256, 0.0
      %v5321 = vmax.f32 %v5257, 0.0
      %v5322 = vmax.f32 %v5258, 0.0
      %v5323 = vmax.f32 %v5259, 0.0
      %v5324 = vmax.f32 %v5260, 0.0
      %v5325 = vmax.f32 %v5261, 0.0
      %v5326 = vmax.f32 %v5262, 0.0
      %v5327 = vmax.f32 %v5263, 0.0
      %v5328 = vmax.f32 %v5264, 0.0
      %v5329 = vmax.f32 %v5265, 0.0
      %v5330 = vmax.f32 %v5266, 0.0
      %v5331 = vmax.f32 %v5267, 0.0
      %v5332 = vmax.f32 %v5268, 0.0
      %v5333 = vmax.f32 %v5269, 0.0
      %v5334 = vmax.f32 %v5270, 0.0
      %v5335 = vmax.f32 %v5271, 0.0
      %v5336 = vmax.f32 %v5272, 0.0
      %v5337 = vmax.f32 %v5273, 0.0
      %v5338 = vmax.f32 %v5274, 0.0
      %v5339 = vmax.f32 %v5275, 0.0
      %v5340 = vmax.f32 %v5276, 0.0
      %v5341 = vmax.f32 %v5277, 0.0
      %v5342 = vmax.f32 %v5278, 0.0
      %v5343 = vmax.f32 %v5279, 0.0
      %v5344 = vmax.f32 %v5280, 0.0
      %v5345 = vmax.f32 %v5281, 0.0
      %v5346 = vmax.f32 %v5282, 0.0
      %v5347 = vmax.f32 %v5283, 0.0
      %v5348 = vmax.f32 %v5284, 0.0
      %v5349 = vmax.f32 %v5285, 0.0
      %v5350 = vmax.f32 %v5286, 0.0
      %v5351 = vmax.f32 %v5287, 0.0
      %v5352 = vmax.f32 %v5288, 0.0
      %v5353 = vmax.f32 %v5289, 0.0
      %v5354 = vmax.f32 %v5290, 0.0
      %v5355 = vmax.f32 %v5291, 0.0
      %v5356 = vmax.f32 %v5292, 0.0
      %v5357 = vmax.f32 %v5293, 0.0
      %v5358 = vmax.f32 %v5294, 0.0
      %v5359 = vmax.f32 %v5295, 0.0
      %v5360 = vmax.f32 %v5296, 0.0
      %v5361 = vmax.f32 %v5297, 0.0
      %v5362 = vmax.f32 %v5298, 0.0
      %v5363 = vmax.f32 %v5299, 0.0
      %v5364 = vmax.f32 %v5300, 0.0
      %v5365 = vmax.f32 %v5301, 0.0
      %v5366 = vmax.f32 %v5302, 0.0
      %v5367 = vmax.f32 %v5303, 0.0
      %v5368 = vadd.f32 %v5304, %v5306
      %v5369 = vadd.f32 %v5368, %v5308
      %v5370 = vadd.f32 %v5369, %v5310
      %v5371 = vadd.f32 %v5370, %v5312
      %v5372 = vadd.f32 %v5371, %v5314
      %v5373 = vadd.f32 %v5372, %v5316
      %v5374 = vadd.f32 %v5373, %v5318
      %v5375 = vadd.f32 %v5374, %v5320
      %v5376 = vadd.f32 %v5375, %v5322
      %v5377 = vadd.f32 %v5376, %v5324
      %v5378 = vadd.f32 %v5377, %v5326
      %v5379 = vadd.f32 %v5378, %v5328
      %v5380 = vadd.f32 %v5379, %v5330
      %v5381 = vadd.f32 %v5380, %v5332
      %v5382 = vadd.f32 %v5381, %v5334
      %v5383 = vadd.f32 %v5382, %v5336
      %v5384 = vadd.f32 %v5383, %v5338
      %v5385 = vadd.f32 %v5384, %v5340
      %v5386 = vadd.f32 %v5385, %v5342
      %v5387 = vadd.f32 %v5386, %v5344
      %v5388 = vadd.f32 %v5387, %v5346
      %v5389 = vadd.f32 %v5388, %v5348
      %v5390 = vadd.f32 %v5389, %v5350
      %v5391 = vadd.f32 %v5390, %v5352
      %v5392 = vadd.f32 %v5391, %v5354
      %v5393 = vadd.f32 %v5392, %v5356
      %v5394 = vadd.f32 %v5393, %v5358
      %v5395 = vadd.f32 %v5394, %v5360
      %v5396 = vadd.f32 %v5395, %v5362
      %v5397 = vadd.f32 %v5396, %v5364
      %v5398 = vadd.f32 %v5397, %v5366
      %v5399 = vrot.slane %v5398, 4
      %v5400 = vadd.f32 %v5398, %v5399
      %v5401 = vrot.slane %v5400, 2
      %v5402 = vadd.f32 %v5400, %v5401
      %v5403 = vrot.slane %v5402, 1
      %v5404 = vadd.f32 %v5402, %v5403
      %v5405 = vsel %vm844, %v5305, 0.0
      %v5406 = vsel %vm844, %v5307, 0.0
      %v5407 = vadd.f32 %v5405, %v5406
      %v5408 = vsel %vm844, %v5309, 0.0
      %v5409 = vadd.f32 %v5407, %v5408
      %v5410 = vsel %vm844, %v5311, 0.0
      %v5411 = vadd.f32 %v5409, %v5410
      %v5412 = vsel %vm844, %v5313, 0.0
      %v5413 = vadd.f32 %v5411, %v5412
      %v5414 = vsel %vm844, %v5315, 0.0
      %v5415 = vadd.f32 %v5413, %v5414
      %v5416 = vsel %vm844, %v5317, 0.0
      %v5417 = vadd.f32 %v5415, %v5416
      %v5418 = vsel %vm844, %v5319, 0.0
      %v5419 = vadd.f32 %v5417, %v5418
      %v5420 = vsel %vm844, %v5321, 0.0
      %v5421 = vadd.f32 %v5419, %v5420
      %v5422 = vsel %vm844, %v5323, 0.0
      %v5423 = vadd.f32 %v5421, %v5422
      %v5424 = vsel %vm844, %v5325, 0.0
      %v5425 = vadd.f32 %v5423, %v5424
      %v5426 = vsel %vm844, %v5327, 0.0
      %v5427 = vadd.f32 %v5425, %v5426
      %v5428 = vsel %vm844, %v5329, 0.0
      %v5429 = vadd.f32 %v5427, %v5428
      %v5430 = vsel %vm844, %v5331, 0.0
      %v5431 = vadd.f32 %v5429, %v5430
      %v5432 = vsel %vm844, %v5333, 0.0
      %v5433 = vadd.f32 %v5431, %v5432
      %v5434 = vsel %vm844, %v5335, 0.0
      %v5435 = vadd.f32 %v5433, %v5434
      %v5436 = vsel %vm844, %v5337, 0.0
      %v5437 = vadd.f32 %v5435, %v5436
      %v5438 = vsel %vm844, %v5339, 0.0
      %v5439 = vadd.f32 %v5437, %v5438
      %v5440 = vsel %vm844, %v5341, 0.0
      %v5441 = vadd.f32 %v5439, %v5440
      %v5442 = vsel %vm844, %v5343, 0.0
      %v5443 = vadd.f32 %v5441, %v5442
      %v5444 = vsel %vm844, %v5345, 0.0
      %v5445 = vadd.f32 %v5443, %v5444
      %v5446 = vsel %vm844, %v5347, 0.0
      %v5447 = vadd.f32 %v5445, %v5446
      %v5448 = vsel %vm844, %v5349, 0.0
      %v5449 = vadd.f32 %v5447, %v5448
      %v5450 = vsel %vm844, %v5351, 0.0
      %v5451 = vadd.f32 %v5449, %v5450
      %v5452 = vsel %vm844, %v5353, 0.0
      %v5453 = vadd.f32 %v5451, %v5452
      %v5454 = vsel %vm844, %v5355, 0.0
      %v5455 = vadd.f32 %v5453, %v5454
      %v5456 = vsel %vm844, %v5357, 0.0
      %v5457 = vadd.f32 %v5455, %v5456
      %v5458 = vsel %vm844, %v5359, 0.0
      %v5459 = vadd.f32 %v5457, %v5458
      %v5460 = vsel %vm844, %v5361, 0.0
      %v5461 = vadd.f32 %v5459, %v5460
      %v5462 = vsel %vm844, %v5363, 0.0
      %v5463 = vadd.f32 %v5461, %v5462
      %v5464 = vsel %vm844, %v5365, 0.0
      %v5465 = vadd.f32 %v5463, %v5464
      %v5466 = vsel %vm844, %v5367, 0.0
      %v5467 = vadd.f32 %v5465, %v5466
      %v5468 = vrot.slane %v5467, 4
      %v5469 = vadd.f32 %v5467, %v5468
      %v5470 = vrot.slane %v5469, 2
      %v5471 = vadd.f32 %v5469, %v5470
      %v5472 = vrot.slane %v5471, 1
      %v5473 = vadd.f32 %v5471, %v5472
      %v5474 = vmul.f32 %v5404, 0.00390625
      %v5475 = vmul.f32 %v5473, 0.00390625
      %v5476 = vld [vmem:[%s5] sm:$0xff]
      %v5477 = vld [vmem:[%s5 + $0x8] sm:$0xff]
      %v5478 = vld [vmem:[%s5 + $0x10] sm:$0xff]
      %v5479 = vld [vmem:[%s5 + $0x18] sm:$0xff]
      %v5480 = vld [vmem:[%s5 + $0x20] sm:$0xff]
      %v5481 = vld [vmem:[%s5 + $0x28] sm:$0xff]
      %v5482 = vld [vmem:[%s5 + $0x30] sm:$0xff]
      %v5483 = vld [vmem:[%s5 + $0x38] sm:$0xff]
      %v5484 = vld [vmem:[%s5 + $0x40] sm:$0xff]
      %v5485 = vld [vmem:[%s5 + $0x48] sm:$0xff]
      %v5486 = vld [vmem:[%s5 + $0x50] sm:$0xff]
      %v5487 = vld [vmem:[%s5 + $0x58] sm:$0xff]
      %v5488 = vld [vmem:[%s5 + $0x60] sm:$0xff]
      %v5489 = vld [vmem:[%s5 + $0x68] sm:$0xff]
      %v5490 = vld [vmem:[%s5 + $0x70] sm:$0xff]
      %v5491 = vld [vmem:[%s5 + $0x78] sm:$0xff]
      %v5492 = vld [vmem:[%s5 + $0x80] sm:$0xff]
      %v5493 = vld [vmem:[%s5 + $0x88] sm:$0xff]
      %v5494 = vld [vmem:[%s6] sm:$0x1]
      %v5496 = vsel %vm844, %v5475, 0
      %5498 = vmatprep.subr.mxu0 0.0
      %5499 = vmatpush1.msra.mxu0 %v5476
      %5500 = vmatprep.subr.mxu0 0.0
      %5501 = vmatpush1.msra.mxu0 %v5477
      %5502 = vmatprep.subr.mxu0 0.0
      %5503 = vmatpush1.msra.mxu0 %v5478
      %5504 = vmatprep.subr.mxu0 0.0
      %5505 = vmatpush1.msra.mxu0 %v5479
      %5506 = vmatprep.subr.mxu0 0.0
      %5507 = vmatpush1.msra.mxu0 %v5480
      %5508 = vmatprep.subr.mxu0 0.0
      %5509 = vmatpush1.msra.mxu0 %v5481
      %5510 = vmatprep.subr.mxu0 0.0
      %5511 = vmatpush1.msra.mxu0 %v5482
      %5512 = vmatprep.subr.mxu0 0.0
      %5513 = vmatpush1.msra.mxu0 %v5483
      %5514 = vmatprep.subr.mxu0 0.0
      %5515 = vmatpush1.msra.mxu0 %v5484
      %5516 = vmatprep.subr.mxu0 0.0
      %5517 = vmatpush1.msra.mxu0 %v5485
      %5518 = vmatprep.subr.mxu0 0.0
      %5519 = vmatpush1.msra.mxu0 %v5486
      %5520 = vmatprep.subr.mxu0 0.0
      %5521 = vmatpush1.msra.mxu0 %v5487
      %5522 = vmatprep.subr.mxu0 0.0
      %5523 = vmatpush1.msra.mxu0 %v5488
      %5524 = vmatprep.subr.mxu0 0.0
      %5525 = vmatpush1.msra.mxu0 %v5489
      %5526 = vmatprep.subr.mxu0 0.0
      %5527 = vmatpush1.msra.mxu0 %v5490
      %5528 = vmatprep.subr.mxu0 0.0
      %5529 = vmatpush1.msra.mxu0 %v5491
      %5530 = vmatprep.subr.mxu0 0.0
      %5531 = vmatpush1.msra.mxu0 %v5492
      %5532 = vmatprep.subr.mxu0 0.0
      %5533 = vmatpush1.msra.mxu0 %v5493
      %5534 = vmatprep.subr.mxu0 0.0
      %5535 = vmatpush1.msra.mxu0 0.0
      %5536 = vmatprep.subr.mxu0 0.0
      %5537 = vmatpush1.msra.mxu0 0.0
      %5538 = vmatprep.subr.mxu0 0.0
      %5539 = vmatpush1.msra.mxu0 0.0
      %5540 = vmatprep.subr.mxu0 0.0
      %5541 = vmatpush1.msra.mxu0 0.0
      %5542 = vmatprep.subr.mxu0 0.0
      %5543 = vmatpush1.msra.mxu0 0.0
      %5544 = vmatprep.subr.mxu0 0.0
      %5545 = vmatpush1.msra.mxu0 0.0
      %5546 = vmatprep.subr.mxu0 0.0
      %5547 = vmatpush1.msra.mxu0 0.0
      %5548 = vmatprep.subr.mxu0 0.0
      %5549 = vmatpush1.msra.mxu0 0.0
      %5550 = vmatprep.subr.mxu0 0.0
      %5551 = vmatpush1.msra.mxu0 0.0
      %5552 = vmatprep.subr.mxu0 0.0
      %5553 = vmatpush1.msra.mxu0 0.0
      %5554 = vmatprep.subr.mxu0 0.0
      %5555 = vmatpush1.msra.mxu0 0.0
      %5556 = vmatprep.subr.mxu0 0.0
      %5557 = vmatpush1.msra.mxu0 0.0
      %5558 = vmatprep.subr.mxu0 0.0
      %5559 = vmatpush1.msra.mxu0 0.0
      %5560 = vmatprep.subr.mxu0 0.0
      %5561 = vmatpush1.msra.mxu0 0.0
      %5562 = vmatprep.mubr.f32.mxu0 %v5496
      %5563 = vmatmul.mubr.f32.gmra.mrb[0].mxu0 %v5474
      %v5564 = vpop.f32.mrb[0].mxu0
      %v5565 = vadd.f32 %v5494, %v5564
      %v5566 = vpop.f32.mrb[0].mxu0
      %5567 = vdwg.mxu0
      %v5568 = vmax.f32 %v5565, 0.0
      %v5569 = vld [vmem:[%s7] sm:$0x3f]
      %v5570 = vld [vmem:[%s7 + $0x8] sm:$0x3f]
      %v5571 = vld [vmem:[%s8] sm:$0x3]
      %v5573 = vlaneseq
      %v5574 = vshrl.u32 %v5573, 7
      %v5575 = vsub.s32 0, %v5574
      %v5576 = vrot.slane %v5571, %v5575
      %v5577 = vlaneseq
      %v5578 = vshrl.u32 %v5577, 7
      %v5579 = vsub.s32 1, %v5578
      %v5580 = vrot.slane %v5571, %v5579
      %vm5583 = vcmask 48128
      %v5585 = vsel %vm5583, %v5568, 0
      %v5588 = vsel %vm2330, %v5569, 0
      %v5591 = vsel %vm2330, %v5570, 0
      %5593 = vmatprep.subr.mxu0 %v5591
      %5594 = vmatpush1.msra.mxu0 %v5588
      %5595 = vmatprep.subr.mxu0 0.0
      %5596 = vmatpush1.msra.mxu0 0.0
      %5597 = vmatprep.subr.mxu0 0.0
      %5598 = vmatpush1.msra.mxu0 0.0
      %5599 = vmatprep.subr.mxu0 0.0
      %5600 = vmatpush1.msra.mxu0 0.0
      %5601 = vmatprep.subr.mxu0 0.0
      %5602 = vmatpush1.msra.mxu0 0.0
      %5603 = vmatprep.subr.mxu0 0.0
      %5604 = vmatpush1.msra.mxu0 0.0
      %5605 = vmatprep.subr.mxu0 0.0
      %5606 = vmatpush1.msra.mxu0 0.0
      %5607 = vmatprep.subr.mxu0 0.0
      %5608 = vmatpush1.msra.mxu0 0.0
      %5609 = vmatprep.subr.mxu0 0.0
      %5610 = vmatpush1.msra.mxu0 0.0
      %5611 = vmatprep.subr.mxu0 0.0
      %5612 = vmatpush1.msra.mxu0 0.0
      %5613 = vmatprep.subr.mxu0 0.0
      %5614 = vmatpush1.msra.mxu0 0.0
      %5615 = vmatprep.subr.mxu0 0.0
      %5616 = vmatpush1.msra.mxu0 0.0
      %5617 = vmatprep.subr.mxu0 0.0
      %5618 = vmatpush1.msra.mxu0 0.0
      %5619 = vmatprep.subr.mxu0 0.0
      %5620 = vmatpush1.msra.mxu0 0.0
      %5621 = vmatprep.subr.mxu0 0.0
      %5622 = vmatpush1.msra.mxu0 0.0
      %5623 = vmatprep.subr.mxu0 0.0
      %5624 = vmatpush1.msra.mxu0 0.0
      %5625 = vmatprep.subr.mxu0 0.0
      %5626 = vmatpush1.msra.mxu0 0.0
      %5627 = vmatprep.subr.mxu0 0.0
      %5628 = vmatpush1.msra.mxu0 0.0
      %5629 = vmatprep.subr.mxu0 0.0
      %5630 = vmatpush1.msra.mxu0 0.0
      %5631 = vmatprep.subr.mxu0 0.0
      %5632 = vmatpush1.msra.mxu0 0.0
      %5633 = vmatprep.subr.mxu0 0.0
      %5634 = vmatpush1.msra.mxu0 0.0
      %5635 = vmatprep.subr.mxu0 0.0
      %5636 = vmatpush1.msra.mxu0 0.0
      %5637 = vmatprep.subr.mxu0 0.0
      %5638 = vmatpush1.msra.mxu0 0.0
      %5639 = vmatprep.subr.mxu0 0.0
      %5640 = vmatpush1.msra.mxu0 0.0
      %5641 = vmatprep.subr.mxu0 0.0
      %5642 = vmatpush1.msra.mxu0 0.0
      %5643 = vmatprep.subr.mxu0 0.0
      %5644 = vmatpush1.msra.mxu0 0.0
      %5645 = vmatprep.subr.mxu0 0.0
      %5646 = vmatpush1.msra.mxu0 0.0
      %5647 = vmatprep.subr.mxu0 0.0
      %5648 = vmatpush1.msra.mxu0 0.0
      %5649 = vmatprep.subr.mxu0 0.0
      %5650 = vmatpush1.msra.mxu0 0.0
      %5651 = vmatprep.subr.mxu0 0.0
      %5652 = vmatpush1.msra.mxu0 0.0
      %5653 = vmatprep.subr.mxu0 0.0
      %5654 = vmatpush1.msra.mxu0 0.0
      %5655 = vmatprep.subr.mxu0 0.0
      %5656 = vmatpush1.msra.mxu0 0.0
      %5657 = vmatprep.mubr.f32.mxu0 0.0
      %5658 = vmatmul.mubr.f32.gmra.mrb[0].mxu0 %v5585
      %v5659 = vpop.f32.mrb[0].mxu0
      %v5660 = vadd.f32 %v5576, %v5659
      %v5661 = vpop.f32.mrb[0].mxu0
      %v5662 = vadd.f32 %v5580, %v5661
      %5663 = vdwg.mxu0
      %v5664 = vsub.f32 0.0, %v5660
      %v5665 = vsub.f32 0.0, %v5662
      %v5666 = vmul.f32 %v5664, 1.442695
      %v5667 = vpow.pop %v5666
      %v5668 = vmul.f32 %v5665, 1.442695
      %v5669 = vpow.pop %v5668
      %v5670 = vadd.f32 %v5667, 1.0
      %v5671 = vadd.f32 %v5669, 1.0
      %v5672 = vrcp.pop %v5670
      %v5673 = vrcp.pop %v5671
      %v5674 = vlaneseq
      %v5675 = vshrl.u32 %v5674, 7
      %v5676 = vsub.s32 0, %v5675
      %v5677 = vrot.slane %v5672, %v5676
      %v5678 = vlaneseq
      %v5679 = vshrl.u32 %v5678, 7
      %v5680 = vsub.s32 0, %v5679
      %v5681 = vrot.slane %v5673, %v5680
      %v5682 = vmul.f32 %v5304, %v5677
      %v5683 = vmul.f32 %v5305, %v5681
      %v5684 = vmul.f32 %v5306, %v5677
      %v5685 = vmul.f32 %v5307, %v5681
      %v5686 = vmul.f32 %v5308, %v5677
      %v5687 = vmul.f32 %v5309, %v5681
      %v5688 = vmul.f32 %v5310, %v5677
      %v5689 = vmul.f32 %v5311, %v5681
      %v5690 = vmul.f32 %v5312, %v5677
      %v5691 = vmul.f32 %v5313, %v5681
      %v5692 = vmul.f32 %v5314, %v5677
      %v5693 = vmul.f32 %v5315, %v5681
      %v5694 = vmul.f32 %v5316, %v5677
      %v5695 = vmul.f32 %v5317, %v5681
      %v5696 = vmul.f32 %v5318, %v5677
      %v5697 = vmul.f32 %v5319, %v5681
      %v5698 = vmul.f32 %v5320, %v5677
      %v5699 = vmul.f32 %v5321, %v5681
      %v5700 = vmul.f32 %v5322, %v5677
      %v5701 = vmul.f32 %v5323, %v5681
      %v5702 = vmul.f32 %v5324, %v5677
      %v5703 = vmul.f32 %v5325, %v5681
      %v5704 = vmul.f32 %v5326, %v5677
      %v5705 = vmul.f32 %v5327, %v5681
      %v5706 = vmul.f32 %v5328, %v5677
      %v5707 = vmul.f32 %v5329, %v5681
      %v5708 = vmul.f32 %v5330, %v5677
      %v5709 = vmul.f32 %v5331, %v5681
      %v5710 = vmul.f32 %v5332, %v5677
      %v5711 = vmul.f32 %v5333, %v5681
      %v5712 = vmul.f32 %v5334, %v5677
      %v5713 = vmul.f32 %v5335, %v5681
      %v5714 = vmul.f32 %v5336, %v5677
      %v5715 = vmul.f32 %v5337, %v5681
      %v5716 = vmul.f32 %v5338, %v5677
      %v5717 = vmul.f32 %v5339, %v5681
      %v5718 = vmul.f32 %v5340, %v5677
      %v5719 = vmul.f32 %v5341, %v5681
      %v5720 = vmul.f32 %v5342, %v5677
      %v5721 = vmul.f32 %v5343, %v5681
      %v5722 = vmul.f32 %v5344, %v5677
      %v5723 = vmul.f32 %v5345, %v5681
      %v5724 = vmul.f32 %v5346, %v5677
      %v5725 = vmul.f32 %v5347, %v5681
      %v5726 = vmul.f32 %v5348, %v5677
      %v5727 = vmul.f32 %v5349, %v5681
      %v5728 = vmul.f32 %v5350, %v5677
      %v5729 = vmul.f32 %v5351, %v5681
      %v5730 = vmul.f32 %v5352, %v5677
      %v5731 = vmul.f32 %v5353, %v5681
      %v5732 = vmul.f32 %v5354, %v5677
      %v5733 = vmul.f32 %v5355, %v5681
      %v5734 = vmul.f32 %v5356, %v5677
      %v5735 = vmul.f32 %v5357, %v5681
      %v5736 = vmul.f32 %v5358, %v5677
      %v5737 = vmul.f32 %v5359, %v5681
      %v5738 = vmul.f32 %v5360, %v5677
      %v5739 = vmul.f32 %v5361, %v5681
      %v5740 = vmul.f32 %v5362, %v5677
      %v5741 = vmul.f32 %v5363, %v5681
      %v5742 = vmul.f32 %v5364, %v5677
      %v5743 = vmul.f32 %v5365, %v5681
      %v5744 = vmul.f32 %v5366, %v5677
      %v5745 = vmul.f32 %v5367, %v5681
      %v5746 = vpack.c.bf16 %v5684, %v5682
      %v5747 = vpack.c.bf16 %v5685, %v5683
      %v5748 = vpack.c.bf16 %v5688, %v5686
      %v5749 = vpack.c.bf16 %v5689, %v5687
      %v5750 = vpack.c.bf16 %v5692, %v5690
      %v5751 = vpack.c.bf16 %v5693, %v5691
      %v5752 = vpack.c.bf16 %v5696, %v5694
      %v5753 = vpack.c.bf16 %v5697, %v5695
      %v5754 = vpack.c.bf16 %v5700, %v5698
      %v5755 = vpack.c.bf16 %v5701, %v5699
      %v5756 = vpack.c.bf16 %v5704, %v5702
      %v5757 = vpack.c.bf16 %v5705, %v5703
      %v5758 = vpack.c.bf16 %v5708, %v5706
      %v5759 = vpack.c.bf16 %v5709, %v5707
      %v5760 = vpack.c.bf16 %v5712, %v5710
      %v5761 = vpack.c.bf16 %v5713, %v5711
      %v5762 = vpack.c.bf16 %v5716, %v5714
      %v5763 = vpack.c.bf16 %v5717, %v5715
      %v5764 = vpack.c.bf16 %v5720, %v5718
      %v5765 = vpack.c.bf16 %v5721, %v5719
      %v5766 = vpack.c.bf16 %v5724, %v5722
      %v5767 = vpack.c.bf16 %v5725, %v5723
      %v5768 = vpack.c.bf16 %v5728, %v5726
      %v5769 = vpack.c.bf16 %v5729, %v5727
      %v5770 = vpack.c.bf16 %v5732, %v5730
      %v5771 = vpack.c.bf16 %v5733, %v5731
      %v5772 = vpack.c.bf16 %v5736, %v5734
      %v5773 = vpack.c.bf16 %v5737, %v5735
      %v5774 = vpack.c.bf16 %v5740, %v5738
      %v5775 = vpack.c.bf16 %v5741, %v5739
      %v5776 = vpack.c.bf16 %v5744, %v5742
      %v5777 = vpack.c.bf16 %v5745, %v5743
      %v5778 = vld [vmem:[%s9] sm:$0xf]
      %v5779 = vld [vmem:[%s9 + $0x4] sm:$0xf]
      %v5780 = vld [vmem:[%s9 + $0x8] sm:$0xf]
      %v5781 = vld [vmem:[%s9 + $0xc] sm:$0xf]
      %v5782 = vld [vmem:[%s9 + $0x10] sm:$0xf]
      %v5783 = vld [vmem:[%s9 + $0x14] sm:$0xf]
      %v5784 = vld [vmem:[%s9 + $0x18] sm:$0xf]
      %v5785 = vld [vmem:[%s9 + $0x1c] sm:$0xf]
      %v5786 = vld [vmem:[%s9 + $0x20] sm:$0xf]
      %v5787 = vld [vmem:[%s9 + $0x24] sm:$0xf]
      %v5788 = vld [vmem:[%s9 + $0x28] sm:$0xf]
      %v5789 = vld [vmem:[%s9 + $0x2c] sm:$0xf]
      %v5790 = vld [vmem:[%s9 + $0x30] sm:$0xf]
      %v5791 = vld [vmem:[%s9 + $0x34] sm:$0xf]
      %v5792 = vld [vmem:[%s9 + $0x38] sm:$0xf]
      %v5793 = vld [vmem:[%s9 + $0x3c] sm:$0xf]
      %v5794 = vld [vmem:[%s9 + $0x40] sm:$0xf]
      %v5795 = vld [vmem:[%s9 + $0x44] sm:$0xf]
      %v5796 = vld [vmem:[%s10] sm:$0x1]
      %v5798 = vlaneseq
      %v5799 = vshrl.u32 %v5798, 7
      %v5800 = vsub.s32 0, %v5799
      %v5801 = vrot.slane %v5796, %v5800
      %v5821 = vunpack.c.l.b16 %v5778
      %v5822 = vunpack.c.l.b16 %v5779
      %v5823 = vunpack.c.l.b16 %v5780
      %v5824 = vunpack.c.l.b16 %v5781
      %v5825 = vunpack.c.l.b16 %v5782
      %v5826 = vunpack.c.l.b16 %v5783
      %v5827 = vunpack.c.l.b16 %v5784
      %v5828 = vunpack.c.l.b16 %v5785
      %v5829 = vunpack.c.l.b16 %v5786
      %v5830 = vunpack.c.l.b16 %v5787
      %v5831 = vunpack.c.l.b16 %v5788
      %v5832 = vunpack.c.l.b16 %v5789
      %v5833 = vunpack.c.l.b16 %v5790
      %v5834 = vunpack.c.l.b16 %v5791
      %v5835 = vunpack.c.l.b16 %v5792
      %v5836 = vunpack.c.l.b16 %v5793
      %v5837 = vunpack.c.l.b16 %v5794
      %v5838 = vunpack.c.l.b16 %v5795
      %v5839 = vpack.c.b16 %v5822, %v5821
      %v5840 = vpack.c.b16 %v5824, %v5823
      %v5841 = vpack.c.b16 %v5826, %v5825
      %v5842 = vpack.c.b16 %v5828, %v5827
      %v5843 = vpack.c.b16 %v5830, %v5829
      %v5844 = vpack.c.b16 %v5832, %v5831
      %v5845 = vpack.c.b16 %v5834, %v5833
      %v5846 = vpack.c.b16 %v5836, %v5835
      %v5847 = vpack.c.b16 %v5838, %v5837
      %v5858 = vsel %vm844, %v5747, 0
      %v5861 = vsel %vm844, %v5749, 0
      %v5864 = vsel %vm844, %v5751, 0
      %v5867 = vsel %vm844, %v5753, 0
      %v5870 = vsel %vm844, %v5755, 0
      %v5873 = vsel %vm844, %v5757, 0
      %v5876 = vsel %vm844, %v5759, 0
      %v5879 = vsel %vm844, %v5761, 0
      %v5882 = vsel %vm844, %v5763, 0
      %v5885 = vsel %vm844, %v5765, 0
      %v5888 = vsel %vm844, %v5767, 0
      %v5891 = vsel %vm844, %v5769, 0
      %v5894 = vsel %vm844, %v5771, 0
      %v5897 = vsel %vm844, %v5773, 0
      %v5900 = vsel %vm844, %v5775, 0
      %v5903 = vsel %vm844, %v5777, 0
      %5905 = vmatprep.subr.bf16.mxu0 0
      %5906 = vmatpush1.bf16.msra.mxu0 %v5839
      %5907 = vmatprep.subr.bf16.mxu0 0
      %5908 = vmatpush1.bf16.msra.mxu0 %v5840
      %5909 = vmatprep.subr.bf16.mxu0 0
      %5910 = vmatpush1.bf16.msra.mxu0 %v5841
      %5911 = vmatprep.subr.bf16.mxu0 0
      %5912 = vmatpush1.bf16.msra.mxu0 %v5842
      %5913 = vmatprep.subr.bf16.mxu0 0
      %5914 = vmatpush1.bf16.msra.mxu0 %v5843
      %5915 = vmatprep.subr.bf16.mxu0 0
      %5916 = vmatpush1.bf16.msra.mxu0 %v5844
      %5917 = vmatprep.subr.bf16.mxu0 0
      %5918 = vmatpush1.bf16.msra.mxu0 %v5845
      %5919 = vmatprep.subr.bf16.mxu0 0
      %5920 = vmatpush1.bf16.msra.mxu0 %v5846
      %5921 = vmatprep.subr.bf16.mxu0 0
      %5922 = vmatpush1.bf16.msra.mxu0 %v5847
      %5923 = vmatprep.subr.bf16.mxu0 0
      %5924 = vmatpush1.bf16.msra.mxu0 0
      %5925 = vmatprep.subr.bf16.mxu0 0
      %5926 = vmatpush1.bf16.msra.mxu0 0
      %5927 = vmatprep.subr.bf16.mxu0 0
      %5928 = vmatpush1.bf16.msra.mxu0 0
      %5929 = vmatprep.subr.bf16.mxu0 0
      %5930 = vmatpush1.bf16.msra.mxu0 0
      %5931 = vmatprep.subr.bf16.mxu0 0
      %5932 = vmatpush1.bf16.msra.mxu0 0
      %5933 = vmatprep.subr.bf16.mxu0 0
      %5934 = vmatpush1.bf16.msra.mxu0 0
      %5935 = vmatprep.subr.bf16.mxu0 0
      %5936 = vmatpush1.bf16.msra.mxu0 0
      %5937 = vmatprep.mubr.bf16.mxu0 %v5858
      %5938 = vmatmul.mubr.bf16.gmra.mrb[0].mxu0 %v5746
      %v5939 = vpop.f32.mrb[0].mxu0
      %v5940 = vadd.f32 %v5801, %v5939
      %v5941 = vpop.f32.mrb[0].mxu0
      %v5942 = vpop.f32.mrb[0].mxu0
      %v5943 = vadd.f32 %v5801, %v5942
      %v5944 = vpop.f32.mrb[0].mxu0
      %5945 = vmatprep.mubr.bf16.mxu0 %v5861
      %5946 = vmatmul.mubr.bf16.gmra.mrb[0].mxu0 %v5748
      %v5947 = vpop.f32.mrb[0].mxu0
      %v5948 = vadd.f32 %v5801, %v5947
      %v5949 = vpop.f32.mrb[0].mxu0
      %v5950 = vpop.f32.mrb[0].mxu0
      %v5951 = vadd.f32 %v5801, %v5950
      %v5952 = vpop.f32.mrb[0].mxu0
      %5953 = vmatprep.mubr.bf16.mxu0 %v5864
      %5954 = vmatmul.mubr.bf16.gmra.mrb[0].mxu0 %v5750
      %v5955 = vpop.f32.mrb[0].mxu0
      %v5956 = vadd.f32 %v5801, %v5955
      %v5957 = vpop.f32.mrb[0].mxu0
      %v5958 = vpop.f32.mrb[0].mxu0
      %v5959 = vadd.f32 %v5801, %v5958
      %v5960 = vpop.f32.mrb[0].mxu0
      %5961 = vmatprep.mubr.bf16.mxu0 %v5867
      %5962 = vmatmul.mubr.bf16.gmra.mrb[0].mxu0 %v5752
      %v5963 = vpop.f32.mrb[0].mxu0
      %v5964 = vadd.f32 %v5801, %v5963
      %v5965 = vpop.f32.mrb[0].mxu0
      %v5966 = vpop.f32.mrb[0].mxu0
      %v5967 = vadd.f32 %v5801, %v5966
      %v5968 = vpop.f32.mrb[0].mxu0
      %5969 = vmatprep.mubr.bf16.mxu0 %v5870
      %5970 = vmatmul.mubr.bf16.gmra.mrb[0].mxu0 %v5754
      %v5971 = vpop.f32.mrb[0].mxu0
      %v5972 = vadd.f32 %v5801, %v5971
      %v5973 = vpop.f32.mrb[0].mxu0
      %v5974 = vpop.f32.mrb[0].mxu0
      %v5975 = vadd.f32 %v5801, %v5974
      %v5976 = vpop.f32.mrb[0].mxu0
      %5977 = vmatprep.mubr.bf16.mxu0 %v5873
      %5978 = vmatmul.mubr.bf16.gmra.mrb[0].mxu0 %v5756
      %v5979 = vpop.f32.mrb[0].mxu0
      %v5980 = vadd.f32 %v5801, %v5979
      %v5981 = vpop.f32.mrb[0].mxu0
      %v5982 = vpop.f32.mrb[0].mxu0
      %v5983 = vadd.f32 %v5801, %v5982
      %v5984 = vpop.f32.mrb[0].mxu0
      %5985 = vmatprep.mubr.bf16.mxu0 %v5876
      %5986 = vmatmul.mubr.bf16.gmra.mrb[0].mxu0 %v5758
      %v5987 = vpop.f32.mrb[0].mxu0
      %v5988 = vadd.f32 %v5801, %v5987
      %v5989 = vpop.f32.mrb[0].mxu0
      %v5990 = vpop.f32.mrb[0].mxu0
      %v5991 = vadd.f32 %v5801, %v5990
      %v5992 = vpop.f32.mrb[0].mxu0
      %5993 = vmatprep.mubr.bf16.mxu0 %v5879
      %5994 = vmatmul.mubr.bf16.gmra.mrb[0].mxu0 %v5760
      %v5995 = vpop.f32.mrb[0].mxu0
      %v5996 = vadd.f32 %v5801, %v5995
      %v5997 = vpop.f32.mrb[0].mxu0
      %v5998 = vpop.f32.mrb[0].mxu0
      %v5999 = vadd.f32 %v5801, %v5998
      %v6000 = vpop.f32.mrb[0].mxu0
      %6001 = vmatprep.mubr.bf16.mxu0 %v5882
      %6002 = vmatmul.mubr.bf16.gmra.mrb[0].mxu0 %v5762
      %v6003 = vpop.f32.mrb[0].mxu0
      %v6004 = vadd.f32 %v5801, %v6003
      %v6005 = vpop.f32.mrb[0].mxu0
      %v6006 = vpop.f32.mrb[0].mxu0
      %v6007 = vadd.f32 %v5801, %v6006
      %v6008 = vpop.f32.mrb[0].mxu0
      %6009 = vmatprep.mubr.bf16.mxu0 %v5885
      %6010 = vmatmul.mubr.bf16.gmra.mrb[0].mxu0 %v5764
      %v6011 = vpop.f32.mrb[0].mxu0
      %v6012 = vadd.f32 %v5801, %v6011
      %v6013 = vpop.f32.mrb[0].mxu0
      %v6014 = vpop.f32.mrb[0].mxu0
      %v6015 = vadd.f32 %v5801, %v6014
      %v6016 = vpop.f32.mrb[0].mxu0
      %6017 = vmatprep.mubr.bf16.mxu0 %v5888
      %6018 = vmatmul.mubr.bf16.gmra.mrb[0].mxu0 %v5766
      %v6019 = vpop.f32.mrb[0].mxu0
      %v6020 = vadd.f32 %v5801, %v6019
      %v6021 = vpop.f32.mrb[0].mxu0
      %v6022 = vpop.f32.mrb[0].mxu0
      %v6023 = vadd.f32 %v5801, %v6022
      %v6024 = vpop.f32.mrb[0].mxu0
      %6025 = vmatprep.mubr.bf16.mxu0 %v5891
      %6026 = vmatmul.mubr.bf16.gmra.mrb[0].mxu0 %v5768
      %v6027 = vpop.f32.mrb[0].mxu0
      %v6028 = vadd.f32 %v5801, %v6027
      %v6029 = vpop.f32.mrb[0].mxu0
      %v6030 = vpop.f32.mrb[0].mxu0
      %v6031 = vadd.f32 %v5801, %v6030
      %v6032 = vpop.f32.mrb[0].mxu0
      %6033 = vmatprep.mubr.bf16.mxu0 %v5894
      %6034 = vmatmul.mubr.bf16.gmra.mrb[0].mxu0 %v5770
      %v6035 = vpop.f32.mrb[0].mxu0
      %v6036 = vadd.f32 %v5801, %v6035
      %v6037 = vpop.f32.mrb[0].mxu0
      %v6038 = vpop.f32.mrb[0].mxu0
      %v6039 = vadd.f32 %v5801, %v6038
      %v6040 = vpop.f32.mrb[0].mxu0
      %6041 = vmatprep.mubr.bf16.mxu0 %v5897
      %6042 = vmatmul.mubr.bf16.gmra.mrb[0].mxu0 %v5772
      %v6043 = vpop.f32.mrb[0].mxu0
      %v6044 = vadd.f32 %v5801, %v6043
      %v6045 = vpop.f32.mrb[0].mxu0
      %v6046 = vpop.f32.mrb[0].mxu0
      %v6047 = vadd.f32 %v5801, %v6046
      %v6048 = vpop.f32.mrb[0].mxu0
      %6049 = vmatprep.mubr.bf16.mxu0 %v5900
      %6050 = vmatmul.mubr.bf16.gmra.mrb[0].mxu0 %v5774
      %v6051 = vpop.f32.mrb[0].mxu0
      %v6052 = vadd.f32 %v5801, %v6051
      %v6053 = vpop.f32.mrb[0].mxu0
      %v6054 = vpop.f32.mrb[0].mxu0
      %v6055 = vadd.f32 %v5801, %v6054
      %v6056 = vpop.f32.mrb[0].mxu0
      %6057 = vmatprep.mubr.bf16.mxu0 %v5903
      %6058 = vmatmul.mubr.bf16.gmra.mrb[0].mxu0 %v5776
      %v6059 = vpop.f32.mrb[0].mxu0
      %v6060 = vadd.f32 %v5801, %v6059
      %v6061 = vpop.f32.mrb[0].mxu0
      %v6062 = vpop.f32.mrb[0].mxu0
      %v6063 = vadd.f32 %v5801, %v6062
      %v6064 = vpop.f32.mrb[0].mxu0
      %6065 = vdwg.mxu0
      %v6066 = vunpack.c.l.bf16 %v388
      %v6067 = vunpack.c.l.bf16 %v389
      %v6068 = vunpack.c.l.bf16 %v390
      %v6069 = vunpack.c.l.bf16 %v391
      %v6070 = vunpack.c.l.bf16 %v392
      %v6071 = vunpack.c.l.bf16 %v393
      %v6072 = vunpack.c.l.bf16 %v394
      %v6073 = vunpack.c.l.bf16 %v395
      %v6074 = vunpack.c.l.bf16 %v396
      %v6075 = vunpack.c.l.bf16 %v397
      %v6076 = vunpack.c.l.bf16 %v398
      %v6077 = vunpack.c.l.bf16 %v399
      %v6078 = vunpack.c.l.bf16 %v400
      %v6079 = vunpack.c.l.bf16 %v401
      %v6080 = vunpack.c.l.bf16 %v402
      %v6081 = vunpack.c.l.bf16 %v403
      %v6082 = vunpack.c.l.bf16 %v404
      %v6083 = vunpack.c.l.bf16 %v405
      %v6084 = vunpack.c.l.bf16 %v406
      %v6085 = vunpack.c.l.bf16 %v407
      %v6086 = vunpack.c.l.bf16 %v408
      %v6087 = vunpack.c.l.bf16 %v409
      %v6088 = vunpack.c.l.bf16 %v410
      %v6089 = vunpack.c.l.bf16 %v411
      %v6090 = vunpack.c.l.bf16 %v412
      %v6091 = vunpack.c.l.bf16 %v413
      %v6092 = vunpack.c.l.bf16 %v414
      %v6093 = vunpack.c.l.bf16 %v415
      %v6094 = vunpack.c.l.bf16 %v416
      %v6095 = vunpack.c.l.bf16 %v417
      %v6096 = vunpack.c.l.bf16 %v418
      %v6097 = vunpack.c.l.bf16 %v419
      %v6098 = vadd.f32 %v5940, %v6066
      %v6099 = vadd.f32 %v5943, %v6067
      %v6100 = vadd.f32 %v5948, %v6068
      %v6101 = vadd.f32 %v5951, %v6069
      %v6102 = vadd.f32 %v5956, %v6070
      %v6103 = vadd.f32 %v5959, %v6071
      %v6104 = vadd.f32 %v5964, %v6072
      %v6105 = vadd.f32 %v5967, %v6073
      %v6106 = vadd.f32 %v5972, %v6074
      %v6107 = vadd.f32 %v5975, %v6075
      %v6108 = vadd.f32 %v5980, %v6076
      %v6109 = vadd.f32 %v5983, %v6077
      %v6110 = vadd.f32 %v5988, %v6078
      %v6111 = vadd.f32 %v5991, %v6079
      %v6112 = vadd.f32 %v5996, %v6080
      %v6113 = vadd.f32 %v5999, %v6081
      %v6114 = vadd.f32 %v6004, %v6082
      %v6115 = vadd.f32 %v6007, %v6083
      %v6116 = vadd.f32 %v6012, %v6084
      %v6117 = vadd.f32 %v6015, %v6085
      %v6118 = vadd.f32 %v6020, %v6086
      %v6119 = vadd.f32 %v6023, %v6087
      %v6120 = vadd.f32 %v6028, %v6088
      %v6121 = vadd.f32 %v6031, %v6089
      %v6122 = vadd.f32 %v6036, %v6090
      %v6123 = vadd.f32 %v6039, %v6091
      %v6124 = vadd.f32 %v6044, %v6092
      %v6125 = vadd.f32 %v6047, %v6093
      %v6126 = vadd.f32 %v6052, %v6094
      %v6127 = vadd.f32 %v6055, %v6095
      %v6128 = vadd.f32 %v6060, %v6096
      %v6129 = vadd.f32 %v6063, %v6097
      %v6130 = vpack.c.bf16 %v6099, %v6098
      %v6131 = vpack.c.bf16 %v6101, %v6100
      %v6132 = vpack.c.bf16 %v6103, %v6102
      %v6133 = vpack.c.bf16 %v6105, %v6104
      %v6134 = vpack.c.bf16 %v6107, %v6106
      %v6135 = vpack.c.bf16 %v6109, %v6108
      %v6136 = vpack.c.bf16 %v6111, %v6110
      %v6137 = vpack.c.bf16 %v6113, %v6112
      %v6138 = vpack.c.bf16 %v6115, %v6114
      %v6139 = vpack.c.bf16 %v6117, %v6116
      %v6140 = vpack.c.bf16 %v6119, %v6118
      %v6141 = vpack.c.bf16 %v6121, %v6120
      %v6142 = vpack.c.bf16 %v6123, %v6122
      %v6143 = vpack.c.bf16 %v6125, %v6124
      %v6144 = vpack.c.bf16 %v6127, %v6126
      %v6145 = vpack.c.bf16 %v6129, %v6128
      %v6162 = vunpack.c.l.b16 %v6130
      %v6163 = vunpack.c.h.b16 %v6130
      %v6164 = vunpack.c.l.b16 %v6131
      %v6165 = vunpack.c.h.b16 %v6131
      %v6166 = vunpack.c.l.b16 %v6132
      %v6167 = vunpack.c.h.b16 %v6132
      %v6168 = vunpack.c.l.b16 %v6133
      %v6169 = vunpack.c.h.b16 %v6133
      %v6170 = vunpack.c.l.b16 %v6134
      %v6171 = vunpack.c.h.b16 %v6134
      %v6172 = vunpack.c.l.b16 %v6135
      %v6173 = vunpack.c.h.b16 %v6135
      %v6174 = vunpack.c.l.b16 %v6136
      %v6175 = vunpack.c.h.b16 %v6136
      %v6176 = vunpack.c.l.b16 %v6137
      %v6177 = vunpack.c.h.b16 %v6137
      %v6178 = vunpack.c.l.b16 %v6138
      %v6179 = vunpack.c.h.b16 %v6138
      %v6180 = vunpack.c.l.b16 %v6139
      %v6181 = vunpack.c.h.b16 %v6139
      %v6182 = vunpack.c.l.b16 %v6140
      %v6183 = vunpack.c.h.b16 %v6140
      %v6184 = vunpack.c.l.b16 %v6141
      %v6185 = vunpack.c.h.b16 %v6141
      %v6186 = vunpack.c.l.b16 %v6142
      %v6187 = vunpack.c.h.b16 %v6142
      %v6188 = vunpack.c.l.b16 %v6143
      %v6189 = vunpack.c.h.b16 %v6143
      %v6190 = vunpack.c.l.b16 %v6144
      %v6191 = vunpack.c.h.b16 %v6144
      %v6192 = vunpack.c.l.b16 %v6145
      %v6193 = vunpack.c.h.b16 %v6145
      %v6194 = vpack.c.b16 %v6162, %v6162
      %v6195 = vpack.c.b16 %v6163, %v6163
      %v6196 = vpack.c.b16 %v6164, %v6164
      %v6197 = vpack.c.b16 %v6165, %v6165
      %v6198 = vpack.c.b16 %v6166, %v6166
      %v6199 = vpack.c.b16 %v6167, %v6167
      %v6200 = vpack.c.b16 %v6168, %v6168
      %v6201 = vpack.c.b16 %v6169, %v6169
      %v6202 = vpack.c.b16 %v6170, %v6170
      %v6203 = vpack.c.b16 %v6171, %v6171
      %v6204 = vpack.c.b16 %v6172, %v6172
      %v6205 = vpack.c.b16 %v6173, %v6173
      %v6206 = vpack.c.b16 %v6174, %v6174
      %v6207 = vpack.c.b16 %v6175, %v6175
      %v6208 = vpack.c.b16 %v6176, %v6176
      %v6209 = vpack.c.b16 %v6177, %v6177
      %v6210 = vpack.c.b16 %v6178, %v6178
      %v6211 = vpack.c.b16 %v6179, %v6179
      %v6212 = vpack.c.b16 %v6180, %v6180
      %v6213 = vpack.c.b16 %v6181, %v6181
      %v6214 = vpack.c.b16 %v6182, %v6182
      %v6215 = vpack.c.b16 %v6183, %v6183
      %v6216 = vpack.c.b16 %v6184, %v6184
      %v6217 = vpack.c.b16 %v6185, %v6185
      %v6218 = vpack.c.b16 %v6186, %v6186
      %v6219 = vpack.c.b16 %v6187, %v6187
      %v6220 = vpack.c.b16 %v6188, %v6188
      %v6221 = vpack.c.b16 %v6189, %v6189
      %v6222 = vpack.c.b16 %v6190, %v6190
      %v6223 = vpack.c.b16 %v6191, %v6191
      %v6224 = vpack.c.b16 %v6192, %v6192
      %v6225 = vpack.c.b16 %v6193, %v6193
      %vm6258 = vcmask 191488
      %6259 = vst.msk [vmem:[%s386] sm:$0xf] %vm6258, %v6194
      %6260 = vst.msk [vmem:[%s386 + $0x4] sm:$0xf] %vm6258, %v6195
      %6261 = vst.msk [vmem:[%s386 + $0x8] sm:$0xf] %vm6258, %v6196
      %6262 = vst.msk [vmem:[%s386 + $0xc] sm:$0xf] %vm6258, %v6197
      %6263 = vst.msk [vmem:[%s386 + $0x10] sm:$0xf] %vm6258, %v6198
      %6264 = vst.msk [vmem:[%s386 + $0x14] sm:$0xf] %vm6258, %v6199
      %6265 = vst.msk [vmem:[%s386 + $0x18] sm:$0xf] %vm6258, %v6200
      %6266 = vst.msk [vmem:[%s386 + $0x1c] sm:$0xf] %vm6258, %v6201
      %6267 = vst.msk [vmem:[%s386 + $0x20] sm:$0xf] %vm6258, %v6202
      %6268 = vst.msk [vmem:[%s386 + $0x24] sm:$0xf] %vm6258, %v6203
      %6269 = vst.msk [vmem:[%s386 + $0x28] sm:$0xf] %vm6258, %v6204
      %6270 = vst.msk [vmem:[%s386 + $0x2c] sm:$0xf] %vm6258, %v6205
      %6271 = vst.msk [vmem:[%s386 + $0x30] sm:$0xf] %vm6258, %v6206
      %6272 = vst.msk [vmem:[%s386 + $0x34] sm:$0xf] %vm6258, %v6207
      %6273 = vst.msk [vmem:[%s386 + $0x38] sm:$0xf] %vm6258, %v6208
      %6274 = vst.msk [vmem:[%s386 + $0x3c] sm:$0xf] %vm6258, %v6209
      %6275 = vst.msk [vmem:[%s386 + $0x40] sm:$0xf] %vm6258, %v6210
      %6276 = vst.msk [vmem:[%s386 + $0x44] sm:$0xf] %vm6258, %v6211
      %6277 = vst.msk [vmem:[%s386 + $0x48] sm:$0xf] %vm6258, %v6212
      %6278 = vst.msk [vmem:[%s386 + $0x4c] sm:$0xf] %vm6258, %v6213
      %6279 = vst.msk [vmem:[%s386 + $0x50] sm:$0xf] %vm6258, %v6214
      %6280 = vst.msk [vmem:[%s386 + $0x54] sm:$0xf] %vm6258, %v6215
      %6281 = vst.msk [vmem:[%s386 + $0x58] sm:$0xf] %vm6258, %v6216
      %6282 = vst.msk [vmem:[%s386 + $0x5c] sm:$0xf] %vm6258, %v6217
      %6283 = vst.msk [vmem:[%s386 + $0x60] sm:$0xf] %vm6258, %v6218
      %6284 = vst.msk [vmem:[%s386 + $0x64] sm:$0xf] %vm6258, %v6219
      %6285 = vst.msk [vmem:[%s386 + $0x68] sm:$0xf] %vm6258, %v6220
      %6286 = vst.msk [vmem:[%s386 + $0x6c] sm:$0xf] %vm6258, %v6221
      %6287 = vst.msk [vmem:[%s386 + $0x70] sm:$0xf] %vm6258, %v6222
      %6288 = vst.msk [vmem:[%s386 + $0x74] sm:$0xf] %vm6258, %v6223
      %6289 = vst.msk [vmem:[%s386 + $0x78] sm:$0xf] %vm6258, %v6224
      %6290 = vst.msk [vmem:[%s386 + $0x7c] sm:$0xf] %vm6258, %v6225
      %p6291 = scmp.lt.s32.totalorder %s22, 1
      %s6292 = scalar_select %p6291, %s22, 1
      %s6293 = smul.addr %s6292, 32
      %s6294 = smul.addr %s6293, 4
      %s6295 = scalar_lea.vmem %s11, %s6294
      // Predicated region
      $region65: #{mbconv_stage_forward.2} parent=63 // pred_check
        %p6296 = pneg %p276
      $region66: #{mbconv_stage_forward.2} parent=63 // pred_check_branch
        %6298 = sbr.rel (%p6296) target = $region68
      $region67: #{mbconv_stage_forward.2} parent=63 // pred_region
        _
      $region68: #{mbconv_stage_forward.2} parent=63 // pred_fallthru
        _
    $region64: #{mbconv_stage_forward.2} parent=5 // pred_fallthru
      _
    %p6299 = scmp.le.s32.totalorder 2, %s17
    // Predicated region
    $region69: #{mbconv_stage_forward.2} parent=5 // pred_check
      %p6300 = pneg %p6299
    $region70: #{mbconv_stage_forward.2} parent=5 // pred_check_branch
      %6302 = sbr.rel (%p6300) target = $region72
    $region71: #{mbconv_stage_forward.2} parent=5 // pred_region
      %s6303 = ssub.s32 %s17, 2
      // Predicated region
      $region73: #{mbconv_stage_forward.2} parent=71 // pred_check
        %p6304 = pneg %p282
      $region74: #{mbconv_stage_forward.2} parent=71 // pred_check_branch
        %6306 = sbr.rel (%p6304) target = $region76
      $region75: #{mbconv_stage_forward.2} parent=71 // pred_region
        %p6307 = scmp.lt.s32.totalorder %s23, 1
        %s6308 = scalar_select %p6307, %s23, 1
        %s6309 = smul.addr %s6308, 32
        %s6310 = smul.addr %s6309, 4
        %s6311 = scalar_lea.vmem %s11, %s6310
      $region76: #{mbconv_stage_forward.2} parent=71 // pred_fallthru
        _
    $region72: #{mbconv_stage_forward.2} parent=5 // pred_fallthru
      _
  $region6: #{mbconv_stage_forward.2} parent=0 // loop_footer
    %s21 = sadd.s32 1, %s17
  $region7: #{mbconv_stage_forward.2} parent=0 // loop_footer_branch
    %16 = sbr.rel target = $region3
  $region8: #{mbconv_stage_forward.2} parent=0 // loop_exit
    _

</llo_original>
